<compile_context>
chip_gen: v6e
topology: v6e:2x2x1
jax: 0.10.0
libtpu: 0.0.40
codegen_flags: <defaults>
</compile_context>

<pallas_src>
import math

import jax
import jax.numpy as jnp
from jax.experimental import pallas as pl
from jax.experimental.pallas import tpu as pltpu

EMBED_DIM = 32
NUM_HEADS = 4
HEAD_DIM = EMBED_DIM // NUM_HEADS
HALF = HEAD_DIM // 2
LN_EPS = 1e-5
NEG_INF = -1e30


def _layer_norm(x_f32, weight_f32, bias_f32=None, eps=LN_EPS):
    """LayerNorm over the last axis, computed in f32."""
    mean = jnp.mean(x_f32, axis=-1, keepdims=True)
    var = jnp.mean((x_f32 - mean) ** 2, axis=-1, keepdims=True)
    y = (x_f32 - mean) * jax.lax.rsqrt(var + eps)
    y = y * weight_f32
    if bias_f32 is not None:
        y = y + bias_f32
    return y


def _apply_rope(x, cos, sin_lo, sin_hi):
    """x*cos + rotate_half(x)*sin on a packed (N, H*D) slab in one shot.

    rotate_half is realized as two +-HALF lane shifts over the whole slab; the
    per-head wrap-around garbage and the rotate-half sign are both folded into
    the precomputed sin_lo / sin_hi tables (zeroed / negated entries)."""
    shl = jnp.concatenate([x[:, HALF:], x[:, :HALF]], axis=-1)    # x[c + HALF]
    shr = jnp.concatenate([x[:, -HALF:], x[:, :-HALF]], axis=-1)  # x[c - HALF]
    return x * cos + shl * sin_lo + shr * sin_hi


def mha_kernel(segq_ref, segk_ref, xq_ref, xk_ref,
               cosq_ref, sinloq_ref, sinhiq_ref,
               cosk_ref, sinlok_ref, sinhik_ref,
               normw_ref, normb_ref, wq_ref, wkv_ref,
               lnqw_ref, lnkw_ref, wo_ref,
               out_ref,
               q_scr, m_scr, l_scr, acc_scr):
    H, D, E = NUM_HEADS, HEAD_DIM, EMBED_DIM
    j = pl.program_id(1)
    nk = pl.num_programs(1)

    norm_w = normw_ref[...].astype(jnp.float32)
    norm_b = normb_ref[...].astype(jnp.float32)

    # ---- once per q block: LN -> Q projection -> LN -> rotary -> scale -----
    @pl.when(j == 0)
    def _init():
        xn = _layer_norm(xq_ref[...].astype(jnp.float32), norm_w, norm_b)
        q = jnp.dot(xn.astype(jnp.bfloat16), wq_ref[...],
                    preferred_element_type=jnp.float32)
        q = _layer_norm(q, lnqw_ref[...].astype(jnp.float32))
        q = _apply_rope(q, cosq_ref[...], sinloq_ref[...], sinhiq_ref[...])
        q_scr[...] = (q * (1.0 / math.sqrt(D))).astype(jnp.bfloat16)
        m_scr[...] = jnp.full_like(m_scr, -jnp.inf)
        l_scr[...] = jnp.zeros_like(l_scr)
        acc_scr[...] = jnp.zeros_like(acc_scr)

    # ---- K / V for this kv block (recomputed per q block; E=32 is cheap) ---
    xnk = _layer_norm(xk_ref[...].astype(jnp.float32), norm_w, norm_b)
    kv = jnp.dot(xnk.astype(jnp.bfloat16), wkv_ref[...],
                 preferred_element_type=jnp.float32)             # (bk, 2E) f32
    k = _layer_norm(kv[:, :E], lnkw_ref[...].astype(jnp.float32))
    k = _apply_rope(k, cosk_ref[...], sinlok_ref[...], sinhik_ref[...])
    k = k.astype(jnp.bfloat16)
    v = kv[:, E:].astype(jnp.bfloat16)

    # same-sequence (varlen, non-causal) mask from segment ids: (bq,1)==(1,bk)
    mask = segq_ref[...] == segk_ref[...]                        # (bq, bk) bool

    q = q_scr[...]                                               # (bq, E) bf16

    # ---- per-head online-softmax attention (static unroll over 4 heads) ----
    for h in range(H):
        sl = slice(h * D, (h + 1) * D)
        s = jax.lax.dot_general(q[:, sl], k[:, sl],
                                (((1,), (1,)), ((), ())),
                                preferred_element_type=jnp.float32)  # (bq, bk)
        s = jnp.where(mask, s, NEG_INF)
        m_prev = m_scr[:, h:h + 1]
        m_new = jnp.maximum(m_prev, jnp.max(s, axis=-1, keepdims=True))
        alpha = jnp.exp(m_prev - m_new)
        p = jnp.exp(s - m_new)
        l_scr[:, h:h + 1] = alpha * l_scr[:, h:h + 1] + jnp.sum(
            p, axis=-1, keepdims=True)
        acc_scr[:, sl] = alpha * acc_scr[:, sl] + jnp.dot(
            p.astype(jnp.bfloat16), v[:, sl],
            preferred_element_type=jnp.float32)
        m_scr[:, h:h + 1] = m_new

    # ---- last kv block: normalize + output projection -----------------------
    @pl.when(j == nk - 1)
    def _finalize():
        for h in range(H):
            sl = slice(h * D, (h + 1) * D)
            acc_scr[:, sl] = acc_scr[:, sl] * pl.reciprocal(
                l_scr[:, h:h + 1], approx=True)
        out = jnp.dot(acc_scr[...].astype(jnp.bfloat16), wo_ref[...],
                      preferred_element_type=jnp.float32)
        out_ref[...] = out.astype(out_ref.dtype)


def flash_mha_forward(x, params, cu_lens, max_len, *, block_q=256, block_k=256):
    """Glue: segment ids, rotary tables, fused/pre-transposed weights, pallas_call."""
    del max_len  # packed layout: boundaries handled via segment ids
    T, E = x.shape
    assert E == EMBED_DIM
    assert block_q % 8 == 0 and block_k % 128 == 0
    H, D = NUM_HEADS, HEAD_DIM

    lcm = math.lcm(block_q, block_k)
    Tp = pl.cdiv(T, lcm) * lcm
    pad = Tp - T

    # segment ids + per-sequence positions (reset at every boundary)
    cu = jnp.asarray(cu_lens, jnp.int32)
    tok = jnp.arange(T, dtype=jnp.int32)
    seg = jnp.sum(tok[:, None] >= cu[None, 1:-1], axis=-1).astype(jnp.int32)
    pos = (tok - cu[seg]).astype(jnp.float32)

    xp = jnp.pad(x.astype(jnp.bfloat16), ((0, pad), (0, 0)))
    segp = jnp.pad(seg, (0, pad), constant_values=-1)  # pads only attend to pads
    posp = jnp.pad(pos, (0, pad))

    # rotary tables tiled to (Tp, E); rotate-half sign / head-wrap folded in
    inv_freq = 1.0 / (10000.0 ** (jnp.arange(0, D, 2, dtype=jnp.float32) / D))
    col = jnp.arange(E, dtype=jnp.int32)
    m_idx = col % D                                  # head-local dim index
    freq_row = inv_freq[m_idx % (D // 2)]            # (E,)
    ang = posp[:, None] * freq_row[None, :]          # (Tp, E)
    cos_t = jnp.cos(ang)
    sin_t = jnp.sin(ang)
    lo = (m_idx < (D // 2))[None, :]
    sin_lo = jnp.where(lo, -sin_t, 0.0)
    sin_hi = jnp.where(lo, 0.0, sin_t)

    seg_col = segp[:, None]                          # (Tp, 1)
    seg_row = segp[None, :]                          # (1, Tp)

    # fused / pre-transposed weights (host side, once)
    w_q_t = params["wq"].T                                              # (E, E)
    w_kv_t = jnp.concatenate([params["wk"].T, params["wv"].T], axis=1)  # (E, 2E)
    w_o_t = params["wo"].T                                              # (E, E)

    nq, nk = Tp // block_q, Tp // block_k

    qmap = lambda i, j: (i, 0)
    kmap = lambda i, j: (j, 0)
    krow = lambda i, j: (0, j)
    wmap = lambda i, j: (0, 0)

    grid_spec = pltpu.PrefetchScalarGridSpec(
        num_scalar_prefetch=0,
        grid=(nq, nk),
        in_specs=[
            pl.BlockSpec((block_q, 1), qmap),        # seg (q side)
            pl.BlockSpec((1, block_k), krow),        # seg (kv side)
            pl.BlockSpec((block_q, E), qmap),        # x   (q side)
            pl.BlockSpec((block_k, E), kmap),        # x   (kv side)
            pl.BlockSpec((block_q, E), qmap),        # cos    (q)
            pl.BlockSpec((block_q, E), qmap),        # sin_lo (q)
            pl.BlockSpec((block_q, E), qmap),        # sin_hi (q)
            pl.BlockSpec((block_k, E), kmap),        # cos    (k)
            pl.BlockSpec((block_k, E), kmap),        # sin_lo (k)
            pl.BlockSpec((block_k, E), kmap),        # sin_hi (k)
            pl.BlockSpec((1, E), wmap),              # norm_w
            pl.BlockSpec((1, E), wmap),              # norm_b
            pl.BlockSpec((E, E), wmap),              # Wq^T
            pl.BlockSpec((E, 2 * E), wmap),          # [Wk^T | Wv^T]
            pl.BlockSpec((1, E), wmap),              # lnq_w
            pl.BlockSpec((1, E), wmap),              # lnk_w
            pl.BlockSpec((E, E), wmap),              # Wo^T
        ],
        out_specs=pl.BlockSpec((block_q, E), qmap),
        scratch_shapes=[
            pltpu.VMEM((block_q, E), jnp.bfloat16),   # Q (post LN/rope/scale)
            pltpu.VMEM((block_q, H), jnp.float32),    # running max (per head)
            pltpu.VMEM((block_q, H), jnp.float32),    # running sum (per head)
            pltpu.VMEM((block_q, E), jnp.float32),    # output accumulator
        ],
    )

    out = pl.pallas_call(
        mha_kernel,
        out_shape=jax.ShapeDtypeStruct((Tp, E), jnp.bfloat16),
        grid_spec=grid_spec,
        compiler_params=pltpu.CompilerParams(
            dimension_semantics=("parallel", "arbitrary"),
            vmem_limit_bytes=32 * 1024 * 1024,
        ),
    )(seg_col, seg_row, xp, xp,
      cos_t, sin_lo, sin_hi, cos_t, sin_lo, sin_hi,
      params["norm_w"], params["norm_b"], w_q_t, w_kv_t,
      params["lnq_w"], params["lnk_w"], w_o_t)

    return out[:T]


def init_params(key, embed_dim):
    """Deterministic init: Xavier-uniform linears, unit layernorm weights."""
    ks = jax.random.split(key, 4)
    limit = math.sqrt(6.0 / (embed_dim + embed_dim))

    def xavier(k):
        w = jax.random.uniform(k, (embed_dim, embed_dim), jnp.float32,
                               -limit, limit)
        return w.astype(jnp.bfloat16)

    return {
        "norm_w": jnp.ones((1, embed_dim), jnp.bfloat16),
        "norm_b": jnp.zeros((1, embed_dim), jnp.bfloat16),
        "wq": xavier(ks[0]),
        "wk": xavier(ks[1]),
        "wv": xavier(ks[2]),
        "wo": xavier(ks[3]),
        "lnq_w": jnp.ones((1, embed_dim), jnp.bfloat16),
        "lnk_w": jnp.ones((1, embed_dim), jnp.bfloat16),
    }


if __name__ == "__main__":
    key = jax.random.PRNGKey(0)
    k_x, k_p = jax.random.split(key)

    # two packed sequences (lengths 100 and 120) -> T = 220 tokens; with
    # 128-token blocks this exercises a (2, 2) grid: init / online-softmax
    # accumulation / finalize, cross-block segments and tail padding.
    cu_lens = jnp.array([0, 100, 220], dtype=jnp.int32)
    max_len = 120
    T = 220

    x = jax.random.normal(k_x, (T, EMBED_DIM), jnp.float32).astype(jnp.bfloat16)
    params = init_params(k_p, EMBED_DIM)

    out = flash_mha_forward(x, params, cu_lens, max_len,
                            block_q=128, block_k=128)
    out = jax.block_until_ready(out)

    assert out.shape == (T, EMBED_DIM) and out.dtype == jnp.bfloat16
    assert bool(jnp.all(jnp.isfinite(out.astype(jnp.float32))))
    print("KERNEL_OK")
</pallas_src>

<mosaic_0001>
module attributes {stable_mosaic.version = 11 : i64} {
  func.func @mha_kernel(%arg0: i32, %arg1: i32, %arg2: memref<128x1xi32, #tpu.memory_space<vmem>>, %arg3: memref<1x128xi32, #tpu.memory_space<vmem>>, %arg4: memref<128x32xbf16, #tpu.memory_space<vmem>>, %arg5: memref<128x32xbf16, #tpu.memory_space<vmem>>, %arg6: memref<128x32xf32, #tpu.memory_space<vmem>>, %arg7: memref<128x32xf32, #tpu.memory_space<vmem>>, %arg8: memref<128x32xf32, #tpu.memory_space<vmem>>, %arg9: memref<128x32xf32, #tpu.memory_space<vmem>>, %arg10: memref<128x32xf32, #tpu.memory_space<vmem>>, %arg11: memref<128x32xf32, #tpu.memory_space<vmem>>, %arg12: memref<1x32xbf16, #tpu.memory_space<vmem>>, %arg13: memref<1x32xbf16, #tpu.memory_space<vmem>>, %arg14: memref<32x32xbf16, #tpu.memory_space<vmem>>, %arg15: memref<32x64xbf16, #tpu.memory_space<vmem>>, %arg16: memref<1x32xbf16, #tpu.memory_space<vmem>>, %arg17: memref<1x32xbf16, #tpu.memory_space<vmem>>, %arg18: memref<32x32xbf16, #tpu.memory_space<vmem>>, %arg19: memref<128x32xbf16, #tpu.memory_space<vmem>>, %arg20: memref<128x32xbf16, #tpu.memory_space<vmem>>, %arg21: memref<128x4xf32, #tpu.memory_space<vmem>>, %arg22: memref<128x4xf32, #tpu.memory_space<vmem>>, %arg23: memref<128x32xf32, #tpu.memory_space<vmem>>) attributes {dimension_semantics = [#tpu.dimension_semantics<parallel>, #tpu.dimension_semantics<arbitrary>], iteration_bounds = array<i64: 2, 2>, scalar_prefetch = 0 : i64, scratch_operands = 4 : i64, tpu.core_type = #tpu.core_type<tc>, window_params = [{transform_indices = @transform_0, window_bounds = array<i64: 128, 1>}, {transform_indices = @transform_1, window_bounds = array<i64: 1, 128>}, {transform_indices = @transform_2, window_bounds = array<i64: 128, 32>}, {transform_indices = @transform_3, window_bounds = array<i64: 128, 32>}, {transform_indices = @transform_4, window_bounds = array<i64: 128, 32>}, {transform_indices = @transform_5, window_bounds = array<i64: 128, 32>}, {transform_indices = @transform_6, window_bounds = array<i64: 128, 32>}, {transform_indices = @transform_7, window_bounds = array<i64: 128, 32>}, {transform_indices = @transform_8, window_bounds = array<i64: 128, 32>}, {transform_indices = @transform_9, window_bounds = array<i64: 128, 32>}, {pipeline_mode = #tpu.pipeline_mode<synchronous>, transform_indices = @transform_10, window_bounds = array<i64: 1, 32>}, {pipeline_mode = #tpu.pipeline_mode<synchronous>, transform_indices = @transform_11, window_bounds = array<i64: 1, 32>}, {pipeline_mode = #tpu.pipeline_mode<synchronous>, transform_indices = @transform_12, window_bounds = array<i64: 32, 32>}, {pipeline_mode = #tpu.pipeline_mode<synchronous>, transform_indices = @transform_13, window_bounds = array<i64: 32, 64>}, {pipeline_mode = #tpu.pipeline_mode<synchronous>, transform_indices = @transform_14, window_bounds = array<i64: 1, 32>}, {pipeline_mode = #tpu.pipeline_mode<synchronous>, transform_indices = @transform_15, window_bounds = array<i64: 1, 32>}, {pipeline_mode = #tpu.pipeline_mode<synchronous>, transform_indices = @transform_16, window_bounds = array<i64: 32, 32>}, {transform_indices = @transform_17, window_bounds = array<i64: 128, 32>}]} {
    %c0 = arith.constant 0 : index
    %c0_0 = arith.constant 0 : index
    %0 = vector.load %arg12[%c0, %c0_0] : memref<1x32xbf16, #tpu.memory_space<vmem>>, vector<1x32xbf16>
    %1 = arith.extf %0 : vector<1x32xbf16> to vector<1x32xf32>
    %c0_1 = arith.constant 0 : index
    %c0_2 = arith.constant 0 : index
    %2 = vector.load %arg13[%c0_1, %c0_2] : memref<1x32xbf16, #tpu.memory_space<vmem>>, vector<1x32xbf16>
    %3 = arith.extf %2 : vector<1x32xbf16> to vector<1x32xf32>
    %c0_i32 = arith.constant 0 : i32
    %4 = arith.cmpi eq, %arg1, %c0_i32 : i32
    %5 = arith.extui %4 : i1 to i32
    %c0_i32_3 = arith.constant 0 : i32
    %6 = arith.cmpi ne, %5, %c0_i32_3 : i32
    scf.if %6 {
      %c0_95 = arith.constant 0 : index
      %c0_96 = arith.constant 0 : index
      %199 = vector.load %arg4[%c0_95, %c0_96] : memref<128x32xbf16, #tpu.memory_space<vmem>>, vector<128x32xbf16>
      %200 = arith.extf %199 : vector<128x32xbf16> to vector<128x32xf32>
      %cst_97 = arith.constant dense<0.000000e+00> : vector<128xf32>
      %201 = vector.multi_reduction <add>, %200, %cst_97 [1] : vector<128x32xf32> to vector<128xf32>
      %202 = vector.shape_cast %201 : vector<128xf32> to vector<128x1xf32>
      %cst_98 = arith.constant 3.200000e+01 : f32
      %203 = vector.broadcast %cst_98 : f32 to vector<128x1xf32>
      %204 = arith.divf %202, %203 : vector<128x1xf32>
      %205 = vector.broadcast %204 : vector<128x1xf32> to vector<128x32xf32>
      %206 = arith.subf %200, %205 : vector<128x32xf32>
      %207 = arith.mulf %206, %206 : vector<128x32xf32>
      %cst_99 = arith.constant dense<0.000000e+00> : vector<128xf32>
      %208 = vector.multi_reduction <add>, %207, %cst_99 [1] : vector<128x32xf32> to vector<128xf32>
      %209 = vector.shape_cast %208 : vector<128xf32> to vector<128x1xf32>
      %cst_100 = arith.constant 3.200000e+01 : f32
      %210 = vector.broadcast %cst_100 : f32 to vector<128x1xf32>
      %211 = arith.divf %209, %210 : vector<128x1xf32>
      %212 = vector.broadcast %204 : vector<128x1xf32> to vector<128x32xf32>
      %213 = arith.subf %200, %212 : vector<128x32xf32>
      %cst_101 = arith.constant 9.99999974E-6 : f32
      %214 = vector.broadcast %cst_101 : f32 to vector<128x1xf32>
      %215 = arith.addf %211, %214 : vector<128x1xf32>
      %216 = math.rsqrt %215 : vector<128x1xf32>
      %217 = vector.broadcast %216 : vector<128x1xf32> to vector<128x32xf32>
      %218 = arith.mulf %213, %217 : vector<128x32xf32>
      %219 = vector.broadcast %1 : vector<1x32xf32> to vector<128x32xf32>
      %220 = arith.mulf %218, %219 : vector<128x32xf32>
      %221 = vector.broadcast %3 : vector<1x32xf32> to vector<128x32xf32>
      %222 = arith.addf %220, %221 : vector<128x32xf32>
      %223 = arith.truncf %222 : vector<128x32xf32> to vector<128x32xbf16>
      %c0_102 = arith.constant 0 : index
      %c0_103 = arith.constant 0 : index
      %224 = vector.load %arg14[%c0_102, %c0_103] : memref<32x32xbf16, #tpu.memory_space<vmem>>, vector<32x32xbf16>
      %cst_104 = arith.constant dense<0.000000e+00> : vector<128x32xf32>
      %225 = tpu.matmul %223, %224, %cst_104 {dimension_numbers = #tpu.dot_dimension_numbers<[1], [0], [0], [1], [0, 0, 1, 1], [], []>} : vector<128x32xbf16>, vector<32x32xbf16>, vector<128x32xf32> -> vector<128x32xf32>
      %c0_105 = arith.constant 0 : index
      %c0_106 = arith.constant 0 : index
      %226 = vector.load %arg16[%c0_105, %c0_106] : memref<1x32xbf16, #tpu.memory_space<vmem>>, vector<1x32xbf16>
      %227 = arith.extf %226 : vector<1x32xbf16> to vector<1x32xf32>
      %cst_107 = arith.constant dense<0.000000e+00> : vector<128xf32>
      %228 = vector.multi_reduction <add>, %225, %cst_107 [1] : vector<128x32xf32> to vector<128xf32>
      %229 = vector.shape_cast %228 : vector<128xf32> to vector<128x1xf32>
      %cst_108 = arith.constant 3.200000e+01 : f32
      %230 = vector.broadcast %cst_108 : f32 to vector<128x1xf32>
      %231 = arith.divf %229, %230 : vector<128x1xf32>
      %232 = vector.broadcast %231 : vector<128x1xf32> to vector<128x32xf32>
      %233 = arith.subf %225, %232 : vector<128x32xf32>
      %234 = arith.mulf %233, %233 : vector<128x32xf32>
      %cst_109 = arith.constant dense<0.000000e+00> : vector<128xf32>
      %235 = vector.multi_reduction <add>, %234, %cst_109 [1] : vector<128x32xf32> to vector<128xf32>
      %236 = vector.shape_cast %235 : vector<128xf32> to vector<128x1xf32>
      %cst_110 = arith.constant 3.200000e+01 : f32
      %237 = vector.broadcast %cst_110 : f32 to vector<128x1xf32>
      %238 = arith.divf %236, %237 : vector<128x1xf32>
      %239 = vector.broadcast %231 : vector<128x1xf32> to vector<128x32xf32>
      %240 = arith.subf %225, %239 : vector<128x32xf32>
      %cst_111 = arith.constant 9.99999974E-6 : f32
      %241 = vector.broadcast %cst_111 : f32 to vector<128x1xf32>
      %242 = arith.addf %238, %241 : vector<128x1xf32>
      %243 = math.rsqrt %242 : vector<128x1xf32>
      %244 = vector.broadcast %243 : vector<128x1xf32> to vector<128x32xf32>
      %245 = arith.mulf %240, %244 : vector<128x32xf32>
      %246 = vector.broadcast %227 : vector<1x32xf32> to vector<128x32xf32>
      %247 = arith.mulf %245, %246 : vector<128x32xf32>
      %c0_112 = arith.constant 0 : index
      %c0_113 = arith.constant 0 : index
      %248 = vector.load %arg6[%c0_112, %c0_113] : memref<128x32xf32, #tpu.memory_space<vmem>>, vector<128x32xf32>
      %c0_114 = arith.constant 0 : index
      %c0_115 = arith.constant 0 : index
      %249 = vector.load %arg7[%c0_114, %c0_115] : memref<128x32xf32, #tpu.memory_space<vmem>>, vector<128x32xf32>
      %c0_116 = arith.constant 0 : index
      %c0_117 = arith.constant 0 : index
      %250 = vector.load %arg8[%c0_116, %c0_117] : memref<128x32xf32, #tpu.memory_space<vmem>>, vector<128x32xf32>
      %251 = vector.extract_strided_slice %247 {offsets = [0, 4], sizes = [128, 28], strides = [1, 1]} : vector<128x32xf32> to vector<128x28xf32>
      %252 = vector.extract_strided_slice %247 {offsets = [0, 0], sizes = [128, 4], strides = [1, 1]} : vector<128x32xf32> to vector<128x4xf32>
      %253 = tpu.concatenate %251, %252 in 1 : vector<128x28xf32>, vector<128x4xf32> -> vector<128x32xf32>
      %254 = vector.extract_strided_slice %247 {offsets = [0, 28], sizes = [128, 4], strides = [1, 1]} : vector<128x32xf32> to vector<128x4xf32>
      %255 = vector.extract_strided_slice %247 {offsets = [0, 0], sizes = [128, 28], strides = [1, 1]} : vector<128x32xf32> to vector<128x28xf32>
      %256 = tpu.concatenate %254, %255 in 1 : vector<128x4xf32>, vector<128x28xf32> -> vector<128x32xf32>
      %257 = arith.mulf %247, %248 : vector<128x32xf32>
      %258 = arith.mulf %253, %249 : vector<128x32xf32>
      %259 = arith.addf %257, %258 : vector<128x32xf32>
      %260 = arith.mulf %256, %250 : vector<128x32xf32>
      %261 = arith.addf %259, %260 : vector<128x32xf32>
      %cst_118 = arith.constant 0.353553385 : f32
      %262 = vector.broadcast %cst_118 : f32 to vector<128x32xf32>
      %263 = arith.mulf %261, %262 : vector<128x32xf32>
      %264 = arith.truncf %263 : vector<128x32xf32> to vector<128x32xbf16>
      %c0_119 = arith.constant 0 : index
      %c0_120 = arith.constant 0 : index
      %265 = vector.load %arg20[%c0_119, %c0_120] : memref<128x32xbf16, #tpu.memory_space<vmem>>, vector<128x32xbf16>
      tpu.vector_store %arg20[%c0_119, %c0_120], %264 {strides = array<i32>} : memref<128x32xbf16, #tpu.memory_space<vmem>>, vector<128x32xbf16>,
      %cst_121 = arith.constant 0xFF800000 : f32
      %266 = vector.broadcast %cst_121 : f32 to vector<128x4xf32>
      %c0_122 = arith.constant 0 : index
      %c0_123 = arith.constant 0 : index
      %267 = vector.load %arg21[%c0_122, %c0_123] : memref<128x4xf32, #tpu.memory_space<vmem>>, vector<128x4xf32>
      tpu.vector_store %arg21[%c0_122, %c0_123], %266 {strides = array<i32>} : memref<128x4xf32, #tpu.memory_space<vmem>>, vector<128x4xf32>,
      %cst_124 = arith.constant 0.000000e+00 : f32
      %268 = vector.broadcast %cst_124 : f32 to vector<128x4xf32>
      %c0_125 = arith.constant 0 : index
      %c0_126 = arith.constant 0 : index
      %269 = vector.load %arg22[%c0_125, %c0_126] : memref<128x4xf32, #tpu.memory_space<vmem>>, vector<128x4xf32>
      tpu.vector_store %arg22[%c0_125, %c0_126], %268 {strides = array<i32>} : memref<128x4xf32, #tpu.memory_space<vmem>>, vector<128x4xf32>,
      %cst_127 = arith.constant 0.000000e+00 : f32
      %270 = vector.broadcast %cst_127 : f32 to vector<128x32xf32>
      %c0_128 = arith.constant 0 : index
      %c0_129 = arith.constant 0 : index
      %271 = vector.load %arg23[%c0_128, %c0_129] : memref<128x32xf32, #tpu.memory_space<vmem>>, vector<128x32xf32>
      tpu.vector_store %arg23[%c0_128, %c0_129], %270 {strides = array<i32>} : memref<128x32xf32, #tpu.memory_space<vmem>>, vector<128x32xf32>,
    } else {
    }
    %c0_4 = arith.constant 0 : index
    %c0_5 = arith.constant 0 : index
    %7 = vector.load %arg5[%c0_4, %c0_5] : memref<128x32xbf16, #tpu.memory_space<vmem>>, vector<128x32xbf16>
    %8 = arith.extf %7 : vector<128x32xbf16> to vector<128x32xf32>
    %cst = arith.constant dense<0.000000e+00> : vector<128xf32>
    %9 = vector.multi_reduction <add>, %8, %cst [1] : vector<128x32xf32> to vector<128xf32>
    %10 = vector.shape_cast %9 : vector<128xf32> to vector<128x1xf32>
    %cst_6 = arith.constant 3.200000e+01 : f32
    %11 = vector.broadcast %cst_6 : f32 to vector<128x1xf32>
    %12 = arith.divf %10, %11 : vector<128x1xf32>
    %13 = vector.broadcast %12 : vector<128x1xf32> to vector<128x32xf32>
    %14 = arith.subf %8, %13 : vector<128x32xf32>
    %15 = arith.mulf %14, %14 : vector<128x32xf32>
    %cst_7 = arith.constant dense<0.000000e+00> : vector<128xf32>
    %16 = vector.multi_reduction <add>, %15, %cst_7 [1] : vector<128x32xf32> to vector<128xf32>
    %17 = vector.shape_cast %16 : vector<128xf32> to vector<128x1xf32>
    %cst_8 = arith.constant 3.200000e+01 : f32
    %18 = vector.broadcast %cst_8 : f32 to vector<128x1xf32>
    %19 = arith.divf %17, %18 : vector<128x1xf32>
    %20 = vector.broadcast %12 : vector<128x1xf32> to vector<128x32xf32>
    %21 = arith.subf %8, %20 : vector<128x32xf32>
    %cst_9 = arith.constant 9.99999974E-6 : f32
    %22 = vector.broadcast %cst_9 : f32 to vector<128x1xf32>
    %23 = arith.addf %19, %22 : vector<128x1xf32>
    %24 = math.rsqrt %23 : vector<128x1xf32>
    %25 = vector.broadcast %24 : vector<128x1xf32> to vector<128x32xf32>
    %26 = arith.mulf %21, %25 : vector<128x32xf32>
    %27 = vector.broadcast %1 : vector<1x32xf32> to vector<128x32xf32>
    %28 = arith.mulf %26, %27 : vector<128x32xf32>
    %29 = vector.broadcast %3 : vector<1x32xf32> to vector<128x32xf32>
    %30 = arith.addf %28, %29 : vector<128x32xf32>
    %31 = arith.truncf %30 : vector<128x32xf32> to vector<128x32xbf16>
    %c0_10 = arith.constant 0 : index
    %c0_11 = arith.constant 0 : index
    %32 = vector.load %arg15[%c0_10, %c0_11] : memref<32x64xbf16, #tpu.memory_space<vmem>>, vector<32x64xbf16>
    %cst_12 = arith.constant dense<0.000000e+00> : vector<128x64xf32>
    %33 = tpu.matmul %31, %32, %cst_12 {dimension_numbers = #tpu.dot_dimension_numbers<[1], [0], [0], [1], [0, 0, 1, 1], [], []>} : vector<128x32xbf16>, vector<32x64xbf16>, vector<128x64xf32> -> vector<128x64xf32>
    %34 = vector.extract_strided_slice %33 {offsets = [0, 0], sizes = [128, 32], strides = [1, 1]} : vector<128x64xf32> to vector<128x32xf32>
    %c0_13 = arith.constant 0 : index
    %c0_14 = arith.constant 0 : index
    %35 = vector.load %arg17[%c0_13, %c0_14] : memref<1x32xbf16, #tpu.memory_space<vmem>>, vector<1x32xbf16>
    %36 = arith.extf %35 : vector<1x32xbf16> to vector<1x32xf32>
    %cst_15 = arith.constant dense<0.000000e+00> : vector<128xf32>
    %37 = vector.multi_reduction <add>, %34, %cst_15 [1] : vector<128x32xf32> to vector<128xf32>
    %38 = vector.shape_cast %37 : vector<128xf32> to vector<128x1xf32>
    %cst_16 = arith.constant 3.200000e+01 : f32
    %39 = vector.broadcast %cst_16 : f32 to vector<128x1xf32>
    %40 = arith.divf %38, %39 : vector<128x1xf32>
    %41 = vector.broadcast %40 : vector<128x1xf32> to vector<128x32xf32>
    %42 = arith.subf %34, %41 : vector<128x32xf32>
    %43 = arith.mulf %42, %42 : vector<128x32xf32>
    %cst_17 = arith.constant dense<0.000000e+00> : vector<128xf32>
    %44 = vector.multi_reduction <add>, %43, %cst_17 [1] : vector<128x32xf32> to vector<128xf32>
    %45 = vector.shape_cast %44 : vector<128xf32> to vector<128x1xf32>
    %cst_18 = arith.constant 3.200000e+01 : f32
    %46 = vector.broadcast %cst_18 : f32 to vector<128x1xf32>
    %47 = arith.divf %45, %46 : vector<128x1xf32>
    %48 = vector.broadcast %40 : vector<128x1xf32> to vector<128x32xf32>
    %49 = arith.subf %34, %48 : vector<128x32xf32>
    %cst_19 = arith.constant 9.99999974E-6 : f32
    %50 = vector.broadcast %cst_19 : f32 to vector<128x1xf32>
    %51 = arith.addf %47, %50 : vector<128x1xf32>
    %52 = math.rsqrt %51 : vector<128x1xf32>
    %53 = vector.broadcast %52 : vector<128x1xf32> to vector<128x32xf32>
    %54 = arith.mulf %49, %53 : vector<128x32xf32>
    %55 = vector.broadcast %36 : vector<1x32xf32> to vector<128x32xf32>
    %56 = arith.mulf %54, %55 : vector<128x32xf32>
    %c0_20 = arith.constant 0 : index
    %c0_21 = arith.constant 0 : index
    %57 = vector.load %arg9[%c0_20, %c0_21] : memref<128x32xf32, #tpu.memory_space<vmem>>, vector<128x32xf32>
    %c0_22 = arith.constant 0 : index
    %c0_23 = arith.constant 0 : index
    %58 = vector.load %arg10[%c0_22, %c0_23] : memref<128x32xf32, #tpu.memory_space<vmem>>, vector<128x32xf32>
    %c0_24 = arith.constant 0 : index
    %c0_25 = arith.constant 0 : index
    %59 = vector.load %arg11[%c0_24, %c0_25] : memref<128x32xf32, #tpu.memory_space<vmem>>, vector<128x32xf32>
    %60 = vector.extract_strided_slice %56 {offsets = [0, 4], sizes = [128, 28], strides = [1, 1]} : vector<128x32xf32> to vector<128x28xf32>
    %61 = vector.extract_strided_slice %56 {offsets = [0, 0], sizes = [128, 4], strides = [1, 1]} : vector<128x32xf32> to vector<128x4xf32>
    %62 = tpu.concatenate %60, %61 in 1 : vector<128x28xf32>, vector<128x4xf32> -> vector<128x32xf32>
    %63 = vector.extract_strided_slice %56 {offsets = [0, 28], sizes = [128, 4], strides = [1, 1]} : vector<128x32xf32> to vector<128x4xf32>
    %64 = vector.extract_strided_slice %56 {offsets = [0, 0], sizes = [128, 28], strides = [1, 1]} : vector<128x32xf32> to vector<128x28xf32>
    %65 = tpu.concatenate %63, %64 in 1 : vector<128x4xf32>, vector<128x28xf32> -> vector<128x32xf32>
    %66 = arith.mulf %56, %57 : vector<128x32xf32>
    %67 = arith.mulf %62, %58 : vector<128x32xf32>
    %68 = arith.addf %66, %67 : vector<128x32xf32>
    %69 = arith.mulf %65, %59 : vector<128x32xf32>
    %70 = arith.addf %68, %69 : vector<128x32xf32>
    %71 = arith.truncf %70 : vector<128x32xf32> to vector<128x32xbf16>
    %72 = vector.extract_strided_slice %33 {offsets = [0, 32], sizes = [128, 32], strides = [1, 1]} : vector<128x64xf32> to vector<128x32xf32>
    %73 = arith.truncf %72 : vector<128x32xf32> to vector<128x32xbf16>
    %c0_26 = arith.constant 0 : index
    %c0_27 = arith.constant 0 : index
    %74 = vector.load %arg2[%c0_26, %c0_27] : memref<128x1xi32, #tpu.memory_space<vmem>>, vector<128x1xi32>
    %c0_28 = arith.constant 0 : index
    %c0_29 = arith.constant 0 : index
    %75 = vector.load %arg3[%c0_28, %c0_29] : memref<1x128xi32, #tpu.memory_space<vmem>>, vector<1x128xi32>
    %76 = vector.broadcast %74 : vector<128x1xi32> to vector<128x128xi32>
    %77 = vector.broadcast %75 : vector<1x128xi32> to vector<128x128xi32>
    %78 = arith.cmpi eq, %76, %77 : vector<128x128xi32>
    %c0_30 = arith.constant 0 : index
    %c0_31 = arith.constant 0 : index
    %79 = vector.load %arg20[%c0_30, %c0_31] : memref<128x32xbf16, #tpu.memory_space<vmem>>, vector<128x32xbf16>
    %80 = vector.extract_strided_slice %79 {offsets = [0, 0], sizes = [128, 8], strides = [1, 1]} : vector<128x32xbf16> to vector<128x8xbf16>
    %81 = vector.extract_strided_slice %71 {offsets = [0, 0], sizes = [128, 8], strides = [1, 1]} : vector<128x32xbf16> to vector<128x8xbf16>
    %cst_32 = arith.constant dense<0.000000e+00> : vector<128x128xf32>
    %82 = tpu.matmul %80, %81, %cst_32 {dimension_numbers = #tpu.dot_dimension_numbers<[1], [1], [0], [0], [0, 0, 1, 0], [], []>} : vector<128x8xbf16>, vector<128x8xbf16>, vector<128x128xf32> -> vector<128x128xf32>
    %cst_33 = arith.constant -1.000000e+30 : f32
    %83 = vector.broadcast %cst_33 : f32 to vector<128x128xf32>
    %84 = arith.select %78, %82, %83 : vector<128x128xi1>, vector<128x128xf32>
    %c0_34 = arith.constant 0 : index
    %c0_35 = arith.constant 0 : index
    %85 = vector.load %arg21[%c0_34, %c0_35] : memref<128x4xf32, #tpu.memory_space<vmem>>, vector<128x1xf32>
    %cst_36 = arith.constant dense<0xFF800000> : vector<128xf32>
    %86 = vector.multi_reduction <maximumf>, %84, %cst_36 [1] : vector<128x128xf32> to vector<128xf32>
    %87 = vector.shape_cast %86 : vector<128xf32> to vector<128x1xf32>
    %88 = arith.maximumf %85, %87 : vector<128x1xf32>
    %89 = arith.subf %85, %88 : vector<128x1xf32>
    %90 = math.exp %89 : vector<128x1xf32>
    %91 = vector.broadcast %88 : vector<128x1xf32> to vector<128x128xf32>
    %92 = arith.subf %84, %91 : vector<128x128xf32>
    %93 = math.exp %92 : vector<128x128xf32>
    %c0_37 = arith.constant 0 : index
    %c0_38 = arith.constant 0 : index
    %94 = vector.load %arg22[%c0_37, %c0_38] : memref<128x4xf32, #tpu.memory_space<vmem>>, vector<128x1xf32>
    %95 = arith.mulf %90, %94 : vector<128x1xf32>
    %cst_39 = arith.constant dense<0.000000e+00> : vector<128xf32>
    %96 = vector.multi_reduction <add>, %93, %cst_39 [1] : vector<128x128xf32> to vector<128xf32>
    %97 = vector.shape_cast %96 : vector<128xf32> to vector<128x1xf32>
    %98 = arith.addf %95, %97 : vector<128x1xf32>
    %c0_40 = arith.constant 0 : index
    %c0_41 = arith.constant 0 : index
    %99 = vector.load %arg22[%c0_40, %c0_41] : memref<128x4xf32, #tpu.memory_space<vmem>>, vector<128x1xf32>
    tpu.vector_store %arg22[%c0_40, %c0_41], %98 {strides = array<i32>} : memref<128x4xf32, #tpu.memory_space<vmem>>, vector<128x1xf32>,
    %c0_42 = arith.constant 0 : index
    %c0_43 = arith.constant 0 : index
    %100 = vector.load %arg23[%c0_42, %c0_43] : memref<128x32xf32, #tpu.memory_space<vmem>>, vector<128x8xf32>
    %101 = vector.broadcast %90 : vector<128x1xf32> to vector<128x8xf32>
    %102 = arith.mulf %101, %100 : vector<128x8xf32>
    %103 = arith.truncf %93 : vector<128x128xf32> to vector<128x128xbf16>
    %104 = vector.extract_strided_slice %73 {offsets = [0, 0], sizes = [128, 8], strides = [1, 1]} : vector<128x32xbf16> to vector<128x8xbf16>
    %cst_44 = arith.constant dense<0.000000e+00> : vector<128x8xf32>
    %105 = tpu.matmul %103, %104, %cst_44 {dimension_numbers = #tpu.dot_dimension_numbers<[1], [0], [0], [1], [0, 0, 1, 1], [], []>} : vector<128x128xbf16>, vector<128x8xbf16>, vector<128x8xf32> -> vector<128x8xf32>
    %106 = arith.addf %102, %105 : vector<128x8xf32>
    %c0_45 = arith.constant 0 : index
    %c0_46 = arith.constant 0 : index
    %107 = vector.load %arg23[%c0_45, %c0_46] : memref<128x32xf32, #tpu.memory_space<vmem>>, vector<128x8xf32>
    tpu.vector_store %arg23[%c0_45, %c0_46], %106 {strides = array<i32>} : memref<128x32xf32, #tpu.memory_space<vmem>>, vector<128x8xf32>,
    %c0_47 = arith.constant 0 : index
    %c0_48 = arith.constant 0 : index
    %108 = vector.load %arg21[%c0_47, %c0_48] : memref<128x4xf32, #tpu.memory_space<vmem>>, vector<128x1xf32>
    tpu.vector_store %arg21[%c0_47, %c0_48], %88 {strides = array<i32>} : memref<128x4xf32, #tpu.memory_space<vmem>>, vector<128x1xf32>,
    %109 = vector.extract_strided_slice %79 {offsets = [0, 8], sizes = [128, 8], strides = [1, 1]} : vector<128x32xbf16> to vector<128x8xbf16>
    %110 = vector.extract_strided_slice %71 {offsets = [0, 8], sizes = [128, 8], strides = [1, 1]} : vector<128x32xbf16> to vector<128x8xbf16>
    %cst_49 = arith.constant dense<0.000000e+00> : vector<128x128xf32>
    %111 = tpu.matmul %109, %110, %cst_49 {dimension_numbers = #tpu.dot_dimension_numbers<[1], [1], [0], [0], [0, 0, 1, 0], [], []>} : vector<128x8xbf16>, vector<128x8xbf16>, vector<128x128xf32> -> vector<128x128xf32>
    %cst_50 = arith.constant -1.000000e+30 : f32
    %112 = vector.broadcast %cst_50 : f32 to vector<128x128xf32>
    %113 = arith.select %78, %111, %112 : vector<128x128xi1>, vector<128x128xf32>
    %c0_51 = arith.constant 0 : index
    %c1 = arith.constant 1 : index
    %114 = vector.load %arg21[%c0_51, %c1] : memref<128x4xf32, #tpu.memory_space<vmem>>, vector<128x1xf32>
    %cst_52 = arith.constant dense<0xFF800000> : vector<128xf32>
    %115 = vector.multi_reduction <maximumf>, %113, %cst_52 [1] : vector<128x128xf32> to vector<128xf32>
    %116 = vector.shape_cast %115 : vector<128xf32> to vector<128x1xf32>
    %117 = arith.maximumf %114, %116 : vector<128x1xf32>
    %118 = arith.subf %114, %117 : vector<128x1xf32>
    %119 = math.exp %118 : vector<128x1xf32>
    %120 = vector.broadcast %117 : vector<128x1xf32> to vector<128x128xf32>
    %121 = arith.subf %113, %120 : vector<128x128xf32>
    %122 = math.exp %121 : vector<128x128xf32>
    %c0_53 = arith.constant 0 : index
    %c1_54 = arith.constant 1 : index
    %123 = vector.load %arg22[%c0_53, %c1_54] : memref<128x4xf32, #tpu.memory_space<vmem>>, vector<128x1xf32>
    %124 = arith.mulf %119, %123 : vector<128x1xf32>
    %cst_55 = arith.constant dense<0.000000e+00> : vector<128xf32>
    %125 = vector.multi_reduction <add>, %122, %cst_55 [1] : vector<128x128xf32> to vector<128xf32>
    %126 = vector.shape_cast %125 : vector<128xf32> to vector<128x1xf32>
    %127 = arith.addf %124, %126 : vector<128x1xf32>
    %c0_56 = arith.constant 0 : index
    %c1_57 = arith.constant 1 : index
    %128 = vector.load %arg22[%c0_56, %c1_57] : memref<128x4xf32, #tpu.memory_space<vmem>>, vector<128x1xf32>
    tpu.vector_store %arg22[%c0_56, %c1_57], %127 {strides = array<i32>} : memref<128x4xf32, #tpu.memory_space<vmem>>, vector<128x1xf32>,
    %c0_58 = arith.constant 0 : index
    %c8 = arith.constant 8 : index
    %129 = vector.load %arg23[%c0_58, %c8] : memref<128x32xf32, #tpu.memory_space<vmem>>, vector<128x8xf32>
    %130 = vector.broadcast %119 : vector<128x1xf32> to vector<128x8xf32>
    %131 = arith.mulf %130, %129 : vector<128x8xf32>
    %132 = arith.truncf %122 : vector<128x128xf32> to vector<128x128xbf16>
    %133 = vector.extract_strided_slice %73 {offsets = [0, 8], sizes = [128, 8], strides = [1, 1]} : vector<128x32xbf16> to vector<128x8xbf16>
    %cst_59 = arith.constant dense<0.000000e+00> : vector<128x8xf32>
    %134 = tpu.matmul %132, %133, %cst_59 {dimension_numbers = #tpu.dot_dimension_numbers<[1], [0], [0], [1], [0, 0, 1, 1], [], []>} : vector<128x128xbf16>, vector<128x8xbf16>, vector<128x8xf32> -> vector<128x8xf32>
    %135 = arith.addf %131, %134 : vector<128x8xf32>
    %c0_60 = arith.constant 0 : index
    %c8_61 = arith.constant 8 : index
    %136 = vector.load %arg23[%c0_60, %c8_61] : memref<128x32xf32, #tpu.memory_space<vmem>>, vector<128x8xf32>
    tpu.vector_store %arg23[%c0_60, %c8_61], %135 {strides = array<i32>} : memref<128x32xf32, #tpu.memory_space<vmem>>, vector<128x8xf32>,
    %c0_62 = arith.constant 0 : index
    %c1_63 = arith.constant 1 : index
    %137 = vector.load %arg21[%c0_62, %c1_63] : memref<128x4xf32, #tpu.memory_space<vmem>>, vector<128x1xf32>
    tpu.vector_store %arg21[%c0_62, %c1_63], %117 {strides = array<i32>} : memref<128x4xf32, #tpu.memory_space<vmem>>, vector<128x1xf32>,
    %138 = vector.extract_strided_slice %79 {offsets = [0, 16], sizes = [128, 8], strides = [1, 1]} : vector<128x32xbf16> to vector<128x8xbf16>
    %139 = vector.extract_strided_slice %71 {offsets = [0, 16], sizes = [128, 8], strides = [1, 1]} : vector<128x32xbf16> to vector<128x8xbf16>
    %cst_64 = arith.constant dense<0.000000e+00> : vector<128x128xf32>
    %140 = tpu.matmul %138, %139, %cst_64 {dimension_numbers = #tpu.dot_dimension_numbers<[1], [1], [0], [0], [0, 0, 1, 0], [], []>} : vector<128x8xbf16>, vector<128x8xbf16>, vector<128x128xf32> -> vector<128x128xf32>
    %cst_65 = arith.constant -1.000000e+30 : f32
    %141 = vector.broadcast %cst_65 : f32 to vector<128x128xf32>
    %142 = arith.select %78, %140, %141 : vector<128x128xi1>, vector<128x128xf32>
    %c0_66 = arith.constant 0 : index
    %c2 = arith.constant 2 : index
    %143 = vector.load %arg21[%c0_66, %c2] : memref<128x4xf32, #tpu.memory_space<vmem>>, vector<128x1xf32>
    %cst_67 = arith.constant dense<0xFF800000> : vector<128xf32>
    %144 = vector.multi_reduction <maximumf>, %142, %cst_67 [1] : vector<128x128xf32> to vector<128xf32>
    %145 = vector.shape_cast %144 : vector<128xf32> to vector<128x1xf32>
    %146 = arith.maximumf %143, %145 : vector<128x1xf32>
    %147 = arith.subf %143, %146 : vector<128x1xf32>
    %148 = math.exp %147 : vector<128x1xf32>
    %149 = vector.broadcast %146 : vector<128x1xf32> to vector<128x128xf32>
    %150 = arith.subf %142, %149 : vector<128x128xf32>
    %151 = math.exp %150 : vector<128x128xf32>
    %c0_68 = arith.constant 0 : index
    %c2_69 = arith.constant 2 : index
    %152 = vector.load %arg22[%c0_68, %c2_69] : memref<128x4xf32, #tpu.memory_space<vmem>>, vector<128x1xf32>
    %153 = arith.mulf %148, %152 : vector<128x1xf32>
    %cst_70 = arith.constant dense<0.000000e+00> : vector<128xf32>
    %154 = vector.multi_reduction <add>, %151, %cst_70 [1] : vector<128x128xf32> to vector<128xf32>
    %155 = vector.shape_cast %154 : vector<128xf32> to vector<128x1xf32>
    %156 = arith.addf %153, %155 : vector<128x1xf32>
    %c0_71 = arith.constant 0 : index
    %c2_72 = arith.constant 2 : index
    %157 = vector.load %arg22[%c0_71, %c2_72] : memref<128x4xf32, #tpu.memory_space<vmem>>, vector<128x1xf32>
    tpu.vector_store %arg22[%c0_71, %c2_72], %156 {strides = array<i32>} : memref<128x4xf32, #tpu.memory_space<vmem>>, vector<128x1xf32>,
    %c0_73 = arith.constant 0 : index
    %c16 = arith.constant 16 : index
    %158 = vector.load %arg23[%c0_73, %c16] : memref<128x32xf32, #tpu.memory_space<vmem>>, vector<128x8xf32>
    %159 = vector.broadcast %148 : vector<128x1xf32> to vector<128x8xf32>
    %160 = arith.mulf %159, %158 : vector<128x8xf32>
    %161 = arith.truncf %151 : vector<128x128xf32> to vector<128x128xbf16>
    %162 = vector.extract_strided_slice %73 {offsets = [0, 16], sizes = [128, 8], strides = [1, 1]} : vector<128x32xbf16> to vector<128x8xbf16>
    %cst_74 = arith.constant dense<0.000000e+00> : vector<128x8xf32>
    %163 = tpu.matmul %161, %162, %cst_74 {dimension_numbers = #tpu.dot_dimension_numbers<[1], [0], [0], [1], [0, 0, 1, 1], [], []>} : vector<128x128xbf16>, vector<128x8xbf16>, vector<128x8xf32> -> vector<128x8xf32>
    %164 = arith.addf %160, %163 : vector<128x8xf32>
    %c0_75 = arith.constant 0 : index
    %c16_76 = arith.constant 16 : index
    %165 = vector.load %arg23[%c0_75, %c16_76] : memref<128x32xf32, #tpu.memory_space<vmem>>, vector<128x8xf32>
    tpu.vector_store %arg23[%c0_75, %c16_76], %164 {strides = array<i32>} : memref<128x32xf32, #tpu.memory_space<vmem>>, vector<128x8xf32>,
    %c0_77 = arith.constant 0 : index
    %c2_78 = arith.constant 2 : index
    %166 = vector.load %arg21[%c0_77, %c2_78] : memref<128x4xf32, #tpu.memory_space<vmem>>, vector<128x1xf32>
    tpu.vector_store %arg21[%c0_77, %c2_78], %146 {strides = array<i32>} : memref<128x4xf32, #tpu.memory_space<vmem>>, vector<128x1xf32>,
    %167 = vector.extract_strided_slice %79 {offsets = [0, 24], sizes = [128, 8], strides = [1, 1]} : vector<128x32xbf16> to vector<128x8xbf16>
    %168 = vector.extract_strided_slice %71 {offsets = [0, 24], sizes = [128, 8], strides = [1, 1]} : vector<128x32xbf16> to vector<128x8xbf16>
    %cst_79 = arith.constant dense<0.000000e+00> : vector<128x128xf32>
    %169 = tpu.matmul %167, %168, %cst_79 {dimension_numbers = #tpu.dot_dimension_numbers<[1], [1], [0], [0], [0, 0, 1, 0], [], []>} : vector<128x8xbf16>, vector<128x8xbf16>, vector<128x128xf32> -> vector<128x128xf32>
    %cst_80 = arith.constant -1.000000e+30 : f32
    %170 = vector.broadcast %cst_80 : f32 to vector<128x128xf32>
    %171 = arith.select %78, %169, %170 : vector<128x128xi1>, vector<128x128xf32>
    %c0_81 = arith.constant 0 : index
    %c3 = arith.constant 3 : index
    %172 = vector.load %arg21[%c0_81, %c3] : memref<128x4xf32, #tpu.memory_space<vmem>>, vector<128x1xf32>
    %cst_82 = arith.constant dense<0xFF800000> : vector<128xf32>
    %173 = vector.multi_reduction <maximumf>, %171, %cst_82 [1] : vector<128x128xf32> to vector<128xf32>
    %174 = vector.shape_cast %173 : vector<128xf32> to vector<128x1xf32>
    %175 = arith.maximumf %172, %174 : vector<128x1xf32>
    %176 = arith.subf %172, %175 : vector<128x1xf32>
    %177 = math.exp %176 : vector<128x1xf32>
    %178 = vector.broadcast %175 : vector<128x1xf32> to vector<128x128xf32>
    %179 = arith.subf %171, %178 : vector<128x128xf32>
    %180 = math.exp %179 : vector<128x128xf32>
    %c0_83 = arith.constant 0 : index
    %c3_84 = arith.constant 3 : index
    %181 = vector.load %arg22[%c0_83, %c3_84] : memref<128x4xf32, #tpu.memory_space<vmem>>, vector<128x1xf32>
    %182 = arith.mulf %177, %181 : vector<128x1xf32>
    %cst_85 = arith.constant dense<0.000000e+00> : vector<128xf32>
    %183 = vector.multi_reduction <add>, %180, %cst_85 [1] : vector<128x128xf32> to vector<128xf32>
    %184 = vector.shape_cast %183 : vector<128xf32> to vector<128x1xf32>
    %185 = arith.addf %182, %184 : vector<128x1xf32>
    %c0_86 = arith.constant 0 : index
    %c3_87 = arith.constant 3 : index
    %186 = vector.load %arg22[%c0_86, %c3_87] : memref<128x4xf32, #tpu.memory_space<vmem>>, vector<128x1xf32>
    tpu.vector_store %arg22[%c0_86, %c3_87], %185 {strides = array<i32>} : memref<128x4xf32, #tpu.memory_space<vmem>>, vector<128x1xf32>,
    %c0_88 = arith.constant 0 : index
    %c24 = arith.constant 24 : index
    %187 = vector.load %arg23[%c0_88, %c24] : memref<128x32xf32, #tpu.memory_space<vmem>>, vector<128x8xf32>
    %188 = vector.broadcast %177 : vector<128x1xf32> to vector<128x8xf32>
    %189 = arith.mulf %188, %187 : vector<128x8xf32>
    %190 = arith.truncf %180 : vector<128x128xf32> to vector<128x128xbf16>
    %191 = vector.extract_strided_slice %73 {offsets = [0, 24], sizes = [128, 8], strides = [1, 1]} : vector<128x32xbf16> to vector<128x8xbf16>
    %cst_89 = arith.constant dense<0.000000e+00> : vector<128x8xf32>
    %192 = tpu.matmul %190, %191, %cst_89 {dimension_numbers = #tpu.dot_dimension_numbers<[1], [0], [0], [1], [0, 0, 1, 1], [], []>} : vector<128x128xbf16>, vector<128x8xbf16>, vector<128x8xf32> -> vector<128x8xf32>
    %193 = arith.addf %189, %192 : vector<128x8xf32>
    %c0_90 = arith.constant 0 : index
    %c24_91 = arith.constant 24 : index
    %194 = vector.load %arg23[%c0_90, %c24_91] : memref<128x32xf32, #tpu.memory_space<vmem>>, vector<128x8xf32>
    tpu.vector_store %arg23[%c0_90, %c24_91], %193 {strides = array<i32>} : memref<128x32xf32, #tpu.memory_space<vmem>>, vector<128x8xf32>,
    %c0_92 = arith.constant 0 : index
    %c3_93 = arith.constant 3 : index
    %195 = vector.load %arg21[%c0_92, %c3_93] : memref<128x4xf32, #tpu.memory_space<vmem>>, vector<128x1xf32>
    tpu.vector_store %arg21[%c0_92, %c3_93], %175 {strides = array<i32>} : memref<128x4xf32, #tpu.memory_space<vmem>>, vector<128x1xf32>,
    %c1_i32 = arith.constant 1 : i32
    %196 = arith.cmpi eq, %arg1, %c1_i32 : i32
    %197 = arith.extui %196 : i1 to i32
    %c0_i32_94 = arith.constant 0 : i32
    %198 = arith.cmpi ne, %197, %c0_i32_94 : i32
    scf.if %198 {
      %c0_95 = arith.constant 0 : index
      %c0_96 = arith.constant 0 : index
      %199 = vector.load %arg23[%c0_95, %c0_96] : memref<128x32xf32, #tpu.memory_space<vmem>>, vector<128x8xf32>
      %c0_97 = arith.constant 0 : index
      %c0_98 = arith.constant 0 : index
      %200 = vector.load %arg22[%c0_97, %c0_98] : memref<128x4xf32, #tpu.memory_space<vmem>>, vector<128x1xf32>
      %201 = tpu.reciprocal %200 {approx = true} : vector<128x1xf32> -> vector<128x1xf32>
      %202 = vector.broadcast %201 : vector<128x1xf32> to vector<128x8xf32>
      %203 = arith.mulf %199, %202 : vector<128x8xf32>
      %c0_99 = arith.constant 0 : index
      %c0_100 = arith.constant 0 : index
      %204 = vector.load %arg23[%c0_99, %c0_100] : memref<128x32xf32, #tpu.memory_space<vmem>>, vector<128x8xf32>
      tpu.vector_store %arg23[%c0_99, %c0_100], %203 {strides = array<i32>} : memref<128x32xf32, #tpu.memory_space<vmem>>, vector<128x8xf32>,
      %c0_101 = arith.constant 0 : index
      %c8_102 = arith.constant 8 : index
      %205 = vector.load %arg23[%c0_101, %c8_102] : memref<128x32xf32, #tpu.memory_space<vmem>>, vector<128x8xf32>
      %c0_103 = arith.constant 0 : index
      %c1_104 = arith.constant 1 : index
      %206 = vector.load %arg22[%c0_103, %c1_104] : memref<128x4xf32, #tpu.memory_space<vmem>>, vector<128x1xf32>
      %207 = tpu.reciprocal %206 {approx = true} : vector<128x1xf32> -> vector<128x1xf32>
      %208 = vector.broadcast %207 : vector<128x1xf32> to vector<128x8xf32>
      %209 = arith.mulf %205, %208 : vector<128x8xf32>
      %c0_105 = arith.constant 0 : index
      %c8_106 = arith.constant 8 : index
      %210 = vector.load %arg23[%c0_105, %c8_106] : memref<128x32xf32, #tpu.memory_space<vmem>>, vector<128x8xf32>
      tpu.vector_store %arg23[%c0_105, %c8_106], %209 {strides = array<i32>} : memref<128x32xf32, #tpu.memory_space<vmem>>, vector<128x8xf32>,
      %c0_107 = arith.constant 0 : index
      %c16_108 = arith.constant 16 : index
      %211 = vector.load %arg23[%c0_107, %c16_108] : memref<128x32xf32, #tpu.memory_space<vmem>>, vector<128x8xf32>
      %c0_109 = arith.constant 0 : index
      %c2_110 = arith.constant 2 : index
      %212 = vector.load %arg22[%c0_109, %c2_110] : memref<128x4xf32, #tpu.memory_space<vmem>>, vector<128x1xf32>
      %213 = tpu.reciprocal %212 {approx = true} : vector<128x1xf32> -> vector<128x1xf32>
      %214 = vector.broadcast %213 : vector<128x1xf32> to vector<128x8xf32>
      %215 = arith.mulf %211, %214 : vector<128x8xf32>
      %c0_111 = arith.constant 0 : index
      %c16_112 = arith.constant 16 : index
      %216 = vector.load %arg23[%c0_111, %c16_112] : memref<128x32xf32, #tpu.memory_space<vmem>>, vector<128x8xf32>
      tpu.vector_store %arg23[%c0_111, %c16_112], %215 {strides = array<i32>} : memref<128x32xf32, #tpu.memory_space<vmem>>, vector<128x8xf32>,
      %c0_113 = arith.constant 0 : index
      %c24_114 = arith.constant 24 : index
      %217 = vector.load %arg23[%c0_113, %c24_114] : memref<128x32xf32, #tpu.memory_space<vmem>>, vector<128x8xf32>
      %c0_115 = arith.constant 0 : index
      %c3_116 = arith.constant 3 : index
      %218 = vector.load %arg22[%c0_115, %c3_116] : memref<128x4xf32, #tpu.memory_space<vmem>>, vector<128x1xf32>
      %219 = tpu.reciprocal %218 {approx = true} : vector<128x1xf32> -> vector<128x1xf32>
      %220 = vector.broadcast %219 : vector<128x1xf32> to vector<128x8xf32>
      %221 = arith.mulf %217, %220 : vector<128x8xf32>
      %c0_117 = arith.constant 0 : index
      %c24_118 = arith.constant 24 : index
      %222 = vector.load %arg23[%c0_117, %c24_118] : memref<128x32xf32, #tpu.memory_space<vmem>>, vector<128x8xf32>
      tpu.vector_store %arg23[%c0_117, %c24_118], %221 {strides = array<i32>} : memref<128x32xf32, #tpu.memory_space<vmem>>, vector<128x8xf32>,
      %c0_119 = arith.constant 0 : index
      %c0_120 = arith.constant 0 : index
      %223 = vector.load %arg23[%c0_119, %c0_120] : memref<128x32xf32, #tpu.memory_space<vmem>>, vector<128x32xf32>
      %224 = arith.truncf %223 : vector<128x32xf32> to vector<128x32xbf16>
      %c0_121 = arith.constant 0 : index
      %c0_122 = arith.constant 0 : index
      %225 = vector.load %arg18[%c0_121, %c0_122] : memref<32x32xbf16, #tpu.memory_space<vmem>>, vector<32x32xbf16>
      %cst_123 = arith.constant dense<0.000000e+00> : vector<128x32xf32>
      %226 = tpu.matmul %224, %225, %cst_123 {dimension_numbers = #tpu.dot_dimension_numbers<[1], [0], [0], [1], [0, 0, 1, 1], [], []>} : vector<128x32xbf16>, vector<32x32xbf16>, vector<128x32xf32> -> vector<128x32xf32>
      %227 = arith.truncf %226 : vector<128x32xf32> to vector<128x32xbf16>
      %c0_124 = arith.constant 0 : index
      %c0_125 = arith.constant 0 : index
      %228 = vector.load %arg19[%c0_124, %c0_125] : memref<128x32xbf16, #tpu.memory_space<vmem>>, vector<128x32xbf16>
      tpu.vector_store %arg19[%c0_124, %c0_125], %227 {strides = array<i32>} : memref<128x32xbf16, #tpu.memory_space<vmem>>, vector<128x32xbf16>,
    } else {
    }
    return
  }
  func.func @transform_0(%arg0: i32, %arg1: i32) -> (i32, i32) {
    %c0_i32 = arith.constant 0 : i32
    %c0_i32_0 = arith.constant 0 : i32
    return %arg0, %c0_i32 : i32, i32
  }
  func.func @transform_1(%arg0: i32, %arg1: i32) -> (i32, i32) {
    %c0_i32 = arith.constant 0 : i32
    %c0_i32_0 = arith.constant 0 : i32
    return %c0_i32, %arg1 : i32, i32
  }
  func.func @transform_2(%arg0: i32, %arg1: i32) -> (i32, i32) {
    %c0_i32 = arith.constant 0 : i32
    %c0_i32_0 = arith.constant 0 : i32
    return %arg0, %c0_i32 : i32, i32
  }
  func.func @transform_3(%arg0: i32, %arg1: i32) -> (i32, i32) {
    %c0_i32 = arith.constant 0 : i32
    %c0_i32_0 = arith.constant 0 : i32
    return %arg1, %c0_i32 : i32, i32
  }
  func.func @transform_4(%arg0: i32, %arg1: i32) -> (i32, i32) {
    %c0_i32 = arith.constant 0 : i32
    %c0_i32_0 = arith.constant 0 : i32
    return %arg0, %c0_i32 : i32, i32
  }
  func.func @transform_5(%arg0: i32, %arg1: i32) -> (i32, i32) {
    %c0_i32 = arith.constant 0 : i32
    %c0_i32_0 = arith.constant 0 : i32
    return %arg0, %c0_i32 : i32, i32
  }
  func.func @transform_6(%arg0: i32, %arg1: i32) -> (i32, i32) {
    %c0_i32 = arith.constant 0 : i32
    %c0_i32_0 = arith.constant 0 : i32
    return %arg0, %c0_i32 : i32, i32
  }
  func.func @transform_7(%arg0: i32, %arg1: i32) -> (i32, i32) {
    %c0_i32 = arith.constant 0 : i32
    %c0_i32_0 = arith.constant 0 : i32
    return %arg1, %c0_i32 : i32, i32
  }
  func.func @transform_8(%arg0: i32, %arg1: i32) -> (i32, i32) {
    %c0_i32 = arith.constant 0 : i32
    %c0_i32_0 = arith.constant 0 : i32
    return %arg1, %c0_i32 : i32, i32
  }
  func.func @transform_9(%arg0: i32, %arg1: i32) -> (i32, i32) {
    %c0_i32 = arith.constant 0 : i32
    %c0_i32_0 = arith.constant 0 : i32
    return %arg1, %c0_i32 : i32, i32
  }
  func.func @transform_10(%arg0: i32, %arg1: i32) -> (i32, i32) {
    %c0_i32 = arith.constant 0 : i32
    %c0_i32_0 = arith.constant 0 : i32
    %c0_i32_1 = arith.constant 0 : i32
    return %c0_i32, %c0_i32_0 : i32, i32
  }
  func.func @transform_11(%arg0: i32, %arg1: i32) -> (i32, i32) {
    %c0_i32 = arith.constant 0 : i32
    %c0_i32_0 = arith.constant 0 : i32
    %c0_i32_1 = arith.constant 0 : i32
    return %c0_i32, %c0_i32_0 : i32, i32
  }
  func.func @transform_12(%arg0: i32, %arg1: i32) -> (i32, i32) {
    %c0_i32 = arith.constant 0 : i32
    %c0_i32_0 = arith.constant 0 : i32
    %c0_i32_1 = arith.constant 0 : i32
    return %c0_i32, %c0_i32_0 : i32, i32
  }
  func.func @transform_13(%arg0: i32, %arg1: i32) -> (i32, i32) {
    %c0_i32 = arith.constant 0 : i32
    %c0_i32_0 = arith.constant 0 : i32
    %c0_i32_1 = arith.constant 0 : i32
    return %c0_i32, %c0_i32_0 : i32, i32
  }
  func.func @transform_14(%arg0: i32, %arg1: i32) -> (i32, i32) {
    %c0_i32 = arith.constant 0 : i32
    %c0_i32_0 = arith.constant 0 : i32
    %c0_i32_1 = arith.constant 0 : i32
    return %c0_i32, %c0_i32_0 : i32, i32
  }
  func.func @transform_15(%arg0: i32, %arg1: i32) -> (i32, i32) {
    %c0_i32 = arith.constant 0 : i32
    %c0_i32_0 = arith.constant 0 : i32
    %c0_i32_1 = arith.constant 0 : i32
    return %c0_i32, %c0_i32_0 : i32, i32
  }
  func.func @transform_16(%arg0: i32, %arg1: i32) -> (i32, i32) {
    %c0_i32 = arith.constant 0 : i32
    %c0_i32_0 = arith.constant 0 : i32
    %c0_i32_1 = arith.constant 0 : i32
    return %c0_i32, %c0_i32_0 : i32, i32
  }
  func.func @transform_17(%arg0: i32, %arg1: i32) -> (i32, i32) {
    %c0_i32 = arith.constant 0 : i32
    %c0_i32_0 = arith.constant 0 : i32
    return %arg0, %c0_i32 : i32, i32
  }
}

</mosaic_0001>

<llo_original>
// kernel: tpu_custom_call.1
$region0: #{tpu_custom_call.1}
  #allocation0 [shape = 'u32[]', space=smem, size = 0x4, offset = 0x4, fixed_abs, tag = 'smem constant byte address 0x4 - core index']
  #allocation1 [shape = 'u32[144,128]{1,0:T(1,128)}', space=vmem, size = 0x12000, scoped, tag = 'internal scratch']
  #allocation2 [shape = 'bf16[128,32]{1,0:T(8,128)(2,1)}', space=vmem, size = 0x8000, scoped, tag = 'scratch operand']
  #allocation3 [shape = 'f32[128,4]{1,0:T(8,128)}', space=vmem, size = 0x10000, scoped, tag = 'scratch operand']
  #allocation4 [shape = 'f32[128,4]{1,0:T(8,128)}', space=vmem, size = 0x10000, scoped, tag = 'scratch operand']
  #allocation5 [shape = 'f32[128,32]{1,0:T(8,128)}', space=vmem, size = 0x10000, scoped, tag = 'scratch operand']
  %s0 = inlined_call_operand.vmem [shape: s32[256,1], index: 0, kind: input, shape index: {}]
  %s1 = inlined_call_operand.vmem [shape: s32[1,256], index: 1, kind: input, shape index: {}]
  %s2 = inlined_call_operand.vmem [shape: bf16[256,32], index: 2, kind: input, shape index: {}]
  %s3 = inlined_call_operand.vmem [shape: bf16[256,32], index: 3, kind: input, shape index: {}]
  %s4 = inlined_call_operand.vmem [shape: f32[256,32], index: 4, kind: input, shape index: {}]
  %s5 = inlined_call_operand.vmem [shape: f32[256,32], index: 5, kind: input, shape index: {}]
  %s6 = inlined_call_operand.vmem [shape: f32[256,32], index: 6, kind: input, shape index: {}]
  %s7 = inlined_call_operand.vmem [shape: f32[256,32], index: 7, kind: input, shape index: {}]
  %s8 = inlined_call_operand.vmem [shape: f32[256,32], index: 8, kind: input, shape index: {}]
  %s9 = inlined_call_operand.vmem [shape: f32[256,32], index: 9, kind: input, shape index: {}]
  %s10 = inlined_call_operand.vmem [shape: bf16[1,32], index: 10, kind: input, shape index: {}]
  %s11 = inlined_call_operand.vmem [shape: bf16[1,32], index: 11, kind: input, shape index: {}]
  %s12 = inlined_call_operand.vmem [shape: bf16[32,32], index: 12, kind: input, shape index: {}]
  %s13 = inlined_call_operand.vmem [shape: bf16[32,64], index: 13, kind: input, shape index: {}]
  %s14 = inlined_call_operand.vmem [shape: bf16[1,32], index: 14, kind: input, shape index: {}]
  %s15 = inlined_call_operand.vmem [shape: bf16[1,32], index: 15, kind: input, shape index: {}]
  %s16 = inlined_call_operand.vmem [shape: bf16[32,32], index: 16, kind: input, shape index: {}]
  %s17 = inlined_call_operand.vmem [shape: bf16[256,32], index: 17, kind: output, shape index: {}]
  %s18 = sld [smem:[#allocation0]]
  $region109: #{tpu_custom_call.1} parent=0
    _
  %s20 = ssub.s32 1, %s18
  %s21 = scalar_select 0, %s20, %s18
  loop: start=0, step=1, limit=6
  $region2: #{tpu_custom_call.1} parent=0 // loop_pre_header
    _
  $region3: #{tpu_custom_call.1} parent=0 // loop_header
    %s23 = sphi 0, %s27
    %p24 = scmp.ge.s32.totalorder %s23, 6
    %s30 = sphi 0, %s42
    %s31 = sphi 0, %s38
    %s32 = sphi 0, %s30
    %s33 = sphi 0, %s31
    %s34 = sphi 0, %s32
    %s35 = sphi 0, %s33
    %s45 = sphi 0, %s47
    %s48 = sphi 0, %s45
    %s49 = sphi 0, %s48
    %s65 = sphi 0, %s49
    %s71 = sphi 0, %s73
    %s74 = sphi 0, %s71
    %s75 = sphi 0, %s74
    %s91 = sphi 0, %s75
    %s97 = sphi 0, %s99
    %s100 = sphi 0, %s97
    %s101 = sphi 0, %s100
    %s117 = sphi 0, %s101
    %s123 = sphi 0, %s125
    %s126 = sphi 0, %s123
    %s127 = sphi 0, %s126
    %s143 = sphi 0, %s127
    %s149 = sphi 0, %s151
    %s152 = sphi 0, %s149
    %s153 = sphi 0, %s152
    %s169 = sphi 0, %s153
    %s175 = sphi 0, %s177
    %s178 = sphi 0, %s175
    %s179 = sphi 0, %s178
    %s195 = sphi 0, %s179
    %s201 = sphi 0, %s203
    %s204 = sphi 0, %s201
    %s205 = sphi 0, %s204
    %s221 = sphi 0, %s205
    %s227 = sphi 0, %s229
    %s230 = sphi 0, %s227
    %s231 = sphi 0, %s230
    %s247 = sphi 0, %s231
    %s253 = sphi 0, %s255
    %s256 = sphi 0, %s253
    %s257 = sphi 0, %s256
    %s273 = sphi 0, %s257
    %s279 = sphi 0, %s281
    %s282 = sphi 0, %s279
    %s283 = sphi 0, %s282
    %s299 = sphi 0, %s283
    %s303 = sphi 0, %s303
    %s305 = sphi 0, %s303
    %s306 = sphi 0, %s305
    %s320 = sphi 0, %s306
    %s324 = sphi 0, %s324
    %s326 = sphi 0, %s324
    %s327 = sphi 0, %s326
    %s341 = sphi 0, %s327
    %s345 = sphi 0, %s345
    %s347 = sphi 0, %s345
    %s348 = sphi 0, %s347
    %s362 = sphi 0, %s348
    %s366 = sphi 0, %s366
    %s368 = sphi 0, %s366
    %s369 = sphi 0, %s368
    %s383 = sphi 0, %s369
    %s387 = sphi 0, %s387
    %s389 = sphi 0, %s387
    %s390 = sphi 0, %s389
    %s404 = sphi 0, %s390
    %s408 = sphi 0, %s408
    %s410 = sphi 0, %s408
    %s411 = sphi 0, %s410
    %s425 = sphi 0, %s411
    %s429 = sphi 0, %s429
    %s431 = sphi 0, %s429
    %s432 = sphi 0, %s431
    %s446 = sphi 0, %s432
    %s452 = sphi 0, %s454
    %s455 = sphi 0, %s452
    %s456 = sphi 0, %s455
    %s472 = sphi 0, %s456
  $region4: #{tpu_custom_call.1} parent=0 // loop_header_branch
    %26 = sbr.rel (%p24) target = $region8
  $region5: #{tpu_custom_call.1} parent=0 // loop_body
    %s28 = ssub.s32 %s23, 1
    %s29 = ssub.s32 %s23, 2
    %s36 = sadd.s32 1, %s31
    %p37 = scmp.ge.s32.totalorder %s36, 2
    %s38 = scalar_select %p37, 0, %s36
    %s39 = sadd.s32 1, %s30
    %s40 = scalar_select %p37, %s39, %s30
    %p41 = scmp.ge.s32.totalorder %s40, 2
    %s42 = scalar_select %p41, 0, %s40
    %s43 = ssub.s32 %s30, %s42
    %p44 = scmp.eq.s32.totalorder %s43, 0
    %s46 = sadd.s32 %s45, 1
    %s47 = scalar_select %p44, %s45, %s46
    %p50 = pneg %p44
    %p51 = scmp.eq.s32.totalorder %s23, 3
    %p52 = por %p50, %p51
    %p53 = scmp.ne.s32.totalorder %s45, %s48
    %p54 = scmp.eq.s32.totalorder %s23, 0
    %p55 = por %p53, %p54
    %p56 = scmp.ne.s32.totalorder %s45, %s48
    %p57 = scmp.eq.s32.totalorder %s28, 3
    %p58 = por %p56, %p57
    %p59 = scmp.ne.s32.totalorder %s48, %s49
    %p60 = scmp.eq.s32.totalorder %s28, 0
    %p61 = por %p59, %p60
    %p62 = scmp.ne.s32.totalorder %s48, %s49
    %p63 = scmp.eq.s32.totalorder %s29, 3
    %p64 = por %p62, %p63
    %p66 = scmp.ne.s32.totalorder %s49, %s65
    %p67 = scmp.eq.s32.totalorder %s29, 0
    %p68 = por %p66, %p67
    %s69 = ssub.s32 %s31, %s38
    %p70 = scmp.eq.s32.totalorder %s69, 0
    %s72 = sadd.s32 %s71, 1
    %s73 = scalar_select %p70, %s71, %s72
    %p76 = pneg %p70
    %p77 = scmp.eq.s32.totalorder %s23, 3
    %p78 = por %p76, %p77
    %p79 = scmp.ne.s32.totalorder %s71, %s74
    %p80 = scmp.eq.s32.totalorder %s23, 0
    %p81 = por %p79, %p80
    %p82 = scmp.ne.s32.totalorder %s71, %s74
    %p83 = scmp.eq.s32.totalorder %s28, 3
    %p84 = por %p82, %p83
    %p85 = scmp.ne.s32.totalorder %s74, %s75
    %p86 = scmp.eq.s32.totalorder %s28, 0
    %p87 = por %p85, %p86
    %p88 = scmp.ne.s32.totalorder %s74, %s75
    %p89 = scmp.eq.s32.totalorder %s29, 3
    %p90 = por %p88, %p89
    %p92 = scmp.ne.s32.totalorder %s75, %s91
    %p93 = scmp.eq.s32.totalorder %s29, 0
    %p94 = por %p92, %p93
    %s95 = ssub.s32 %s30, %s42
    %p96 = scmp.eq.s32.totalorder %s95, 0
    %s98 = sadd.s32 %s97, 1
    %s99 = scalar_select %p96, %s97, %s98
    %p102 = pneg %p96
    %p103 = scmp.eq.s32.totalorder %s23, 3
    %p104 = por %p102, %p103
    %p105 = scmp.ne.s32.totalorder %s97, %s100
    %p106 = scmp.eq.s32.totalorder %s23, 0
    %p107 = por %p105, %p106
    %p108 = scmp.ne.s32.totalorder %s97, %s100
    %p109 = scmp.eq.s32.totalorder %s28, 3
    %p110 = por %p108, %p109
    %p111 = scmp.ne.s32.totalorder %s100, %s101
    %p112 = scmp.eq.s32.totalorder %s28, 0
    %p113 = por %p111, %p112
    %p114 = scmp.ne.s32.totalorder %s100, %s101
    %p115 = scmp.eq.s32.totalorder %s29, 3
    %p116 = por %p114, %p115
    %p118 = scmp.ne.s32.totalorder %s101, %s117
    %p119 = scmp.eq.s32.totalorder %s29, 0
    %p120 = por %p118, %p119
    %s121 = ssub.s32 %s31, %s38
    %p122 = scmp.eq.s32.totalorder %s121, 0
    %s124 = sadd.s32 %s123, 1
    %s125 = scalar_select %p122, %s123, %s124
    %p128 = pneg %p122
    %p129 = scmp.eq.s32.totalorder %s23, 3
    %p130 = por %p128, %p129
    %p131 = scmp.ne.s32.totalorder %s123, %s126
    %p132 = scmp.eq.s32.totalorder %s23, 0
    %p133 = por %p131, %p132
    %p134 = scmp.ne.s32.totalorder %s123, %s126
    %p135 = scmp.eq.s32.totalorder %s28, 3
    %p136 = por %p134, %p135
    %p137 = scmp.ne.s32.totalorder %s126, %s127
    %p138 = scmp.eq.s32.totalorder %s28, 0
    %p139 = por %p137, %p138
    %p140 = scmp.ne.s32.totalorder %s126, %s127
    %p141 = scmp.eq.s32.totalorder %s29, 3
    %p142 = por %p140, %p141
    %p144 = scmp.ne.s32.totalorder %s127, %s143
    %p145 = scmp.eq.s32.totalorder %s29, 0
    %p146 = por %p144, %p145
    %s147 = ssub.s32 %s30, %s42
    %p148 = scmp.eq.s32.totalorder %s147, 0
    %s150 = sadd.s32 %s149, 1
    %s151 = scalar_select %p148, %s149, %s150
    %p154 = pneg %p148
    %p155 = scmp.eq.s32.totalorder %s23, 3
    %p156 = por %p154, %p155
    %p157 = scmp.ne.s32.totalorder %s149, %s152
    %p158 = scmp.eq.s32.totalorder %s23, 0
    %p159 = por %p157, %p158
    %p160 = scmp.ne.s32.totalorder %s149, %s152
    %p161 = scmp.eq.s32.totalorder %s28, 3
    %p162 = por %p160, %p161
    %p163 = scmp.ne.s32.totalorder %s152, %s153
    %p164 = scmp.eq.s32.totalorder %s28, 0
    %p165 = por %p163, %p164
    %p166 = scmp.ne.s32.totalorder %s152, %s153
    %p167 = scmp.eq.s32.totalorder %s29, 3
    %p168 = por %p166, %p167
    %p170 = scmp.ne.s32.totalorder %s153, %s169
    %p171 = scmp.eq.s32.totalorder %s29, 0
    %p172 = por %p170, %p171
    %s173 = ssub.s32 %s30, %s42
    %p174 = scmp.eq.s32.totalorder %s173, 0
    %s176 = sadd.s32 %s175, 1
    %s177 = scalar_select %p174, %s175, %s176
    %p180 = pneg %p174
    %p181 = scmp.eq.s32.totalorder %s23, 3
    %p182 = por %p180, %p181
    %p183 = scmp.ne.s32.totalorder %s175, %s178
    %p184 = scmp.eq.s32.totalorder %s23, 0
    %p185 = por %p183, %p184
    %p186 = scmp.ne.s32.totalorder %s175, %s178
    %p187 = scmp.eq.s32.totalorder %s28, 3
    %p188 = por %p186, %p187
    %p189 = scmp.ne.s32.totalorder %s178, %s179
    %p190 = scmp.eq.s32.totalorder %s28, 0
    %p191 = por %p189, %p190
    %p192 = scmp.ne.s32.totalorder %s178, %s179
    %p193 = scmp.eq.s32.totalorder %s29, 3
    %p194 = por %p192, %p193
    %p196 = scmp.ne.s32.totalorder %s179, %s195
    %p197 = scmp.eq.s32.totalorder %s29, 0
    %p198 = por %p196, %p197
    %s199 = ssub.s32 %s30, %s42
    %p200 = scmp.eq.s32.totalorder %s199, 0
    %s202 = sadd.s32 %s201, 1
    %s203 = scalar_select %p200, %s201, %s202
    %p206 = pneg %p200
    %p207 = scmp.eq.s32.totalorder %s23, 3
    %p208 = por %p206, %p207
    %p209 = scmp.ne.s32.totalorder %s201, %s204
    %p210 = scmp.eq.s32.totalorder %s23, 0
    %p211 = por %p209, %p210
    %p212 = scmp.ne.s32.totalorder %s201, %s204
    %p213 = scmp.eq.s32.totalorder %s28, 3
    %p214 = por %p212, %p213
    %p215 = scmp.ne.s32.totalorder %s204, %s205
    %p216 = scmp.eq.s32.totalorder %s28, 0
    %p217 = por %p215, %p216
    %p218 = scmp.ne.s32.totalorder %s204, %s205
    %p219 = scmp.eq.s32.totalorder %s29, 3
    %p220 = por %p218, %p219
    %p222 = scmp.ne.s32.totalorder %s205, %s221
    %p223 = scmp.eq.s32.totalorder %s29, 0
    %p224 = por %p222, %p223
    %s225 = ssub.s32 %s31, %s38
    %p226 = scmp.eq.s32.totalorder %s225, 0
    %s228 = sadd.s32 %s227, 1
    %s229 = scalar_select %p226, %s227, %s228
    %p232 = pneg %p226
    %p233 = scmp.eq.s32.totalorder %s23, 3
    %p234 = por %p232, %p233
    %p235 = scmp.ne.s32.totalorder %s227, %s230
    %p236 = scmp.eq.s32.totalorder %s23, 0
    %p237 = por %p235, %p236
    %p238 = scmp.ne.s32.totalorder %s227, %s230
    %p239 = scmp.eq.s32.totalorder %s28, 3
    %p240 = por %p238, %p239
    %p241 = scmp.ne.s32.totalorder %s230, %s231
    %p242 = scmp.eq.s32.totalorder %s28, 0
    %p243 = por %p241, %p242
    %p244 = scmp.ne.s32.totalorder %s230, %s231
    %p245 = scmp.eq.s32.totalorder %s29, 3
    %p246 = por %p244, %p245
    %p248 = scmp.ne.s32.totalorder %s231, %s247
    %p249 = scmp.eq.s32.totalorder %s29, 0
    %p250 = por %p248, %p249
    %s251 = ssub.s32 %s31, %s38
    %p252 = scmp.eq.s32.totalorder %s251, 0
    %s254 = sadd.s32 %s253, 1
    %s255 = scalar_select %p252, %s253, %s254
    %p258 = pneg %p252
    %p259 = scmp.eq.s32.totalorder %s23, 3
    %p260 = por %p258, %p259
    %p261 = scmp.ne.s32.totalorder %s253, %s256
    %p262 = scmp.eq.s32.totalorder %s23, 0
    %p263 = por %p261, %p262
    %p264 = scmp.ne.s32.totalorder %s253, %s256
    %p265 = scmp.eq.s32.totalorder %s28, 3
    %p266 = por %p264, %p265
    %p267 = scmp.ne.s32.totalorder %s256, %s257
    %p268 = scmp.eq.s32.totalorder %s28, 0
    %p269 = por %p267, %p268
    %p270 = scmp.ne.s32.totalorder %s256, %s257
    %p271 = scmp.eq.s32.totalorder %s29, 3
    %p272 = por %p270, %p271
    %p274 = scmp.ne.s32.totalorder %s257, %s273
    %p275 = scmp.eq.s32.totalorder %s29, 0
    %p276 = por %p274, %p275
    %s277 = ssub.s32 %s31, %s38
    %p278 = scmp.eq.s32.totalorder %s277, 0
    %s280 = sadd.s32 %s279, 1
    %s281 = scalar_select %p278, %s279, %s280
    %p284 = pneg %p278
    %p285 = scmp.eq.s32.totalorder %s23, 3
    %p286 = por %p284, %p285
    %p287 = scmp.ne.s32.totalorder %s279, %s282
    %p288 = scmp.eq.s32.totalorder %s23, 0
    %p289 = por %p287, %p288
    %p290 = scmp.ne.s32.totalorder %s279, %s282
    %p291 = scmp.eq.s32.totalorder %s28, 3
    %p292 = por %p290, %p291
    %p293 = scmp.ne.s32.totalorder %s282, %s283
    %p294 = scmp.eq.s32.totalorder %s28, 0
    %p295 = por %p293, %p294
    %p296 = scmp.ne.s32.totalorder %s282, %s283
    %p297 = scmp.eq.s32.totalorder %s29, 3
    %p298 = por %p296, %p297
    %p300 = scmp.ne.s32.totalorder %s283, %s299
    %p301 = scmp.eq.s32.totalorder %s29, 0
    %p302 = por %p300, %p301
    %s304 = sadd.s32 %s303, 1
    %p307 = scmp.eq.s32.totalorder %s23, 3
    %p308 = scmp.ne.s32.totalorder %s303, %s305
    %p309 = scmp.eq.s32.totalorder %s23, 0
    %p310 = por %p308, %p309
    %p311 = scmp.ne.s32.totalorder %s303, %s305
    %p312 = scmp.eq.s32.totalorder %s28, 3
    %p313 = por %p311, %p312
    %p314 = scmp.ne.s32.totalorder %s305, %s306
    %p315 = scmp.eq.s32.totalorder %s28, 0
    %p316 = por %p314, %p315
    %p317 = scmp.ne.s32.totalorder %s305, %s306
    %p318 = scmp.eq.s32.totalorder %s29, 3
    %p319 = por %p317, %p318
    %p321 = scmp.ne.s32.totalorder %s306, %s320
    %p322 = scmp.eq.s32.totalorder %s29, 0
    %p323 = por %p321, %p322
    %s325 = sadd.s32 %s324, 1
    %p328 = scmp.eq.s32.totalorder %s23, 3
    %p329 = scmp.ne.s32.totalorder %s324, %s326
    %p330 = scmp.eq.s32.totalorder %s23, 0
    %p331 = por %p329, %p330
    %p332 = scmp.ne.s32.totalorder %s324, %s326
    %p333 = scmp.eq.s32.totalorder %s28, 3
    %p334 = por %p332, %p333
    %p335 = scmp.ne.s32.totalorder %s326, %s327
    %p336 = scmp.eq.s32.totalorder %s28, 0
    %p337 = por %p335, %p336
    %p338 = scmp.ne.s32.totalorder %s326, %s327
    %p339 = scmp.eq.s32.totalorder %s29, 3
    %p340 = por %p338, %p339
    %p342 = scmp.ne.s32.totalorder %s327, %s341
    %p343 = scmp.eq.s32.totalorder %s29, 0
    %p344 = por %p342, %p343
    %s346 = sadd.s32 %s345, 1
    %p349 = scmp.eq.s32.totalorder %s23, 3
    %p350 = scmp.ne.s32.totalorder %s345, %s347
    %p351 = scmp.eq.s32.totalorder %s23, 0
    %p352 = por %p350, %p351
    %p353 = scmp.ne.s32.totalorder %s345, %s347
    %p354 = scmp.eq.s32.totalorder %s28, 3
    %p355 = por %p353, %p354
    %p356 = scmp.ne.s32.totalorder %s347, %s348
    %p357 = scmp.eq.s32.totalorder %s28, 0
    %p358 = por %p356, %p357
    %p359 = scmp.ne.s32.totalorder %s347, %s348
    %p360 = scmp.eq.s32.totalorder %s29, 3
    %p361 = por %p359, %p360
    %p363 = scmp.ne.s32.totalorder %s348, %s362
    %p364 = scmp.eq.s32.totalorder %s29, 0
    %p365 = por %p363, %p364
    %s367 = sadd.s32 %s366, 1
    %p370 = scmp.eq.s32.totalorder %s23, 3
    %p371 = scmp.ne.s32.totalorder %s366, %s368
    %p372 = scmp.eq.s32.totalorder %s23, 0
    %p373 = por %p371, %p372
    %p374 = scmp.ne.s32.totalorder %s366, %s368
    %p375 = scmp.eq.s32.totalorder %s28, 3
    %p376 = por %p374, %p375
    %p377 = scmp.ne.s32.totalorder %s368, %s369
    %p378 = scmp.eq.s32.totalorder %s28, 0
    %p379 = por %p377, %p378
    %p380 = scmp.ne.s32.totalorder %s368, %s369
    %p381 = scmp.eq.s32.totalorder %s29, 3
    %p382 = por %p380, %p381
    %p384 = scmp.ne.s32.totalorder %s369, %s383
    %p385 = scmp.eq.s32.totalorder %s29, 0
    %p386 = por %p384, %p385
    %s388 = sadd.s32 %s387, 1
    %p391 = scmp.eq.s32.totalorder %s23, 3
    %p392 = scmp.ne.s32.totalorder %s387, %s389
    %p393 = scmp.eq.s32.totalorder %s23, 0
    %p394 = por %p392, %p393
    %p395 = scmp.ne.s32.totalorder %s387, %s389
    %p396 = scmp.eq.s32.totalorder %s28, 3
    %p397 = por %p395, %p396
    %p398 = scmp.ne.s32.totalorder %s389, %s390
    %p399 = scmp.eq.s32.totalorder %s28, 0
    %p400 = por %p398, %p399
    %p401 = scmp.ne.s32.totalorder %s389, %s390
    %p402 = scmp.eq.s32.totalorder %s29, 3
    %p403 = por %p401, %p402
    %p405 = scmp.ne.s32.totalorder %s390, %s404
    %p406 = scmp.eq.s32.totalorder %s29, 0
    %p407 = por %p405, %p406
    %s409 = sadd.s32 %s408, 1
    %p412 = scmp.eq.s32.totalorder %s23, 3
    %p413 = scmp.ne.s32.totalorder %s408, %s410
    %p414 = scmp.eq.s32.totalorder %s23, 0
    %p415 = por %p413, %p414
    %p416 = scmp.ne.s32.totalorder %s408, %s410
    %p417 = scmp.eq.s32.totalorder %s28, 3
    %p418 = por %p416, %p417
    %p419 = scmp.ne.s32.totalorder %s410, %s411
    %p420 = scmp.eq.s32.totalorder %s28, 0
    %p421 = por %p419, %p420
    %p422 = scmp.ne.s32.totalorder %s410, %s411
    %p423 = scmp.eq.s32.totalorder %s29, 3
    %p424 = por %p422, %p423
    %p426 = scmp.ne.s32.totalorder %s411, %s425
    %p427 = scmp.eq.s32.totalorder %s29, 0
    %p428 = por %p426, %p427
    %s430 = sadd.s32 %s429, 1
    %p433 = scmp.eq.s32.totalorder %s23, 3
    %p434 = scmp.ne.s32.totalorder %s429, %s431
    %p435 = scmp.eq.s32.totalorder %s23, 0
    %p436 = por %p434, %p435
    %p437 = scmp.ne.s32.totalorder %s429, %s431
    %p438 = scmp.eq.s32.totalorder %s28, 3
    %p439 = por %p437, %p438
    %p440 = scmp.ne.s32.totalorder %s431, %s432
    %p441 = scmp.eq.s32.totalorder %s28, 0
    %p442 = por %p440, %p441
    %p443 = scmp.ne.s32.totalorder %s431, %s432
    %p444 = scmp.eq.s32.totalorder %s29, 3
    %p445 = por %p443, %p444
    %p447 = scmp.ne.s32.totalorder %s432, %s446
    %p448 = scmp.eq.s32.totalorder %s29, 0
    %p449 = por %p447, %p448
    %s450 = ssub.s32 %s30, %s42
    %p451 = scmp.eq.s32.totalorder %s450, 0
    %s453 = sadd.s32 %s452, 1
    %s454 = scalar_select %p451, %s452, %s453
    %p457 = pneg %p451
    %p458 = scmp.eq.s32.totalorder %s23, 3
    %p459 = por %p457, %p458
    %p460 = scmp.ne.s32.totalorder %s452, %s455
    %p461 = scmp.eq.s32.totalorder %s23, 0
    %p462 = por %p460, %p461
    %p463 = scmp.ne.s32.totalorder %s452, %s455
    %p464 = scmp.eq.s32.totalorder %s28, 3
    %p465 = por %p463, %p464
    %p466 = scmp.ne.s32.totalorder %s455, %s456
    %p467 = scmp.eq.s32.totalorder %s28, 0
    %p468 = por %p466, %p467
    %p469 = scmp.ne.s32.totalorder %s455, %s456
    %p470 = scmp.eq.s32.totalorder %s29, 3
    %p471 = por %p469, %p470
    %p473 = scmp.ne.s32.totalorder %s456, %s472
    %p474 = scmp.eq.s32.totalorder %s29, 0
    %p475 = por %p473, %p474
    %p476 = scmp.le.s32.totalorder 1, %s23
    %p477 = scmp.lt.s32.totalorder %s23, 5
    %p478 = pnand %p476, %p477
    %p479 = pneg %p478
    // Predicated region
    $region9: #{tpu_custom_call.1} parent=5 // pred_check
      _
    $region10: #{tpu_custom_call.1} parent=5 // pred_check_branch
      %481 = sbr.rel (%p478) target = $region12
    $region11: #{tpu_custom_call.1} parent=5 // pred_region
      %s482 = ssub.s32 %s23, 1
      // Predicated region
      $region13: #{tpu_custom_call.1} parent=11 // pred_check
        %p483 = pneg %p316
      $region14: #{tpu_custom_call.1} parent=11 // pred_check_branch
        %485 = sbr.rel (%p483) target = $region16
      $region15: #{tpu_custom_call.1} parent=11 // pred_region
        _
      $region16: #{tpu_custom_call.1} parent=11 // pred_fallthru
        _
      // Predicated region
      $region17: #{tpu_custom_call.1} parent=11 // pred_check
        %p486 = pneg %p337
      $region18: #{tpu_custom_call.1} parent=11 // pred_check_branch
        %488 = sbr.rel (%p486) target = $region20
      $region19: #{tpu_custom_call.1} parent=11 // pred_region
        _
      $region20: #{tpu_custom_call.1} parent=11 // pred_fallthru
        _
      // Predicated region
      $region21: #{tpu_custom_call.1} parent=11 // pred_check
        %p489 = pneg %p358
      $region22: #{tpu_custom_call.1} parent=11 // pred_check_branch
        %491 = sbr.rel (%p489) target = $region24
      $region23: #{tpu_custom_call.1} parent=11 // pred_region
        _
      $region24: #{tpu_custom_call.1} parent=11 // pred_fallthru
        _
      // Predicated region
      $region25: #{tpu_custom_call.1} parent=11 // pred_check
        %p492 = pneg %p379
      $region26: #{tpu_custom_call.1} parent=11 // pred_check_branch
        %494 = sbr.rel (%p492) target = $region28
      $region27: #{tpu_custom_call.1} parent=11 // pred_region
        _
      $region28: #{tpu_custom_call.1} parent=11 // pred_fallthru
        _
      // Predicated region
      $region29: #{tpu_custom_call.1} parent=11 // pred_check
        %p495 = pneg %p400
      $region30: #{tpu_custom_call.1} parent=11 // pred_check_branch
        %497 = sbr.rel (%p495) target = $region32
      $region31: #{tpu_custom_call.1} parent=11 // pred_region
        _
      $region32: #{tpu_custom_call.1} parent=11 // pred_fallthru
        _
      // Predicated region
      $region33: #{tpu_custom_call.1} parent=11 // pred_check
        %p498 = pneg %p421
      $region34: #{tpu_custom_call.1} parent=11 // pred_check_branch
        %500 = sbr.rel (%p498) target = $region36
      $region35: #{tpu_custom_call.1} parent=11 // pred_region
        _
      $region36: #{tpu_custom_call.1} parent=11 // pred_fallthru
        _
      // Predicated region
      $region37: #{tpu_custom_call.1} parent=11 // pred_check
        %p501 = pneg %p442
      $region38: #{tpu_custom_call.1} parent=11 // pred_check_branch
        %503 = sbr.rel (%p501) target = $region40
      $region39: #{tpu_custom_call.1} parent=11 // pred_region
        _
      $region40: #{tpu_custom_call.1} parent=11 // pred_fallthru
        _
    $region12: #{tpu_custom_call.1} parent=5 // pred_fallthru
      _
    %p504 = scmp.lt.s32.totalorder %s23, 4
    // Predicated region
    $region41: #{tpu_custom_call.1} parent=5 // pred_check
      %p505 = pneg %p504
    $region42: #{tpu_custom_call.1} parent=5 // pred_check_branch
      %507 = sbr.rel (%p505) target = $region44
    $region43: #{tpu_custom_call.1} parent=5 // pred_region
      // Predicated region
      $region45: #{tpu_custom_call.1} parent=43 // pred_check
        %p508 = pneg %p55
      $region46: #{tpu_custom_call.1} parent=43 // pred_check_branch
        %510 = sbr.rel (%p508) target = $region48
      $region47: #{tpu_custom_call.1} parent=43 // pred_region
        %s511 = smul.u32 16, %s30
        %p512 = scmp.lt.s32.totalorder %s511, 31
        %s513 = scalar_select %p512, %s511, 31
        %s514 = smul.addr %s513, 8
        %s515 = scalar_lea.vmem %s0, %s514
        %s516 = smul.u32 16, %s30
      $region48: #{tpu_custom_call.1} parent=43 // pred_fallthru
        _
      // Predicated region
      $region49: #{tpu_custom_call.1} parent=43 // pred_check
        %p517 = pneg %p81
      $region50: #{tpu_custom_call.1} parent=43 // pred_check_branch
        %519 = sbr.rel (%p517) target = $region52
      $region51: #{tpu_custom_call.1} parent=43 // pred_region
        %p520 = scmp.lt.s32.totalorder %s31, 1
        %s521 = scalar_select %p520, %s31, 1
        %s522 = scalar_lea.vmem %s1, %s521
      $region52: #{tpu_custom_call.1} parent=43 // pred_fallthru
        _
      // Predicated region
      $region53: #{tpu_custom_call.1} parent=43 // pred_check
        %p523 = pneg %p107
      $region54: #{tpu_custom_call.1} parent=43 // pred_check_branch
        %525 = sbr.rel (%p523) target = $region56
      $region55: #{tpu_custom_call.1} parent=43 // pred_region
        %s526 = smul.u32 16, %s30
        %p527 = scmp.lt.s32.totalorder %s526, 31
        %s528 = scalar_select %p527, %s526, 31
        %s529 = smul.addr %s528, 4
        %s530 = scalar_lea.vmem %s2, %s529
        %s531 = smul.u32 16, %s30
      $region56: #{tpu_custom_call.1} parent=43 // pred_fallthru
        _
      // Predicated region
      $region57: #{tpu_custom_call.1} parent=43 // pred_check
        %p532 = pneg %p133
      $region58: #{tpu_custom_call.1} parent=43 // pred_check_branch
        %534 = sbr.rel (%p532) target = $region60
      $region59: #{tpu_custom_call.1} parent=43 // pred_region
        %s535 = smul.u32 16, %s31
        %p536 = scmp.lt.s32.totalorder %s535, 31
        %s537 = scalar_select %p536, %s535, 31
        %s538 = smul.addr %s537, 4
        %s539 = scalar_lea.vmem %s3, %s538
        %s540 = smul.u32 16, %s31
      $region60: #{tpu_custom_call.1} parent=43 // pred_fallthru
        _
      // Predicated region
      $region61: #{tpu_custom_call.1} parent=43 // pred_check
        %p541 = pneg %p159
      $region62: #{tpu_custom_call.1} parent=43 // pred_check_branch
        %543 = sbr.rel (%p541) target = $region64
      $region63: #{tpu_custom_call.1} parent=43 // pred_region
        %s544 = smul.u32 16, %s30
        %p545 = scmp.lt.s32.totalorder %s544, 31
        %s546 = scalar_select %p545, %s544, 31
        %s547 = smul.addr %s546, 8
        %s548 = scalar_lea.vmem %s4, %s547
        %s549 = smul.u32 16, %s30
      $region64: #{tpu_custom_call.1} parent=43 // pred_fallthru
        _
      // Predicated region
      $region65: #{tpu_custom_call.1} parent=43 // pred_check
        %p550 = pneg %p185
      $region66: #{tpu_custom_call.1} parent=43 // pred_check_branch
        %552 = sbr.rel (%p550) target = $region68
      $region67: #{tpu_custom_call.1} parent=43 // pred_region
        %s553 = smul.u32 16, %s30
        %p554 = scmp.lt.s32.totalorder %s553, 31
        %s555 = scalar_select %p554, %s553, 31
        %s556 = smul.addr %s555, 8
        %s557 = scalar_lea.vmem %s5, %s556
        %s558 = smul.u32 16, %s30
      $region68: #{tpu_custom_call.1} parent=43 // pred_fallthru
        _
      // Predicated region
      $region69: #{tpu_custom_call.1} parent=43 // pred_check
        %p559 = pneg %p211
      $region70: #{tpu_custom_call.1} parent=43 // pred_check_branch
        %561 = sbr.rel (%p559) target = $region72
      $region71: #{tpu_custom_call.1} parent=43 // pred_region
        %s562 = smul.u32 16, %s30
        %p563 = scmp.lt.s32.totalorder %s562, 31
        %s564 = scalar_select %p563, %s562, 31
        %s565 = smul.addr %s564, 8
        %s566 = scalar_lea.vmem %s6, %s565
        %s567 = smul.u32 16, %s30
      $region72: #{tpu_custom_call.1} parent=43 // pred_fallthru
        _
      // Predicated region
      $region73: #{tpu_custom_call.1} parent=43 // pred_check
        %p568 = pneg %p237
      $region74: #{tpu_custom_call.1} parent=43 // pred_check_branch
        %570 = sbr.rel (%p568) target = $region76
      $region75: #{tpu_custom_call.1} parent=43 // pred_region
        %s571 = smul.u32 16, %s31
        %p572 = scmp.lt.s32.totalorder %s571, 31
        %s573 = scalar_select %p572, %s571, 31
        %s574 = smul.addr %s573, 8
        %s575 = scalar_lea.vmem %s7, %s574
        %s576 = smul.u32 16, %s31
      $region76: #{tpu_custom_call.1} parent=43 // pred_fallthru
        _
      // Predicated region
      $region77: #{tpu_custom_call.1} parent=43 // pred_check
        %p577 = pneg %p263
      $region78: #{tpu_custom_call.1} parent=43 // pred_check_branch
        %579 = sbr.rel (%p577) target = $region80
      $region79: #{tpu_custom_call.1} parent=43 // pred_region
        %s580 = smul.u32 16, %s31
        %p581 = scmp.lt.s32.totalorder %s580, 31
        %s582 = scalar_select %p581, %s580, 31
        %s583 = smul.addr %s582, 8
        %s584 = scalar_lea.vmem %s8, %s583
        %s585 = smul.u32 16, %s31
      $region80: #{tpu_custom_call.1} parent=43 // pred_fallthru
        _
      // Predicated region
      $region81: #{tpu_custom_call.1} parent=43 // pred_check
        %p586 = pneg %p289
      $region82: #{tpu_custom_call.1} parent=43 // pred_check_branch
        %588 = sbr.rel (%p586) target = $region84
      $region83: #{tpu_custom_call.1} parent=43 // pred_region
        %s589 = smul.u32 16, %s31
        %p590 = scmp.lt.s32.totalorder %s589, 31
        %s591 = scalar_select %p590, %s589, 31
        %s592 = smul.addr %s591, 8
        %s593 = scalar_lea.vmem %s9, %s592
        %s594 = smul.u32 16, %s31
      $region84: #{tpu_custom_call.1} parent=43 // pred_fallthru
        _
    $region44: #{tpu_custom_call.1} parent=5 // pred_fallthru
      _
    %p595 = scmp.le.s32.totalorder 1, %s23
    %p596 = scmp.lt.s32.totalorder %s23, 5
    %p597 = pnand %p595, %p596
    %p598 = pneg %p597
    // Predicated region
    $region85: #{tpu_custom_call.1} parent=5 // pred_check
      _
    $region86: #{tpu_custom_call.1} parent=5 // pred_check_branch
      %600 = sbr.rel (%p597) target = $region88
    $region87: #{tpu_custom_call.1} parent=5 // pred_region
      %s601 = ssub.s32 %s23, 1
      %s602 = smul.u32 16, %s32
      %p603 = scmp.lt.s32.totalorder %s602, 31
      %s604 = scalar_select %p603, %s602, 31
      %s605 = smul.addr %s604, 8
      %s606 = scalar_lea.vmem %s0, %s605
      %p607 = pneg %p61
      %p608 = pneg %p58
      %p609 = scmp.lt.s32.totalorder %s33, 1
      %s610 = scalar_select %p609, %s33, 1
      %s611 = scalar_lea.vmem %s1, %s610
      %p612 = pneg %p87
      %p613 = pneg %p84
      %s614 = smul.u32 16, %s32
      %p615 = scmp.lt.s32.totalorder %s614, 31
      %s616 = scalar_select %p615, %s614, 31
      %s617 = smul.addr %s616, 4
      %s618 = scalar_lea.vmem %s2, %s617
      %p619 = pneg %p113
      %p620 = pneg %p110
      %s621 = smul.u32 16, %s33
      %p622 = scmp.lt.s32.totalorder %s621, 31
      %s623 = scalar_select %p622, %s621, 31
      %s624 = smul.addr %s623, 4
      %s625 = scalar_lea.vmem %s3, %s624
      %p626 = pneg %p139
      %p627 = pneg %p136
      %s628 = smul.u32 16, %s32
      %p629 = scmp.lt.s32.totalorder %s628, 31
      %s630 = scalar_select %p629, %s628, 31
      %s631 = smul.addr %s630, 8
      %s632 = scalar_lea.vmem %s4, %s631
      %p633 = pneg %p165
      %p634 = pneg %p162
      %s635 = smul.u32 16, %s32
      %p636 = scmp.lt.s32.totalorder %s635, 31
      %s637 = scalar_select %p636, %s635, 31
      %s638 = smul.addr %s637, 8
      %s639 = scalar_lea.vmem %s5, %s638
      %p640 = pneg %p191
      %p641 = pneg %p188
      %s642 = smul.u32 16, %s32
      %p643 = scmp.lt.s32.totalorder %s642, 31
      %s644 = scalar_select %p643, %s642, 31
      %s645 = smul.addr %s644, 8
      %s646 = scalar_lea.vmem %s6, %s645
      %p647 = pneg %p217
      %p648 = pneg %p214
      %s649 = smul.u32 16, %s33
      %p650 = scmp.lt.s32.totalorder %s649, 31
      %s651 = scalar_select %p650, %s649, 31
      %s652 = smul.addr %s651, 8
      %s653 = scalar_lea.vmem %s7, %s652
      %p654 = pneg %p243
      %p655 = pneg %p240
      %s656 = smul.u32 16, %s33
      %p657 = scmp.lt.s32.totalorder %s656, 31
      %s658 = scalar_select %p657, %s656, 31
      %s659 = smul.addr %s658, 8
      %s660 = scalar_lea.vmem %s8, %s659
      %p661 = pneg %p269
      %p662 = pneg %p266
      %s663 = smul.u32 16, %s33
      %p664 = scmp.lt.s32.totalorder %s663, 31
      %s665 = scalar_select %p664, %s663, 31
      %s666 = smul.addr %s665, 8
      %s667 = scalar_lea.vmem %s9, %s666
      %p668 = pneg %p295
      %p669 = pneg %p292
      %p670 = pneg %p316
      %p671 = pneg %p313
      %p672 = pneg %p337
      %p673 = pneg %p334
      %p674 = pneg %p358
      %p675 = pneg %p355
      %p676 = pneg %p379
      %p677 = pneg %p376
      %p678 = pneg %p400
      %p679 = pneg %p397
      %p680 = pneg %p421
      %p681 = pneg %p418
      %p682 = pneg %p442
      %p683 = pneg %p439
      %p684 = pneg %p468
      %p685 = pneg %p465
      %s686 = smul.u32 16, %s32
      %p687 = scmp.lt.s32.totalorder %s686, 31
      %s688 = scalar_select %p687, %s686, 31
      %s689 = smul.addr %s688, 4
      %s690 = scalar_lea.vmem %s17, %s689
      %s691 = smul.u32 16, %s32
      %p692 = scmp.lt.s32.totalorder %s691, 31
      %s693 = scalar_select %p692, %s691, 31
      %s694 = smul.addr %s693, 8
      %s695 = scalar_lea.vmem %s0, %s694
      %s696 = smul.u32 16, %s32
      %p697 = scmp.lt.s32.totalorder %s33, 1
      %s698 = scalar_select %p697, %s33, 1
      %s699 = scalar_lea.vmem %s1, %s698
      %s700 = smul.u32 16, %s32
      %p701 = scmp.lt.s32.totalorder %s700, 31
      %s702 = scalar_select %p701, %s700, 31
      %s703 = smul.addr %s702, 4
      %s704 = scalar_lea.vmem %s2, %s703
      %s705 = smul.u32 16, %s32
      %s706 = smul.u32 16, %s33
      %p707 = scmp.lt.s32.totalorder %s706, 31
      %s708 = scalar_select %p707, %s706, 31
      %s709 = smul.addr %s708, 4
      %s710 = scalar_lea.vmem %s3, %s709
      %s711 = smul.u32 16, %s33
      %s712 = smul.u32 16, %s32
      %p713 = scmp.lt.s32.totalorder %s712, 31
      %s714 = scalar_select %p713, %s712, 31
      %s715 = smul.addr %s714, 8
      %s716 = scalar_lea.vmem %s4, %s715
      %s717 = smul.u32 16, %s32
      %s718 = smul.u32 16, %s32
      %p719 = scmp.lt.s32.totalorder %s718, 31
      %s720 = scalar_select %p719, %s718, 31
      %s721 = smul.addr %s720, 8
      %s722 = scalar_lea.vmem %s5, %s721
      %s723 = smul.u32 16, %s32
      %s724 = smul.u32 16, %s32
      %p725 = scmp.lt.s32.totalorder %s724, 31
      %s726 = scalar_select %p725, %s724, 31
      %s727 = smul.addr %s726, 8
      %s728 = scalar_lea.vmem %s6, %s727
      %s729 = smul.u32 16, %s32
      %s730 = smul.u32 16, %s33
      %p731 = scmp.lt.s32.totalorder %s730, 31
      %s732 = scalar_select %p731, %s730, 31
      %s733 = smul.addr %s732, 8
      %s734 = scalar_lea.vmem %s7, %s733
      %s735 = smul.u32 16, %s33
      %s736 = smul.u32 16, %s33
      %p737 = scmp.lt.s32.totalorder %s736, 31
      %s738 = scalar_select %p737, %s736, 31
      %s739 = smul.addr %s738, 8
      %s740 = scalar_lea.vmem %s8, %s739
      %s741 = smul.u32 16, %s33
      %s742 = smul.u32 16, %s33
      %p743 = scmp.lt.s32.totalorder %s742, 31
      %s744 = scalar_select %p743, %s742, 31
      %s745 = smul.addr %s744, 8
      %s746 = scalar_lea.vmem %s9, %s745
      %s747 = smul.u32 16, %s33
      %s748 = smul.u32 16, %s32
      %p749 = scmp.lt.s32.totalorder %s748, 31
      %s750 = scalar_select %p749, %s748, 31
      %s751 = smul.addr %s750, 4
      %s752 = scalar_lea.vmem %s17, %s751
      %s753 = smul.u32 16, %s32
      %v755 = vld [vmem:[%s10] sm:$0x1]
      %v756 = vunpack.c.l.bf16 %v755
      %v757 = vld [vmem:[%s11] sm:$0x1]
      %v758 = vunpack.c.l.bf16 %v757
      %p759 = scmp.eq.s32.totalorder %s33, 0
      // Predicated region
      $region89: #{tpu_custom_call.1} parent=87 // pred_check
        %p760 = pneg %p759
      $region90: #{tpu_custom_call.1} parent=87 // pred_check_branch
        %762 = sbr.rel (%p760) target = $region92
      $region91: #{tpu_custom_call.1} parent=87 // pred_region
        %v763 = vld [vmem:[%s704] sm:$0xf]
        %v764 = vld [vmem:[%s704 + $0x4] sm:$0xf]
        %v765 = vld [vmem:[%s704 + $0x8] sm:$0xf]
        %v766 = vld [vmem:[%s704 + $0xc] sm:$0xf]
        %v767 = vld [vmem:[%s704 + $0x10] sm:$0xf]
        %v768 = vld [vmem:[%s704 + $0x14] sm:$0xf]
        %v769 = vld [vmem:[%s704 + $0x18] sm:$0xf]
        %v770 = vld [vmem:[%s704 + $0x1c] sm:$0xf]
        %v771 = vld [vmem:[%s704 + $0x20] sm:$0xf]
        %v772 = vld [vmem:[%s704 + $0x24] sm:$0xf]
        %v773 = vld [vmem:[%s704 + $0x28] sm:$0xf]
        %v774 = vld [vmem:[%s704 + $0x2c] sm:$0xf]
        %v775 = vld [vmem:[%s704 + $0x30] sm:$0xf]
        %v776 = vld [vmem:[%s704 + $0x34] sm:$0xf]
        %v777 = vld [vmem:[%s704 + $0x38] sm:$0xf]
        %v778 = vld [vmem:[%s704 + $0x3c] sm:$0xf]
        %v779 = vunpack.c.l.bf16 %v763
        %v780 = vunpack.c.l.bf16 %v764
        %v781 = vunpack.c.l.bf16 %v765
        %v782 = vunpack.c.l.bf16 %v766
        %v783 = vunpack.c.l.bf16 %v767
        %v784 = vunpack.c.l.bf16 %v768
        %v785 = vunpack.c.l.bf16 %v769
        %v786 = vunpack.c.l.bf16 %v770
        %v787 = vunpack.c.l.bf16 %v771
        %v788 = vunpack.c.l.bf16 %v772
        %v789 = vunpack.c.l.bf16 %v773
        %v790 = vunpack.c.l.bf16 %v774
        %v791 = vunpack.c.l.bf16 %v775
        %v792 = vunpack.c.l.bf16 %v776
        %v793 = vunpack.c.l.bf16 %v777
        %v794 = vunpack.c.l.bf16 %v778
        %vm795 = vcmask 261120
        %v796 = vsel %vm795, %v779, 0.0
        %797 = vadd.xlane.f32.xlu0 %v796
        %v798 = vpop.xlane.xlu0 %797
        %v799 = vsel %vm795, %v780, 0.0
        %800 = vadd.xlane.f32.xlu0 %v799
        %v801 = vpop.xlane.xlu0 %800
        %v802 = vsel %vm795, %v781, 0.0
        %803 = vadd.xlane.f32.xlu0 %v802
        %v804 = vpop.xlane.xlu0 %803
        %v805 = vsel %vm795, %v782, 0.0
        %806 = vadd.xlane.f32.xlu0 %v805
        %v807 = vpop.xlane.xlu0 %806
        %v808 = vsel %vm795, %v783, 0.0
        %809 = vadd.xlane.f32.xlu0 %v808
        %v810 = vpop.xlane.xlu0 %809
        %v811 = vsel %vm795, %v784, 0.0
        %812 = vadd.xlane.f32.xlu0 %v811
        %v813 = vpop.xlane.xlu0 %812
        %v814 = vsel %vm795, %v785, 0.0
        %815 = vadd.xlane.f32.xlu0 %v814
        %v816 = vpop.xlane.xlu0 %815
        %v817 = vsel %vm795, %v786, 0.0
        %818 = vadd.xlane.f32.xlu0 %v817
        %v819 = vpop.xlane.xlu0 %818
        %v820 = vsel %vm795, %v787, 0.0
        %821 = vadd.xlane.f32.xlu0 %v820
        %v822 = vpop.xlane.xlu0 %821
        %v823 = vsel %vm795, %v788, 0.0
        %824 = vadd.xlane.f32.xlu0 %v823
        %v825 = vpop.xlane.xlu0 %824
        %v826 = vsel %vm795, %v789, 0.0
        %827 = vadd.xlane.f32.xlu0 %v826
        %v828 = vpop.xlane.xlu0 %827
        %v829 = vsel %vm795, %v790, 0.0
        %830 = vadd.xlane.f32.xlu0 %v829
        %v831 = vpop.xlane.xlu0 %830
        %v832 = vsel %vm795, %v791, 0.0
        %833 = vadd.xlane.f32.xlu0 %v832
        %v834 = vpop.xlane.xlu0 %833
        %v835 = vsel %vm795, %v792, 0.0
        %836 = vadd.xlane.f32.xlu0 %v835
        %v837 = vpop.xlane.xlu0 %836
        %v838 = vsel %vm795, %v793, 0.0
        %839 = vadd.xlane.f32.xlu0 %v838
        %v840 = vpop.xlane.xlu0 %839
        %v841 = vsel %vm795, %v794, 0.0
        %842 = vadd.xlane.f32.xlu0 %v841
        %v843 = vpop.xlane.xlu0 %842
        %v844 = vrcp.pop 32.0
        %v845 = vmul.f32 %v798, %v844
        %v846 = vmul.f32 %v801, %v844
        %v847 = vmul.f32 %v804, %v844
        %v848 = vmul.f32 %v807, %v844
        %v849 = vmul.f32 %v810, %v844
        %v850 = vmul.f32 %v813, %v844
        %v851 = vmul.f32 %v816, %v844
        %v852 = vmul.f32 %v819, %v844
        %v853 = vmul.f32 %v822, %v844
        %v854 = vmul.f32 %v825, %v844
        %v855 = vmul.f32 %v828, %v844
        %v856 = vmul.f32 %v831, %v844
        %v857 = vmul.f32 %v834, %v844
        %v858 = vmul.f32 %v837, %v844
        %v859 = vmul.f32 %v840, %v844
        %v860 = vmul.f32 %v843, %v844
        %v861 = vsub.f32 %v779, %v845
        %v862 = vsub.f32 %v780, %v846
        %v863 = vsub.f32 %v781, %v847
        %v864 = vsub.f32 %v782, %v848
        %v865 = vsub.f32 %v783, %v849
        %v866 = vsub.f32 %v784, %v850
        %v867 = vsub.f32 %v785, %v851
        %v868 = vsub.f32 %v786, %v852
        %v869 = vsub.f32 %v787, %v853
        %v870 = vsub.f32 %v788, %v854
        %v871 = vsub.f32 %v789, %v855
        %v872 = vsub.f32 %v790, %v856
        %v873 = vsub.f32 %v791, %v857
        %v874 = vsub.f32 %v792, %v858
        %v875 = vsub.f32 %v793, %v859
        %v876 = vsub.f32 %v794, %v860
        %v877 = vmul.f32 %v861, %v861
        %v878 = vmul.f32 %v862, %v862
        %v879 = vmul.f32 %v863, %v863
        %v880 = vmul.f32 %v864, %v864
        %v881 = vmul.f32 %v865, %v865
        %v882 = vmul.f32 %v866, %v866
        %v883 = vmul.f32 %v867, %v867
        %v884 = vmul.f32 %v868, %v868
        %v885 = vmul.f32 %v869, %v869
        %v886 = vmul.f32 %v870, %v870
        %v887 = vmul.f32 %v871, %v871
        %v888 = vmul.f32 %v872, %v872
        %v889 = vmul.f32 %v873, %v873
        %v890 = vmul.f32 %v874, %v874
        %v891 = vmul.f32 %v875, %v875
        %v892 = vmul.f32 %v876, %v876
        %v893 = vsel %vm795, %v877, 0.0
        %894 = vadd.xlane.f32.xlu0 %v893
        %v895 = vpop.xlane.xlu0 %894
        %v896 = vsel %vm795, %v878, 0.0
        %897 = vadd.xlane.f32.xlu0 %v896
        %v898 = vpop.xlane.xlu0 %897
        %v899 = vsel %vm795, %v879, 0.0
        %900 = vadd.xlane.f32.xlu0 %v899
        %v901 = vpop.xlane.xlu0 %900
        %v902 = vsel %vm795, %v880, 0.0
        %903 = vadd.xlane.f32.xlu0 %v902
        %v904 = vpop.xlane.xlu0 %903
        %v905 = vsel %vm795, %v881, 0.0
        %906 = vadd.xlane.f32.xlu0 %v905
        %v907 = vpop.xlane.xlu0 %906
        %v908 = vsel %vm795, %v882, 0.0
        %909 = vadd.xlane.f32.xlu0 %v908
        %v910 = vpop.xlane.xlu0 %909
        %v911 = vsel %vm795, %v883, 0.0
        %912 = vadd.xlane.f32.xlu0 %v911
        %v913 = vpop.xlane.xlu0 %912
        %v914 = vsel %vm795, %v884, 0.0
        %915 = vadd.xlane.f32.xlu0 %v914
        %v916 = vpop.xlane.xlu0 %915
        %v917 = vsel %vm795, %v885, 0.0
        %918 = vadd.xlane.f32.xlu0 %v917
        %v919 = vpop.xlane.xlu0 %918
        %v920 = vsel %vm795, %v886, 0.0
        %921 = vadd.xlane.f32.xlu0 %v920
        %v922 = vpop.xlane.xlu0 %921
        %v923 = vsel %vm795, %v887, 0.0
        %924 = vadd.xlane.f32.xlu0 %v923
        %v925 = vpop.xlane.xlu0 %924
        %v926 = vsel %vm795, %v888, 0.0
        %927 = vadd.xlane.f32.xlu0 %v926
        %v928 = vpop.xlane.xlu0 %927
        %v929 = vsel %vm795, %v889, 0.0
        %930 = vadd.xlane.f32.xlu0 %v929
        %v931 = vpop.xlane.xlu0 %930
        %v932 = vsel %vm795, %v890, 0.0
        %933 = vadd.xlane.f32.xlu0 %v932
        %v934 = vpop.xlane.xlu0 %933
        %v935 = vsel %vm795, %v891, 0.0
        %936 = vadd.xlane.f32.xlu0 %v935
        %v937 = vpop.xlane.xlu0 %936
        %v938 = vsel %vm795, %v892, 0.0
        %939 = vadd.xlane.f32.xlu0 %v938
        %v940 = vpop.xlane.xlu0 %939
        %v941 = vmul.f32 %v895, %v844
        %v942 = vmul.f32 %v898, %v844
        %v943 = vmul.f32 %v901, %v844
        %v944 = vmul.f32 %v904, %v844
        %v945 = vmul.f32 %v907, %v844
        %v946 = vmul.f32 %v910, %v844
        %v947 = vmul.f32 %v913, %v844
        %v948 = vmul.f32 %v916, %v844
        %v949 = vmul.f32 %v919, %v844
        %v950 = vmul.f32 %v922, %v844
        %v951 = vmul.f32 %v925, %v844
        %v952 = vmul.f32 %v928, %v844
        %v953 = vmul.f32 %v931, %v844
        %v954 = vmul.f32 %v934, %v844
        %v955 = vmul.f32 %v937, %v844
        %v956 = vmul.f32 %v940, %v844
        %v957 = vadd.f32 %v941, 1e-05
        %v958 = vadd.f32 %v942, 1e-05
        %v959 = vadd.f32 %v943, 1e-05
        %v960 = vadd.f32 %v944, 1e-05
        %v961 = vadd.f32 %v945, 1e-05
        %v962 = vadd.f32 %v946, 1e-05
        %v963 = vadd.f32 %v947, 1e-05
        %v964 = vadd.f32 %v948, 1e-05
        %v965 = vadd.f32 %v949, 1e-05
        %v966 = vadd.f32 %v950, 1e-05
        %v967 = vadd.f32 %v951, 1e-05
        %v968 = vadd.f32 %v952, 1e-05
        %v969 = vadd.f32 %v953, 1e-05
        %v970 = vadd.f32 %v954, 1e-05
        %v971 = vadd.f32 %v955, 1e-05
        %v972 = vadd.f32 %v956, 1e-05
        %v973 = vrsqrt.pop %v957
        %v974 = vrsqrt.pop %v958
        %v975 = vrsqrt.pop %v959
        %v976 = vrsqrt.pop %v960
        %v977 = vrsqrt.pop %v961
        %v978 = vrsqrt.pop %v962
        %v979 = vrsqrt.pop %v963
        %v980 = vrsqrt.pop %v964
        %v981 = vrsqrt.pop %v965
        %v982 = vrsqrt.pop %v966
        %v983 = vrsqrt.pop %v967
        %v984 = vrsqrt.pop %v968
        %v985 = vrsqrt.pop %v969
        %v986 = vrsqrt.pop %v970
        %v987 = vrsqrt.pop %v971
        %v988 = vrsqrt.pop %v972
        %v989 = vmul.f32 %v861, %v973
        %v990 = vmul.f32 %v862, %v974
        %v991 = vmul.f32 %v863, %v975
        %v992 = vmul.f32 %v864, %v976
        %v993 = vmul.f32 %v865, %v977
        %v994 = vmul.f32 %v866, %v978
        %v995 = vmul.f32 %v867, %v979
        %v996 = vmul.f32 %v868, %v980
        %v997 = vmul.f32 %v869, %v981
        %v998 = vmul.f32 %v870, %v982
        %v999 = vmul.f32 %v871, %v983
        %v1000 = vmul.f32 %v872, %v984
        %v1001 = vmul.f32 %v873, %v985
        %v1002 = vmul.f32 %v874, %v986
        %v1003 = vmul.f32 %v875, %v987
        %v1004 = vmul.f32 %v876, %v988
        %v1005 = vlaneseq
        %v1006 = vshrl.u32 %v1005, 7
        %v1007 = vsub.s32 0, %v1006
        %v1008 = vrot.slane %v756, %v1007
        %v1009 = vmul.f32 %v989, %v1008
        %v1010 = vmul.f32 %v990, %v1008
        %v1011 = vmul.f32 %v991, %v1008
        %v1012 = vmul.f32 %v992, %v1008
        %v1013 = vmul.f32 %v993, %v1008
        %v1014 = vmul.f32 %v994, %v1008
        %v1015 = vmul.f32 %v995, %v1008
        %v1016 = vmul.f32 %v996, %v1008
        %v1017 = vmul.f32 %v997, %v1008
        %v1018 = vmul.f32 %v998, %v1008
        %v1019 = vmul.f32 %v999, %v1008
        %v1020 = vmul.f32 %v1000, %v1008
        %v1021 = vmul.f32 %v1001, %v1008
        %v1022 = vmul.f32 %v1002, %v1008
        %v1023 = vmul.f32 %v1003, %v1008
        %v1024 = vmul.f32 %v1004, %v1008
        %v1025 = vlaneseq
        %v1026 = vshrl.u32 %v1025, 7
        %v1027 = vsub.s32 0, %v1026
        %v1028 = vrot.slane %v758, %v1027
        %v1029 = vadd.f32 %v1009, %v1028
        %v1030 = vadd.f32 %v1010, %v1028
        %v1031 = vadd.f32 %v1011, %v1028
        %v1032 = vadd.f32 %v1012, %v1028
        %v1033 = vadd.f32 %v1013, %v1028
        %v1034 = vadd.f32 %v1014, %v1028
        %v1035 = vadd.f32 %v1015, %v1028
        %v1036 = vadd.f32 %v1016, %v1028
        %v1037 = vadd.f32 %v1017, %v1028
        %v1038 = vadd.f32 %v1018, %v1028
        %v1039 = vadd.f32 %v1019, %v1028
        %v1040 = vadd.f32 %v1020, %v1028
        %v1041 = vadd.f32 %v1021, %v1028
        %v1042 = vadd.f32 %v1022, %v1028
        %v1043 = vadd.f32 %v1023, %v1028
        %v1044 = vadd.f32 %v1024, %v1028
        %v1045 = vpack.c.bf16 %v1030, %v1029
        %v1046 = vpack.c.bf16 %v1032, %v1031
        %v1047 = vpack.c.bf16 %v1034, %v1033
        %v1048 = vpack.c.bf16 %v1036, %v1035
        %v1049 = vpack.c.bf16 %v1038, %v1037
        %v1050 = vpack.c.bf16 %v1040, %v1039
        %v1051 = vpack.c.bf16 %v1042, %v1041
        %v1052 = vpack.c.bf16 %v1044, %v1043
        %v1053 = vld [vmem:[%s12] sm:$0xf]
        %v1054 = vld [vmem:[%s12 + $0x4] sm:$0xf]
        %v1055 = vld [vmem:[%s12 + $0x8] sm:$0xf]
        %v1056 = vld [vmem:[%s12 + $0xc] sm:$0xf]
        %v1061 = vunpack.c.l.b16 %v1053
        %v1062 = vunpack.c.l.b16 %v1054
        %v1063 = vunpack.c.l.b16 %v1055
        %v1064 = vunpack.c.l.b16 %v1056
        %v1065 = vpack.c.b16 %v1062, %v1061
        %v1066 = vpack.c.b16 %v1064, %v1063
        %v1070 = vsel %vm795, %v1045, 0
        %v1073 = vsel %vm795, %v1046, 0
        %v1076 = vsel %vm795, %v1047, 0
        %v1079 = vsel %vm795, %v1048, 0
        %v1082 = vsel %vm795, %v1049, 0
        %v1085 = vsel %vm795, %v1050, 0
        %v1088 = vsel %vm795, %v1051, 0
        %v1091 = vsel %vm795, %v1052, 0
        %1093 = vmatprep.subr.bf16.mxu0 0
        %1094 = vmatpush1.bf16.msra.mxu0 0
        %1095 = vmatprep.subr.bf16.mxu0 0
        %1096 = vmatpush1.bf16.msra.mxu0 0
        %1097 = vmatprep.subr.bf16.mxu0 0
        %1098 = vmatpush1.bf16.msra.mxu0 0
        %1099 = vmatprep.subr.bf16.mxu0 0
        %1100 = vmatpush1.bf16.msra.mxu0 0
        %1101 = vmatprep.subr.bf16.mxu0 0
        %1102 = vmatpush1.bf16.msra.mxu0 0
        %1103 = vmatprep.subr.bf16.mxu0 0
        %1104 = vmatpush1.bf16.msra.mxu0 0
        %1105 = vmatprep.subr.bf16.mxu0 0
        %1106 = vmatpush1.bf16.msra.mxu0 %v1066
        %1107 = vmatprep.subr.bf16.mxu0 0
        %1108 = vmatpush1.bf16.msra.mxu0 %v1065
        %1109 = vmatprep.subr.bf16.mxu0 0
        %1110 = vmatpush2.bf16.msra.mxu0 0
        %1111 = vmatprep.subr.bf16.mxu0 0
        %1112 = vmatpush2.bf16.msra.mxu0 0
        %1113 = vmatprep.subr.bf16.mxu0 0
        %1114 = vmatpush2.bf16.msra.mxu0 0
        %1115 = vmatprep.subr.bf16.mxu0 0
        %1116 = vmatpush2.bf16.msra.mxu0 0
        %1117 = vmatprep.subr.bf16.mxu0 0
        %1118 = vmatpush2.bf16.msra.mxu0 0
        %1119 = vmatprep.subr.bf16.mxu0 0
        %1120 = vmatpush2.bf16.msra.mxu0 0
        %1121 = vmatprep.subr.bf16.mxu0 0
        %1122 = vmatpush2.bf16.msra.mxu0 0
        %1123 = vmatprep.subr.bf16.mxu0 0
        %1124 = vmatpush2.bf16.msra.mxu0 0
        %1125 = vmatprep.mubr.bf16.mxu0 0
        %1126 = vmatmul.mubr.bf16.gmra.mxu0 %v1070
        %v1127 = vpop.f32.mrf.mxu0
        %v1128 = vadd.f32 0.0, %v1127
        %v1129 = vpop.f32.mrf.mxu0
        %v1130 = vpop.f32.mrf.mxu0
        %v1131 = vadd.f32 0.0, %v1130
        %v1132 = vpop.f32.mrf.mxu0
        %1133 = vmatprep.mubr.bf16.mxu0 0
        %1134 = vmatmul.mubr.bf16.gmra.mxu0 %v1073
        %v1135 = vpop.f32.mrf.mxu0
        %v1136 = vadd.f32 0.0, %v1135
        %v1137 = vpop.f32.mrf.mxu0
        %v1138 = vpop.f32.mrf.mxu0
        %v1139 = vadd.f32 0.0, %v1138
        %v1140 = vpop.f32.mrf.mxu0
        %1141 = vmatprep.mubr.bf16.mxu0 0
        %1142 = vmatmul.mubr.bf16.gmra.mxu0 %v1076
        %v1143 = vpop.f32.mrf.mxu0
        %v1144 = vadd.f32 0.0, %v1143
        %v1145 = vpop.f32.mrf.mxu0
        %v1146 = vpop.f32.mrf.mxu0
        %v1147 = vadd.f32 0.0, %v1146
        %v1148 = vpop.f32.mrf.mxu0
        %1149 = vmatprep.mubr.bf16.mxu0 0
        %1150 = vmatmul.mubr.bf16.gmra.mxu0 %v1079
        %v1151 = vpop.f32.mrf.mxu0
        %v1152 = vadd.f32 0.0, %v1151
        %v1153 = vpop.f32.mrf.mxu0
        %v1154 = vpop.f32.mrf.mxu0
        %v1155 = vadd.f32 0.0, %v1154
        %v1156 = vpop.f32.mrf.mxu0
        %1157 = vmatprep.mubr.bf16.mxu0 0
        %1158 = vmatmul.mubr.bf16.gmra.mxu0 %v1082
        %v1159 = vpop.f32.mrf.mxu0
        %v1160 = vadd.f32 0.0, %v1159
        %v1161 = vpop.f32.mrf.mxu0
        %v1162 = vpop.f32.mrf.mxu0
        %v1163 = vadd.f32 0.0, %v1162
        %v1164 = vpop.f32.mrf.mxu0
        %1165 = vmatprep.mubr.bf16.mxu0 0
        %1166 = vmatmul.mubr.bf16.gmra.mxu0 %v1085
        %v1167 = vpop.f32.mrf.mxu0
        %v1168 = vadd.f32 0.0, %v1167
        %v1169 = vpop.f32.mrf.mxu0
        %v1170 = vpop.f32.mrf.mxu0
        %v1171 = vadd.f32 0.0, %v1170
        %v1172 = vpop.f32.mrf.mxu0
        %1173 = vmatprep.mubr.bf16.mxu0 0
        %1174 = vmatmul.mubr.bf16.gmra.mxu0 %v1088
        %v1175 = vpop.f32.mrf.mxu0
        %v1176 = vadd.f32 0.0, %v1175
        %v1177 = vpop.f32.mrf.mxu0
        %v1178 = vpop.f32.mrf.mxu0
        %v1179 = vadd.f32 0.0, %v1178
        %v1180 = vpop.f32.mrf.mxu0
        %1181 = vmatprep.mubr.bf16.mxu0 0
        %1182 = vmatmul.mubr.bf16.gmra.mxu0 %v1091
        %v1183 = vpop.f32.mrf.mxu0
        %v1184 = vadd.f32 0.0, %v1183
        %v1185 = vpop.f32.mrf.mxu0
        %v1186 = vpop.f32.mrf.mxu0
        %v1187 = vadd.f32 0.0, %v1186
        %v1188 = vpop.f32.mrf.mxu0
        %1189 = vdwg.mxu0
        %v1190 = vld [vmem:[%s14] sm:$0x1]
        %v1191 = vunpack.c.l.bf16 %v1190
        %v1192 = vsel %vm795, %v1128, 0.0
        %1193 = vadd.xlane.f32.xlu0 %v1192
        %v1194 = vpop.xlane.xlu0 %1193
        %v1195 = vsel %vm795, %v1131, 0.0
        %1196 = vadd.xlane.f32.xlu0 %v1195
        %v1197 = vpop.xlane.xlu0 %1196
        %v1198 = vsel %vm795, %v1136, 0.0
        %1199 = vadd.xlane.f32.xlu0 %v1198
        %v1200 = vpop.xlane.xlu0 %1199
        %v1201 = vsel %vm795, %v1139, 0.0
        %1202 = vadd.xlane.f32.xlu0 %v1201
        %v1203 = vpop.xlane.xlu0 %1202
        %v1204 = vsel %vm795, %v1144, 0.0
        %1205 = vadd.xlane.f32.xlu0 %v1204
        %v1206 = vpop.xlane.xlu0 %1205
        %v1207 = vsel %vm795, %v1147, 0.0
        %1208 = vadd.xlane.f32.xlu0 %v1207
        %v1209 = vpop.xlane.xlu0 %1208
        %v1210 = vsel %vm795, %v1152, 0.0
        %1211 = vadd.xlane.f32.xlu0 %v1210
        %v1212 = vpop.xlane.xlu0 %1211
        %v1213 = vsel %vm795, %v1155, 0.0
        %1214 = vadd.xlane.f32.xlu0 %v1213
        %v1215 = vpop.xlane.xlu0 %1214
        %v1216 = vsel %vm795, %v1160, 0.0
        %1217 = vadd.xlane.f32.xlu0 %v1216
        %v1218 = vpop.xlane.xlu0 %1217
        %v1219 = vsel %vm795, %v1163, 0.0
        %1220 = vadd.xlane.f32.xlu0 %v1219
        %v1221 = vpop.xlane.xlu0 %1220
        %v1222 = vsel %vm795, %v1168, 0.0
        %1223 = vadd.xlane.f32.xlu0 %v1222
        %v1224 = vpop.xlane.xlu0 %1223
        %v1225 = vsel %vm795, %v1171, 0.0
        %1226 = vadd.xlane.f32.xlu0 %v1225
        %v1227 = vpop.xlane.xlu0 %1226
        %v1228 = vsel %vm795, %v1176, 0.0
        %1229 = vadd.xlane.f32.xlu0 %v1228
        %v1230 = vpop.xlane.xlu0 %1229
        %v1231 = vsel %vm795, %v1179, 0.0
        %1232 = vadd.xlane.f32.xlu0 %v1231
        %v1233 = vpop.xlane.xlu0 %1232
        %v1234 = vsel %vm795, %v1184, 0.0
        %1235 = vadd.xlane.f32.xlu0 %v1234
        %v1236 = vpop.xlane.xlu0 %1235
        %v1237 = vsel %vm795, %v1187, 0.0
        %1238 = vadd.xlane.f32.xlu0 %v1237
        %v1239 = vpop.xlane.xlu0 %1238
        %v1240 = vmul.f32 %v1194, %v844
        %v1241 = vmul.f32 %v1197, %v844
        %v1242 = vmul.f32 %v1200, %v844
        %v1243 = vmul.f32 %v1203, %v844
        %v1244 = vmul.f32 %v1206, %v844
        %v1245 = vmul.f32 %v1209, %v844
        %v1246 = vmul.f32 %v1212, %v844
        %v1247 = vmul.f32 %v1215, %v844
        %v1248 = vmul.f32 %v1218, %v844
        %v1249 = vmul.f32 %v1221, %v844
        %v1250 = vmul.f32 %v1224, %v844
        %v1251 = vmul.f32 %v1227, %v844
        %v1252 = vmul.f32 %v1230, %v844
        %v1253 = vmul.f32 %v1233, %v844
        %v1254 = vmul.f32 %v1236, %v844
        %v1255 = vmul.f32 %v1239, %v844
        %v1256 = vsub.f32 %v1128, %v1240
        %v1257 = vsub.f32 %v1131, %v1241
        %v1258 = vsub.f32 %v1136, %v1242
        %v1259 = vsub.f32 %v1139, %v1243
        %v1260 = vsub.f32 %v1144, %v1244
        %v1261 = vsub.f32 %v1147, %v1245
        %v1262 = vsub.f32 %v1152, %v1246
        %v1263 = vsub.f32 %v1155, %v1247
        %v1264 = vsub.f32 %v1160, %v1248
        %v1265 = vsub.f32 %v1163, %v1249
        %v1266 = vsub.f32 %v1168, %v1250
        %v1267 = vsub.f32 %v1171, %v1251
        %v1268 = vsub.f32 %v1176, %v1252
        %v1269 = vsub.f32 %v1179, %v1253
        %v1270 = vsub.f32 %v1184, %v1254
        %v1271 = vsub.f32 %v1187, %v1255
        %v1272 = vmul.f32 %v1256, %v1256
        %v1273 = vmul.f32 %v1257, %v1257
        %v1274 = vmul.f32 %v1258, %v1258
        %v1275 = vmul.f32 %v1259, %v1259
        %v1276 = vmul.f32 %v1260, %v1260
        %v1277 = vmul.f32 %v1261, %v1261
        %v1278 = vmul.f32 %v1262, %v1262
        %v1279 = vmul.f32 %v1263, %v1263
        %v1280 = vmul.f32 %v1264, %v1264
        %v1281 = vmul.f32 %v1265, %v1265
        %v1282 = vmul.f32 %v1266, %v1266
        %v1283 = vmul.f32 %v1267, %v1267
        %v1284 = vmul.f32 %v1268, %v1268
        %v1285 = vmul.f32 %v1269, %v1269
        %v1286 = vmul.f32 %v1270, %v1270
        %v1287 = vmul.f32 %v1271, %v1271
        %v1288 = vsel %vm795, %v1272, 0.0
        %1289 = vadd.xlane.f32.xlu0 %v1288
        %v1290 = vpop.xlane.xlu0 %1289
        %v1291 = vsel %vm795, %v1273, 0.0
        %1292 = vadd.xlane.f32.xlu0 %v1291
        %v1293 = vpop.xlane.xlu0 %1292
        %v1294 = vsel %vm795, %v1274, 0.0
        %1295 = vadd.xlane.f32.xlu0 %v1294
        %v1296 = vpop.xlane.xlu0 %1295
        %v1297 = vsel %vm795, %v1275, 0.0
        %1298 = vadd.xlane.f32.xlu0 %v1297
        %v1299 = vpop.xlane.xlu0 %1298
        %v1300 = vsel %vm795, %v1276, 0.0
        %1301 = vadd.xlane.f32.xlu0 %v1300
        %v1302 = vpop.xlane.xlu0 %1301
        %v1303 = vsel %vm795, %v1277, 0.0
        %1304 = vadd.xlane.f32.xlu0 %v1303
        %v1305 = vpop.xlane.xlu0 %1304
        %v1306 = vsel %vm795, %v1278, 0.0
        %1307 = vadd.xlane.f32.xlu0 %v1306
        %v1308 = vpop.xlane.xlu0 %1307
        %v1309 = vsel %vm795, %v1279, 0.0
        %1310 = vadd.xlane.f32.xlu0 %v1309
        %v1311 = vpop.xlane.xlu0 %1310
        %v1312 = vsel %vm795, %v1280, 0.0
        %1313 = vadd.xlane.f32.xlu0 %v1312
        %v1314 = vpop.xlane.xlu0 %1313
        %v1315 = vsel %vm795, %v1281, 0.0
        %1316 = vadd.xlane.f32.xlu0 %v1315
        %v1317 = vpop.xlane.xlu0 %1316
        %v1318 = vsel %vm795, %v1282, 0.0
        %1319 = vadd.xlane.f32.xlu0 %v1318
        %v1320 = vpop.xlane.xlu0 %1319
        %v1321 = vsel %vm795, %v1283, 0.0
        %1322 = vadd.xlane.f32.xlu0 %v1321
        %v1323 = vpop.xlane.xlu0 %1322
        %v1324 = vsel %vm795, %v1284, 0.0
        %1325 = vadd.xlane.f32.xlu0 %v1324
        %v1326 = vpop.xlane.xlu0 %1325
        %v1327 = vsel %vm795, %v1285, 0.0
        %1328 = vadd.xlane.f32.xlu0 %v1327
        %v1329 = vpop.xlane.xlu0 %1328
        %v1330 = vsel %vm795, %v1286, 0.0
        %1331 = vadd.xlane.f32.xlu0 %v1330
        %v1332 = vpop.xlane.xlu0 %1331
        %v1333 = vsel %vm795, %v1287, 0.0
        %1334 = vadd.xlane.f32.xlu0 %v1333
        %v1335 = vpop.xlane.xlu0 %1334
        %v1336 = vmul.f32 %v1290, %v844
        %v1337 = vmul.f32 %v1293, %v844
        %v1338 = vmul.f32 %v1296, %v844
        %v1339 = vmul.f32 %v1299, %v844
        %v1340 = vmul.f32 %v1302, %v844
        %v1341 = vmul.f32 %v1305, %v844
        %v1342 = vmul.f32 %v1308, %v844
        %v1343 = vmul.f32 %v1311, %v844
        %v1344 = vmul.f32 %v1314, %v844
        %v1345 = vmul.f32 %v1317, %v844
        %v1346 = vmul.f32 %v1320, %v844
        %v1347 = vmul.f32 %v1323, %v844
        %v1348 = vmul.f32 %v1326, %v844
        %v1349 = vmul.f32 %v1329, %v844
        %v1350 = vmul.f32 %v1332, %v844
        %v1351 = vmul.f32 %v1335, %v844
        %v1352 = vadd.f32 %v1336, 1e-05
        %v1353 = vadd.f32 %v1337, 1e-05
        %v1354 = vadd.f32 %v1338, 1e-05
        %v1355 = vadd.f32 %v1339, 1e-05
        %v1356 = vadd.f32 %v1340, 1e-05
        %v1357 = vadd.f32 %v1341, 1e-05
        %v1358 = vadd.f32 %v1342, 1e-05
        %v1359 = vadd.f32 %v1343, 1e-05
        %v1360 = vadd.f32 %v1344, 1e-05
        %v1361 = vadd.f32 %v1345, 1e-05
        %v1362 = vadd.f32 %v1346, 1e-05
        %v1363 = vadd.f32 %v1347, 1e-05
        %v1364 = vadd.f32 %v1348, 1e-05
        %v1365 = vadd.f32 %v1349, 1e-05
        %v1366 = vadd.f32 %v1350, 1e-05
        %v1367 = vadd.f32 %v1351, 1e-05
        %v1368 = vrsqrt.pop %v1352
        %v1369 = vrsqrt.pop %v1353
        %v1370 = vrsqrt.pop %v1354
        %v1371 = vrsqrt.pop %v1355
        %v1372 = vrsqrt.pop %v1356
        %v1373 = vrsqrt.pop %v1357
        %v1374 = vrsqrt.pop %v1358
        %v1375 = vrsqrt.pop %v1359
        %v1376 = vrsqrt.pop %v1360
        %v1377 = vrsqrt.pop %v1361
        %v1378 = vrsqrt.pop %v1362
        %v1379 = vrsqrt.pop %v1363
        %v1380 = vrsqrt.pop %v1364
        %v1381 = vrsqrt.pop %v1365
        %v1382 = vrsqrt.pop %v1366
        %v1383 = vrsqrt.pop %v1367
        %v1384 = vmul.f32 %v1256, %v1368
        %v1385 = vmul.f32 %v1257, %v1369
        %v1386 = vmul.f32 %v1258, %v1370
        %v1387 = vmul.f32 %v1259, %v1371
        %v1388 = vmul.f32 %v1260, %v1372
        %v1389 = vmul.f32 %v1261, %v1373
        %v1390 = vmul.f32 %v1262, %v1374
        %v1391 = vmul.f32 %v1263, %v1375
        %v1392 = vmul.f32 %v1264, %v1376
        %v1393 = vmul.f32 %v1265, %v1377
        %v1394 = vmul.f32 %v1266, %v1378
        %v1395 = vmul.f32 %v1267, %v1379
        %v1396 = vmul.f32 %v1268, %v1380
        %v1397 = vmul.f32 %v1269, %v1381
        %v1398 = vmul.f32 %v1270, %v1382
        %v1399 = vmul.f32 %v1271, %v1383
        %v1400 = vlaneseq
        %v1401 = vshrl.u32 %v1400, 7
        %v1402 = vsub.s32 0, %v1401
        %v1403 = vrot.slane %v1191, %v1402
        %v1404 = vmul.f32 %v1384, %v1403
        %v1405 = vmul.f32 %v1385, %v1403
        %v1406 = vmul.f32 %v1386, %v1403
        %v1407 = vmul.f32 %v1387, %v1403
        %v1408 = vmul.f32 %v1388, %v1403
        %v1409 = vmul.f32 %v1389, %v1403
        %v1410 = vmul.f32 %v1390, %v1403
        %v1411 = vmul.f32 %v1391, %v1403
        %v1412 = vmul.f32 %v1392, %v1403
        %v1413 = vmul.f32 %v1393, %v1403
        %v1414 = vmul.f32 %v1394, %v1403
        %v1415 = vmul.f32 %v1395, %v1403
        %v1416 = vmul.f32 %v1396, %v1403
        %v1417 = vmul.f32 %v1397, %v1403
        %v1418 = vmul.f32 %v1398, %v1403
        %v1419 = vmul.f32 %v1399, %v1403
        %v1420 = vld [vmem:[%s716] sm:$0xff]
        %v1421 = vld [vmem:[%s716 + $0x8] sm:$0xff]
        %v1422 = vld [vmem:[%s716 + $0x10] sm:$0xff]
        %v1423 = vld [vmem:[%s716 + $0x18] sm:$0xff]
        %v1424 = vld [vmem:[%s716 + $0x20] sm:$0xff]
        %v1425 = vld [vmem:[%s716 + $0x28] sm:$0xff]
        %v1426 = vld [vmem:[%s716 + $0x30] sm:$0xff]
        %v1427 = vld [vmem:[%s716 + $0x38] sm:$0xff]
        %v1428 = vld [vmem:[%s716 + $0x40] sm:$0xff]
        %v1429 = vld [vmem:[%s716 + $0x48] sm:$0xff]
        %v1430 = vld [vmem:[%s716 + $0x50] sm:$0xff]
        %v1431 = vld [vmem:[%s716 + $0x58] sm:$0xff]
        %v1432 = vld [vmem:[%s716 + $0x60] sm:$0xff]
        %v1433 = vld [vmem:[%s716 + $0x68] sm:$0xff]
        %v1434 = vld [vmem:[%s716 + $0x70] sm:$0xff]
        %v1435 = vld [vmem:[%s716 + $0x78] sm:$0xff]
        %v1436 = vld [vmem:[%s722] sm:$0xff]
        %v1437 = vld [vmem:[%s722 + $0x8] sm:$0xff]
        %v1438 = vld [vmem:[%s722 + $0x10] sm:$0xff]
        %v1439 = vld [vmem:[%s722 + $0x18] sm:$0xff]
        %v1440 = vld [vmem:[%s722 + $0x20] sm:$0xff]
        %v1441 = vld [vmem:[%s722 + $0x28] sm:$0xff]
        %v1442 = vld [vmem:[%s722 + $0x30] sm:$0xff]
        %v1443 = vld [vmem:[%s722 + $0x38] sm:$0xff]
        %v1444 = vld [vmem:[%s722 + $0x40] sm:$0xff]
        %v1445 = vld [vmem:[%s722 + $0x48] sm:$0xff]
        %v1446 = vld [vmem:[%s722 + $0x50] sm:$0xff]
        %v1447 = vld [vmem:[%s722 + $0x58] sm:$0xff]
        %v1448 = vld [vmem:[%s722 + $0x60] sm:$0xff]
        %v1449 = vld [vmem:[%s722 + $0x68] sm:$0xff]
        %v1450 = vld [vmem:[%s722 + $0x70] sm:$0xff]
        %v1451 = vld [vmem:[%s722 + $0x78] sm:$0xff]
        %v1452 = vld [vmem:[%s728] sm:$0xff]
        %v1453 = vld [vmem:[%s728 + $0x8] sm:$0xff]
        %v1454 = vld [vmem:[%s728 + $0x10] sm:$0xff]
        %v1455 = vld [vmem:[%s728 + $0x18] sm:$0xff]
        %v1456 = vld [vmem:[%s728 + $0x20] sm:$0xff]
        %v1457 = vld [vmem:[%s728 + $0x28] sm:$0xff]
        %v1458 = vld [vmem:[%s728 + $0x30] sm:$0xff]
        %v1459 = vld [vmem:[%s728 + $0x38] sm:$0xff]
        %v1460 = vld [vmem:[%s728 + $0x40] sm:$0xff]
        %v1461 = vld [vmem:[%s728 + $0x48] sm:$0xff]
        %v1462 = vld [vmem:[%s728 + $0x50] sm:$0xff]
        %v1463 = vld [vmem:[%s728 + $0x58] sm:$0xff]
        %v1464 = vld [vmem:[%s728 + $0x60] sm:$0xff]
        %v1465 = vld [vmem:[%s728 + $0x68] sm:$0xff]
        %v1466 = vld [vmem:[%s728 + $0x70] sm:$0xff]
        %v1467 = vld [vmem:[%s728 + $0x78] sm:$0xff]
        %1484 = vrot.lane.b32.xlu0 %v1404, 124
        %v1485 = vpop.permute.xlu0 %1484
        %1486 = vrot.lane.b32.xlu0 %v1405, 124
        %v1487 = vpop.permute.xlu0 %1486
        %1488 = vrot.lane.b32.xlu0 %v1406, 124
        %v1489 = vpop.permute.xlu0 %1488
        %1490 = vrot.lane.b32.xlu0 %v1407, 124
        %v1491 = vpop.permute.xlu0 %1490
        %1492 = vrot.lane.b32.xlu0 %v1408, 124
        %v1493 = vpop.permute.xlu0 %1492
        %1494 = vrot.lane.b32.xlu0 %v1409, 124
        %v1495 = vpop.permute.xlu0 %1494
        %1496 = vrot.lane.b32.xlu0 %v1410, 124
        %v1497 = vpop.permute.xlu0 %1496
        %1498 = vrot.lane.b32.xlu0 %v1411, 124
        %v1499 = vpop.permute.xlu0 %1498
        %1500 = vrot.lane.b32.xlu0 %v1412, 124
        %v1501 = vpop.permute.xlu0 %1500
        %1502 = vrot.lane.b32.xlu0 %v1413, 124
        %v1503 = vpop.permute.xlu0 %1502
        %1504 = vrot.lane.b32.xlu0 %v1414, 124
        %v1505 = vpop.permute.xlu0 %1504
        %1506 = vrot.lane.b32.xlu0 %v1415, 124
        %v1507 = vpop.permute.xlu0 %1506
        %1508 = vrot.lane.b32.xlu0 %v1416, 124
        %v1509 = vpop.permute.xlu0 %1508
        %1510 = vrot.lane.b32.xlu0 %v1417, 124
        %v1511 = vpop.permute.xlu0 %1510
        %1512 = vrot.lane.b32.xlu0 %v1418, 124
        %v1513 = vpop.permute.xlu0 %1512
        %1514 = vrot.lane.b32.xlu0 %v1419, 124
        %v1515 = vpop.permute.xlu0 %1514
        %1532 = vrot.lane.b32.xlu0 %v1404, 28
        %v1533 = vpop.permute.xlu0 %1532
        %1534 = vrot.lane.b32.xlu0 %v1405, 28
        %v1535 = vpop.permute.xlu0 %1534
        %1536 = vrot.lane.b32.xlu0 %v1406, 28
        %v1537 = vpop.permute.xlu0 %1536
        %1538 = vrot.lane.b32.xlu0 %v1407, 28
        %v1539 = vpop.permute.xlu0 %1538
        %1540 = vrot.lane.b32.xlu0 %v1408, 28
        %v1541 = vpop.permute.xlu0 %1540
        %1542 = vrot.lane.b32.xlu0 %v1409, 28
        %v1543 = vpop.permute.xlu0 %1542
        %1544 = vrot.lane.b32.xlu0 %v1410, 28
        %v1545 = vpop.permute.xlu0 %1544
        %1546 = vrot.lane.b32.xlu0 %v1411, 28
        %v1547 = vpop.permute.xlu0 %1546
        %1548 = vrot.lane.b32.xlu0 %v1412, 28
        %v1549 = vpop.permute.xlu0 %1548
        %1550 = vrot.lane.b32.xlu0 %v1413, 28
        %v1551 = vpop.permute.xlu0 %1550
        %1552 = vrot.lane.b32.xlu0 %v1414, 28
        %v1553 = vpop.permute.xlu0 %1552
        %1554 = vrot.lane.b32.xlu0 %v1415, 28
        %v1555 = vpop.permute.xlu0 %1554
        %1556 = vrot.lane.b32.xlu0 %v1416, 28
        %v1557 = vpop.permute.xlu0 %1556
        %1558 = vrot.lane.b32.xlu0 %v1417, 28
        %v1559 = vpop.permute.xlu0 %1558
        %1560 = vrot.lane.b32.xlu0 %v1418, 28
        %v1561 = vpop.permute.xlu0 %1560
        %1562 = vrot.lane.b32.xlu0 %v1419, 28
        %v1563 = vpop.permute.xlu0 %1562
        %vm1580 = vcmask 228352
        %v1581 = vsel %vm1580, %v1485, %v1533
        %v1582 = vsel %vm1580, %v1487, %v1535
        %v1583 = vsel %vm1580, %v1489, %v1537
        %v1584 = vsel %vm1580, %v1491, %v1539
        %v1585 = vsel %vm1580, %v1493, %v1541
        %v1586 = vsel %vm1580, %v1495, %v1543
        %v1587 = vsel %vm1580, %v1497, %v1545
        %v1588 = vsel %vm1580, %v1499, %v1547
        %v1589 = vsel %vm1580, %v1501, %v1549
        %v1590 = vsel %vm1580, %v1503, %v1551
        %v1591 = vsel %vm1580, %v1505, %v1553
        %v1592 = vsel %vm1580, %v1507, %v1555
        %v1593 = vsel %vm1580, %v1509, %v1557
        %v1594 = vsel %vm1580, %v1511, %v1559
        %v1595 = vsel %vm1580, %v1513, %v1561
        %v1596 = vsel %vm1580, %v1515, %v1563
        %1597 = vrot.lane.b32.xlu0 %v1404, 100
        %v1598 = vpop.permute.xlu0 %1597
        %1599 = vrot.lane.b32.xlu0 %v1405, 100
        %v1600 = vpop.permute.xlu0 %1599
        %1601 = vrot.lane.b32.xlu0 %v1406, 100
        %v1602 = vpop.permute.xlu0 %1601
        %1603 = vrot.lane.b32.xlu0 %v1407, 100
        %v1604 = vpop.permute.xlu0 %1603
        %1605 = vrot.lane.b32.xlu0 %v1408, 100
        %v1606 = vpop.permute.xlu0 %1605
        %1607 = vrot.lane.b32.xlu0 %v1409, 100
        %v1608 = vpop.permute.xlu0 %1607
        %1609 = vrot.lane.b32.xlu0 %v1410, 100
        %v1610 = vpop.permute.xlu0 %1609
        %1611 = vrot.lane.b32.xlu0 %v1411, 100
        %v1612 = vpop.permute.xlu0 %1611
        %1613 = vrot.lane.b32.xlu0 %v1412, 100
        %v1614 = vpop.permute.xlu0 %1613
        %1615 = vrot.lane.b32.xlu0 %v1413, 100
        %v1616 = vpop.permute.xlu0 %1615
        %1617 = vrot.lane.b32.xlu0 %v1414, 100
        %v1618 = vpop.permute.xlu0 %1617
        %1619 = vrot.lane.b32.xlu0 %v1415, 100
        %v1620 = vpop.permute.xlu0 %1619
        %1621 = vrot.lane.b32.xlu0 %v1416, 100
        %v1622 = vpop.permute.xlu0 %1621
        %1623 = vrot.lane.b32.xlu0 %v1417, 100
        %v1624 = vpop.permute.xlu0 %1623
        %1625 = vrot.lane.b32.xlu0 %v1418, 100
        %v1626 = vpop.permute.xlu0 %1625
        %1627 = vrot.lane.b32.xlu0 %v1419, 100
        %v1628 = vpop.permute.xlu0 %1627
        %1645 = vrot.lane.b32.xlu0 %v1404, 4
        %v1646 = vpop.permute.xlu0 %1645
        %1647 = vrot.lane.b32.xlu0 %v1405, 4
        %v1648 = vpop.permute.xlu0 %1647
        %1649 = vrot.lane.b32.xlu0 %v1406, 4
        %v1650 = vpop.permute.xlu0 %1649
        %1651 = vrot.lane.b32.xlu0 %v1407, 4
        %v1652 = vpop.permute.xlu0 %1651
        %1653 = vrot.lane.b32.xlu0 %v1408, 4
        %v1654 = vpop.permute.xlu0 %1653
        %1655 = vrot.lane.b32.xlu0 %v1409, 4
        %v1656 = vpop.permute.xlu0 %1655
        %1657 = vrot.lane.b32.xlu0 %v1410, 4
        %v1658 = vpop.permute.xlu0 %1657
        %1659 = vrot.lane.b32.xlu0 %v1411, 4
        %v1660 = vpop.permute.xlu0 %1659
        %1661 = vrot.lane.b32.xlu0 %v1412, 4
        %v1662 = vpop.permute.xlu0 %1661
        %1663 = vrot.lane.b32.xlu0 %v1413, 4
        %v1664 = vpop.permute.xlu0 %1663
        %1665 = vrot.lane.b32.xlu0 %v1414, 4
        %v1666 = vpop.permute.xlu0 %1665
        %1667 = vrot.lane.b32.xlu0 %v1415, 4
        %v1668 = vpop.permute.xlu0 %1667
        %1669 = vrot.lane.b32.xlu0 %v1416, 4
        %v1670 = vpop.permute.xlu0 %1669
        %1671 = vrot.lane.b32.xlu0 %v1417, 4
        %v1672 = vpop.permute.xlu0 %1671
        %1673 = vrot.lane.b32.xlu0 %v1418, 4
        %v1674 = vpop.permute.xlu0 %1673
        %1675 = vrot.lane.b32.xlu0 %v1419, 4
        %v1676 = vpop.permute.xlu0 %1675
        %vm1693 = vcmask 31744
        %v1694 = vsel %vm1693, %v1598, %v1646
        %v1695 = vsel %vm1693, %v1600, %v1648
        %v1696 = vsel %vm1693, %v1602, %v1650
        %v1697 = vsel %vm1693, %v1604, %v1652
        %v1698 = vsel %vm1693, %v1606, %v1654
        %v1699 = vsel %vm1693, %v1608, %v1656
        %v1700 = vsel %vm1693, %v1610, %v1658
        %v1701 = vsel %vm1693, %v1612, %v1660
        %v1702 = vsel %vm1693, %v1614, %v1662
        %v1703 = vsel %vm1693, %v1616, %v1664
        %v1704 = vsel %vm1693, %v1618, %v1666
        %v1705 = vsel %vm1693, %v1620, %v1668
        %v1706 = vsel %vm1693, %v1622, %v1670
        %v1707 = vsel %vm1693, %v1624, %v1672
        %v1708 = vsel %vm1693, %v1626, %v1674
        %v1709 = vsel %vm1693, %v1628, %v1676
        %v1710 = vmul.f32 %v1404, %v1420
        %v1711 = vmul.f32 %v1405, %v1421
        %v1712 = vmul.f32 %v1406, %v1422
        %v1713 = vmul.f32 %v1407, %v1423
        %v1714 = vmul.f32 %v1408, %v1424
        %v1715 = vmul.f32 %v1409, %v1425
        %v1716 = vmul.f32 %v1410, %v1426
        %v1717 = vmul.f32 %v1411, %v1427
        %v1718 = vmul.f32 %v1412, %v1428
        %v1719 = vmul.f32 %v1413, %v1429
        %v1720 = vmul.f32 %v1414, %v1430
        %v1721 = vmul.f32 %v1415, %v1431
        %v1722 = vmul.f32 %v1416, %v1432
        %v1723 = vmul.f32 %v1417, %v1433
        %v1724 = vmul.f32 %v1418, %v1434
        %v1725 = vmul.f32 %v1419, %v1435
        %v1726 = vmul.f32 %v1581, %v1436
        %v1727 = vmul.f32 %v1582, %v1437
        %v1728 = vmul.f32 %v1583, %v1438
        %v1729 = vmul.f32 %v1584, %v1439
        %v1730 = vmul.f32 %v1585, %v1440
        %v1731 = vmul.f32 %v1586, %v1441
        %v1732 = vmul.f32 %v1587, %v1442
        %v1733 = vmul.f32 %v1588, %v1443
        %v1734 = vmul.f32 %v1589, %v1444
        %v1735 = vmul.f32 %v1590, %v1445
        %v1736 = vmul.f32 %v1591, %v1446
        %v1737 = vmul.f32 %v1592, %v1447
        %v1738 = vmul.f32 %v1593, %v1448
        %v1739 = vmul.f32 %v1594, %v1449
        %v1740 = vmul.f32 %v1595, %v1450
        %v1741 = vmul.f32 %v1596, %v1451
        %v1742 = vadd.f32 %v1710, %v1726
        %v1743 = vadd.f32 %v1711, %v1727
        %v1744 = vadd.f32 %v1712, %v1728
        %v1745 = vadd.f32 %v1713, %v1729
        %v1746 = vadd.f32 %v1714, %v1730
        %v1747 = vadd.f32 %v1715, %v1731
        %v1748 = vadd.f32 %v1716, %v1732
        %v1749 = vadd.f32 %v1717, %v1733
        %v1750 = vadd.f32 %v1718, %v1734
        %v1751 = vadd.f32 %v1719, %v1735
        %v1752 = vadd.f32 %v1720, %v1736
        %v1753 = vadd.f32 %v1721, %v1737
        %v1754 = vadd.f32 %v1722, %v1738
        %v1755 = vadd.f32 %v1723, %v1739
        %v1756 = vadd.f32 %v1724, %v1740
        %v1757 = vadd.f32 %v1725, %v1741
        %v1758 = vmul.f32 %v1694, %v1452
        %v1759 = vmul.f32 %v1695, %v1453
        %v1760 = vmul.f32 %v1696, %v1454
        %v1761 = vmul.f32 %v1697, %v1455
        %v1762 = vmul.f32 %v1698, %v1456
        %v1763 = vmul.f32 %v1699, %v1457
        %v1764 = vmul.f32 %v1700, %v1458
        %v1765 = vmul.f32 %v1701, %v1459
        %v1766 = vmul.f32 %v1702, %v1460
        %v1767 = vmul.f32 %v1703, %v1461
        %v1768 = vmul.f32 %v1704, %v1462
        %v1769 = vmul.f32 %v1705, %v1463
        %v1770 = vmul.f32 %v1706, %v1464
        %v1771 = vmul.f32 %v1707, %v1465
        %v1772 = vmul.f32 %v1708, %v1466
        %v1773 = vmul.f32 %v1709, %v1467
        %v1774 = vadd.f32 %v1742, %v1758
        %v1775 = vadd.f32 %v1743, %v1759
        %v1776 = vadd.f32 %v1744, %v1760
        %v1777 = vadd.f32 %v1745, %v1761
        %v1778 = vadd.f32 %v1746, %v1762
        %v1779 = vadd.f32 %v1747, %v1763
        %v1780 = vadd.f32 %v1748, %v1764
        %v1781 = vadd.f32 %v1749, %v1765
        %v1782 = vadd.f32 %v1750, %v1766
        %v1783 = vadd.f32 %v1751, %v1767
        %v1784 = vadd.f32 %v1752, %v1768
        %v1785 = vadd.f32 %v1753, %v1769
        %v1786 = vadd.f32 %v1754, %v1770
        %v1787 = vadd.f32 %v1755, %v1771
        %v1788 = vadd.f32 %v1756, %v1772
        %v1789 = vadd.f32 %v1757, %v1773
        %v1790 = vmul.f32 %v1774, 0.35355338
        %v1791 = vmul.f32 %v1775, 0.35355338
        %v1792 = vmul.f32 %v1776, 0.35355338
        %v1793 = vmul.f32 %v1777, 0.35355338
        %v1794 = vmul.f32 %v1778, 0.35355338
        %v1795 = vmul.f32 %v1779, 0.35355338
        %v1796 = vmul.f32 %v1780, 0.35355338
        %v1797 = vmul.f32 %v1781, 0.35355338
        %v1798 = vmul.f32 %v1782, 0.35355338
        %v1799 = vmul.f32 %v1783, 0.35355338
        %v1800 = vmul.f32 %v1784, 0.35355338
        %v1801 = vmul.f32 %v1785, 0.35355338
        %v1802 = vmul.f32 %v1786, 0.35355338
        %v1803 = vmul.f32 %v1787, 0.35355338
        %v1804 = vmul.f32 %v1788, 0.35355338
        %v1805 = vmul.f32 %v1789, 0.35355338
        %v1806 = vpack.c.bf16 %v1791, %v1790
        %v1807 = vpack.c.bf16 %v1793, %v1792
        %v1808 = vpack.c.bf16 %v1795, %v1794
        %v1809 = vpack.c.bf16 %v1797, %v1796
        %v1810 = vpack.c.bf16 %v1799, %v1798
        %v1811 = vpack.c.bf16 %v1801, %v1800
        %v1812 = vpack.c.bf16 %v1803, %v1802
        %v1813 = vpack.c.bf16 %v1805, %v1804
        %v1822 = vunpack.c.l.b16 %v1806
        %v1823 = vunpack.c.h.b16 %v1806
        %v1824 = vunpack.c.l.b16 %v1807
        %v1825 = vunpack.c.h.b16 %v1807
        %v1826 = vunpack.c.l.b16 %v1808
        %v1827 = vunpack.c.h.b16 %v1808
        %v1828 = vunpack.c.l.b16 %v1809
        %v1829 = vunpack.c.h.b16 %v1809
        %v1830 = vunpack.c.l.b16 %v1810
        %v1831 = vunpack.c.h.b16 %v1810
        %v1832 = vunpack.c.l.b16 %v1811
        %v1833 = vunpack.c.h.b16 %v1811
        %v1834 = vunpack.c.l.b16 %v1812
        %v1835 = vunpack.c.h.b16 %v1812
        %v1836 = vunpack.c.l.b16 %v1813
        %v1837 = vunpack.c.h.b16 %v1813
        %v1838 = vpack.c.b16 %v1822, %v1822
        %v1839 = vpack.c.b16 %v1823, %v1823
        %v1840 = vpack.c.b16 %v1824, %v1824
        %v1841 = vpack.c.b16 %v1825, %v1825
        %v1842 = vpack.c.b16 %v1826, %v1826
        %v1843 = vpack.c.b16 %v1827, %v1827
        %v1844 = vpack.c.b16 %v1828, %v1828
        %v1845 = vpack.c.b16 %v1829, %v1829
        %v1846 = vpack.c.b16 %v1830, %v1830
        %v1847 = vpack.c.b16 %v1831, %v1831
        %v1848 = vpack.c.b16 %v1832, %v1832
        %v1849 = vpack.c.b16 %v1833, %v1833
        %v1850 = vpack.c.b16 %v1834, %v1834
        %v1851 = vpack.c.b16 %v1835, %v1835
        %v1852 = vpack.c.b16 %v1836, %v1836
        %v1853 = vpack.c.b16 %v1837, %v1837
        %vm1870 = vcmask 257024
        %1871 = vst.msk [vmem:[#allocation2] sm:$0xf] %vm1870, %v1838
        %1872 = vst.msk [vmem:[#allocation2 + $0x4] sm:$0xf] %vm1870, %v1839
        %1873 = vst.msk [vmem:[#allocation2 + $0x8] sm:$0xf] %vm1870, %v1840
        %1874 = vst.msk [vmem:[#allocation2 + $0xc] sm:$0xf] %vm1870, %v1841
        %1875 = vst.msk [vmem:[#allocation2 + $0x10] sm:$0xf] %vm1870, %v1842
        %1876 = vst.msk [vmem:[#allocation2 + $0x14] sm:$0xf] %vm1870, %v1843
        %1877 = vst.msk [vmem:[#allocation2 + $0x18] sm:$0xf] %vm1870, %v1844
        %1878 = vst.msk [vmem:[#allocation2 + $0x1c] sm:$0xf] %vm1870, %v1845
        %1879 = vst.msk [vmem:[#allocation2 + $0x20] sm:$0xf] %vm1870, %v1846
        %1880 = vst.msk [vmem:[#allocation2 + $0x24] sm:$0xf] %vm1870, %v1847
        %1881 = vst.msk [vmem:[#allocation2 + $0x28] sm:$0xf] %vm1870, %v1848
        %1882 = vst.msk [vmem:[#allocation2 + $0x2c] sm:$0xf] %vm1870, %v1849
        %1883 = vst.msk [vmem:[#allocation2 + $0x30] sm:$0xf] %vm1870, %v1850
        %1884 = vst.msk [vmem:[#allocation2 + $0x34] sm:$0xf] %vm1870, %v1851
        %1885 = vst.msk [vmem:[#allocation2 + $0x38] sm:$0xf] %vm1870, %v1852
        %1886 = vst.msk [vmem:[#allocation2 + $0x3c] sm:$0xf] %vm1870, %v1853
        %1887 = vst.msk [vmem:[#allocation3] sm:$0xff] %vm1693, -inf
        %1888 = vst.msk [vmem:[#allocation3 + $0x8] sm:$0xff] %vm1693, -inf
        %1889 = vst.msk [vmem:[#allocation3 + $0x10] sm:$0xff] %vm1693, -inf
        %1890 = vst.msk [vmem:[#allocation3 + $0x18] sm:$0xff] %vm1693, -inf
        %1891 = vst.msk [vmem:[#allocation3 + $0x20] sm:$0xff] %vm1693, -inf
        %1892 = vst.msk [vmem:[#allocation3 + $0x28] sm:$0xff] %vm1693, -inf
        %1893 = vst.msk [vmem:[#allocation3 + $0x30] sm:$0xff] %vm1693, -inf
        %1894 = vst.msk [vmem:[#allocation3 + $0x38] sm:$0xff] %vm1693, -inf
        %1895 = vst.msk [vmem:[#allocation3 + $0x40] sm:$0xff] %vm1693, -inf
        %1896 = vst.msk [vmem:[#allocation3 + $0x48] sm:$0xff] %vm1693, -inf
        %1897 = vst.msk [vmem:[#allocation3 + $0x50] sm:$0xff] %vm1693, -inf
        %1898 = vst.msk [vmem:[#allocation3 + $0x58] sm:$0xff] %vm1693, -inf
        %1899 = vst.msk [vmem:[#allocation3 + $0x60] sm:$0xff] %vm1693, -inf
        %1900 = vst.msk [vmem:[#allocation3 + $0x68] sm:$0xff] %vm1693, -inf
        %1901 = vst.msk [vmem:[#allocation3 + $0x70] sm:$0xff] %vm1693, -inf
        %1902 = vst.msk [vmem:[#allocation3 + $0x78] sm:$0xff] %vm1693, -inf
        %1903 = vst.msk [vmem:[#allocation4] sm:$0xff] %vm1693, 0.0
        %1904 = vst.msk [vmem:[#allocation4 + $0x8] sm:$0xff] %vm1693, 0.0
        %1905 = vst.msk [vmem:[#allocation4 + $0x10] sm:$0xff] %vm1693, 0.0
        %1906 = vst.msk [vmem:[#allocation4 + $0x18] sm:$0xff] %vm1693, 0.0
        %1907 = vst.msk [vmem:[#allocation4 + $0x20] sm:$0xff] %vm1693, 0.0
        %1908 = vst.msk [vmem:[#allocation4 + $0x28] sm:$0xff] %vm1693, 0.0
        %1909 = vst.msk [vmem:[#allocation4 + $0x30] sm:$0xff] %vm1693, 0.0
        %1910 = vst.msk [vmem:[#allocation4 + $0x38] sm:$0xff] %vm1693, 0.0
        %1911 = vst.msk [vmem:[#allocation4 + $0x40] sm:$0xff] %vm1693, 0.0
        %1912 = vst.msk [vmem:[#allocation4 + $0x48] sm:$0xff] %vm1693, 0.0
        %1913 = vst.msk [vmem:[#allocation4 + $0x50] sm:$0xff] %vm1693, 0.0
        %1914 = vst.msk [vmem:[#allocation4 + $0x58] sm:$0xff] %vm1693, 0.0
        %1915 = vst.msk [vmem:[#allocation4 + $0x60] sm:$0xff] %vm1693, 0.0
        %1916 = vst.msk [vmem:[#allocation4 + $0x68] sm:$0xff] %vm1693, 0.0
        %1917 = vst.msk [vmem:[#allocation4 + $0x70] sm:$0xff] %vm1693, 0.0
        %1918 = vst.msk [vmem:[#allocation4 + $0x78] sm:$0xff] %vm1693, 0.0
        %1919 = vst.msk [vmem:[#allocation5] sm:$0xff] %vm795, 0.0
        %1920 = vst.msk [vmem:[#allocation5 + $0x8] sm:$0xff] %vm795, 0.0
        %1921 = vst.msk [vmem:[#allocation5 + $0x10] sm:$0xff] %vm795, 0.0
        %1922 = vst.msk [vmem:[#allocation5 + $0x18] sm:$0xff] %vm795, 0.0
        %1923 = vst.msk [vmem:[#allocation5 + $0x20] sm:$0xff] %vm795, 0.0
        %1924 = vst.msk [vmem:[#allocation5 + $0x28] sm:$0xff] %vm795, 0.0
        %1925 = vst.msk [vmem:[#allocation5 + $0x30] sm:$0xff] %vm795, 0.0
        %1926 = vst.msk [vmem:[#allocation5 + $0x38] sm:$0xff] %vm795, 0.0
        %1927 = vst.msk [vmem:[#allocation5 + $0x40] sm:$0xff] %vm795, 0.0
        %1928 = vst.msk [vmem:[#allocation5 + $0x48] sm:$0xff] %vm795, 0.0
        %1929 = vst.msk [vmem:[#allocation5 + $0x50] sm:$0xff] %vm795, 0.0
        %1930 = vst.msk [vmem:[#allocation5 + $0x58] sm:$0xff] %vm795, 0.0
        %1931 = vst.msk [vmem:[#allocation5 + $0x60] sm:$0xff] %vm795, 0.0
        %1932 = vst.msk [vmem:[#allocation5 + $0x68] sm:$0xff] %vm795, 0.0
        %1933 = vst.msk [vmem:[#allocation5 + $0x70] sm:$0xff] %vm795, 0.0
        %1934 = vst.msk [vmem:[#allocation5 + $0x78] sm:$0xff] %vm795, 0.0
      $region92: #{tpu_custom_call.1} parent=87 // pred_fallthru
        _
      %v1935 = vld [vmem:[%s710] sm:$0xf]
      %v1936 = vld [vmem:[%s710 + $0x4] sm:$0xf]
      %v1937 = vld [vmem:[%s710 + $0x8] sm:$0xf]
      %v1938 = vld [vmem:[%s710 + $0xc] sm:$0xf]
      %v1939 = vld [vmem:[%s710 + $0x10] sm:$0xf]
      %v1940 = vld [vmem:[%s710 + $0x14] sm:$0xf]
      %v1941 = vld [vmem:[%s710 + $0x18] sm:$0xf]
      %v1942 = vld [vmem:[%s710 + $0x1c] sm:$0xf]
      %v1943 = vld [vmem:[%s710 + $0x20] sm:$0xf]
      %v1944 = vld [vmem:[%s710 + $0x24] sm:$0xf]
      %v1945 = vld [vmem:[%s710 + $0x28] sm:$0xf]
      %v1946 = vld [vmem:[%s710 + $0x2c] sm:$0xf]
      %v1947 = vld [vmem:[%s710 + $0x30] sm:$0xf]
      %v1948 = vld [vmem:[%s710 + $0x34] sm:$0xf]
      %v1949 = vld [vmem:[%s710 + $0x38] sm:$0xf]
      %v1950 = vld [vmem:[%s710 + $0x3c] sm:$0xf]
      %v1951 = vunpack.c.l.bf16 %v1935
      %v1952 = vunpack.c.l.bf16 %v1936
      %v1953 = vunpack.c.l.bf16 %v1937
      %v1954 = vunpack.c.l.bf16 %v1938
      %v1955 = vunpack.c.l.bf16 %v1939
      %v1956 = vunpack.c.l.bf16 %v1940
      %v1957 = vunpack.c.l.bf16 %v1941
      %v1958 = vunpack.c.l.bf16 %v1942
      %v1959 = vunpack.c.l.bf16 %v1943
      %v1960 = vunpack.c.l.bf16 %v1944
      %v1961 = vunpack.c.l.bf16 %v1945
      %v1962 = vunpack.c.l.bf16 %v1946
      %v1963 = vunpack.c.l.bf16 %v1947
      %v1964 = vunpack.c.l.bf16 %v1948
      %v1965 = vunpack.c.l.bf16 %v1949
      %v1966 = vunpack.c.l.bf16 %v1950
      %vm1967 = vcmask 261120
      %v1968 = vsel %vm1967, %v1951, 0.0
      %1969 = vadd.xlane.f32.xlu0 %v1968
      %v1970 = vpop.xlane.xlu0 %1969
      %v1971 = vsel %vm1967, %v1952, 0.0
      %1972 = vadd.xlane.f32.xlu0 %v1971
      %v1973 = vpop.xlane.xlu0 %1972
      %v1974 = vsel %vm1967, %v1953, 0.0
      %1975 = vadd.xlane.f32.xlu0 %v1974
      %v1976 = vpop.xlane.xlu0 %1975
      %v1977 = vsel %vm1967, %v1954, 0.0
      %1978 = vadd.xlane.f32.xlu0 %v1977
      %v1979 = vpop.xlane.xlu0 %1978
      %v1980 = vsel %vm1967, %v1955, 0.0
      %1981 = vadd.xlane.f32.xlu0 %v1980
      %v1982 = vpop.xlane.xlu0 %1981
      %v1983 = vsel %vm1967, %v1956, 0.0
      %1984 = vadd.xlane.f32.xlu0 %v1983
      %v1985 = vpop.xlane.xlu0 %1984
      %v1986 = vsel %vm1967, %v1957, 0.0
      %1987 = vadd.xlane.f32.xlu0 %v1986
      %v1988 = vpop.xlane.xlu0 %1987
      %v1989 = vsel %vm1967, %v1958, 0.0
      %1990 = vadd.xlane.f32.xlu0 %v1989
      %v1991 = vpop.xlane.xlu0 %1990
      %v1992 = vsel %vm1967, %v1959, 0.0
      %1993 = vadd.xlane.f32.xlu0 %v1992
      %v1994 = vpop.xlane.xlu0 %1993
      %v1995 = vsel %vm1967, %v1960, 0.0
      %1996 = vadd.xlane.f32.xlu0 %v1995
      %v1997 = vpop.xlane.xlu0 %1996
      %v1998 = vsel %vm1967, %v1961, 0.0
      %1999 = vadd.xlane.f32.xlu0 %v1998
      %v2000 = vpop.xlane.xlu0 %1999
      %v2001 = vsel %vm1967, %v1962, 0.0
      %2002 = vadd.xlane.f32.xlu0 %v2001
      %v2003 = vpop.xlane.xlu0 %2002
      %v2004 = vsel %vm1967, %v1963, 0.0
      %2005 = vadd.xlane.f32.xlu0 %v2004
      %v2006 = vpop.xlane.xlu0 %2005
      %v2007 = vsel %vm1967, %v1964, 0.0
      %2008 = vadd.xlane.f32.xlu0 %v2007
      %v2009 = vpop.xlane.xlu0 %2008
      %v2010 = vsel %vm1967, %v1965, 0.0
      %2011 = vadd.xlane.f32.xlu0 %v2010
      %v2012 = vpop.xlane.xlu0 %2011
      %v2013 = vsel %vm1967, %v1966, 0.0
      %2014 = vadd.xlane.f32.xlu0 %v2013
      %v2015 = vpop.xlane.xlu0 %2014
      %v2016 = vrcp.pop 32.0
      %v2017 = vmul.f32 %v1970, %v2016
      %v2018 = vmul.f32 %v1973, %v2016
      %v2019 = vmul.f32 %v1976, %v2016
      %v2020 = vmul.f32 %v1979, %v2016
      %v2021 = vmul.f32 %v1982, %v2016
      %v2022 = vmul.f32 %v1985, %v2016
      %v2023 = vmul.f32 %v1988, %v2016
      %v2024 = vmul.f32 %v1991, %v2016
      %v2025 = vmul.f32 %v1994, %v2016
      %v2026 = vmul.f32 %v1997, %v2016
      %v2027 = vmul.f32 %v2000, %v2016
      %v2028 = vmul.f32 %v2003, %v2016
      %v2029 = vmul.f32 %v2006, %v2016
      %v2030 = vmul.f32 %v2009, %v2016
      %v2031 = vmul.f32 %v2012, %v2016
      %v2032 = vmul.f32 %v2015, %v2016
      %v2033 = vsub.f32 %v1951, %v2017
      %v2034 = vsub.f32 %v1952, %v2018
      %v2035 = vsub.f32 %v1953, %v2019
      %v2036 = vsub.f32 %v1954, %v2020
      %v2037 = vsub.f32 %v1955, %v2021
      %v2038 = vsub.f32 %v1956, %v2022
      %v2039 = vsub.f32 %v1957, %v2023
      %v2040 = vsub.f32 %v1958, %v2024
      %v2041 = vsub.f32 %v1959, %v2025
      %v2042 = vsub.f32 %v1960, %v2026
      %v2043 = vsub.f32 %v1961, %v2027
      %v2044 = vsub.f32 %v1962, %v2028
      %v2045 = vsub.f32 %v1963, %v2029
      %v2046 = vsub.f32 %v1964, %v2030
      %v2047 = vsub.f32 %v1965, %v2031
      %v2048 = vsub.f32 %v1966, %v2032
      %v2049 = vmul.f32 %v2033, %v2033
      %v2050 = vmul.f32 %v2034, %v2034
      %v2051 = vmul.f32 %v2035, %v2035
      %v2052 = vmul.f32 %v2036, %v2036
      %v2053 = vmul.f32 %v2037, %v2037
      %v2054 = vmul.f32 %v2038, %v2038
      %v2055 = vmul.f32 %v2039, %v2039
      %v2056 = vmul.f32 %v2040, %v2040
      %v2057 = vmul.f32 %v2041, %v2041
      %v2058 = vmul.f32 %v2042, %v2042
      %v2059 = vmul.f32 %v2043, %v2043
      %v2060 = vmul.f32 %v2044, %v2044
      %v2061 = vmul.f32 %v2045, %v2045
      %v2062 = vmul.f32 %v2046, %v2046
      %v2063 = vmul.f32 %v2047, %v2047
      %v2064 = vmul.f32 %v2048, %v2048
      %v2065 = vsel %vm1967, %v2049, 0.0
      %2066 = vadd.xlane.f32.xlu0 %v2065
      %v2067 = vpop.xlane.xlu0 %2066
      %v2068 = vsel %vm1967, %v2050, 0.0
      %2069 = vadd.xlane.f32.xlu0 %v2068
      %v2070 = vpop.xlane.xlu0 %2069
      %v2071 = vsel %vm1967, %v2051, 0.0
      %2072 = vadd.xlane.f32.xlu0 %v2071
      %v2073 = vpop.xlane.xlu0 %2072
      %v2074 = vsel %vm1967, %v2052, 0.0
      %2075 = vadd.xlane.f32.xlu0 %v2074
      %v2076 = vpop.xlane.xlu0 %2075
      %v2077 = vsel %vm1967, %v2053, 0.0
      %2078 = vadd.xlane.f32.xlu0 %v2077
      %v2079 = vpop.xlane.xlu0 %2078
      %v2080 = vsel %vm1967, %v2054, 0.0
      %2081 = vadd.xlane.f32.xlu0 %v2080
      %v2082 = vpop.xlane.xlu0 %2081
      %v2083 = vsel %vm1967, %v2055, 0.0
      %2084 = vadd.xlane.f32.xlu0 %v2083
      %v2085 = vpop.xlane.xlu0 %2084
      %v2086 = vsel %vm1967, %v2056, 0.0
      %2087 = vadd.xlane.f32.xlu0 %v2086
      %v2088 = vpop.xlane.xlu0 %2087
      %v2089 = vsel %vm1967, %v2057, 0.0
      %2090 = vadd.xlane.f32.xlu0 %v2089
      %v2091 = vpop.xlane.xlu0 %2090
      %v2092 = vsel %vm1967, %v2058, 0.0
      %2093 = vadd.xlane.f32.xlu0 %v2092
      %v2094 = vpop.xlane.xlu0 %2093
      %v2095 = vsel %vm1967, %v2059, 0.0
      %2096 = vadd.xlane.f32.xlu0 %v2095
      %v2097 = vpop.xlane.xlu0 %2096
      %v2098 = vsel %vm1967, %v2060, 0.0
      %2099 = vadd.xlane.f32.xlu0 %v2098
      %v2100 = vpop.xlane.xlu0 %2099
      %v2101 = vsel %vm1967, %v2061, 0.0
      %2102 = vadd.xlane.f32.xlu0 %v2101
      %v2103 = vpop.xlane.xlu0 %2102
      %v2104 = vsel %vm1967, %v2062, 0.0
      %2105 = vadd.xlane.f32.xlu0 %v2104
      %v2106 = vpop.xlane.xlu0 %2105
      %v2107 = vsel %vm1967, %v2063, 0.0
      %2108 = vadd.xlane.f32.xlu0 %v2107
      %v2109 = vpop.xlane.xlu0 %2108
      %v2110 = vsel %vm1967, %v2064, 0.0
      %2111 = vadd.xlane.f32.xlu0 %v2110
      %v2112 = vpop.xlane.xlu0 %2111
      %v2113 = vmul.f32 %v2067, %v2016
      %v2114 = vmul.f32 %v2070, %v2016
      %v2115 = vmul.f32 %v2073, %v2016
      %v2116 = vmul.f32 %v2076, %v2016
      %v2117 = vmul.f32 %v2079, %v2016
      %v2118 = vmul.f32 %v2082, %v2016
      %v2119 = vmul.f32 %v2085, %v2016
      %v2120 = vmul.f32 %v2088, %v2016
      %v2121 = vmul.f32 %v2091, %v2016
      %v2122 = vmul.f32 %v2094, %v2016
      %v2123 = vmul.f32 %v2097, %v2016
      %v2124 = vmul.f32 %v2100, %v2016
      %v2125 = vmul.f32 %v2103, %v2016
      %v2126 = vmul.f32 %v2106, %v2016
      %v2127 = vmul.f32 %v2109, %v2016
      %v2128 = vmul.f32 %v2112, %v2016
      %v2129 = vadd.f32 %v2113, 1e-05
      %v2130 = vadd.f32 %v2114, 1e-05
      %v2131 = vadd.f32 %v2115, 1e-05
      %v2132 = vadd.f32 %v2116, 1e-05
      %v2133 = vadd.f32 %v2117, 1e-05
      %v2134 = vadd.f32 %v2118, 1e-05
      %v2135 = vadd.f32 %v2119, 1e-05
      %v2136 = vadd.f32 %v2120, 1e-05
      %v2137 = vadd.f32 %v2121, 1e-05
      %v2138 = vadd.f32 %v2122, 1e-05
      %v2139 = vadd.f32 %v2123, 1e-05
      %v2140 = vadd.f32 %v2124, 1e-05
      %v2141 = vadd.f32 %v2125, 1e-05
      %v2142 = vadd.f32 %v2126, 1e-05
      %v2143 = vadd.f32 %v2127, 1e-05
      %v2144 = vadd.f32 %v2128, 1e-05
      %v2145 = vrsqrt.pop %v2129
      %v2146 = vrsqrt.pop %v2130
      %v2147 = vrsqrt.pop %v2131
      %v2148 = vrsqrt.pop %v2132
      %v2149 = vrsqrt.pop %v2133
      %v2150 = vrsqrt.pop %v2134
      %v2151 = vrsqrt.pop %v2135
      %v2152 = vrsqrt.pop %v2136
      %v2153 = vrsqrt.pop %v2137
      %v2154 = vrsqrt.pop %v2138
      %v2155 = vrsqrt.pop %v2139
      %v2156 = vrsqrt.pop %v2140
      %v2157 = vrsqrt.pop %v2141
      %v2158 = vrsqrt.pop %v2142
      %v2159 = vrsqrt.pop %v2143
      %v2160 = vrsqrt.pop %v2144
      %v2161 = vmul.f32 %v2033, %v2145
      %v2162 = vmul.f32 %v2034, %v2146
      %v2163 = vmul.f32 %v2035, %v2147
      %v2164 = vmul.f32 %v2036, %v2148
      %v2165 = vmul.f32 %v2037, %v2149
      %v2166 = vmul.f32 %v2038, %v2150
      %v2167 = vmul.f32 %v2039, %v2151
      %v2168 = vmul.f32 %v2040, %v2152
      %v2169 = vmul.f32 %v2041, %v2153
      %v2170 = vmul.f32 %v2042, %v2154
      %v2171 = vmul.f32 %v2043, %v2155
      %v2172 = vmul.f32 %v2044, %v2156
      %v2173 = vmul.f32 %v2045, %v2157
      %v2174 = vmul.f32 %v2046, %v2158
      %v2175 = vmul.f32 %v2047, %v2159
      %v2176 = vmul.f32 %v2048, %v2160
      %v2177 = vlaneseq
      %v2178 = vshrl.u32 %v2177, 7
      %v2179 = vsub.s32 0, %v2178
      %v2180 = vrot.slane %v756, %v2179
      %v2181 = vmul.f32 %v2161, %v2180
      %v2182 = vmul.f32 %v2162, %v2180
      %v2183 = vmul.f32 %v2163, %v2180
      %v2184 = vmul.f32 %v2164, %v2180
      %v2185 = vmul.f32 %v2165, %v2180
      %v2186 = vmul.f32 %v2166, %v2180
      %v2187 = vmul.f32 %v2167, %v2180
      %v2188 = vmul.f32 %v2168, %v2180
      %v2189 = vmul.f32 %v2169, %v2180
      %v2190 = vmul.f32 %v2170, %v2180
      %v2191 = vmul.f32 %v2171, %v2180
      %v2192 = vmul.f32 %v2172, %v2180
      %v2193 = vmul.f32 %v2173, %v2180
      %v2194 = vmul.f32 %v2174, %v2180
      %v2195 = vmul.f32 %v2175, %v2180
      %v2196 = vmul.f32 %v2176, %v2180
      %v2197 = vlaneseq
      %v2198 = vshrl.u32 %v2197, 7
      %v2199 = vsub.s32 0, %v2198
      %v2200 = vrot.slane %v758, %v2199
      %v2201 = vadd.f32 %v2181, %v2200
      %v2202 = vadd.f32 %v2182, %v2200
      %v2203 = vadd.f32 %v2183, %v2200
      %v2204 = vadd.f32 %v2184, %v2200
      %v2205 = vadd.f32 %v2185, %v2200
      %v2206 = vadd.f32 %v2186, %v2200
      %v2207 = vadd.f32 %v2187, %v2200
      %v2208 = vadd.f32 %v2188, %v2200
      %v2209 = vadd.f32 %v2189, %v2200
      %v2210 = vadd.f32 %v2190, %v2200
      %v2211 = vadd.f32 %v2191, %v2200
      %v2212 = vadd.f32 %v2192, %v2200
      %v2213 = vadd.f32 %v2193, %v2200
      %v2214 = vadd.f32 %v2194, %v2200
      %v2215 = vadd.f32 %v2195, %v2200
      %v2216 = vadd.f32 %v2196, %v2200
      %v2217 = vpack.c.bf16 %v2202, %v2201
      %v2218 = vpack.c.bf16 %v2204, %v2203
      %v2219 = vpack.c.bf16 %v2206, %v2205
      %v2220 = vpack.c.bf16 %v2208, %v2207
      %v2221 = vpack.c.bf16 %v2210, %v2209
      %v2222 = vpack.c.bf16 %v2212, %v2211
      %v2223 = vpack.c.bf16 %v2214, %v2213
      %v2224 = vpack.c.bf16 %v2216, %v2215
      %v2225 = vld [vmem:[%s13] sm:$0xf]
      %v2226 = vld [vmem:[%s13 + $0x4] sm:$0xf]
      %v2227 = vld [vmem:[%s13 + $0x8] sm:$0xf]
      %v2228 = vld [vmem:[%s13 + $0xc] sm:$0xf]
      %v2233 = vunpack.c.l.b16 %v2225
      %v2234 = vunpack.c.l.b16 %v2226
      %v2235 = vunpack.c.l.b16 %v2227
      %v2236 = vunpack.c.l.b16 %v2228
      %v2237 = vpack.c.b16 %v2234, %v2233
      %v2238 = vpack.c.b16 %v2236, %v2235
      %v2242 = vsel %vm1967, %v2217, 0
      %v2245 = vsel %vm1967, %v2218, 0
      %v2248 = vsel %vm1967, %v2219, 0
      %v2251 = vsel %vm1967, %v2220, 0
      %v2254 = vsel %vm1967, %v2221, 0
      %v2257 = vsel %vm1967, %v2222, 0
      %v2260 = vsel %vm1967, %v2223, 0
      %v2263 = vsel %vm1967, %v2224, 0
      %2265 = vmatprep.subr.bf16.mxu0 0
      %2266 = vmatpush1.bf16.msra.mxu0 0
      %2267 = vmatprep.subr.bf16.mxu0 0
      %2268 = vmatpush1.bf16.msra.mxu0 0
      %2269 = vmatprep.subr.bf16.mxu0 0
      %2270 = vmatpush1.bf16.msra.mxu0 0
      %2271 = vmatprep.subr.bf16.mxu0 0
      %2272 = vmatpush1.bf16.msra.mxu0 0
      %2273 = vmatprep.subr.bf16.mxu0 0
      %2274 = vmatpush1.bf16.msra.mxu0 0
      %2275 = vmatprep.subr.bf16.mxu0 0
      %2276 = vmatpush1.bf16.msra.mxu0 0
      %2277 = vmatprep.subr.bf16.mxu0 0
      %2278 = vmatpush1.bf16.msra.mxu0 %v2238
      %2279 = vmatprep.subr.bf16.mxu0 0
      %2280 = vmatpush1.bf16.msra.mxu0 %v2237
      %2281 = vmatprep.subr.bf16.mxu0 0
      %2282 = vmatpush2.bf16.msra.mxu0 0
      %2283 = vmatprep.subr.bf16.mxu0 0
      %2284 = vmatpush2.bf16.msra.mxu0 0
      %2285 = vmatprep.subr.bf16.mxu0 0
      %2286 = vmatpush2.bf16.msra.mxu0 0
      %2287 = vmatprep.subr.bf16.mxu0 0
      %2288 = vmatpush2.bf16.msra.mxu0 0
      %2289 = vmatprep.subr.bf16.mxu0 0
      %2290 = vmatpush2.bf16.msra.mxu0 0
      %2291 = vmatprep.subr.bf16.mxu0 0
      %2292 = vmatpush2.bf16.msra.mxu0 0
      %2293 = vmatprep.subr.bf16.mxu0 0
      %2294 = vmatpush2.bf16.msra.mxu0 0
      %2295 = vmatprep.subr.bf16.mxu0 0
      %2296 = vmatpush2.bf16.msra.mxu0 0
      %2297 = vmatprep.mubr.bf16.mxu0 0
      %2298 = vmatmul.mubr.bf16.gmra.mxu0 %v2242
      %v2299 = vpop.f32.mrf.mxu0
      %v2300 = vadd.f32 0.0, %v2299
      %v2301 = vpop.f32.mrf.mxu0
      %v2302 = vpop.f32.mrf.mxu0
      %v2303 = vadd.f32 0.0, %v2302
      %v2304 = vpop.f32.mrf.mxu0
      %2305 = vmatprep.mubr.bf16.mxu0 0
      %2306 = vmatmul.mubr.bf16.gmra.mxu0 %v2245
      %v2307 = vpop.f32.mrf.mxu0
      %v2308 = vadd.f32 0.0, %v2307
      %v2309 = vpop.f32.mrf.mxu0
      %v2310 = vpop.f32.mrf.mxu0
      %v2311 = vadd.f32 0.0, %v2310
      %v2312 = vpop.f32.mrf.mxu0
      %2313 = vmatprep.mubr.bf16.mxu0 0
      %2314 = vmatmul.mubr.bf16.gmra.mxu0 %v2248
      %v2315 = vpop.f32.mrf.mxu0
      %v2316 = vadd.f32 0.0, %v2315
      %v2317 = vpop.f32.mrf.mxu0
      %v2318 = vpop.f32.mrf.mxu0
      %v2319 = vadd.f32 0.0, %v2318
      %v2320 = vpop.f32.mrf.mxu0
      %2321 = vmatprep.mubr.bf16.mxu0 0
      %2322 = vmatmul.mubr.bf16.gmra.mxu0 %v2251
      %v2323 = vpop.f32.mrf.mxu0
      %v2324 = vadd.f32 0.0, %v2323
      %v2325 = vpop.f32.mrf.mxu0
      %v2326 = vpop.f32.mrf.mxu0
      %v2327 = vadd.f32 0.0, %v2326
      %v2328 = vpop.f32.mrf.mxu0
      %2329 = vmatprep.mubr.bf16.mxu0 0
      %2330 = vmatmul.mubr.bf16.gmra.mxu0 %v2254
      %v2331 = vpop.f32.mrf.mxu0
      %v2332 = vadd.f32 0.0, %v2331
      %v2333 = vpop.f32.mrf.mxu0
      %v2334 = vpop.f32.mrf.mxu0
      %v2335 = vadd.f32 0.0, %v2334
      %v2336 = vpop.f32.mrf.mxu0
      %2337 = vmatprep.mubr.bf16.mxu0 0
      %2338 = vmatmul.mubr.bf16.gmra.mxu0 %v2257
      %v2339 = vpop.f32.mrf.mxu0
      %v2340 = vadd.f32 0.0, %v2339
      %v2341 = vpop.f32.mrf.mxu0
      %v2342 = vpop.f32.mrf.mxu0
      %v2343 = vadd.f32 0.0, %v2342
      %v2344 = vpop.f32.mrf.mxu0
      %2345 = vmatprep.mubr.bf16.mxu0 0
      %2346 = vmatmul.mubr.bf16.gmra.mxu0 %v2260
      %v2347 = vpop.f32.mrf.mxu0
      %v2348 = vadd.f32 0.0, %v2347
      %v2349 = vpop.f32.mrf.mxu0
      %v2350 = vpop.f32.mrf.mxu0
      %v2351 = vadd.f32 0.0, %v2350
      %v2352 = vpop.f32.mrf.mxu0
      %2353 = vmatprep.mubr.bf16.mxu0 0
      %2354 = vmatmul.mubr.bf16.gmra.mxu0 %v2263
      %v2355 = vpop.f32.mrf.mxu0
      %v2356 = vadd.f32 0.0, %v2355
      %v2357 = vpop.f32.mrf.mxu0
      %v2358 = vpop.f32.mrf.mxu0
      %v2359 = vadd.f32 0.0, %v2358
      %v2360 = vpop.f32.mrf.mxu0
      %2361 = vdwg.mxu0
      %v2362 = vld [vmem:[%s15] sm:$0x1]
      %v2363 = vunpack.c.l.bf16 %v2362
      %v2364 = vsel %vm1967, %v2300, 0.0
      %2365 = vadd.xlane.f32.xlu0 %v2364
      %v2366 = vpop.xlane.xlu0 %2365
      %v2367 = vsel %vm1967, %v2303, 0.0
      %2368 = vadd.xlane.f32.xlu0 %v2367
      %v2369 = vpop.xlane.xlu0 %2368
      %v2370 = vsel %vm1967, %v2308, 0.0
      %2371 = vadd.xlane.f32.xlu0 %v2370
      %v2372 = vpop.xlane.xlu0 %2371
      %v2373 = vsel %vm1967, %v2311, 0.0
      %2374 = vadd.xlane.f32.xlu0 %v2373
      %v2375 = vpop.xlane.xlu0 %2374
      %v2376 = vsel %vm1967, %v2316, 0.0
      %2377 = vadd.xlane.f32.xlu0 %v2376
      %v2378 = vpop.xlane.xlu0 %2377
      %v2379 = vsel %vm1967, %v2319, 0.0
      %2380 = vadd.xlane.f32.xlu0 %v2379
      %v2381 = vpop.xlane.xlu0 %2380
      %v2382 = vsel %vm1967, %v2324, 0.0
      %2383 = vadd.xlane.f32.xlu0 %v2382
      %v2384 = vpop.xlane.xlu0 %2383
      %v2385 = vsel %vm1967, %v2327, 0.0
      %2386 = vadd.xlane.f32.xlu0 %v2385
      %v2387 = vpop.xlane.xlu0 %2386
      %v2388 = vsel %vm1967, %v2332, 0.0
      %2389 = vadd.xlane.f32.xlu0 %v2388
      %v2390 = vpop.xlane.xlu0 %2389
      %v2391 = vsel %vm1967, %v2335, 0.0
      %2392 = vadd.xlane.f32.xlu0 %v2391
      %v2393 = vpop.xlane.xlu0 %2392
      %v2394 = vsel %vm1967, %v2340, 0.0
      %2395 = vadd.xlane.f32.xlu0 %v2394
      %v2396 = vpop.xlane.xlu0 %2395
      %v2397 = vsel %vm1967, %v2343, 0.0
      %2398 = vadd.xlane.f32.xlu0 %v2397
      %v2399 = vpop.xlane.xlu0 %2398
      %v2400 = vsel %vm1967, %v2348, 0.0
      %2401 = vadd.xlane.f32.xlu0 %v2400
      %v2402 = vpop.xlane.xlu0 %2401
      %v2403 = vsel %vm1967, %v2351, 0.0
      %2404 = vadd.xlane.f32.xlu0 %v2403
      %v2405 = vpop.xlane.xlu0 %2404
      %v2406 = vsel %vm1967, %v2356, 0.0
      %2407 = vadd.xlane.f32.xlu0 %v2406
      %v2408 = vpop.xlane.xlu0 %2407
      %v2409 = vsel %vm1967, %v2359, 0.0
      %2410 = vadd.xlane.f32.xlu0 %v2409
      %v2411 = vpop.xlane.xlu0 %2410
      %v2412 = vmul.f32 %v2366, %v2016
      %v2413 = vmul.f32 %v2369, %v2016
      %v2414 = vmul.f32 %v2372, %v2016
      %v2415 = vmul.f32 %v2375, %v2016
      %v2416 = vmul.f32 %v2378, %v2016
      %v2417 = vmul.f32 %v2381, %v2016
      %v2418 = vmul.f32 %v2384, %v2016
      %v2419 = vmul.f32 %v2387, %v2016
      %v2420 = vmul.f32 %v2390, %v2016
      %v2421 = vmul.f32 %v2393, %v2016
      %v2422 = vmul.f32 %v2396, %v2016
      %v2423 = vmul.f32 %v2399, %v2016
      %v2424 = vmul.f32 %v2402, %v2016
      %v2425 = vmul.f32 %v2405, %v2016
      %v2426 = vmul.f32 %v2408, %v2016
      %v2427 = vmul.f32 %v2411, %v2016
      %v2428 = vsub.f32 %v2300, %v2412
      %v2429 = vsub.f32 %v2303, %v2413
      %v2430 = vsub.f32 %v2308, %v2414
      %v2431 = vsub.f32 %v2311, %v2415
      %v2432 = vsub.f32 %v2316, %v2416
      %v2433 = vsub.f32 %v2319, %v2417
      %v2434 = vsub.f32 %v2324, %v2418
      %v2435 = vsub.f32 %v2327, %v2419
      %v2436 = vsub.f32 %v2332, %v2420
      %v2437 = vsub.f32 %v2335, %v2421
      %v2438 = vsub.f32 %v2340, %v2422
      %v2439 = vsub.f32 %v2343, %v2423
      %v2440 = vsub.f32 %v2348, %v2424
      %v2441 = vsub.f32 %v2351, %v2425
      %v2442 = vsub.f32 %v2356, %v2426
      %v2443 = vsub.f32 %v2359, %v2427
      %v2444 = vmul.f32 %v2428, %v2428
      %v2445 = vmul.f32 %v2429, %v2429
      %v2446 = vmul.f32 %v2430, %v2430
      %v2447 = vmul.f32 %v2431, %v2431
      %v2448 = vmul.f32 %v2432, %v2432
      %v2449 = vmul.f32 %v2433, %v2433
      %v2450 = vmul.f32 %v2434, %v2434
      %v2451 = vmul.f32 %v2435, %v2435
      %v2452 = vmul.f32 %v2436, %v2436
      %v2453 = vmul.f32 %v2437, %v2437
      %v2454 = vmul.f32 %v2438, %v2438
      %v2455 = vmul.f32 %v2439, %v2439
      %v2456 = vmul.f32 %v2440, %v2440
      %v2457 = vmul.f32 %v2441, %v2441
      %v2458 = vmul.f32 %v2442, %v2442
      %v2459 = vmul.f32 %v2443, %v2443
      %v2460 = vsel %vm1967, %v2444, 0.0
      %2461 = vadd.xlane.f32.xlu0 %v2460
      %v2462 = vpop.xlane.xlu0 %2461
      %v2463 = vsel %vm1967, %v2445, 0.0
      %2464 = vadd.xlane.f32.xlu0 %v2463
      %v2465 = vpop.xlane.xlu0 %2464
      %v2466 = vsel %vm1967, %v2446, 0.0
      %2467 = vadd.xlane.f32.xlu0 %v2466
      %v2468 = vpop.xlane.xlu0 %2467
      %v2469 = vsel %vm1967, %v2447, 0.0
      %2470 = vadd.xlane.f32.xlu0 %v2469
      %v2471 = vpop.xlane.xlu0 %2470
      %v2472 = vsel %vm1967, %v2448, 0.0
      %2473 = vadd.xlane.f32.xlu0 %v2472
      %v2474 = vpop.xlane.xlu0 %2473
      %v2475 = vsel %vm1967, %v2449, 0.0
      %2476 = vadd.xlane.f32.xlu0 %v2475
      %v2477 = vpop.xlane.xlu0 %2476
      %v2478 = vsel %vm1967, %v2450, 0.0
      %2479 = vadd.xlane.f32.xlu0 %v2478
      %v2480 = vpop.xlane.xlu0 %2479
      %v2481 = vsel %vm1967, %v2451, 0.0
      %2482 = vadd.xlane.f32.xlu0 %v2481
      %v2483 = vpop.xlane.xlu0 %2482
      %v2484 = vsel %vm1967, %v2452, 0.0
      %2485 = vadd.xlane.f32.xlu0 %v2484
      %v2486 = vpop.xlane.xlu0 %2485
      %v2487 = vsel %vm1967, %v2453, 0.0
      %2488 = vadd.xlane.f32.xlu0 %v2487
      %v2489 = vpop.xlane.xlu0 %2488
      %v2490 = vsel %vm1967, %v2454, 0.0
      %2491 = vadd.xlane.f32.xlu0 %v2490
      %v2492 = vpop.xlane.xlu0 %2491
      %v2493 = vsel %vm1967, %v2455, 0.0
      %2494 = vadd.xlane.f32.xlu0 %v2493
      %v2495 = vpop.xlane.xlu0 %2494
      %v2496 = vsel %vm1967, %v2456, 0.0
      %2497 = vadd.xlane.f32.xlu0 %v2496
      %v2498 = vpop.xlane.xlu0 %2497
      %v2499 = vsel %vm1967, %v2457, 0.0
      %2500 = vadd.xlane.f32.xlu0 %v2499
      %v2501 = vpop.xlane.xlu0 %2500
      %v2502 = vsel %vm1967, %v2458, 0.0
      %2503 = vadd.xlane.f32.xlu0 %v2502
      %v2504 = vpop.xlane.xlu0 %2503
      %v2505 = vsel %vm1967, %v2459, 0.0
      %2506 = vadd.xlane.f32.xlu0 %v2505
      %v2507 = vpop.xlane.xlu0 %2506
      %v2508 = vmul.f32 %v2462, %v2016
      %v2509 = vmul.f32 %v2465, %v2016
      %v2510 = vmul.f32 %v2468, %v2016
      %v2511 = vmul.f32 %v2471, %v2016
      %v2512 = vmul.f32 %v2474, %v2016
      %v2513 = vmul.f32 %v2477, %v2016
      %v2514 = vmul.f32 %v2480, %v2016
      %v2515 = vmul.f32 %v2483, %v2016
      %v2516 = vmul.f32 %v2486, %v2016
      %v2517 = vmul.f32 %v2489, %v2016
      %v2518 = vmul.f32 %v2492, %v2016
      %v2519 = vmul.f32 %v2495, %v2016
      %v2520 = vmul.f32 %v2498, %v2016
      %v2521 = vmul.f32 %v2501, %v2016
      %v2522 = vmul.f32 %v2504, %v2016
      %v2523 = vmul.f32 %v2507, %v2016
      %v2524 = vadd.f32 %v2508, 1e-05
      %v2525 = vadd.f32 %v2509, 1e-05
      %v2526 = vadd.f32 %v2510, 1e-05
      %v2527 = vadd.f32 %v2511, 1e-05
      %v2528 = vadd.f32 %v2512, 1e-05
      %v2529 = vadd.f32 %v2513, 1e-05
      %v2530 = vadd.f32 %v2514, 1e-05
      %v2531 = vadd.f32 %v2515, 1e-05
      %v2532 = vadd.f32 %v2516, 1e-05
      %v2533 = vadd.f32 %v2517, 1e-05
      %v2534 = vadd.f32 %v2518, 1e-05
      %v2535 = vadd.f32 %v2519, 1e-05
      %v2536 = vadd.f32 %v2520, 1e-05
      %v2537 = vadd.f32 %v2521, 1e-05
      %v2538 = vadd.f32 %v2522, 1e-05
      %v2539 = vadd.f32 %v2523, 1e-05
      %v2540 = vrsqrt.pop %v2524
      %v2541 = vrsqrt.pop %v2525
      %v2542 = vrsqrt.pop %v2526
      %v2543 = vrsqrt.pop %v2527
      %v2544 = vrsqrt.pop %v2528
      %v2545 = vrsqrt.pop %v2529
      %v2546 = vrsqrt.pop %v2530
      %v2547 = vrsqrt.pop %v2531
      %v2548 = vrsqrt.pop %v2532
      %v2549 = vrsqrt.pop %v2533
      %v2550 = vrsqrt.pop %v2534
      %v2551 = vrsqrt.pop %v2535
      %v2552 = vrsqrt.pop %v2536
      %v2553 = vrsqrt.pop %v2537
      %v2554 = vrsqrt.pop %v2538
      %v2555 = vrsqrt.pop %v2539
      %v2556 = vmul.f32 %v2428, %v2540
      %v2557 = vmul.f32 %v2429, %v2541
      %v2558 = vmul.f32 %v2430, %v2542
      %v2559 = vmul.f32 %v2431, %v2543
      %v2560 = vmul.f32 %v2432, %v2544
      %v2561 = vmul.f32 %v2433, %v2545
      %v2562 = vmul.f32 %v2434, %v2546
      %v2563 = vmul.f32 %v2435, %v2547
      %v2564 = vmul.f32 %v2436, %v2548
      %v2565 = vmul.f32 %v2437, %v2549
      %v2566 = vmul.f32 %v2438, %v2550
      %v2567 = vmul.f32 %v2439, %v2551
      %v2568 = vmul.f32 %v2440, %v2552
      %v2569 = vmul.f32 %v2441, %v2553
      %v2570 = vmul.f32 %v2442, %v2554
      %v2571 = vmul.f32 %v2443, %v2555
      %v2572 = vlaneseq
      %v2573 = vshrl.u32 %v2572, 7
      %v2574 = vsub.s32 0, %v2573
      %v2575 = vrot.slane %v2363, %v2574
      %v2576 = vmul.f32 %v2556, %v2575
      %v2577 = vmul.f32 %v2557, %v2575
      %v2578 = vmul.f32 %v2558, %v2575
      %v2579 = vmul.f32 %v2559, %v2575
      %v2580 = vmul.f32 %v2560, %v2575
      %v2581 = vmul.f32 %v2561, %v2575
      %v2582 = vmul.f32 %v2562, %v2575
      %v2583 = vmul.f32 %v2563, %v2575
      %v2584 = vmul.f32 %v2564, %v2575
      %v2585 = vmul.f32 %v2565, %v2575
      %v2586 = vmul.f32 %v2566, %v2575
      %v2587 = vmul.f32 %v2567, %v2575
      %v2588 = vmul.f32 %v2568, %v2575
      %v2589 = vmul.f32 %v2569, %v2575
      %v2590 = vmul.f32 %v2570, %v2575
      %v2591 = vmul.f32 %v2571, %v2575
      %v2592 = vld [vmem:[%s734] sm:$0xff]
      %v2593 = vld [vmem:[%s734 + $0x8] sm:$0xff]
      %v2594 = vld [vmem:[%s734 + $0x10] sm:$0xff]
      %v2595 = vld [vmem:[%s734 + $0x18] sm:$0xff]
      %v2596 = vld [vmem:[%s734 + $0x20] sm:$0xff]
      %v2597 = vld [vmem:[%s734 + $0x28] sm:$0xff]
      %v2598 = vld [vmem:[%s734 + $0x30] sm:$0xff]
      %v2599 = vld [vmem:[%s734 + $0x38] sm:$0xff]
      %v2600 = vld [vmem:[%s734 + $0x40] sm:$0xff]
      %v2601 = vld [vmem:[%s734 + $0x48] sm:$0xff]
      %v2602 = vld [vmem:[%s734 + $0x50] sm:$0xff]
      %v2603 = vld [vmem:[%s734 + $0x58] sm:$0xff]
      %v2604 = vld [vmem:[%s734 + $0x60] sm:$0xff]
      %v2605 = vld [vmem:[%s734 + $0x68] sm:$0xff]
      %v2606 = vld [vmem:[%s734 + $0x70] sm:$0xff]
      %v2607 = vld [vmem:[%s734 + $0x78] sm:$0xff]
      %v2608 = vld [vmem:[%s740] sm:$0xff]
      %v2609 = vld [vmem:[%s740 + $0x8] sm:$0xff]
      %v2610 = vld [vmem:[%s740 + $0x10] sm:$0xff]
      %v2611 = vld [vmem:[%s740 + $0x18] sm:$0xff]
      %v2612 = vld [vmem:[%s740 + $0x20] sm:$0xff]
      %v2613 = vld [vmem:[%s740 + $0x28] sm:$0xff]
      %v2614 = vld [vmem:[%s740 + $0x30] sm:$0xff]
      %v2615 = vld [vmem:[%s740 + $0x38] sm:$0xff]
      %v2616 = vld [vmem:[%s740 + $0x40] sm:$0xff]
      %v2617 = vld [vmem:[%s740 + $0x48] sm:$0xff]
      %v2618 = vld [vmem:[%s740 + $0x50] sm:$0xff]
      %v2619 = vld [vmem:[%s740 + $0x58] sm:$0xff]
      %v2620 = vld [vmem:[%s740 + $0x60] sm:$0xff]
      %v2621 = vld [vmem:[%s740 + $0x68] sm:$0xff]
      %v2622 = vld [vmem:[%s740 + $0x70] sm:$0xff]
      %v2623 = vld [vmem:[%s740 + $0x78] sm:$0xff]
      %v2624 = vld [vmem:[%s746] sm:$0xff]
      %v2625 = vld [vmem:[%s746 + $0x8] sm:$0xff]
      %v2626 = vld [vmem:[%s746 + $0x10] sm:$0xff]
      %v2627 = vld [vmem:[%s746 + $0x18] sm:$0xff]
      %v2628 = vld [vmem:[%s746 + $0x20] sm:$0xff]
      %v2629 = vld [vmem:[%s746 + $0x28] sm:$0xff]
      %v2630 = vld [vmem:[%s746 + $0x30] sm:$0xff]
      %v2631 = vld [vmem:[%s746 + $0x38] sm:$0xff]
      %v2632 = vld [vmem:[%s746 + $0x40] sm:$0xff]
      %v2633 = vld [vmem:[%s746 + $0x48] sm:$0xff]
      %v2634 = vld [vmem:[%s746 + $0x50] sm:$0xff]
      %v2635 = vld [vmem:[%s746 + $0x58] sm:$0xff]
      %v2636 = vld [vmem:[%s746 + $0x60] sm:$0xff]
      %v2637 = vld [vmem:[%s746 + $0x68] sm:$0xff]
      %v2638 = vld [vmem:[%s746 + $0x70] sm:$0xff]
      %v2639 = vld [vmem:[%s746 + $0x78] sm:$0xff]
      %2656 = vrot.lane.b32.xlu0 %v2576, 124
      %v2657 = vpop.permute.xlu0 %2656
      %2658 = vrot.lane.b32.xlu0 %v2577, 124
      %v2659 = vpop.permute.xlu0 %2658
      %2660 = vrot.lane.b32.xlu0 %v2578, 124
      %v2661 = vpop.permute.xlu0 %2660
      %2662 = vrot.lane.b32.xlu0 %v2579, 124
      %v2663 = vpop.permute.xlu0 %2662
      %2664 = vrot.lane.b32.xlu0 %v2580, 124
      %v2665 = vpop.permute.xlu0 %2664
      %2666 = vrot.lane.b32.xlu0 %v2581, 124
      %v2667 = vpop.permute.xlu0 %2666
      %2668 = vrot.lane.b32.xlu0 %v2582, 124
      %v2669 = vpop.permute.xlu0 %2668
      %2670 = vrot.lane.b32.xlu0 %v2583, 124
      %v2671 = vpop.permute.xlu0 %2670
      %2672 = vrot.lane.b32.xlu0 %v2584, 124
      %v2673 = vpop.permute.xlu0 %2672
      %2674 = vrot.lane.b32.xlu0 %v2585, 124
      %v2675 = vpop.permute.xlu0 %2674
      %2676 = vrot.lane.b32.xlu0 %v2586, 124
      %v2677 = vpop.permute.xlu0 %2676
      %2678 = vrot.lane.b32.xlu0 %v2587, 124
      %v2679 = vpop.permute.xlu0 %2678
      %2680 = vrot.lane.b32.xlu0 %v2588, 124
      %v2681 = vpop.permute.xlu0 %2680
      %2682 = vrot.lane.b32.xlu0 %v2589, 124
      %v2683 = vpop.permute.xlu0 %2682
      %2684 = vrot.lane.b32.xlu0 %v2590, 124
      %v2685 = vpop.permute.xlu0 %2684
      %2686 = vrot.lane.b32.xlu0 %v2591, 124
      %v2687 = vpop.permute.xlu0 %2686
      %2704 = vrot.lane.b32.xlu0 %v2576, 28
      %v2705 = vpop.permute.xlu0 %2704
      %2706 = vrot.lane.b32.xlu0 %v2577, 28
      %v2707 = vpop.permute.xlu0 %2706
      %2708 = vrot.lane.b32.xlu0 %v2578, 28
      %v2709 = vpop.permute.xlu0 %2708
      %2710 = vrot.lane.b32.xlu0 %v2579, 28
      %v2711 = vpop.permute.xlu0 %2710
      %2712 = vrot.lane.b32.xlu0 %v2580, 28
      %v2713 = vpop.permute.xlu0 %2712
      %2714 = vrot.lane.b32.xlu0 %v2581, 28
      %v2715 = vpop.permute.xlu0 %2714
      %2716 = vrot.lane.b32.xlu0 %v2582, 28
      %v2717 = vpop.permute.xlu0 %2716
      %2718 = vrot.lane.b32.xlu0 %v2583, 28
      %v2719 = vpop.permute.xlu0 %2718
      %2720 = vrot.lane.b32.xlu0 %v2584, 28
      %v2721 = vpop.permute.xlu0 %2720
      %2722 = vrot.lane.b32.xlu0 %v2585, 28
      %v2723 = vpop.permute.xlu0 %2722
      %2724 = vrot.lane.b32.xlu0 %v2586, 28
      %v2725 = vpop.permute.xlu0 %2724
      %2726 = vrot.lane.b32.xlu0 %v2587, 28
      %v2727 = vpop.permute.xlu0 %2726
      %2728 = vrot.lane.b32.xlu0 %v2588, 28
      %v2729 = vpop.permute.xlu0 %2728
      %2730 = vrot.lane.b32.xlu0 %v2589, 28
      %v2731 = vpop.permute.xlu0 %2730
      %2732 = vrot.lane.b32.xlu0 %v2590, 28
      %v2733 = vpop.permute.xlu0 %2732
      %2734 = vrot.lane.b32.xlu0 %v2591, 28
      %v2735 = vpop.permute.xlu0 %2734
      %vm2752 = vcmask 228352
      %v2753 = vsel %vm2752, %v2657, %v2705
      %v2754 = vsel %vm2752, %v2659, %v2707
      %v2755 = vsel %vm2752, %v2661, %v2709
      %v2756 = vsel %vm2752, %v2663, %v2711
      %v2757 = vsel %vm2752, %v2665, %v2713
      %v2758 = vsel %vm2752, %v2667, %v2715
      %v2759 = vsel %vm2752, %v2669, %v2717
      %v2760 = vsel %vm2752, %v2671, %v2719
      %v2761 = vsel %vm2752, %v2673, %v2721
      %v2762 = vsel %vm2752, %v2675, %v2723
      %v2763 = vsel %vm2752, %v2677, %v2725
      %v2764 = vsel %vm2752, %v2679, %v2727
      %v2765 = vsel %vm2752, %v2681, %v2729
      %v2766 = vsel %vm2752, %v2683, %v2731
      %v2767 = vsel %vm2752, %v2685, %v2733
      %v2768 = vsel %vm2752, %v2687, %v2735
      %2769 = vrot.lane.b32.xlu0 %v2576, 100
      %v2770 = vpop.permute.xlu0 %2769
      %2771 = vrot.lane.b32.xlu0 %v2577, 100
      %v2772 = vpop.permute.xlu0 %2771
      %2773 = vrot.lane.b32.xlu0 %v2578, 100
      %v2774 = vpop.permute.xlu0 %2773
      %2775 = vrot.lane.b32.xlu0 %v2579, 100
      %v2776 = vpop.permute.xlu0 %2775
      %2777 = vrot.lane.b32.xlu0 %v2580, 100
      %v2778 = vpop.permute.xlu0 %2777
      %2779 = vrot.lane.b32.xlu0 %v2581, 100
      %v2780 = vpop.permute.xlu0 %2779
      %2781 = vrot.lane.b32.xlu0 %v2582, 100
      %v2782 = vpop.permute.xlu0 %2781
      %2783 = vrot.lane.b32.xlu0 %v2583, 100
      %v2784 = vpop.permute.xlu0 %2783
      %2785 = vrot.lane.b32.xlu0 %v2584, 100
      %v2786 = vpop.permute.xlu0 %2785
      %2787 = vrot.lane.b32.xlu0 %v2585, 100
      %v2788 = vpop.permute.xlu0 %2787
      %2789 = vrot.lane.b32.xlu0 %v2586, 100
      %v2790 = vpop.permute.xlu0 %2789
      %2791 = vrot.lane.b32.xlu0 %v2587, 100
      %v2792 = vpop.permute.xlu0 %2791
      %2793 = vrot.lane.b32.xlu0 %v2588, 100
      %v2794 = vpop.permute.xlu0 %2793
      %2795 = vrot.lane.b32.xlu0 %v2589, 100
      %v2796 = vpop.permute.xlu0 %2795
      %2797 = vrot.lane.b32.xlu0 %v2590, 100
      %v2798 = vpop.permute.xlu0 %2797
      %2799 = vrot.lane.b32.xlu0 %v2591, 100
      %v2800 = vpop.permute.xlu0 %2799
      %2817 = vrot.lane.b32.xlu0 %v2576, 4
      %v2818 = vpop.permute.xlu0 %2817
      %2819 = vrot.lane.b32.xlu0 %v2577, 4
      %v2820 = vpop.permute.xlu0 %2819
      %2821 = vrot.lane.b32.xlu0 %v2578, 4
      %v2822 = vpop.permute.xlu0 %2821
      %2823 = vrot.lane.b32.xlu0 %v2579, 4
      %v2824 = vpop.permute.xlu0 %2823
      %2825 = vrot.lane.b32.xlu0 %v2580, 4
      %v2826 = vpop.permute.xlu0 %2825
      %2827 = vrot.lane.b32.xlu0 %v2581, 4
      %v2828 = vpop.permute.xlu0 %2827
      %2829 = vrot.lane.b32.xlu0 %v2582, 4
      %v2830 = vpop.permute.xlu0 %2829
      %2831 = vrot.lane.b32.xlu0 %v2583, 4
      %v2832 = vpop.permute.xlu0 %2831
      %2833 = vrot.lane.b32.xlu0 %v2584, 4
      %v2834 = vpop.permute.xlu0 %2833
      %2835 = vrot.lane.b32.xlu0 %v2585, 4
      %v2836 = vpop.permute.xlu0 %2835
      %2837 = vrot.lane.b32.xlu0 %v2586, 4
      %v2838 = vpop.permute.xlu0 %2837
      %2839 = vrot.lane.b32.xlu0 %v2587, 4
      %v2840 = vpop.permute.xlu0 %2839
      %2841 = vrot.lane.b32.xlu0 %v2588, 4
      %v2842 = vpop.permute.xlu0 %2841
      %2843 = vrot.lane.b32.xlu0 %v2589, 4
      %v2844 = vpop.permute.xlu0 %2843
      %2845 = vrot.lane.b32.xlu0 %v2590, 4
      %v2846 = vpop.permute.xlu0 %2845
      %2847 = vrot.lane.b32.xlu0 %v2591, 4
      %v2848 = vpop.permute.xlu0 %2847
      %vm2865 = vcmask 31744
      %v2866 = vsel %vm2865, %v2770, %v2818
      %v2867 = vsel %vm2865, %v2772, %v2820
      %v2868 = vsel %vm2865, %v2774, %v2822
      %v2869 = vsel %vm2865, %v2776, %v2824
      %v2870 = vsel %vm2865, %v2778, %v2826
      %v2871 = vsel %vm2865, %v2780, %v2828
      %v2872 = vsel %vm2865, %v2782, %v2830
      %v2873 = vsel %vm2865, %v2784, %v2832
      %v2874 = vsel %vm2865, %v2786, %v2834
      %v2875 = vsel %vm2865, %v2788, %v2836
      %v2876 = vsel %vm2865, %v2790, %v2838
      %v2877 = vsel %vm2865, %v2792, %v2840
      %v2878 = vsel %vm2865, %v2794, %v2842
      %v2879 = vsel %vm2865, %v2796, %v2844
      %v2880 = vsel %vm2865, %v2798, %v2846
      %v2881 = vsel %vm2865, %v2800, %v2848
      %v2882 = vmul.f32 %v2576, %v2592
      %v2883 = vmul.f32 %v2577, %v2593
      %v2884 = vmul.f32 %v2578, %v2594
      %v2885 = vmul.f32 %v2579, %v2595
      %v2886 = vmul.f32 %v2580, %v2596
      %v2887 = vmul.f32 %v2581, %v2597
      %v2888 = vmul.f32 %v2582, %v2598
      %v2889 = vmul.f32 %v2583, %v2599
      %v2890 = vmul.f32 %v2584, %v2600
      %v2891 = vmul.f32 %v2585, %v2601
      %v2892 = vmul.f32 %v2586, %v2602
      %v2893 = vmul.f32 %v2587, %v2603
      %v2894 = vmul.f32 %v2588, %v2604
      %v2895 = vmul.f32 %v2589, %v2605
      %v2896 = vmul.f32 %v2590, %v2606
      %v2897 = vmul.f32 %v2591, %v2607
      %v2898 = vmul.f32 %v2753, %v2608
      %v2899 = vmul.f32 %v2754, %v2609
      %v2900 = vmul.f32 %v2755, %v2610
      %v2901 = vmul.f32 %v2756, %v2611
      %v2902 = vmul.f32 %v2757, %v2612
      %v2903 = vmul.f32 %v2758, %v2613
      %v2904 = vmul.f32 %v2759, %v2614
      %v2905 = vmul.f32 %v2760, %v2615
      %v2906 = vmul.f32 %v2761, %v2616
      %v2907 = vmul.f32 %v2762, %v2617
      %v2908 = vmul.f32 %v2763, %v2618
      %v2909 = vmul.f32 %v2764, %v2619
      %v2910 = vmul.f32 %v2765, %v2620
      %v2911 = vmul.f32 %v2766, %v2621
      %v2912 = vmul.f32 %v2767, %v2622
      %v2913 = vmul.f32 %v2768, %v2623
      %v2914 = vadd.f32 %v2882, %v2898
      %v2915 = vadd.f32 %v2883, %v2899
      %v2916 = vadd.f32 %v2884, %v2900
      %v2917 = vadd.f32 %v2885, %v2901
      %v2918 = vadd.f32 %v2886, %v2902
      %v2919 = vadd.f32 %v2887, %v2903
      %v2920 = vadd.f32 %v2888, %v2904
      %v2921 = vadd.f32 %v2889, %v2905
      %v2922 = vadd.f32 %v2890, %v2906
      %v2923 = vadd.f32 %v2891, %v2907
      %v2924 = vadd.f32 %v2892, %v2908
      %v2925 = vadd.f32 %v2893, %v2909
      %v2926 = vadd.f32 %v2894, %v2910
      %v2927 = vadd.f32 %v2895, %v2911
      %v2928 = vadd.f32 %v2896, %v2912
      %v2929 = vadd.f32 %v2897, %v2913
      %v2930 = vmul.f32 %v2866, %v2624
      %v2931 = vmul.f32 %v2867, %v2625
      %v2932 = vmul.f32 %v2868, %v2626
      %v2933 = vmul.f32 %v2869, %v2627
      %v2934 = vmul.f32 %v2870, %v2628
      %v2935 = vmul.f32 %v2871, %v2629
      %v2936 = vmul.f32 %v2872, %v2630
      %v2937 = vmul.f32 %v2873, %v2631
      %v2938 = vmul.f32 %v2874, %v2632
      %v2939 = vmul.f32 %v2875, %v2633
      %v2940 = vmul.f32 %v2876, %v2634
      %v2941 = vmul.f32 %v2877, %v2635
      %v2942 = vmul.f32 %v2878, %v2636
      %v2943 = vmul.f32 %v2879, %v2637
      %v2944 = vmul.f32 %v2880, %v2638
      %v2945 = vmul.f32 %v2881, %v2639
      %v2946 = vadd.f32 %v2914, %v2930
      %v2947 = vadd.f32 %v2915, %v2931
      %v2948 = vadd.f32 %v2916, %v2932
      %v2949 = vadd.f32 %v2917, %v2933
      %v2950 = vadd.f32 %v2918, %v2934
      %v2951 = vadd.f32 %v2919, %v2935
      %v2952 = vadd.f32 %v2920, %v2936
      %v2953 = vadd.f32 %v2921, %v2937
      %v2954 = vadd.f32 %v2922, %v2938
      %v2955 = vadd.f32 %v2923, %v2939
      %v2956 = vadd.f32 %v2924, %v2940
      %v2957 = vadd.f32 %v2925, %v2941
      %v2958 = vadd.f32 %v2926, %v2942
      %v2959 = vadd.f32 %v2927, %v2943
      %v2960 = vadd.f32 %v2928, %v2944
      %v2961 = vadd.f32 %v2929, %v2945
      %v2962 = vpack.c.bf16 %v2947, %v2946
      %v2963 = vpack.c.bf16 %v2949, %v2948
      %v2964 = vpack.c.bf16 %v2951, %v2950
      %v2965 = vpack.c.bf16 %v2953, %v2952
      %v2966 = vpack.c.bf16 %v2955, %v2954
      %v2967 = vpack.c.bf16 %v2957, %v2956
      %v2968 = vpack.c.bf16 %v2959, %v2958
      %v2969 = vpack.c.bf16 %v2961, %v2960
      %v2970 = vpack.c.bf16 %v2303, %v2300
      %v2971 = vpack.c.bf16 %v2311, %v2308
      %v2972 = vpack.c.bf16 %v2319, %v2316
      %v2973 = vpack.c.bf16 %v2327, %v2324
      %v2974 = vpack.c.bf16 %v2335, %v2332
      %v2975 = vpack.c.bf16 %v2343, %v2340
      %v2976 = vpack.c.bf16 %v2351, %v2348
      %v2977 = vpack.c.bf16 %v2359, %v2356
      %v2978 = vld [vmem:[%s695] sm:$0xff]
      %v2979 = vld [vmem:[%s695 + $0x8] sm:$0xff]
      %v2980 = vld [vmem:[%s695 + $0x10] sm:$0xff]
      %v2981 = vld [vmem:[%s695 + $0x18] sm:$0xff]
      %v2982 = vld [vmem:[%s695 + $0x20] sm:$0xff]
      %v2983 = vld [vmem:[%s695 + $0x28] sm:$0xff]
      %v2984 = vld [vmem:[%s695 + $0x30] sm:$0xff]
      %v2985 = vld [vmem:[%s695 + $0x38] sm:$0xff]
      %v2986 = vld [vmem:[%s695 + $0x40] sm:$0xff]
      %v2987 = vld [vmem:[%s695 + $0x48] sm:$0xff]
      %v2988 = vld [vmem:[%s695 + $0x50] sm:$0xff]
      %v2989 = vld [vmem:[%s695 + $0x58] sm:$0xff]
      %v2990 = vld [vmem:[%s695 + $0x60] sm:$0xff]
      %v2991 = vld [vmem:[%s695 + $0x68] sm:$0xff]
      %v2992 = vld [vmem:[%s695 + $0x70] sm:$0xff]
      %v2993 = vld [vmem:[%s695 + $0x78] sm:$0xff]
      %v2994 = vld [vmem:[%s699] sm:$0x1]
      %2995 = vset.pattern.permute.xlu0 0
      %2996 = vperm.xlu0 %2995, %v2978
      %v2997 = vpop.permute.xlu0 %2996
      %2998 = vset.pattern.permute.xlu0 0
      %2999 = vperm.xlu0 %2998, %v2979
      %v3000 = vpop.permute.xlu0 %2999
      %3001 = vset.pattern.permute.xlu0 0
      %3002 = vperm.xlu0 %3001, %v2980
      %v3003 = vpop.permute.xlu0 %3002
      %3004 = vset.pattern.permute.xlu0 0
      %3005 = vperm.xlu0 %3004, %v2981
      %v3006 = vpop.permute.xlu0 %3005
      %3007 = vset.pattern.permute.xlu0 0
      %3008 = vperm.xlu0 %3007, %v2982
      %v3009 = vpop.permute.xlu0 %3008
      %3010 = vset.pattern.permute.xlu0 0
      %3011 = vperm.xlu0 %3010, %v2983
      %v3012 = vpop.permute.xlu0 %3011
      %3013 = vset.pattern.permute.xlu0 0
      %3014 = vperm.xlu0 %3013, %v2984
      %v3015 = vpop.permute.xlu0 %3014
      %3016 = vset.pattern.permute.xlu0 0
      %3017 = vperm.xlu0 %3016, %v2985
      %v3018 = vpop.permute.xlu0 %3017
      %3019 = vset.pattern.permute.xlu0 0
      %3020 = vperm.xlu0 %3019, %v2986
      %v3021 = vpop.permute.xlu0 %3020
      %3022 = vset.pattern.permute.xlu0 0
      %3023 = vperm.xlu0 %3022, %v2987
      %v3024 = vpop.permute.xlu0 %3023
      %3025 = vset.pattern.permute.xlu0 0
      %3026 = vperm.xlu0 %3025, %v2988
      %v3027 = vpop.permute.xlu0 %3026
      %3028 = vset.pattern.permute.xlu0 0
      %3029 = vperm.xlu0 %3028, %v2989
      %v3030 = vpop.permute.xlu0 %3029
      %3031 = vset.pattern.permute.xlu0 0
      %3032 = vperm.xlu0 %3031, %v2990
      %v3033 = vpop.permute.xlu0 %3032
      %3034 = vset.pattern.permute.xlu0 0
      %3035 = vperm.xlu0 %3034, %v2991
      %v3036 = vpop.permute.xlu0 %3035
      %3037 = vset.pattern.permute.xlu0 0
      %3038 = vperm.xlu0 %3037, %v2992
      %v3039 = vpop.permute.xlu0 %3038
      %3040 = vset.pattern.permute.xlu0 0
      %3041 = vperm.xlu0 %3040, %v2993
      %v3042 = vpop.permute.xlu0 %3041
      %v3043 = vlaneseq
      %v3044 = vshrl.u32 %v3043, 7
      %v3045 = vsub.s32 0, %v3044
      %v3046 = vrot.slane %v2994, %v3045
      %vm3047 = vcmp.eq.s32.totalorder %v2997, %v3046
      %vm3048 = vcmp.eq.s32.totalorder %v3000, %v3046
      %vm3049 = vcmp.eq.s32.totalorder %v3003, %v3046
      %vm3050 = vcmp.eq.s32.totalorder %v3006, %v3046
      %vm3051 = vcmp.eq.s32.totalorder %v3009, %v3046
      %vm3052 = vcmp.eq.s32.totalorder %v3012, %v3046
      %vm3053 = vcmp.eq.s32.totalorder %v3015, %v3046
      %vm3054 = vcmp.eq.s32.totalorder %v3018, %v3046
      %vm3055 = vcmp.eq.s32.totalorder %v3021, %v3046
      %vm3056 = vcmp.eq.s32.totalorder %v3024, %v3046
      %vm3057 = vcmp.eq.s32.totalorder %v3027, %v3046
      %vm3058 = vcmp.eq.s32.totalorder %v3030, %v3046
      %vm3059 = vcmp.eq.s32.totalorder %v3033, %v3046
      %vm3060 = vcmp.eq.s32.totalorder %v3036, %v3046
      %vm3061 = vcmp.eq.s32.totalorder %v3039, %v3046
      %vm3062 = vcmp.eq.s32.totalorder %v3042, %v3046
      %v3063 = vld [vmem:[#allocation2] sm:$0xf]
      %v3064 = vld [vmem:[#allocation2 + $0x4] sm:$0xf]
      %v3065 = vld [vmem:[#allocation2 + $0x8] sm:$0xf]
      %v3066 = vld [vmem:[#allocation2 + $0xc] sm:$0xf]
      %v3067 = vld [vmem:[#allocation2 + $0x10] sm:$0xf]
      %v3068 = vld [vmem:[#allocation2 + $0x14] sm:$0xf]
      %v3069 = vld [vmem:[#allocation2 + $0x18] sm:$0xf]
      %v3070 = vld [vmem:[#allocation2 + $0x1c] sm:$0xf]
      %v3071 = vld [vmem:[#allocation2 + $0x20] sm:$0xf]
      %v3072 = vld [vmem:[#allocation2 + $0x24] sm:$0xf]
      %v3073 = vld [vmem:[#allocation2 + $0x28] sm:$0xf]
      %v3074 = vld [vmem:[#allocation2 + $0x2c] sm:$0xf]
      %v3075 = vld [vmem:[#allocation2 + $0x30] sm:$0xf]
      %v3076 = vld [vmem:[#allocation2 + $0x34] sm:$0xf]
      %v3077 = vld [vmem:[#allocation2 + $0x38] sm:$0xf]
      %v3078 = vld [vmem:[#allocation2 + $0x3c] sm:$0xf]
      %v3095 = vunpack.c.l.b16 %v3063
      %v3096 = vunpack.c.l.b16 %v3064
      %v3097 = vunpack.c.l.b16 %v3065
      %v3098 = vunpack.c.l.b16 %v3066
      %v3099 = vunpack.c.l.b16 %v3067
      %v3100 = vunpack.c.l.b16 %v3068
      %v3101 = vunpack.c.l.b16 %v3069
      %v3102 = vunpack.c.l.b16 %v3070
      %v3103 = vunpack.c.l.b16 %v3071
      %v3104 = vunpack.c.l.b16 %v3072
      %v3105 = vunpack.c.l.b16 %v3073
      %v3106 = vunpack.c.l.b16 %v3074
      %v3107 = vunpack.c.l.b16 %v3075
      %v3108 = vunpack.c.l.b16 %v3076
      %v3109 = vunpack.c.l.b16 %v3077
      %v3110 = vunpack.c.l.b16 %v3078
      %v3111 = vpack.c.b16 %v3096, %v3095
      %v3112 = vpack.c.b16 %v3098, %v3097
      %v3113 = vpack.c.b16 %v3100, %v3099
      %v3114 = vpack.c.b16 %v3102, %v3101
      %v3115 = vpack.c.b16 %v3104, %v3103
      %v3116 = vpack.c.b16 %v3106, %v3105
      %v3117 = vpack.c.b16 %v3108, %v3107
      %v3118 = vpack.c.b16 %v3110, %v3109
      %vm3119 = vcmask 64512
      %v3121 = vsel %vm3119, %v3111, 0
      %v3124 = vsel %vm3119, %v3112, 0
      %v3127 = vsel %vm3119, %v3113, 0
      %v3130 = vsel %vm3119, %v3114, 0
      %v3133 = vsel %vm3119, %v3115, 0
      %v3136 = vsel %vm3119, %v3116, 0
      %v3139 = vsel %vm3119, %v3117, 0
      %v3142 = vsel %vm3119, %v3118, 0
      %v3145 = vsel %vm3119, %v2962, 0
      %v3148 = vsel %vm3119, %v2963, 0
      %v3151 = vsel %vm3119, %v2964, 0
      %v3154 = vsel %vm3119, %v2965, 0
      %v3157 = vsel %vm3119, %v2966, 0
      %v3160 = vsel %vm3119, %v2967, 0
      %v3163 = vsel %vm3119, %v2968, 0
      %v3166 = vsel %vm3119, %v2969, 0
      %3168 = vmatprep.subr.bf16.mxu0 0
      %3169 = vmatpush1.bf16.xpose.msra.mxu0 %v3166
      %3170 = vmatprep.subr.bf16.mxu0 0
      %3171 = vmatpush1.bf16.xpose.msra.mxu0 %v3163
      %3172 = vmatprep.subr.bf16.mxu0 0
      %3173 = vmatpush1.bf16.xpose.msra.mxu0 %v3160
      %3174 = vmatprep.subr.bf16.mxu0 0
      %3175 = vmatpush1.bf16.xpose.msra.mxu0 %v3157
      %3176 = vmatprep.subr.bf16.mxu0 0
      %3177 = vmatpush1.bf16.xpose.msra.mxu0 %v3154
      %3178 = vmatprep.subr.bf16.mxu0 0
      %3179 = vmatpush1.bf16.xpose.msra.mxu0 %v3151
      %3180 = vmatprep.subr.bf16.mxu0 0
      %3181 = vmatpush1.bf16.xpose.msra.mxu0 %v3148
      %3182 = vmatprep.subr.bf16.mxu0 0
      %3183 = vmatpush1.bf16.xpose.msra.mxu0 %v3145
      %3184 = vmatprep.subr.bf16.mxu0 0
      %3185 = vmatpush2.bf16.xpose.msra.mxu0 0
      %3186 = vmatprep.subr.bf16.mxu0 0
      %3187 = vmatpush2.bf16.xpose.msra.mxu0 0
      %3188 = vmatprep.subr.bf16.mxu0 0
      %3189 = vmatpush2.bf16.xpose.msra.mxu0 0
      %3190 = vmatprep.subr.bf16.mxu0 0
      %3191 = vmatpush2.bf16.xpose.msra.mxu0 0
      %3192 = vmatprep.subr.bf16.mxu0 0
      %3193 = vmatpush2.bf16.xpose.msra.mxu0 0
      %3194 = vmatprep.subr.bf16.mxu0 0
      %3195 = vmatpush2.bf16.xpose.msra.mxu0 0
      %3196 = vmatprep.subr.bf16.mxu0 0
      %3197 = vmatpush2.bf16.xpose.msra.mxu0 0
      %3198 = vmatprep.subr.bf16.mxu0 0
      %3199 = vmatpush2.bf16.xpose.msra.mxu0 0
      %3200 = vmatprep.mubr.bf16.mxu0 0
      %3201 = vmatmul.mubr.bf16.gmra.mxu0 %v3121
      %v3202 = vpop.f32.mrf.mxu0
      %v3203 = vadd.f32 0.0, %v3202
      %v3204 = vpop.f32.mrf.mxu0
      %v3205 = vpop.f32.mrf.mxu0
      %v3206 = vadd.f32 0.0, %v3205
      %v3207 = vpop.f32.mrf.mxu0
      %3208 = vmatprep.mubr.bf16.mxu0 0
      %3209 = vmatmul.mubr.bf16.gmra.mxu0 %v3124
      %v3210 = vpop.f32.mrf.mxu0
      %v3211 = vadd.f32 0.0, %v3210
      %v3212 = vpop.f32.mrf.mxu0
      %v3213 = vpop.f32.mrf.mxu0
      %v3214 = vadd.f32 0.0, %v3213
      %v3215 = vpop.f32.mrf.mxu0
      %3216 = vmatprep.mubr.bf16.mxu0 0
      %3217 = vmatmul.mubr.bf16.gmra.mxu0 %v3127
      %v3218 = vpop.f32.mrf.mxu0
      %v3219 = vadd.f32 0.0, %v3218
      %v3220 = vpop.f32.mrf.mxu0
      %v3221 = vpop.f32.mrf.mxu0
      %v3222 = vadd.f32 0.0, %v3221
      %v3223 = vpop.f32.mrf.mxu0
      %3224 = vmatprep.mubr.bf16.mxu0 0
      %3225 = vmatmul.mubr.bf16.gmra.mxu0 %v3130
      %v3226 = vpop.f32.mrf.mxu0
      %v3227 = vadd.f32 0.0, %v3226
      %v3228 = vpop.f32.mrf.mxu0
      %v3229 = vpop.f32.mrf.mxu0
      %v3230 = vadd.f32 0.0, %v3229
      %v3231 = vpop.f32.mrf.mxu0
      %3232 = vmatprep.mubr.bf16.mxu0 0
      %3233 = vmatmul.mubr.bf16.gmra.mxu0 %v3133
      %v3234 = vpop.f32.mrf.mxu0
      %v3235 = vadd.f32 0.0, %v3234
      %v3236 = vpop.f32.mrf.mxu0
      %v3237 = vpop.f32.mrf.mxu0
      %v3238 = vadd.f32 0.0, %v3237
      %v3239 = vpop.f32.mrf.mxu0
      %3240 = vmatprep.mubr.bf16.mxu0 0
      %3241 = vmatmul.mubr.bf16.gmra.mxu0 %v3136
      %v3242 = vpop.f32.mrf.mxu0
      %v3243 = vadd.f32 0.0, %v3242
      %v3244 = vpop.f32.mrf.mxu0
      %v3245 = vpop.f32.mrf.mxu0
      %v3246 = vadd.f32 0.0, %v3245
      %v3247 = vpop.f32.mrf.mxu0
      %3248 = vmatprep.mubr.bf16.mxu0 0
      %3249 = vmatmul.mubr.bf16.gmra.mxu0 %v3139
      %v3250 = vpop.f32.mrf.mxu0
      %v3251 = vadd.f32 0.0, %v3250
      %v3252 = vpop.f32.mrf.mxu0
      %v3253 = vpop.f32.mrf.mxu0
      %v3254 = vadd.f32 0.0, %v3253
      %v3255 = vpop.f32.mrf.mxu0
      %3256 = vmatprep.mubr.bf16.mxu0 0
      %3257 = vmatmul.mubr.bf16.gmra.mxu0 %v3142
      %v3258 = vpop.f32.mrf.mxu0
      %v3259 = vadd.f32 0.0, %v3258
      %v3260 = vpop.f32.mrf.mxu0
      %v3261 = vpop.f32.mrf.mxu0
      %v3262 = vadd.f32 0.0, %v3261
      %v3263 = vpop.f32.mrf.mxu0
      %3264 = vdwg.mxu0
      %v3265 = vsel %vm3047, %v3203, -1e+30
      %v3266 = vsel %vm3048, %v3206, -1e+30
      %v3267 = vsel %vm3049, %v3211, -1e+30
      %v3268 = vsel %vm3050, %v3214, -1e+30
      %v3269 = vsel %vm3051, %v3219, -1e+30
      %v3270 = vsel %vm3052, %v3222, -1e+30
      %v3271 = vsel %vm3053, %v3227, -1e+30
      %v3272 = vsel %vm3054, %v3230, -1e+30
      %v3273 = vsel %vm3055, %v3235, -1e+30
      %v3274 = vsel %vm3056, %v3238, -1e+30
      %v3275 = vsel %vm3057, %v3243, -1e+30
      %v3276 = vsel %vm3058, %v3246, -1e+30
      %v3277 = vsel %vm3059, %v3251, -1e+30
      %v3278 = vsel %vm3060, %v3254, -1e+30
      %v3279 = vsel %vm3061, %v3259, -1e+30
      %v3280 = vsel %vm3062, %v3262, -1e+30
      %v3281 = vld [vmem:[#allocation3] sm:$0xff]
      %v3282 = vld [vmem:[#allocation3 + $0x8] sm:$0xff]
      %v3283 = vld [vmem:[#allocation3 + $0x10] sm:$0xff]
      %v3284 = vld [vmem:[#allocation3 + $0x18] sm:$0xff]
      %v3285 = vld [vmem:[#allocation3 + $0x20] sm:$0xff]
      %v3286 = vld [vmem:[#allocation3 + $0x28] sm:$0xff]
      %v3287 = vld [vmem:[#allocation3 + $0x30] sm:$0xff]
      %v3288 = vld [vmem:[#allocation3 + $0x38] sm:$0xff]
      %v3289 = vld [vmem:[#allocation3 + $0x40] sm:$0xff]
      %v3290 = vld [vmem:[#allocation3 + $0x48] sm:$0xff]
      %v3291 = vld [vmem:[#allocation3 + $0x50] sm:$0xff]
      %v3292 = vld [vmem:[#allocation3 + $0x58] sm:$0xff]
      %v3293 = vld [vmem:[#allocation3 + $0x60] sm:$0xff]
      %v3294 = vld [vmem:[#allocation3 + $0x68] sm:$0xff]
      %v3295 = vld [vmem:[#allocation3 + $0x70] sm:$0xff]
      %v3296 = vld [vmem:[#allocation3 + $0x78] sm:$0xff]
      %3297 = vmax.xlane.f32.xlu0 %v3265
      %v3298 = vpop.xlane.xlu0 %3297
      %3299 = vmax.xlane.f32.xlu0 %v3266
      %v3300 = vpop.xlane.xlu0 %3299
      %3301 = vmax.xlane.f32.xlu0 %v3267
      %v3302 = vpop.xlane.xlu0 %3301
      %3303 = vmax.xlane.f32.xlu0 %v3268
      %v3304 = vpop.xlane.xlu0 %3303
      %3305 = vmax.xlane.f32.xlu0 %v3269
      %v3306 = vpop.xlane.xlu0 %3305
      %3307 = vmax.xlane.f32.xlu0 %v3270
      %v3308 = vpop.xlane.xlu0 %3307
      %3309 = vmax.xlane.f32.xlu0 %v3271
      %v3310 = vpop.xlane.xlu0 %3309
      %3311 = vmax.xlane.f32.xlu0 %v3272
      %v3312 = vpop.xlane.xlu0 %3311
      %3313 = vmax.xlane.f32.xlu0 %v3273
      %v3314 = vpop.xlane.xlu0 %3313
      %3315 = vmax.xlane.f32.xlu0 %v3274
      %v3316 = vpop.xlane.xlu0 %3315
      %3317 = vmax.xlane.f32.xlu0 %v3275
      %v3318 = vpop.xlane.xlu0 %3317
      %3319 = vmax.xlane.f32.xlu0 %v3276
      %v3320 = vpop.xlane.xlu0 %3319
      %3321 = vmax.xlane.f32.xlu0 %v3277
      %v3322 = vpop.xlane.xlu0 %3321
      %3323 = vmax.xlane.f32.xlu0 %v3278
      %v3324 = vpop.xlane.xlu0 %3323
      %3325 = vmax.xlane.f32.xlu0 %v3279
      %v3326 = vpop.xlane.xlu0 %3325
      %3327 = vmax.xlane.f32.xlu0 %v3280
      %v3328 = vpop.xlane.xlu0 %3327
      %v3329 = vmax.f32 %v3281, %v3298
      %v3330 = vmax.f32 %v3282, %v3300
      %v3331 = vmax.f32 %v3283, %v3302
      %v3332 = vmax.f32 %v3284, %v3304
      %v3333 = vmax.f32 %v3285, %v3306
      %v3334 = vmax.f32 %v3286, %v3308
      %v3335 = vmax.f32 %v3287, %v3310
      %v3336 = vmax.f32 %v3288, %v3312
      %v3337 = vmax.f32 %v3289, %v3314
      %v3338 = vmax.f32 %v3290, %v3316
      %v3339 = vmax.f32 %v3291, %v3318
      %v3340 = vmax.f32 %v3292, %v3320
      %v3341 = vmax.f32 %v3293, %v3322
      %v3342 = vmax.f32 %v3294, %v3324
      %v3343 = vmax.f32 %v3295, %v3326
      %v3344 = vmax.f32 %v3296, %v3328
      %v3345 = vsub.f32 %v3281, %v3329
      %v3346 = vsub.f32 %v3282, %v3330
      %v3347 = vsub.f32 %v3283, %v3331
      %v3348 = vsub.f32 %v3284, %v3332
      %v3349 = vsub.f32 %v3285, %v3333
      %v3350 = vsub.f32 %v3286, %v3334
      %v3351 = vsub.f32 %v3287, %v3335
      %v3352 = vsub.f32 %v3288, %v3336
      %v3353 = vsub.f32 %v3289, %v3337
      %v3354 = vsub.f32 %v3290, %v3338
      %v3355 = vsub.f32 %v3291, %v3339
      %v3356 = vsub.f32 %v3292, %v3340
      %v3357 = vsub.f32 %v3293, %v3341
      %v3358 = vsub.f32 %v3294, %v3342
      %v3359 = vsub.f32 %v3295, %v3343
      %v3360 = vsub.f32 %v3296, %v3344
      %v3361 = vmul.f32 %v3345, 1.442695
      %v3362 = vpow.pop %v3361
      %v3363 = vmul.f32 %v3346, 1.442695
      %v3364 = vpow.pop %v3363
      %v3365 = vmul.f32 %v3347, 1.442695
      %v3366 = vpow.pop %v3365
      %v3367 = vmul.f32 %v3348, 1.442695
      %v3368 = vpow.pop %v3367
      %v3369 = vmul.f32 %v3349, 1.442695
      %v3370 = vpow.pop %v3369
      %v3371 = vmul.f32 %v3350, 1.442695
      %v3372 = vpow.pop %v3371
      %v3373 = vmul.f32 %v3351, 1.442695
      %v3374 = vpow.pop %v3373
      %v3375 = vmul.f32 %v3352, 1.442695
      %v3376 = vpow.pop %v3375
      %v3377 = vmul.f32 %v3353, 1.442695
      %v3378 = vpow.pop %v3377
      %v3379 = vmul.f32 %v3354, 1.442695
      %v3380 = vpow.pop %v3379
      %v3381 = vmul.f32 %v3355, 1.442695
      %v3382 = vpow.pop %v3381
      %v3383 = vmul.f32 %v3356, 1.442695
      %v3384 = vpow.pop %v3383
      %v3385 = vmul.f32 %v3357, 1.442695
      %v3386 = vpow.pop %v3385
      %v3387 = vmul.f32 %v3358, 1.442695
      %v3388 = vpow.pop %v3387
      %v3389 = vmul.f32 %v3359, 1.442695
      %v3390 = vpow.pop %v3389
      %v3391 = vmul.f32 %v3360, 1.442695
      %v3392 = vpow.pop %v3391
      %3394 = vset.pattern.permute.xlu0 0
      %3395 = vperm.xlu0 %3394, %v3329
      %v3396 = vpop.permute.xlu0 %3395
      %3399 = vset.pattern.permute.xlu0 0
      %3400 = vperm.xlu0 %3399, %v3330
      %v3401 = vpop.permute.xlu0 %3400
      %3404 = vset.pattern.permute.xlu0 0
      %3405 = vperm.xlu0 %3404, %v3331
      %v3406 = vpop.permute.xlu0 %3405
      %3409 = vset.pattern.permute.xlu0 0
      %3410 = vperm.xlu0 %3409, %v3332
      %v3411 = vpop.permute.xlu0 %3410
      %3414 = vset.pattern.permute.xlu0 0
      %3415 = vperm.xlu0 %3414, %v3333
      %v3416 = vpop.permute.xlu0 %3415
      %3419 = vset.pattern.permute.xlu0 0
      %3420 = vperm.xlu0 %3419, %v3334
      %v3421 = vpop.permute.xlu0 %3420
      %3424 = vset.pattern.permute.xlu0 0
      %3425 = vperm.xlu0 %3424, %v3335
      %v3426 = vpop.permute.xlu0 %3425
      %3429 = vset.pattern.permute.xlu0 0
      %3430 = vperm.xlu0 %3429, %v3336
      %v3431 = vpop.permute.xlu0 %3430
      %3434 = vset.pattern.permute.xlu0 0
      %3435 = vperm.xlu0 %3434, %v3337
      %v3436 = vpop.permute.xlu0 %3435
      %3439 = vset.pattern.permute.xlu0 0
      %3440 = vperm.xlu0 %3439, %v3338
      %v3441 = vpop.permute.xlu0 %3440
      %3444 = vset.pattern.permute.xlu0 0
      %3445 = vperm.xlu0 %3444, %v3339
      %v3446 = vpop.permute.xlu0 %3445
      %3449 = vset.pattern.permute.xlu0 0
      %3450 = vperm.xlu0 %3449, %v3340
      %v3451 = vpop.permute.xlu0 %3450
      %3454 = vset.pattern.permute.xlu0 0
      %3455 = vperm.xlu0 %3454, %v3341
      %v3456 = vpop.permute.xlu0 %3455
      %3459 = vset.pattern.permute.xlu0 0
      %3460 = vperm.xlu0 %3459, %v3342
      %v3461 = vpop.permute.xlu0 %3460
      %3464 = vset.pattern.permute.xlu0 0
      %3465 = vperm.xlu0 %3464, %v3343
      %v3466 = vpop.permute.xlu0 %3465
      %3469 = vset.pattern.permute.xlu0 0
      %3470 = vperm.xlu0 %3469, %v3344
      %v3471 = vpop.permute.xlu0 %3470
      %v3473 = vsub.f32 %v3265, %v3396
      %v3474 = vsub.f32 %v3266, %v3401
      %v3475 = vsub.f32 %v3267, %v3406
      %v3476 = vsub.f32 %v3268, %v3411
      %v3477 = vsub.f32 %v3269, %v3416
      %v3478 = vsub.f32 %v3270, %v3421
      %v3479 = vsub.f32 %v3271, %v3426
      %v3480 = vsub.f32 %v3272, %v3431
      %v3481 = vsub.f32 %v3273, %v3436
      %v3482 = vsub.f32 %v3274, %v3441
      %v3483 = vsub.f32 %v3275, %v3446
      %v3484 = vsub.f32 %v3276, %v3451
      %v3485 = vsub.f32 %v3277, %v3456
      %v3486 = vsub.f32 %v3278, %v3461
      %v3487 = vsub.f32 %v3279, %v3466
      %v3488 = vsub.f32 %v3280, %v3471
      %v3489 = vmul.f32 %v3473, 1.442695
      %v3490 = vpow.pop %v3489
      %v3491 = vmul.f32 %v3474, 1.442695
      %v3492 = vpow.pop %v3491
      %v3493 = vmul.f32 %v3475, 1.442695
      %v3494 = vpow.pop %v3493
      %v3495 = vmul.f32 %v3476, 1.442695
      %v3496 = vpow.pop %v3495
      %v3497 = vmul.f32 %v3477, 1.442695
      %v3498 = vpow.pop %v3497
      %v3499 = vmul.f32 %v3478, 1.442695
      %v3500 = vpow.pop %v3499
      %v3501 = vmul.f32 %v3479, 1.442695
      %v3502 = vpow.pop %v3501
      %v3503 = vmul.f32 %v3480, 1.442695
      %v3504 = vpow.pop %v3503
      %v3505 = vmul.f32 %v3481, 1.442695
      %v3506 = vpow.pop %v3505
      %v3507 = vmul.f32 %v3482, 1.442695
      %v3508 = vpow.pop %v3507
      %v3509 = vmul.f32 %v3483, 1.442695
      %v3510 = vpow.pop %v3509
      %v3511 = vmul.f32 %v3484, 1.442695
      %v3512 = vpow.pop %v3511
      %v3513 = vmul.f32 %v3485, 1.442695
      %v3514 = vpow.pop %v3513
      %v3515 = vmul.f32 %v3486, 1.442695
      %v3516 = vpow.pop %v3515
      %v3517 = vmul.f32 %v3487, 1.442695
      %v3518 = vpow.pop %v3517
      %v3519 = vmul.f32 %v3488, 1.442695
      %v3520 = vpow.pop %v3519
      %v3521 = vld [vmem:[#allocation4] sm:$0xff]
      %v3522 = vld [vmem:[#allocation4 + $0x8] sm:$0xff]
      %v3523 = vld [vmem:[#allocation4 + $0x10] sm:$0xff]
      %v3524 = vld [vmem:[#allocation4 + $0x18] sm:$0xff]
      %v3525 = vld [vmem:[#allocation4 + $0x20] sm:$0xff]
      %v3526 = vld [vmem:[#allocation4 + $0x28] sm:$0xff]
      %v3527 = vld [vmem:[#allocation4 + $0x30] sm:$0xff]
      %v3528 = vld [vmem:[#allocation4 + $0x38] sm:$0xff]
      %v3529 = vld [vmem:[#allocation4 + $0x40] sm:$0xff]
      %v3530 = vld [vmem:[#allocation4 + $0x48] sm:$0xff]
      %v3531 = vld [vmem:[#allocation4 + $0x50] sm:$0xff]
      %v3532 = vld [vmem:[#allocation4 + $0x58] sm:$0xff]
      %v3533 = vld [vmem:[#allocation4 + $0x60] sm:$0xff]
      %v3534 = vld [vmem:[#allocation4 + $0x68] sm:$0xff]
      %v3535 = vld [vmem:[#allocation4 + $0x70] sm:$0xff]
      %v3536 = vld [vmem:[#allocation4 + $0x78] sm:$0xff]
      %v3537 = vmul.f32 %v3362, %v3521
      %v3538 = vmul.f32 %v3364, %v3522
      %v3539 = vmul.f32 %v3366, %v3523
      %v3540 = vmul.f32 %v3368, %v3524
      %v3541 = vmul.f32 %v3370, %v3525
      %v3542 = vmul.f32 %v3372, %v3526
      %v3543 = vmul.f32 %v3374, %v3527
      %v3544 = vmul.f32 %v3376, %v3528
      %v3545 = vmul.f32 %v3378, %v3529
      %v3546 = vmul.f32 %v3380, %v3530
      %v3547 = vmul.f32 %v3382, %v3531
      %v3548 = vmul.f32 %v3384, %v3532
      %v3549 = vmul.f32 %v3386, %v3533
      %v3550 = vmul.f32 %v3388, %v3534
      %v3551 = vmul.f32 %v3390, %v3535
      %v3552 = vmul.f32 %v3392, %v3536
      %3553 = vadd.xlane.f32.xlu0 %v3490
      %v3554 = vpop.xlane.xlu0 %3553
      %3555 = vadd.xlane.f32.xlu0 %v3492
      %v3556 = vpop.xlane.xlu0 %3555
      %3557 = vadd.xlane.f32.xlu0 %v3494
      %v3558 = vpop.xlane.xlu0 %3557
      %3559 = vadd.xlane.f32.xlu0 %v3496
      %v3560 = vpop.xlane.xlu0 %3559
      %3561 = vadd.xlane.f32.xlu0 %v3498
      %v3562 = vpop.xlane.xlu0 %3561
      %3563 = vadd.xlane.f32.xlu0 %v3500
      %v3564 = vpop.xlane.xlu0 %3563
      %3565 = vadd.xlane.f32.xlu0 %v3502
      %v3566 = vpop.xlane.xlu0 %3565
      %3567 = vadd.xlane.f32.xlu0 %v3504
      %v3568 = vpop.xlane.xlu0 %3567
      %3569 = vadd.xlane.f32.xlu0 %v3506
      %v3570 = vpop.xlane.xlu0 %3569
      %3571 = vadd.xlane.f32.xlu0 %v3508
      %v3572 = vpop.xlane.xlu0 %3571
      %3573 = vadd.xlane.f32.xlu0 %v3510
      %v3574 = vpop.xlane.xlu0 %3573
      %3575 = vadd.xlane.f32.xlu0 %v3512
      %v3576 = vpop.xlane.xlu0 %3575
      %3577 = vadd.xlane.f32.xlu0 %v3514
      %v3578 = vpop.xlane.xlu0 %3577
      %3579 = vadd.xlane.f32.xlu0 %v3516
      %v3580 = vpop.xlane.xlu0 %3579
      %3581 = vadd.xlane.f32.xlu0 %v3518
      %v3582 = vpop.xlane.xlu0 %3581
      %3583 = vadd.xlane.f32.xlu0 %v3520
      %v3584 = vpop.xlane.xlu0 %3583
      %v3585 = vadd.f32 %v3537, %v3554
      %v3586 = vadd.f32 %v3538, %v3556
      %v3587 = vadd.f32 %v3539, %v3558
      %v3588 = vadd.f32 %v3540, %v3560
      %v3589 = vadd.f32 %v3541, %v3562
      %v3590 = vadd.f32 %v3542, %v3564
      %v3591 = vadd.f32 %v3543, %v3566
      %v3592 = vadd.f32 %v3544, %v3568
      %v3593 = vadd.f32 %v3545, %v3570
      %v3594 = vadd.f32 %v3546, %v3572
      %v3595 = vadd.f32 %v3547, %v3574
      %v3596 = vadd.f32 %v3548, %v3576
      %v3597 = vadd.f32 %v3549, %v3578
      %v3598 = vadd.f32 %v3550, %v3580
      %v3599 = vadd.f32 %v3551, %v3582
      %v3600 = vadd.f32 %v3552, %v3584
      %vm3601 = vcmask 7168
      %3602 = vst.msk [vmem:[#allocation4] sm:$0xff] %vm3601, %v3585
      %3603 = vst.msk [vmem:[#allocation4 + $0x8] sm:$0xff] %vm3601, %v3586
      %3604 = vst.msk [vmem:[#allocation4 + $0x10] sm:$0xff] %vm3601, %v3587
      %3605 = vst.msk [vmem:[#allocation4 + $0x18] sm:$0xff] %vm3601, %v3588
      %3606 = vst.msk [vmem:[#allocation4 + $0x20] sm:$0xff] %vm3601, %v3589
      %3607 = vst.msk [vmem:[#allocation4 + $0x28] sm:$0xff] %vm3601, %v3590
      %3608 = vst.msk [vmem:[#allocation4 + $0x30] sm:$0xff] %vm3601, %v3591
      %3609 = vst.msk [vmem:[#allocation4 + $0x38] sm:$0xff] %vm3601, %v3592
      %3610 = vst.msk [vmem:[#allocation4 + $0x40] sm:$0xff] %vm3601, %v3593
      %3611 = vst.msk [vmem:[#allocation4 + $0x48] sm:$0xff] %vm3601, %v3594
      %3612 = vst.msk [vmem:[#allocation4 + $0x50] sm:$0xff] %vm3601, %v3595
      %3613 = vst.msk [vmem:[#allocation4 + $0x58] sm:$0xff] %vm3601, %v3596
      %3614 = vst.msk [vmem:[#allocation4 + $0x60] sm:$0xff] %vm3601, %v3597
      %3615 = vst.msk [vmem:[#allocation4 + $0x68] sm:$0xff] %vm3601, %v3598
      %3616 = vst.msk [vmem:[#allocation4 + $0x70] sm:$0xff] %vm3601, %v3599
      %3617 = vst.msk [vmem:[#allocation4 + $0x78] sm:$0xff] %vm3601, %v3600
      %v3618 = vld [vmem:[#allocation5] sm:$0xff]
      %v3619 = vld [vmem:[#allocation5 + $0x8] sm:$0xff]
      %v3620 = vld [vmem:[#allocation5 + $0x10] sm:$0xff]
      %v3621 = vld [vmem:[#allocation5 + $0x18] sm:$0xff]
      %v3622 = vld [vmem:[#allocation5 + $0x20] sm:$0xff]
      %v3623 = vld [vmem:[#allocation5 + $0x28] sm:$0xff]
      %v3624 = vld [vmem:[#allocation5 + $0x30] sm:$0xff]
      %v3625 = vld [vmem:[#allocation5 + $0x38] sm:$0xff]
      %v3626 = vld [vmem:[#allocation5 + $0x40] sm:$0xff]
      %v3627 = vld [vmem:[#allocation5 + $0x48] sm:$0xff]
      %v3628 = vld [vmem:[#allocation5 + $0x50] sm:$0xff]
      %v3629 = vld [vmem:[#allocation5 + $0x58] sm:$0xff]
      %v3630 = vld [vmem:[#allocation5 + $0x60] sm:$0xff]
      %v3631 = vld [vmem:[#allocation5 + $0x68] sm:$0xff]
      %v3632 = vld [vmem:[#allocation5 + $0x70] sm:$0xff]
      %v3633 = vld [vmem:[#allocation5 + $0x78] sm:$0xff]
      %3635 = vset.pattern.permute.xlu0 0
      %3636 = vperm.xlu0 %3635, %v3362
      %v3637 = vpop.permute.xlu0 %3636
      %3640 = vset.pattern.permute.xlu0 0
      %3641 = vperm.xlu0 %3640, %v3364
      %v3642 = vpop.permute.xlu0 %3641
      %3645 = vset.pattern.permute.xlu0 0
      %3646 = vperm.xlu0 %3645, %v3366
      %v3647 = vpop.permute.xlu0 %3646
      %3650 = vset.pattern.permute.xlu0 0
      %3651 = vperm.xlu0 %3650, %v3368
      %v3652 = vpop.permute.xlu0 %3651
      %3655 = vset.pattern.permute.xlu0 0
      %3656 = vperm.xlu0 %3655, %v3370
      %v3657 = vpop.permute.xlu0 %3656
      %3660 = vset.pattern.permute.xlu0 0
      %3661 = vperm.xlu0 %3660, %v3372
      %v3662 = vpop.permute.xlu0 %3661
      %3665 = vset.pattern.permute.xlu0 0
      %3666 = vperm.xlu0 %3665, %v3374
      %v3667 = vpop.permute.xlu0 %3666
      %3670 = vset.pattern.permute.xlu0 0
      %3671 = vperm.xlu0 %3670, %v3376
      %v3672 = vpop.permute.xlu0 %3671
      %3675 = vset.pattern.permute.xlu0 0
      %3676 = vperm.xlu0 %3675, %v3378
      %v3677 = vpop.permute.xlu0 %3676
      %3680 = vset.pattern.permute.xlu0 0
      %3681 = vperm.xlu0 %3680, %v3380
      %v3682 = vpop.permute.xlu0 %3681
      %3685 = vset.pattern.permute.xlu0 0
      %3686 = vperm.xlu0 %3685, %v3382
      %v3687 = vpop.permute.xlu0 %3686
      %3690 = vset.pattern.permute.xlu0 0
      %3691 = vperm.xlu0 %3690, %v3384
      %v3692 = vpop.permute.xlu0 %3691
      %3695 = vset.pattern.permute.xlu0 0
      %3696 = vperm.xlu0 %3695, %v3386
      %v3697 = vpop.permute.xlu0 %3696
      %3700 = vset.pattern.permute.xlu0 0
      %3701 = vperm.xlu0 %3700, %v3388
      %v3702 = vpop.permute.xlu0 %3701
      %3705 = vset.pattern.permute.xlu0 0
      %3706 = vperm.xlu0 %3705, %v3390
      %v3707 = vpop.permute.xlu0 %3706
      %3710 = vset.pattern.permute.xlu0 0
      %3711 = vperm.xlu0 %3710, %v3392
      %v3712 = vpop.permute.xlu0 %3711
      %v3714 = vmul.f32 %v3637, %v3618
      %v3715 = vmul.f32 %v3642, %v3619
      %v3716 = vmul.f32 %v3647, %v3620
      %v3717 = vmul.f32 %v3652, %v3621
      %v3718 = vmul.f32 %v3657, %v3622
      %v3719 = vmul.f32 %v3662, %v3623
      %v3720 = vmul.f32 %v3667, %v3624
      %v3721 = vmul.f32 %v3672, %v3625
      %v3722 = vmul.f32 %v3677, %v3626
      %v3723 = vmul.f32 %v3682, %v3627
      %v3724 = vmul.f32 %v3687, %v3628
      %v3725 = vmul.f32 %v3692, %v3629
      %v3726 = vmul.f32 %v3697, %v3630
      %v3727 = vmul.f32 %v3702, %v3631
      %v3728 = vmul.f32 %v3707, %v3632
      %v3729 = vmul.f32 %v3712, %v3633
      %v3730 = vpack.c.bf16 %v3492, %v3490
      %v3731 = vpack.c.bf16 %v3496, %v3494
      %v3732 = vpack.c.bf16 %v3500, %v3498
      %v3733 = vpack.c.bf16 %v3504, %v3502
      %v3734 = vpack.c.bf16 %v3508, %v3506
      %v3735 = vpack.c.bf16 %v3512, %v3510
      %v3736 = vpack.c.bf16 %v3516, %v3514
      %v3737 = vpack.c.bf16 %v3520, %v3518
      %3746 = vrot.lane.b32.xlu0 %v2970, 96
      %v3747 = vpop.permute.xlu0 %3746
      %3748 = vrot.lane.b32.xlu0 %v2971, 96
      %v3749 = vpop.permute.xlu0 %3748
      %3750 = vrot.lane.b32.xlu0 %v2972, 96
      %v3751 = vpop.permute.xlu0 %3750
      %3752 = vrot.lane.b32.xlu0 %v2973, 96
      %v3753 = vpop.permute.xlu0 %3752
      %3754 = vrot.lane.b32.xlu0 %v2974, 96
      %v3755 = vpop.permute.xlu0 %3754
      %3756 = vrot.lane.b32.xlu0 %v2975, 96
      %v3757 = vpop.permute.xlu0 %3756
      %3758 = vrot.lane.b32.xlu0 %v2976, 96
      %v3759 = vpop.permute.xlu0 %3758
      %3760 = vrot.lane.b32.xlu0 %v2977, 96
      %v3761 = vpop.permute.xlu0 %3760
      %3770 = vmatprep.subr.bf16.mxu0 0
      %3771 = vmatpush1.bf16.msra.mxu0 %v3761
      %3772 = vmatprep.subr.bf16.mxu0 0
      %3773 = vmatpush1.bf16.msra.mxu0 %v3759
      %3774 = vmatprep.subr.bf16.mxu0 0
      %3775 = vmatpush1.bf16.msra.mxu0 %v3757
      %3776 = vmatprep.subr.bf16.mxu0 0
      %3777 = vmatpush1.bf16.msra.mxu0 %v3755
      %3778 = vmatprep.subr.bf16.mxu0 0
      %3779 = vmatpush1.bf16.msra.mxu0 %v3753
      %3780 = vmatprep.subr.bf16.mxu0 0
      %3781 = vmatpush1.bf16.msra.mxu0 %v3751
      %3782 = vmatprep.subr.bf16.mxu0 0
      %3783 = vmatpush1.bf16.msra.mxu0 %v3749
      %3784 = vmatprep.subr.bf16.mxu0 0
      %3785 = vmatpush1.bf16.msra.mxu0 %v3747
      %3786 = vmatprep.subr.bf16.mxu0 0
      %3787 = vmatpush2.bf16.msra.mxu0 0
      %3788 = vmatprep.subr.bf16.mxu0 0
      %3789 = vmatpush2.bf16.msra.mxu0 0
      %3790 = vmatprep.subr.bf16.mxu0 0
      %3791 = vmatpush2.bf16.msra.mxu0 0
      %3792 = vmatprep.subr.bf16.mxu0 0
      %3793 = vmatpush2.bf16.msra.mxu0 0
      %3794 = vmatprep.subr.bf16.mxu0 0
      %3795 = vmatpush2.bf16.msra.mxu0 0
      %3796 = vmatprep.subr.bf16.mxu0 0
      %3797 = vmatpush2.bf16.msra.mxu0 0
      %3798 = vmatprep.subr.bf16.mxu0 0
      %3799 = vmatpush2.bf16.msra.mxu0 0
      %3800 = vmatprep.subr.bf16.mxu0 0
      %3801 = vmatpush2.bf16.msra.mxu0 0
      %3802 = vmatprep.mubr.bf16.mxu0 0
      %3803 = vmatmul.mubr.bf16.gmra.mxu0 %v3730
      %v3804 = vpop.f32.mrf.mxu0
      %v3805 = vadd.f32 0.0, %v3804
      %v3806 = vpop.f32.mrf.mxu0
      %v3807 = vpop.f32.mrf.mxu0
      %v3808 = vadd.f32 0.0, %v3807
      %v3809 = vpop.f32.mrf.mxu0
      %3810 = vmatprep.mubr.bf16.mxu0 0
      %3811 = vmatmul.mubr.bf16.gmra.mxu0 %v3731
      %v3812 = vpop.f32.mrf.mxu0
      %v3813 = vadd.f32 0.0, %v3812
      %v3814 = vpop.f32.mrf.mxu0
      %v3815 = vpop.f32.mrf.mxu0
      %v3816 = vadd.f32 0.0, %v3815
      %v3817 = vpop.f32.mrf.mxu0
      %3818 = vmatprep.mubr.bf16.mxu0 0
      %3819 = vmatmul.mubr.bf16.gmra.mxu0 %v3732
      %v3820 = vpop.f32.mrf.mxu0
      %v3821 = vadd.f32 0.0, %v3820
      %v3822 = vpop.f32.mrf.mxu0
      %v3823 = vpop.f32.mrf.mxu0
      %v3824 = vadd.f32 0.0, %v3823
      %v3825 = vpop.f32.mrf.mxu0
      %3826 = vmatprep.mubr.bf16.mxu0 0
      %3827 = vmatmul.mubr.bf16.gmra.mxu0 %v3733
      %v3828 = vpop.f32.mrf.mxu0
      %v3829 = vadd.f32 0.0, %v3828
      %v3830 = vpop.f32.mrf.mxu0
      %v3831 = vpop.f32.mrf.mxu0
      %v3832 = vadd.f32 0.0, %v3831
      %v3833 = vpop.f32.mrf.mxu0
      %3834 = vmatprep.mubr.bf16.mxu0 0
      %3835 = vmatmul.mubr.bf16.gmra.mxu0 %v3734
      %v3836 = vpop.f32.mrf.mxu0
      %v3837 = vadd.f32 0.0, %v3836
      %v3838 = vpop.f32.mrf.mxu0
      %v3839 = vpop.f32.mrf.mxu0
      %v3840 = vadd.f32 0.0, %v3839
      %v3841 = vpop.f32.mrf.mxu0
      %3842 = vmatprep.mubr.bf16.mxu0 0
      %3843 = vmatmul.mubr.bf16.gmra.mxu0 %v3735
      %v3844 = vpop.f32.mrf.mxu0
      %v3845 = vadd.f32 0.0, %v3844
      %v3846 = vpop.f32.mrf.mxu0
      %v3847 = vpop.f32.mrf.mxu0
      %v3848 = vadd.f32 0.0, %v3847
      %v3849 = vpop.f32.mrf.mxu0
      %3850 = vmatprep.mubr.bf16.mxu0 0
      %3851 = vmatmul.mubr.bf16.gmra.mxu0 %v3736
      %v3852 = vpop.f32.mrf.mxu0
      %v3853 = vadd.f32 0.0, %v3852
      %v3854 = vpop.f32.mrf.mxu0
      %v3855 = vpop.f32.mrf.mxu0
      %v3856 = vadd.f32 0.0, %v3855
      %v3857 = vpop.f32.mrf.mxu0
      %3858 = vmatprep.mubr.bf16.mxu0 0
      %3859 = vmatmul.mubr.bf16.gmra.mxu0 %v3737
      %v3860 = vpop.f32.mrf.mxu0
      %v3861 = vadd.f32 0.0, %v3860
      %v3862 = vpop.f32.mrf.mxu0
      %v3863 = vpop.f32.mrf.mxu0
      %v3864 = vadd.f32 0.0, %v3863
      %v3865 = vpop.f32.mrf.mxu0
      %3866 = vdwg.mxu0
      %v3867 = vadd.f32 %v3714, %v3805
      %v3868 = vadd.f32 %v3715, %v3808
      %v3869 = vadd.f32 %v3716, %v3813
      %v3870 = vadd.f32 %v3717, %v3816
      %v3871 = vadd.f32 %v3718, %v3821
      %v3872 = vadd.f32 %v3719, %v3824
      %v3873 = vadd.f32 %v3720, %v3829
      %v3874 = vadd.f32 %v3721, %v3832
      %v3875 = vadd.f32 %v3722, %v3837
      %v3876 = vadd.f32 %v3723, %v3840
      %v3877 = vadd.f32 %v3724, %v3845
      %v3878 = vadd.f32 %v3725, %v3848
      %v3879 = vadd.f32 %v3726, %v3853
      %v3880 = vadd.f32 %v3727, %v3856
      %v3881 = vadd.f32 %v3728, %v3861
      %v3882 = vadd.f32 %v3729, %v3864
      %3883 = vst.msk [vmem:[#allocation5] sm:$0xff] %vm3119, %v3867
      %3884 = vst.msk [vmem:[#allocation5 + $0x8] sm:$0xff] %vm3119, %v3868
      %3885 = vst.msk [vmem:[#allocation5 + $0x10] sm:$0xff] %vm3119, %v3869
      %3886 = vst.msk [vmem:[#allocation5 + $0x18] sm:$0xff] %vm3119, %v3870
      %3887 = vst.msk [vmem:[#allocation5 + $0x20] sm:$0xff] %vm3119, %v3871
      %3888 = vst.msk [vmem:[#allocation5 + $0x28] sm:$0xff] %vm3119, %v3872
      %3889 = vst.msk [vmem:[#allocation5 + $0x30] sm:$0xff] %vm3119, %v3873
      %3890 = vst.msk [vmem:[#allocation5 + $0x38] sm:$0xff] %vm3119, %v3874
      %3891 = vst.msk [vmem:[#allocation5 + $0x40] sm:$0xff] %vm3119, %v3875
      %3892 = vst.msk [vmem:[#allocation5 + $0x48] sm:$0xff] %vm3119, %v3876
      %3893 = vst.msk [vmem:[#allocation5 + $0x50] sm:$0xff] %vm3119, %v3877
      %3894 = vst.msk [vmem:[#allocation5 + $0x58] sm:$0xff] %vm3119, %v3878
      %3895 = vst.msk [vmem:[#allocation5 + $0x60] sm:$0xff] %vm3119, %v3879
      %3896 = vst.msk [vmem:[#allocation5 + $0x68] sm:$0xff] %vm3119, %v3880
      %3897 = vst.msk [vmem:[#allocation5 + $0x70] sm:$0xff] %vm3119, %v3881
      %3898 = vst.msk [vmem:[#allocation5 + $0x78] sm:$0xff] %vm3119, %v3882
      %3899 = vst.msk [vmem:[#allocation3] sm:$0xff] %vm3601, %v3329
      %3900 = vst.msk [vmem:[#allocation3 + $0x8] sm:$0xff] %vm3601, %v3330
      %3901 = vst.msk [vmem:[#allocation3 + $0x10] sm:$0xff] %vm3601, %v3331
      %3902 = vst.msk [vmem:[#allocation3 + $0x18] sm:$0xff] %vm3601, %v3332
      %3903 = vst.msk [vmem:[#allocation3 + $0x20] sm:$0xff] %vm3601, %v3333
      %3904 = vst.msk [vmem:[#allocation3 + $0x28] sm:$0xff] %vm3601, %v3334
      %3905 = vst.msk [vmem:[#allocation3 + $0x30] sm:$0xff] %vm3601, %v3335
      %3906 = vst.msk [vmem:[#allocation3 + $0x38] sm:$0xff] %vm3601, %v3336
      %3907 = vst.msk [vmem:[#allocation3 + $0x40] sm:$0xff] %vm3601, %v3337
      %3908 = vst.msk [vmem:[#allocation3 + $0x48] sm:$0xff] %vm3601, %v3338
      %3909 = vst.msk [vmem:[#allocation3 + $0x50] sm:$0xff] %vm3601, %v3339
      %3910 = vst.msk [vmem:[#allocation3 + $0x58] sm:$0xff] %vm3601, %v3340
      %3911 = vst.msk [vmem:[#allocation3 + $0x60] sm:$0xff] %vm3601, %v3341
      %3912 = vst.msk [vmem:[#allocation3 + $0x68] sm:$0xff] %vm3601, %v3342
      %3913 = vst.msk [vmem:[#allocation3 + $0x70] sm:$0xff] %vm3601, %v3343
      %3914 = vst.msk [vmem:[#allocation3 + $0x78] sm:$0xff] %vm3601, %v3344
      %3915 = vrot.lane.b32.xlu0 %v3111, 120
      %v3916 = vpop.permute.xlu0 %3915
      %3917 = vrot.lane.b32.xlu0 %v3112, 120
      %v3918 = vpop.permute.xlu0 %3917
      %3919 = vrot.lane.b32.xlu0 %v3113, 120
      %v3920 = vpop.permute.xlu0 %3919
      %3921 = vrot.lane.b32.xlu0 %v3114, 120
      %v3922 = vpop.permute.xlu0 %3921
      %3923 = vrot.lane.b32.xlu0 %v3115, 120
      %v3924 = vpop.permute.xlu0 %3923
      %3925 = vrot.lane.b32.xlu0 %v3116, 120
      %v3926 = vpop.permute.xlu0 %3925
      %3927 = vrot.lane.b32.xlu0 %v3117, 120
      %v3928 = vpop.permute.xlu0 %3927
      %3929 = vrot.lane.b32.xlu0 %v3118, 120
      %v3930 = vpop.permute.xlu0 %3929
      %3939 = vrot.lane.b32.xlu0 %v2962, 120
      %v3940 = vpop.permute.xlu0 %3939
      %3941 = vrot.lane.b32.xlu0 %v2963, 120
      %v3942 = vpop.permute.xlu0 %3941
      %3943 = vrot.lane.b32.xlu0 %v2964, 120
      %v3944 = vpop.permute.xlu0 %3943
      %3945 = vrot.lane.b32.xlu0 %v2965, 120
      %v3946 = vpop.permute.xlu0 %3945
      %3947 = vrot.lane.b32.xlu0 %v2966, 120
      %v3948 = vpop.permute.xlu0 %3947
      %3949 = vrot.lane.b32.xlu0 %v2967, 120
      %v3950 = vpop.permute.xlu0 %3949
      %3951 = vrot.lane.b32.xlu0 %v2968, 120
      %v3952 = vpop.permute.xlu0 %3951
      %3953 = vrot.lane.b32.xlu0 %v2969, 120
      %v3954 = vpop.permute.xlu0 %3953
      %v3956 = vsel %vm3119, %v3916, 0
      %v3959 = vsel %vm3119, %v3918, 0
      %v3962 = vsel %vm3119, %v3920, 0
      %v3965 = vsel %vm3119, %v3922, 0
      %v3968 = vsel %vm3119, %v3924, 0
      %v3971 = vsel %vm3119, %v3926, 0
      %v3974 = vsel %vm3119, %v3928, 0
      %v3977 = vsel %vm3119, %v3930, 0
      %v3980 = vsel %vm3119, %v3940, 0
      %v3983 = vsel %vm3119, %v3942, 0
      %v3986 = vsel %vm3119, %v3944, 0
      %v3989 = vsel %vm3119, %v3946, 0
      %v3992 = vsel %vm3119, %v3948, 0
      %v3995 = vsel %vm3119, %v3950, 0
      %v3998 = vsel %vm3119, %v3952, 0
      %v4001 = vsel %vm3119, %v3954, 0
      %4003 = vmatprep.subr.bf16.mxu0 0
      %4004 = vmatpush1.bf16.xpose.msra.mxu0 %v4001
      %4005 = vmatprep.subr.bf16.mxu0 0
      %4006 = vmatpush1.bf16.xpose.msra.mxu0 %v3998
      %4007 = vmatprep.subr.bf16.mxu0 0
      %4008 = vmatpush1.bf16.xpose.msra.mxu0 %v3995
      %4009 = vmatprep.subr.bf16.mxu0 0
      %4010 = vmatpush1.bf16.xpose.msra.mxu0 %v3992
      %4011 = vmatprep.subr.bf16.mxu0 0
      %4012 = vmatpush1.bf16.xpose.msra.mxu0 %v3989
      %4013 = vmatprep.subr.bf16.mxu0 0
      %4014 = vmatpush1.bf16.xpose.msra.mxu0 %v3986
      %4015 = vmatprep.subr.bf16.mxu0 0
      %4016 = vmatpush1.bf16.xpose.msra.mxu0 %v3983
      %4017 = vmatprep.subr.bf16.mxu0 0
      %4018 = vmatpush1.bf16.xpose.msra.mxu0 %v3980
      %4019 = vmatprep.subr.bf16.mxu0 0
      %4020 = vmatpush2.bf16.xpose.msra.mxu0 0
      %4021 = vmatprep.subr.bf16.mxu0 0
      %4022 = vmatpush2.bf16.xpose.msra.mxu0 0
      %4023 = vmatprep.subr.bf16.mxu0 0
      %4024 = vmatpush2.bf16.xpose.msra.mxu0 0
      %4025 = vmatprep.subr.bf16.mxu0 0
      %4026 = vmatpush2.bf16.xpose.msra.mxu0 0
      %4027 = vmatprep.subr.bf16.mxu0 0
      %4028 = vmatpush2.bf16.xpose.msra.mxu0 0
      %4029 = vmatprep.subr.bf16.mxu0 0
      %4030 = vmatpush2.bf16.xpose.msra.mxu0 0
      %4031 = vmatprep.subr.bf16.mxu0 0
      %4032 = vmatpush2.bf16.xpose.msra.mxu0 0
      %4033 = vmatprep.subr.bf16.mxu0 0
      %4034 = vmatpush2.bf16.xpose.msra.mxu0 0
      %4035 = vmatprep.mubr.bf16.mxu0 0
      %4036 = vmatmul.mubr.bf16.gmra.mxu0 %v3956
      %v4037 = vpop.f32.mrf.mxu0
      %v4038 = vadd.f32 0.0, %v4037
      %v4039 = vpop.f32.mrf.mxu0
      %v4040 = vpop.f32.mrf.mxu0
      %v4041 = vadd.f32 0.0, %v4040
      %v4042 = vpop.f32.mrf.mxu0
      %4043 = vmatprep.mubr.bf16.mxu0 0
      %4044 = vmatmul.mubr.bf16.gmra.mxu0 %v3959
      %v4045 = vpop.f32.mrf.mxu0
      %v4046 = vadd.f32 0.0, %v4045
      %v4047 = vpop.f32.mrf.mxu0
      %v4048 = vpop.f32.mrf.mxu0
      %v4049 = vadd.f32 0.0, %v4048
      %v4050 = vpop.f32.mrf.mxu0
      %4051 = vmatprep.mubr.bf16.mxu0 0
      %4052 = vmatmul.mubr.bf16.gmra.mxu0 %v3962
      %v4053 = vpop.f32.mrf.mxu0
      %v4054 = vadd.f32 0.0, %v4053
      %v4055 = vpop.f32.mrf.mxu0
      %v4056 = vpop.f32.mrf.mxu0
      %v4057 = vadd.f32 0.0, %v4056
      %v4058 = vpop.f32.mrf.mxu0
      %4059 = vmatprep.mubr.bf16.mxu0 0
      %4060 = vmatmul.mubr.bf16.gmra.mxu0 %v3965
      %v4061 = vpop.f32.mrf.mxu0
      %v4062 = vadd.f32 0.0, %v4061
      %v4063 = vpop.f32.mrf.mxu0
      %v4064 = vpop.f32.mrf.mxu0
      %v4065 = vadd.f32 0.0, %v4064
      %v4066 = vpop.f32.mrf.mxu0
      %4067 = vmatprep.mubr.bf16.mxu0 0
      %4068 = vmatmul.mubr.bf16.gmra.mxu0 %v3968
      %v4069 = vpop.f32.mrf.mxu0
      %v4070 = vadd.f32 0.0, %v4069
      %v4071 = vpop.f32.mrf.mxu0
      %v4072 = vpop.f32.mrf.mxu0
      %v4073 = vadd.f32 0.0, %v4072
      %v4074 = vpop.f32.mrf.mxu0
      %4075 = vmatprep.mubr.bf16.mxu0 0
      %4076 = vmatmul.mubr.bf16.gmra.mxu0 %v3971
      %v4077 = vpop.f32.mrf.mxu0
      %v4078 = vadd.f32 0.0, %v4077
      %v4079 = vpop.f32.mrf.mxu0
      %v4080 = vpop.f32.mrf.mxu0
      %v4081 = vadd.f32 0.0, %v4080
      %v4082 = vpop.f32.mrf.mxu0
      %4083 = vmatprep.mubr.bf16.mxu0 0
      %4084 = vmatmul.mubr.bf16.gmra.mxu0 %v3974
      %v4085 = vpop.f32.mrf.mxu0
      %v4086 = vadd.f32 0.0, %v4085
      %v4087 = vpop.f32.mrf.mxu0
      %v4088 = vpop.f32.mrf.mxu0
      %v4089 = vadd.f32 0.0, %v4088
      %v4090 = vpop.f32.mrf.mxu0
      %4091 = vmatprep.mubr.bf16.mxu0 0
      %4092 = vmatmul.mubr.bf16.gmra.mxu0 %v3977
      %v4093 = vpop.f32.mrf.mxu0
      %v4094 = vadd.f32 0.0, %v4093
      %v4095 = vpop.f32.mrf.mxu0
      %v4096 = vpop.f32.mrf.mxu0
      %v4097 = vadd.f32 0.0, %v4096
      %v4098 = vpop.f32.mrf.mxu0
      %4099 = vdwg.mxu0
      %v4100 = vsel %vm3047, %v4038, -1e+30
      %v4101 = vsel %vm3048, %v4041, -1e+30
      %v4102 = vsel %vm3049, %v4046, -1e+30
      %v4103 = vsel %vm3050, %v4049, -1e+30
      %v4104 = vsel %vm3051, %v4054, -1e+30
      %v4105 = vsel %vm3052, %v4057, -1e+30
      %v4106 = vsel %vm3053, %v4062, -1e+30
      %v4107 = vsel %vm3054, %v4065, -1e+30
      %v4108 = vsel %vm3055, %v4070, -1e+30
      %v4109 = vsel %vm3056, %v4073, -1e+30
      %v4110 = vsel %vm3057, %v4078, -1e+30
      %v4111 = vsel %vm3058, %v4081, -1e+30
      %v4112 = vsel %vm3059, %v4086, -1e+30
      %v4113 = vsel %vm3060, %v4089, -1e+30
      %v4114 = vsel %vm3061, %v4094, -1e+30
      %v4115 = vsel %vm3062, %v4097, -1e+30
      %v4116 = vld [vmem:[#allocation3] sm:$0xff]
      %v4117 = vld [vmem:[#allocation3 + $0x8] sm:$0xff]
      %v4118 = vld [vmem:[#allocation3 + $0x10] sm:$0xff]
      %v4119 = vld [vmem:[#allocation3 + $0x18] sm:$0xff]
      %v4120 = vld [vmem:[#allocation3 + $0x20] sm:$0xff]
      %v4121 = vld [vmem:[#allocation3 + $0x28] sm:$0xff]
      %v4122 = vld [vmem:[#allocation3 + $0x30] sm:$0xff]
      %v4123 = vld [vmem:[#allocation3 + $0x38] sm:$0xff]
      %v4124 = vld [vmem:[#allocation3 + $0x40] sm:$0xff]
      %v4125 = vld [vmem:[#allocation3 + $0x48] sm:$0xff]
      %v4126 = vld [vmem:[#allocation3 + $0x50] sm:$0xff]
      %v4127 = vld [vmem:[#allocation3 + $0x58] sm:$0xff]
      %v4128 = vld [vmem:[#allocation3 + $0x60] sm:$0xff]
      %v4129 = vld [vmem:[#allocation3 + $0x68] sm:$0xff]
      %v4130 = vld [vmem:[#allocation3 + $0x70] sm:$0xff]
      %v4131 = vld [vmem:[#allocation3 + $0x78] sm:$0xff]
      %4132 = vmax.xlane.f32.xlu0 %v4100
      %v4133 = vpop.xlane.xlu0 %4132
      %4134 = vmax.xlane.f32.xlu0 %v4101
      %v4135 = vpop.xlane.xlu0 %4134
      %4136 = vmax.xlane.f32.xlu0 %v4102
      %v4137 = vpop.xlane.xlu0 %4136
      %4138 = vmax.xlane.f32.xlu0 %v4103
      %v4139 = vpop.xlane.xlu0 %4138
      %4140 = vmax.xlane.f32.xlu0 %v4104
      %v4141 = vpop.xlane.xlu0 %4140
      %4142 = vmax.xlane.f32.xlu0 %v4105
      %v4143 = vpop.xlane.xlu0 %4142
      %4144 = vmax.xlane.f32.xlu0 %v4106
      %v4145 = vpop.xlane.xlu0 %4144
      %4146 = vmax.xlane.f32.xlu0 %v4107
      %v4147 = vpop.xlane.xlu0 %4146
      %4148 = vmax.xlane.f32.xlu0 %v4108
      %v4149 = vpop.xlane.xlu0 %4148
      %4150 = vmax.xlane.f32.xlu0 %v4109
      %v4151 = vpop.xlane.xlu0 %4150
      %4152 = vmax.xlane.f32.xlu0 %v4110
      %v4153 = vpop.xlane.xlu0 %4152
      %4154 = vmax.xlane.f32.xlu0 %v4111
      %v4155 = vpop.xlane.xlu0 %4154
      %4156 = vmax.xlane.f32.xlu0 %v4112
      %v4157 = vpop.xlane.xlu0 %4156
      %4158 = vmax.xlane.f32.xlu0 %v4113
      %v4159 = vpop.xlane.xlu0 %4158
      %4160 = vmax.xlane.f32.xlu0 %v4114
      %v4161 = vpop.xlane.xlu0 %4160
      %4162 = vmax.xlane.f32.xlu0 %v4115
      %v4163 = vpop.xlane.xlu0 %4162
      %v4164 = vmax.f32 %v4116, %v4133
      %v4165 = vmax.f32 %v4117, %v4135
      %v4166 = vmax.f32 %v4118, %v4137
      %v4167 = vmax.f32 %v4119, %v4139
      %v4168 = vmax.f32 %v4120, %v4141
      %v4169 = vmax.f32 %v4121, %v4143
      %v4170 = vmax.f32 %v4122, %v4145
      %v4171 = vmax.f32 %v4123, %v4147
      %v4172 = vmax.f32 %v4124, %v4149
      %v4173 = vmax.f32 %v4125, %v4151
      %v4174 = vmax.f32 %v4126, %v4153
      %v4175 = vmax.f32 %v4127, %v4155
      %v4176 = vmax.f32 %v4128, %v4157
      %v4177 = vmax.f32 %v4129, %v4159
      %v4178 = vmax.f32 %v4130, %v4161
      %v4179 = vmax.f32 %v4131, %v4163
      %v4180 = vsub.f32 %v4116, %v4164
      %v4181 = vsub.f32 %v4117, %v4165
      %v4182 = vsub.f32 %v4118, %v4166
      %v4183 = vsub.f32 %v4119, %v4167
      %v4184 = vsub.f32 %v4120, %v4168
      %v4185 = vsub.f32 %v4121, %v4169
      %v4186 = vsub.f32 %v4122, %v4170
      %v4187 = vsub.f32 %v4123, %v4171
      %v4188 = vsub.f32 %v4124, %v4172
      %v4189 = vsub.f32 %v4125, %v4173
      %v4190 = vsub.f32 %v4126, %v4174
      %v4191 = vsub.f32 %v4127, %v4175
      %v4192 = vsub.f32 %v4128, %v4176
      %v4193 = vsub.f32 %v4129, %v4177
      %v4194 = vsub.f32 %v4130, %v4178
      %v4195 = vsub.f32 %v4131, %v4179
      %v4196 = vmul.f32 %v4180, 1.442695
      %v4197 = vpow.pop %v4196
      %v4198 = vmul.f32 %v4181, 1.442695
      %v4199 = vpow.pop %v4198
      %v4200 = vmul.f32 %v4182, 1.442695
      %v4201 = vpow.pop %v4200
      %v4202 = vmul.f32 %v4183, 1.442695
      %v4203 = vpow.pop %v4202
      %v4204 = vmul.f32 %v4184, 1.442695
      %v4205 = vpow.pop %v4204
      %v4206 = vmul.f32 %v4185, 1.442695
      %v4207 = vpow.pop %v4206
      %v4208 = vmul.f32 %v4186, 1.442695
      %v4209 = vpow.pop %v4208
      %v4210 = vmul.f32 %v4187, 1.442695
      %v4211 = vpow.pop %v4210
      %v4212 = vmul.f32 %v4188, 1.442695
      %v4213 = vpow.pop %v4212
      %v4214 = vmul.f32 %v4189, 1.442695
      %v4215 = vpow.pop %v4214
      %v4216 = vmul.f32 %v4190, 1.442695
      %v4217 = vpow.pop %v4216
      %v4218 = vmul.f32 %v4191, 1.442695
      %v4219 = vpow.pop %v4218
      %v4220 = vmul.f32 %v4192, 1.442695
      %v4221 = vpow.pop %v4220
      %v4222 = vmul.f32 %v4193, 1.442695
      %v4223 = vpow.pop %v4222
      %v4224 = vmul.f32 %v4194, 1.442695
      %v4225 = vpow.pop %v4224
      %v4226 = vmul.f32 %v4195, 1.442695
      %v4227 = vpow.pop %v4226
      %4229 = vset.pattern.permute.xlu0 1
      %4230 = vperm.xlu0 %4229, %v4164
      %v4231 = vpop.permute.xlu0 %4230
      %4234 = vset.pattern.permute.xlu0 1
      %4235 = vperm.xlu0 %4234, %v4165
      %v4236 = vpop.permute.xlu0 %4235
      %4239 = vset.pattern.permute.xlu0 1
      %4240 = vperm.xlu0 %4239, %v4166
      %v4241 = vpop.permute.xlu0 %4240
      %4244 = vset.pattern.permute.xlu0 1
      %4245 = vperm.xlu0 %4244, %v4167
      %v4246 = vpop.permute.xlu0 %4245
      %4249 = vset.pattern.permute.xlu0 1
      %4250 = vperm.xlu0 %4249, %v4168
      %v4251 = vpop.permute.xlu0 %4250
      %4254 = vset.pattern.permute.xlu0 1
      %4255 = vperm.xlu0 %4254, %v4169
      %v4256 = vpop.permute.xlu0 %4255
      %4259 = vset.pattern.permute.xlu0 1
      %4260 = vperm.xlu0 %4259, %v4170
      %v4261 = vpop.permute.xlu0 %4260
      %4264 = vset.pattern.permute.xlu0 1
      %4265 = vperm.xlu0 %4264, %v4171
      %v4266 = vpop.permute.xlu0 %4265
      %4269 = vset.pattern.permute.xlu0 1
      %4270 = vperm.xlu0 %4269, %v4172
      %v4271 = vpop.permute.xlu0 %4270
      %4274 = vset.pattern.permute.xlu0 1
      %4275 = vperm.xlu0 %4274, %v4173
      %v4276 = vpop.permute.xlu0 %4275
      %4279 = vset.pattern.permute.xlu0 1
      %4280 = vperm.xlu0 %4279, %v4174
      %v4281 = vpop.permute.xlu0 %4280
      %4284 = vset.pattern.permute.xlu0 1
      %4285 = vperm.xlu0 %4284, %v4175
      %v4286 = vpop.permute.xlu0 %4285
      %4289 = vset.pattern.permute.xlu0 1
      %4290 = vperm.xlu0 %4289, %v4176
      %v4291 = vpop.permute.xlu0 %4290
      %4294 = vset.pattern.permute.xlu0 1
      %4295 = vperm.xlu0 %4294, %v4177
      %v4296 = vpop.permute.xlu0 %4295
      %4299 = vset.pattern.permute.xlu0 1
      %4300 = vperm.xlu0 %4299, %v4178
      %v4301 = vpop.permute.xlu0 %4300
      %4304 = vset.pattern.permute.xlu0 1
      %4305 = vperm.xlu0 %4304, %v4179
      %v4306 = vpop.permute.xlu0 %4305
      %v4308 = vsub.f32 %v4100, %v4231
      %v4309 = vsub.f32 %v4101, %v4236
      %v4310 = vsub.f32 %v4102, %v4241
      %v4311 = vsub.f32 %v4103, %v4246
      %v4312 = vsub.f32 %v4104, %v4251
      %v4313 = vsub.f32 %v4105, %v4256
      %v4314 = vsub.f32 %v4106, %v4261
      %v4315 = vsub.f32 %v4107, %v4266
      %v4316 = vsub.f32 %v4108, %v4271
      %v4317 = vsub.f32 %v4109, %v4276
      %v4318 = vsub.f32 %v4110, %v4281
      %v4319 = vsub.f32 %v4111, %v4286
      %v4320 = vsub.f32 %v4112, %v4291
      %v4321 = vsub.f32 %v4113, %v4296
      %v4322 = vsub.f32 %v4114, %v4301
      %v4323 = vsub.f32 %v4115, %v4306
      %v4324 = vmul.f32 %v4308, 1.442695
      %v4325 = vpow.pop %v4324
      %v4326 = vmul.f32 %v4309, 1.442695
      %v4327 = vpow.pop %v4326
      %v4328 = vmul.f32 %v4310, 1.442695
      %v4329 = vpow.pop %v4328
      %v4330 = vmul.f32 %v4311, 1.442695
      %v4331 = vpow.pop %v4330
      %v4332 = vmul.f32 %v4312, 1.442695
      %v4333 = vpow.pop %v4332
      %v4334 = vmul.f32 %v4313, 1.442695
      %v4335 = vpow.pop %v4334
      %v4336 = vmul.f32 %v4314, 1.442695
      %v4337 = vpow.pop %v4336
      %v4338 = vmul.f32 %v4315, 1.442695
      %v4339 = vpow.pop %v4338
      %v4340 = vmul.f32 %v4316, 1.442695
      %v4341 = vpow.pop %v4340
      %v4342 = vmul.f32 %v4317, 1.442695
      %v4343 = vpow.pop %v4342
      %v4344 = vmul.f32 %v4318, 1.442695
      %v4345 = vpow.pop %v4344
      %v4346 = vmul.f32 %v4319, 1.442695
      %v4347 = vpow.pop %v4346
      %v4348 = vmul.f32 %v4320, 1.442695
      %v4349 = vpow.pop %v4348
      %v4350 = vmul.f32 %v4321, 1.442695
      %v4351 = vpow.pop %v4350
      %v4352 = vmul.f32 %v4322, 1.442695
      %v4353 = vpow.pop %v4352
      %v4354 = vmul.f32 %v4323, 1.442695
      %v4355 = vpow.pop %v4354
      %v4356 = vld [vmem:[#allocation4] sm:$0xff]
      %v4357 = vld [vmem:[#allocation4 + $0x8] sm:$0xff]
      %v4358 = vld [vmem:[#allocation4 + $0x10] sm:$0xff]
      %v4359 = vld [vmem:[#allocation4 + $0x18] sm:$0xff]
      %v4360 = vld [vmem:[#allocation4 + $0x20] sm:$0xff]
      %v4361 = vld [vmem:[#allocation4 + $0x28] sm:$0xff]
      %v4362 = vld [vmem:[#allocation4 + $0x30] sm:$0xff]
      %v4363 = vld [vmem:[#allocation4 + $0x38] sm:$0xff]
      %v4364 = vld [vmem:[#allocation4 + $0x40] sm:$0xff]
      %v4365 = vld [vmem:[#allocation4 + $0x48] sm:$0xff]
      %v4366 = vld [vmem:[#allocation4 + $0x50] sm:$0xff]
      %v4367 = vld [vmem:[#allocation4 + $0x58] sm:$0xff]
      %v4368 = vld [vmem:[#allocation4 + $0x60] sm:$0xff]
      %v4369 = vld [vmem:[#allocation4 + $0x68] sm:$0xff]
      %v4370 = vld [vmem:[#allocation4 + $0x70] sm:$0xff]
      %v4371 = vld [vmem:[#allocation4 + $0x78] sm:$0xff]
      %v4372 = vmul.f32 %v4197, %v4356
      %v4373 = vmul.f32 %v4199, %v4357
      %v4374 = vmul.f32 %v4201, %v4358
      %v4375 = vmul.f32 %v4203, %v4359
      %v4376 = vmul.f32 %v4205, %v4360
      %v4377 = vmul.f32 %v4207, %v4361
      %v4378 = vmul.f32 %v4209, %v4362
      %v4379 = vmul.f32 %v4211, %v4363
      %v4380 = vmul.f32 %v4213, %v4364
      %v4381 = vmul.f32 %v4215, %v4365
      %v4382 = vmul.f32 %v4217, %v4366
      %v4383 = vmul.f32 %v4219, %v4367
      %v4384 = vmul.f32 %v4221, %v4368
      %v4385 = vmul.f32 %v4223, %v4369
      %v4386 = vmul.f32 %v4225, %v4370
      %v4387 = vmul.f32 %v4227, %v4371
      %4388 = vadd.xlane.f32.xlu0 %v4325
      %v4389 = vpop.xlane.xlu0 %4388
      %4390 = vadd.xlane.f32.xlu0 %v4327
      %v4391 = vpop.xlane.xlu0 %4390
      %4392 = vadd.xlane.f32.xlu0 %v4329
      %v4393 = vpop.xlane.xlu0 %4392
      %4394 = vadd.xlane.f32.xlu0 %v4331
      %v4395 = vpop.xlane.xlu0 %4394
      %4396 = vadd.xlane.f32.xlu0 %v4333
      %v4397 = vpop.xlane.xlu0 %4396
      %4398 = vadd.xlane.f32.xlu0 %v4335
      %v4399 = vpop.xlane.xlu0 %4398
      %4400 = vadd.xlane.f32.xlu0 %v4337
      %v4401 = vpop.xlane.xlu0 %4400
      %4402 = vadd.xlane.f32.xlu0 %v4339
      %v4403 = vpop.xlane.xlu0 %4402
      %4404 = vadd.xlane.f32.xlu0 %v4341
      %v4405 = vpop.xlane.xlu0 %4404
      %4406 = vadd.xlane.f32.xlu0 %v4343
      %v4407 = vpop.xlane.xlu0 %4406
      %4408 = vadd.xlane.f32.xlu0 %v4345
      %v4409 = vpop.xlane.xlu0 %4408
      %4410 = vadd.xlane.f32.xlu0 %v4347
      %v4411 = vpop.xlane.xlu0 %4410
      %4412 = vadd.xlane.f32.xlu0 %v4349
      %v4413 = vpop.xlane.xlu0 %4412
      %4414 = vadd.xlane.f32.xlu0 %v4351
      %v4415 = vpop.xlane.xlu0 %4414
      %4416 = vadd.xlane.f32.xlu0 %v4353
      %v4417 = vpop.xlane.xlu0 %4416
      %4418 = vadd.xlane.f32.xlu0 %v4355
      %v4419 = vpop.xlane.xlu0 %4418
      %v4420 = vadd.f32 %v4372, %v4389
      %v4421 = vadd.f32 %v4373, %v4391
      %v4422 = vadd.f32 %v4374, %v4393
      %v4423 = vadd.f32 %v4375, %v4395
      %v4424 = vadd.f32 %v4376, %v4397
      %v4425 = vadd.f32 %v4377, %v4399
      %v4426 = vadd.f32 %v4378, %v4401
      %v4427 = vadd.f32 %v4379, %v4403
      %v4428 = vadd.f32 %v4380, %v4405
      %v4429 = vadd.f32 %v4381, %v4407
      %v4430 = vadd.f32 %v4382, %v4409
      %v4431 = vadd.f32 %v4383, %v4411
      %v4432 = vadd.f32 %v4384, %v4413
      %v4433 = vadd.f32 %v4385, %v4415
      %v4434 = vadd.f32 %v4386, %v4417
      %v4435 = vadd.f32 %v4387, %v4419
      %vm4436 = vcmask 15368
      %4437 = vst.msk [vmem:[#allocation4] sm:$0xff] %vm4436, %v4420
      %4438 = vst.msk [vmem:[#allocation4 + $0x8] sm:$0xff] %vm4436, %v4421
      %4439 = vst.msk [vmem:[#allocation4 + $0x10] sm:$0xff] %vm4436, %v4422
      %4440 = vst.msk [vmem:[#allocation4 + $0x18] sm:$0xff] %vm4436, %v4423
      %4441 = vst.msk [vmem:[#allocation4 + $0x20] sm:$0xff] %vm4436, %v4424
      %4442 = vst.msk [vmem:[#allocation4 + $0x28] sm:$0xff] %vm4436, %v4425
      %4443 = vst.msk [vmem:[#allocation4 + $0x30] sm:$0xff] %vm4436, %v4426
      %4444 = vst.msk [vmem:[#allocation4 + $0x38] sm:$0xff] %vm4436, %v4427
      %4445 = vst.msk [vmem:[#allocation4 + $0x40] sm:$0xff] %vm4436, %v4428
      %4446 = vst.msk [vmem:[#allocation4 + $0x48] sm:$0xff] %vm4436, %v4429
      %4447 = vst.msk [vmem:[#allocation4 + $0x50] sm:$0xff] %vm4436, %v4430
      %4448 = vst.msk [vmem:[#allocation4 + $0x58] sm:$0xff] %vm4436, %v4431
      %4449 = vst.msk [vmem:[#allocation4 + $0x60] sm:$0xff] %vm4436, %v4432
      %4450 = vst.msk [vmem:[#allocation4 + $0x68] sm:$0xff] %vm4436, %v4433
      %4451 = vst.msk [vmem:[#allocation4 + $0x70] sm:$0xff] %vm4436, %v4434
      %4452 = vst.msk [vmem:[#allocation4 + $0x78] sm:$0xff] %vm4436, %v4435
      %v4453 = vld [vmem:[#allocation5] sm:$0xff]
      %v4454 = vld [vmem:[#allocation5 + $0x8] sm:$0xff]
      %v4455 = vld [vmem:[#allocation5 + $0x10] sm:$0xff]
      %v4456 = vld [vmem:[#allocation5 + $0x18] sm:$0xff]
      %v4457 = vld [vmem:[#allocation5 + $0x20] sm:$0xff]
      %v4458 = vld [vmem:[#allocation5 + $0x28] sm:$0xff]
      %v4459 = vld [vmem:[#allocation5 + $0x30] sm:$0xff]
      %v4460 = vld [vmem:[#allocation5 + $0x38] sm:$0xff]
      %v4461 = vld [vmem:[#allocation5 + $0x40] sm:$0xff]
      %v4462 = vld [vmem:[#allocation5 + $0x48] sm:$0xff]
      %v4463 = vld [vmem:[#allocation5 + $0x50] sm:$0xff]
      %v4464 = vld [vmem:[#allocation5 + $0x58] sm:$0xff]
      %v4465 = vld [vmem:[#allocation5 + $0x60] sm:$0xff]
      %v4466 = vld [vmem:[#allocation5 + $0x68] sm:$0xff]
      %v4467 = vld [vmem:[#allocation5 + $0x70] sm:$0xff]
      %v4468 = vld [vmem:[#allocation5 + $0x78] sm:$0xff]
      %4470 = vset.pattern.permute.xlu0 1
      %4471 = vperm.xlu0 %4470, %v4197
      %v4472 = vpop.permute.xlu0 %4471
      %4475 = vset.pattern.permute.xlu0 1
      %4476 = vperm.xlu0 %4475, %v4199
      %v4477 = vpop.permute.xlu0 %4476
      %4480 = vset.pattern.permute.xlu0 1
      %4481 = vperm.xlu0 %4480, %v4201
      %v4482 = vpop.permute.xlu0 %4481
      %4485 = vset.pattern.permute.xlu0 1
      %4486 = vperm.xlu0 %4485, %v4203
      %v4487 = vpop.permute.xlu0 %4486
      %4490 = vset.pattern.permute.xlu0 1
      %4491 = vperm.xlu0 %4490, %v4205
      %v4492 = vpop.permute.xlu0 %4491
      %4495 = vset.pattern.permute.xlu0 1
      %4496 = vperm.xlu0 %4495, %v4207
      %v4497 = vpop.permute.xlu0 %4496
      %4500 = vset.pattern.permute.xlu0 1
      %4501 = vperm.xlu0 %4500, %v4209
      %v4502 = vpop.permute.xlu0 %4501
      %4505 = vset.pattern.permute.xlu0 1
      %4506 = vperm.xlu0 %4505, %v4211
      %v4507 = vpop.permute.xlu0 %4506
      %4510 = vset.pattern.permute.xlu0 1
      %4511 = vperm.xlu0 %4510, %v4213
      %v4512 = vpop.permute.xlu0 %4511
      %4515 = vset.pattern.permute.xlu0 1
      %4516 = vperm.xlu0 %4515, %v4215
      %v4517 = vpop.permute.xlu0 %4516
      %4520 = vset.pattern.permute.xlu0 1
      %4521 = vperm.xlu0 %4520, %v4217
      %v4522 = vpop.permute.xlu0 %4521
      %4525 = vset.pattern.permute.xlu0 1
      %4526 = vperm.xlu0 %4525, %v4219
      %v4527 = vpop.permute.xlu0 %4526
      %4530 = vset.pattern.permute.xlu0 1
      %4531 = vperm.xlu0 %4530, %v4221
      %v4532 = vpop.permute.xlu0 %4531
      %4535 = vset.pattern.permute.xlu0 1
      %4536 = vperm.xlu0 %4535, %v4223
      %v4537 = vpop.permute.xlu0 %4536
      %4540 = vset.pattern.permute.xlu0 1
      %4541 = vperm.xlu0 %4540, %v4225
      %v4542 = vpop.permute.xlu0 %4541
      %4545 = vset.pattern.permute.xlu0 1
      %4546 = vperm.xlu0 %4545, %v4227
      %v4547 = vpop.permute.xlu0 %4546
      %v4549 = vmul.f32 %v4472, %v4453
      %v4550 = vmul.f32 %v4477, %v4454
      %v4551 = vmul.f32 %v4482, %v4455
      %v4552 = vmul.f32 %v4487, %v4456
      %v4553 = vmul.f32 %v4492, %v4457
      %v4554 = vmul.f32 %v4497, %v4458
      %v4555 = vmul.f32 %v4502, %v4459
      %v4556 = vmul.f32 %v4507, %v4460
      %v4557 = vmul.f32 %v4512, %v4461
      %v4558 = vmul.f32 %v4517, %v4462
      %v4559 = vmul.f32 %v4522, %v4463
      %v4560 = vmul.f32 %v4527, %v4464
      %v4561 = vmul.f32 %v4532, %v4465
      %v4562 = vmul.f32 %v4537, %v4466
      %v4563 = vmul.f32 %v4542, %v4467
      %v4564 = vmul.f32 %v4547, %v4468
      %v4565 = vpack.c.bf16 %v4327, %v4325
      %v4566 = vpack.c.bf16 %v4331, %v4329
      %v4567 = vpack.c.bf16 %v4335, %v4333
      %v4568 = vpack.c.bf16 %v4339, %v4337
      %v4569 = vpack.c.bf16 %v4343, %v4341
      %v4570 = vpack.c.bf16 %v4347, %v4345
      %v4571 = vpack.c.bf16 %v4351, %v4349
      %v4572 = vpack.c.bf16 %v4355, %v4353
      %4573 = vrot.lane.b32.xlu0 %v2970, 88
      %v4574 = vpop.permute.xlu0 %4573
      %4575 = vrot.lane.b32.xlu0 %v2971, 88
      %v4576 = vpop.permute.xlu0 %4575
      %4577 = vrot.lane.b32.xlu0 %v2972, 88
      %v4578 = vpop.permute.xlu0 %4577
      %4579 = vrot.lane.b32.xlu0 %v2973, 88
      %v4580 = vpop.permute.xlu0 %4579
      %4581 = vrot.lane.b32.xlu0 %v2974, 88
      %v4582 = vpop.permute.xlu0 %4581
      %4583 = vrot.lane.b32.xlu0 %v2975, 88
      %v4584 = vpop.permute.xlu0 %4583
      %4585 = vrot.lane.b32.xlu0 %v2976, 88
      %v4586 = vpop.permute.xlu0 %4585
      %4587 = vrot.lane.b32.xlu0 %v2977, 88
      %v4588 = vpop.permute.xlu0 %4587
      %4597 = vmatprep.subr.bf16.mxu0 0
      %4598 = vmatpush1.bf16.msra.mxu0 %v4588
      %4599 = vmatprep.subr.bf16.mxu0 0
      %4600 = vmatpush1.bf16.msra.mxu0 %v4586
      %4601 = vmatprep.subr.bf16.mxu0 0
      %4602 = vmatpush1.bf16.msra.mxu0 %v4584
      %4603 = vmatprep.subr.bf16.mxu0 0
      %4604 = vmatpush1.bf16.msra.mxu0 %v4582
      %4605 = vmatprep.subr.bf16.mxu0 0
      %4606 = vmatpush1.bf16.msra.mxu0 %v4580
      %4607 = vmatprep.subr.bf16.mxu0 0
      %4608 = vmatpush1.bf16.msra.mxu0 %v4578
      %4609 = vmatprep.subr.bf16.mxu0 0
      %4610 = vmatpush1.bf16.msra.mxu0 %v4576
      %4611 = vmatprep.subr.bf16.mxu0 0
      %4612 = vmatpush1.bf16.msra.mxu0 %v4574
      %4613 = vmatprep.subr.bf16.mxu0 0
      %4614 = vmatpush2.bf16.msra.mxu0 0
      %4615 = vmatprep.subr.bf16.mxu0 0
      %4616 = vmatpush2.bf16.msra.mxu0 0
      %4617 = vmatprep.subr.bf16.mxu0 0
      %4618 = vmatpush2.bf16.msra.mxu0 0
      %4619 = vmatprep.subr.bf16.mxu0 0
      %4620 = vmatpush2.bf16.msra.mxu0 0
      %4621 = vmatprep.subr.bf16.mxu0 0
      %4622 = vmatpush2.bf16.msra.mxu0 0
      %4623 = vmatprep.subr.bf16.mxu0 0
      %4624 = vmatpush2.bf16.msra.mxu0 0
      %4625 = vmatprep.subr.bf16.mxu0 0
      %4626 = vmatpush2.bf16.msra.mxu0 0
      %4627 = vmatprep.subr.bf16.mxu0 0
      %4628 = vmatpush2.bf16.msra.mxu0 0
      %4629 = vmatprep.mubr.bf16.mxu0 0
      %4630 = vmatmul.mubr.bf16.gmra.mxu0 %v4565
      %v4631 = vpop.f32.mrf.mxu0
      %v4632 = vadd.f32 0.0, %v4631
      %v4633 = vpop.f32.mrf.mxu0
      %v4634 = vpop.f32.mrf.mxu0
      %v4635 = vadd.f32 0.0, %v4634
      %v4636 = vpop.f32.mrf.mxu0
      %4637 = vmatprep.mubr.bf16.mxu0 0
      %4638 = vmatmul.mubr.bf16.gmra.mxu0 %v4566
      %v4639 = vpop.f32.mrf.mxu0
      %v4640 = vadd.f32 0.0, %v4639
      %v4641 = vpop.f32.mrf.mxu0
      %v4642 = vpop.f32.mrf.mxu0
      %v4643 = vadd.f32 0.0, %v4642
      %v4644 = vpop.f32.mrf.mxu0
      %4645 = vmatprep.mubr.bf16.mxu0 0
      %4646 = vmatmul.mubr.bf16.gmra.mxu0 %v4567
      %v4647 = vpop.f32.mrf.mxu0
      %v4648 = vadd.f32 0.0, %v4647
      %v4649 = vpop.f32.mrf.mxu0
      %v4650 = vpop.f32.mrf.mxu0
      %v4651 = vadd.f32 0.0, %v4650
      %v4652 = vpop.f32.mrf.mxu0
      %4653 = vmatprep.mubr.bf16.mxu0 0
      %4654 = vmatmul.mubr.bf16.gmra.mxu0 %v4568
      %v4655 = vpop.f32.mrf.mxu0
      %v4656 = vadd.f32 0.0, %v4655
      %v4657 = vpop.f32.mrf.mxu0
      %v4658 = vpop.f32.mrf.mxu0
      %v4659 = vadd.f32 0.0, %v4658
      %v4660 = vpop.f32.mrf.mxu0
      %4661 = vmatprep.mubr.bf16.mxu0 0
      %4662 = vmatmul.mubr.bf16.gmra.mxu0 %v4569
      %v4663 = vpop.f32.mrf.mxu0
      %v4664 = vadd.f32 0.0, %v4663
      %v4665 = vpop.f32.mrf.mxu0
      %v4666 = vpop.f32.mrf.mxu0
      %v4667 = vadd.f32 0.0, %v4666
      %v4668 = vpop.f32.mrf.mxu0
      %4669 = vmatprep.mubr.bf16.mxu0 0
      %4670 = vmatmul.mubr.bf16.gmra.mxu0 %v4570
      %v4671 = vpop.f32.mrf.mxu0
      %v4672 = vadd.f32 0.0, %v4671
      %v4673 = vpop.f32.mrf.mxu0
      %v4674 = vpop.f32.mrf.mxu0
      %v4675 = vadd.f32 0.0, %v4674
      %v4676 = vpop.f32.mrf.mxu0
      %4677 = vmatprep.mubr.bf16.mxu0 0
      %4678 = vmatmul.mubr.bf16.gmra.mxu0 %v4571
      %v4679 = vpop.f32.mrf.mxu0
      %v4680 = vadd.f32 0.0, %v4679
      %v4681 = vpop.f32.mrf.mxu0
      %v4682 = vpop.f32.mrf.mxu0
      %v4683 = vadd.f32 0.0, %v4682
      %v4684 = vpop.f32.mrf.mxu0
      %4685 = vmatprep.mubr.bf16.mxu0 0
      %4686 = vmatmul.mubr.bf16.gmra.mxu0 %v4572
      %v4687 = vpop.f32.mrf.mxu0
      %v4688 = vadd.f32 0.0, %v4687
      %v4689 = vpop.f32.mrf.mxu0
      %v4690 = vpop.f32.mrf.mxu0
      %v4691 = vadd.f32 0.0, %v4690
      %v4692 = vpop.f32.mrf.mxu0
      %4693 = vdwg.mxu0
      %4710 = vrot.lane.b32.xlu0 %v4632, 8
      %v4711 = vpop.permute.xlu0 %4710
      %4712 = vrot.lane.b32.xlu0 %v4635, 8
      %v4713 = vpop.permute.xlu0 %4712
      %4714 = vrot.lane.b32.xlu0 %v4640, 8
      %v4715 = vpop.permute.xlu0 %4714
      %4716 = vrot.lane.b32.xlu0 %v4643, 8
      %v4717 = vpop.permute.xlu0 %4716
      %4718 = vrot.lane.b32.xlu0 %v4648, 8
      %v4719 = vpop.permute.xlu0 %4718
      %4720 = vrot.lane.b32.xlu0 %v4651, 8
      %v4721 = vpop.permute.xlu0 %4720
      %4722 = vrot.lane.b32.xlu0 %v4656, 8
      %v4723 = vpop.permute.xlu0 %4722
      %4724 = vrot.lane.b32.xlu0 %v4659, 8
      %v4725 = vpop.permute.xlu0 %4724
      %4726 = vrot.lane.b32.xlu0 %v4664, 8
      %v4727 = vpop.permute.xlu0 %4726
      %4728 = vrot.lane.b32.xlu0 %v4667, 8
      %v4729 = vpop.permute.xlu0 %4728
      %4730 = vrot.lane.b32.xlu0 %v4672, 8
      %v4731 = vpop.permute.xlu0 %4730
      %4732 = vrot.lane.b32.xlu0 %v4675, 8
      %v4733 = vpop.permute.xlu0 %4732
      %4734 = vrot.lane.b32.xlu0 %v4680, 8
      %v4735 = vpop.permute.xlu0 %4734
      %4736 = vrot.lane.b32.xlu0 %v4683, 8
      %v4737 = vpop.permute.xlu0 %4736
      %4738 = vrot.lane.b32.xlu0 %v4688, 8
      %v4739 = vpop.permute.xlu0 %4738
      %4740 = vrot.lane.b32.xlu0 %v4691, 8
      %v4741 = vpop.permute.xlu0 %4740
      %v4758 = vadd.f32 %v4549, %v4711
      %v4759 = vadd.f32 %v4550, %v4713
      %v4760 = vadd.f32 %v4551, %v4715
      %v4761 = vadd.f32 %v4552, %v4717
      %v4762 = vadd.f32 %v4553, %v4719
      %v4763 = vadd.f32 %v4554, %v4721
      %v4764 = vadd.f32 %v4555, %v4723
      %v4765 = vadd.f32 %v4556, %v4725
      %v4766 = vadd.f32 %v4557, %v4727
      %v4767 = vadd.f32 %v4558, %v4729
      %v4768 = vadd.f32 %v4559, %v4731
      %v4769 = vadd.f32 %v4560, %v4733
      %v4770 = vadd.f32 %v4561, %v4735
      %v4771 = vadd.f32 %v4562, %v4737
      %v4772 = vadd.f32 %v4563, %v4739
      %v4773 = vadd.f32 %v4564, %v4741
      %vm4774 = vcmask 130112
      %4775 = vst.msk [vmem:[#allocation5] sm:$0xff] %vm4774, %v4758
      %4776 = vst.msk [vmem:[#allocation5 + $0x8] sm:$0xff] %vm4774, %v4759
      %4777 = vst.msk [vmem:[#allocation5 + $0x10] sm:$0xff] %vm4774, %v4760
      %4778 = vst.msk [vmem:[#allocation5 + $0x18] sm:$0xff] %vm4774, %v4761
      %4779 = vst.msk [vmem:[#allocation5 + $0x20] sm:$0xff] %vm4774, %v4762
      %4780 = vst.msk [vmem:[#allocation5 + $0x28] sm:$0xff] %vm4774, %v4763
      %4781 = vst.msk [vmem:[#allocation5 + $0x30] sm:$0xff] %vm4774, %v4764
      %4782 = vst.msk [vmem:[#allocation5 + $0x38] sm:$0xff] %vm4774, %v4765
      %4783 = vst.msk [vmem:[#allocation5 + $0x40] sm:$0xff] %vm4774, %v4766
      %4784 = vst.msk [vmem:[#allocation5 + $0x48] sm:$0xff] %vm4774, %v4767
      %4785 = vst.msk [vmem:[#allocation5 + $0x50] sm:$0xff] %vm4774, %v4768
      %4786 = vst.msk [vmem:[#allocation5 + $0x58] sm:$0xff] %vm4774, %v4769
      %4787 = vst.msk [vmem:[#allocation5 + $0x60] sm:$0xff] %vm4774, %v4770
      %4788 = vst.msk [vmem:[#allocation5 + $0x68] sm:$0xff] %vm4774, %v4771
      %4789 = vst.msk [vmem:[#allocation5 + $0x70] sm:$0xff] %vm4774, %v4772
      %4790 = vst.msk [vmem:[#allocation5 + $0x78] sm:$0xff] %vm4774, %v4773
      %4791 = vst.msk [vmem:[#allocation3] sm:$0xff] %vm4436, %v4164
      %4792 = vst.msk [vmem:[#allocation3 + $0x8] sm:$0xff] %vm4436, %v4165
      %4793 = vst.msk [vmem:[#allocation3 + $0x10] sm:$0xff] %vm4436, %v4166
      %4794 = vst.msk [vmem:[#allocation3 + $0x18] sm:$0xff] %vm4436, %v4167
      %4795 = vst.msk [vmem:[#allocation3 + $0x20] sm:$0xff] %vm4436, %v4168
      %4796 = vst.msk [vmem:[#allocation3 + $0x28] sm:$0xff] %vm4436, %v4169
      %4797 = vst.msk [vmem:[#allocation3 + $0x30] sm:$0xff] %vm4436, %v4170
      %4798 = vst.msk [vmem:[#allocation3 + $0x38] sm:$0xff] %vm4436, %v4171
      %4799 = vst.msk [vmem:[#allocation3 + $0x40] sm:$0xff] %vm4436, %v4172
      %4800 = vst.msk [vmem:[#allocation3 + $0x48] sm:$0xff] %vm4436, %v4173
      %4801 = vst.msk [vmem:[#allocation3 + $0x50] sm:$0xff] %vm4436, %v4174
      %4802 = vst.msk [vmem:[#allocation3 + $0x58] sm:$0xff] %vm4436, %v4175
      %4803 = vst.msk [vmem:[#allocation3 + $0x60] sm:$0xff] %vm4436, %v4176
      %4804 = vst.msk [vmem:[#allocation3 + $0x68] sm:$0xff] %vm4436, %v4177
      %4805 = vst.msk [vmem:[#allocation3 + $0x70] sm:$0xff] %vm4436, %v4178
      %4806 = vst.msk [vmem:[#allocation3 + $0x78] sm:$0xff] %vm4436, %v4179
      %4807 = vrot.lane.b32.xlu0 %v3111, 112
      %v4808 = vpop.permute.xlu0 %4807
      %4809 = vrot.lane.b32.xlu0 %v3112, 112
      %v4810 = vpop.permute.xlu0 %4809
      %4811 = vrot.lane.b32.xlu0 %v3113, 112
      %v4812 = vpop.permute.xlu0 %4811
      %4813 = vrot.lane.b32.xlu0 %v3114, 112
      %v4814 = vpop.permute.xlu0 %4813
      %4815 = vrot.lane.b32.xlu0 %v3115, 112
      %v4816 = vpop.permute.xlu0 %4815
      %4817 = vrot.lane.b32.xlu0 %v3116, 112
      %v4818 = vpop.permute.xlu0 %4817
      %4819 = vrot.lane.b32.xlu0 %v3117, 112
      %v4820 = vpop.permute.xlu0 %4819
      %4821 = vrot.lane.b32.xlu0 %v3118, 112
      %v4822 = vpop.permute.xlu0 %4821
      %4823 = vrot.lane.b32.xlu0 %v2962, 112
      %v4824 = vpop.permute.xlu0 %4823
      %4825 = vrot.lane.b32.xlu0 %v2963, 112
      %v4826 = vpop.permute.xlu0 %4825
      %4827 = vrot.lane.b32.xlu0 %v2964, 112
      %v4828 = vpop.permute.xlu0 %4827
      %4829 = vrot.lane.b32.xlu0 %v2965, 112
      %v4830 = vpop.permute.xlu0 %4829
      %4831 = vrot.lane.b32.xlu0 %v2966, 112
      %v4832 = vpop.permute.xlu0 %4831
      %4833 = vrot.lane.b32.xlu0 %v2967, 112
      %v4834 = vpop.permute.xlu0 %4833
      %4835 = vrot.lane.b32.xlu0 %v2968, 112
      %v4836 = vpop.permute.xlu0 %4835
      %4837 = vrot.lane.b32.xlu0 %v2969, 112
      %v4838 = vpop.permute.xlu0 %4837
      %v4840 = vsel %vm3119, %v4808, 0
      %v4843 = vsel %vm3119, %v4810, 0
      %v4846 = vsel %vm3119, %v4812, 0
      %v4849 = vsel %vm3119, %v4814, 0
      %v4852 = vsel %vm3119, %v4816, 0
      %v4855 = vsel %vm3119, %v4818, 0
      %v4858 = vsel %vm3119, %v4820, 0
      %v4861 = vsel %vm3119, %v4822, 0
      %v4864 = vsel %vm3119, %v4824, 0
      %v4867 = vsel %vm3119, %v4826, 0
      %v4870 = vsel %vm3119, %v4828, 0
      %v4873 = vsel %vm3119, %v4830, 0
      %v4876 = vsel %vm3119, %v4832, 0
      %v4879 = vsel %vm3119, %v4834, 0
      %v4882 = vsel %vm3119, %v4836, 0
      %v4885 = vsel %vm3119, %v4838, 0
      %4887 = vmatprep.subr.bf16.mxu0 0
      %4888 = vmatpush1.bf16.xpose.msra.mxu0 %v4885
      %4889 = vmatprep.subr.bf16.mxu0 0
      %4890 = vmatpush1.bf16.xpose.msra.mxu0 %v4882
      %4891 = vmatprep.subr.bf16.mxu0 0
      %4892 = vmatpush1.bf16.xpose.msra.mxu0 %v4879
      %4893 = vmatprep.subr.bf16.mxu0 0
      %4894 = vmatpush1.bf16.xpose.msra.mxu0 %v4876
      %4895 = vmatprep.subr.bf16.mxu0 0
      %4896 = vmatpush1.bf16.xpose.msra.mxu0 %v4873
      %4897 = vmatprep.subr.bf16.mxu0 0
      %4898 = vmatpush1.bf16.xpose.msra.mxu0 %v4870
      %4899 = vmatprep.subr.bf16.mxu0 0
      %4900 = vmatpush1.bf16.xpose.msra.mxu0 %v4867
      %4901 = vmatprep.subr.bf16.mxu0 0
      %4902 = vmatpush1.bf16.xpose.msra.mxu0 %v4864
      %4903 = vmatprep.subr.bf16.mxu0 0
      %4904 = vmatpush2.bf16.xpose.msra.mxu0 0
      %4905 = vmatprep.subr.bf16.mxu0 0
      %4906 = vmatpush2.bf16.xpose.msra.mxu0 0
      %4907 = vmatprep.subr.bf16.mxu0 0
      %4908 = vmatpush2.bf16.xpose.msra.mxu0 0
      %4909 = vmatprep.subr.bf16.mxu0 0
      %4910 = vmatpush2.bf16.xpose.msra.mxu0 0
      %4911 = vmatprep.subr.bf16.mxu0 0
      %4912 = vmatpush2.bf16.xpose.msra.mxu0 0
      %4913 = vmatprep.subr.bf16.mxu0 0
      %4914 = vmatpush2.bf16.xpose.msra.mxu0 0
      %4915 = vmatprep.subr.bf16.mxu0 0
      %4916 = vmatpush2.bf16.xpose.msra.mxu0 0
      %4917 = vmatprep.subr.bf16.mxu0 0
      %4918 = vmatpush2.bf16.xpose.msra.mxu0 0
      %4919 = vmatprep.mubr.bf16.mxu0 0
      %4920 = vmatmul.mubr.bf16.gmra.mxu0 %v4840
      %v4921 = vpop.f32.mrf.mxu0
      %v4922 = vadd.f32 0.0, %v4921
      %v4923 = vpop.f32.mrf.mxu0
      %v4924 = vpop.f32.mrf.mxu0
      %v4925 = vadd.f32 0.0, %v4924
      %v4926 = vpop.f32.mrf.mxu0
      %4927 = vmatprep.mubr.bf16.mxu0 0
      %4928 = vmatmul.mubr.bf16.gmra.mxu0 %v4843
      %v4929 = vpop.f32.mrf.mxu0
      %v4930 = vadd.f32 0.0, %v4929
      %v4931 = vpop.f32.mrf.mxu0
      %v4932 = vpop.f32.mrf.mxu0
      %v4933 = vadd.f32 0.0, %v4932
      %v4934 = vpop.f32.mrf.mxu0
      %4935 = vmatprep.mubr.bf16.mxu0 0
      %4936 = vmatmul.mubr.bf16.gmra.mxu0 %v4846
      %v4937 = vpop.f32.mrf.mxu0
      %v4938 = vadd.f32 0.0, %v4937
      %v4939 = vpop.f32.mrf.mxu0
      %v4940 = vpop.f32.mrf.mxu0
      %v4941 = vadd.f32 0.0, %v4940
      %v4942 = vpop.f32.mrf.mxu0
      %4943 = vmatprep.mubr.bf16.mxu0 0
      %4944 = vmatmul.mubr.bf16.gmra.mxu0 %v4849
      %v4945 = vpop.f32.mrf.mxu0
      %v4946 = vadd.f32 0.0, %v4945
      %v4947 = vpop.f32.mrf.mxu0
      %v4948 = vpop.f32.mrf.mxu0
      %v4949 = vadd.f32 0.0, %v4948
      %v4950 = vpop.f32.mrf.mxu0
      %4951 = vmatprep.mubr.bf16.mxu0 0
      %4952 = vmatmul.mubr.bf16.gmra.mxu0 %v4852
      %v4953 = vpop.f32.mrf.mxu0
      %v4954 = vadd.f32 0.0, %v4953
      %v4955 = vpop.f32.mrf.mxu0
      %v4956 = vpop.f32.mrf.mxu0
      %v4957 = vadd.f32 0.0, %v4956
      %v4958 = vpop.f32.mrf.mxu0
      %4959 = vmatprep.mubr.bf16.mxu0 0
      %4960 = vmatmul.mubr.bf16.gmra.mxu0 %v4855
      %v4961 = vpop.f32.mrf.mxu0
      %v4962 = vadd.f32 0.0, %v4961
      %v4963 = vpop.f32.mrf.mxu0
      %v4964 = vpop.f32.mrf.mxu0
      %v4965 = vadd.f32 0.0, %v4964
      %v4966 = vpop.f32.mrf.mxu0
      %4967 = vmatprep.mubr.bf16.mxu0 0
      %4968 = vmatmul.mubr.bf16.gmra.mxu0 %v4858
      %v4969 = vpop.f32.mrf.mxu0
      %v4970 = vadd.f32 0.0, %v4969
      %v4971 = vpop.f32.mrf.mxu0
      %v4972 = vpop.f32.mrf.mxu0
      %v4973 = vadd.f32 0.0, %v4972
      %v4974 = vpop.f32.mrf.mxu0
      %4975 = vmatprep.mubr.bf16.mxu0 0
      %4976 = vmatmul.mubr.bf16.gmra.mxu0 %v4861
      %v4977 = vpop.f32.mrf.mxu0
      %v4978 = vadd.f32 0.0, %v4977
      %v4979 = vpop.f32.mrf.mxu0
      %v4980 = vpop.f32.mrf.mxu0
      %v4981 = vadd.f32 0.0, %v4980
      %v4982 = vpop.f32.mrf.mxu0
      %4983 = vdwg.mxu0
      %v4984 = vsel %vm3047, %v4922, -1e+30
      %v4985 = vsel %vm3048, %v4925, -1e+30
      %v4986 = vsel %vm3049, %v4930, -1e+30
      %v4987 = vsel %vm3050, %v4933, -1e+30
      %v4988 = vsel %vm3051, %v4938, -1e+30
      %v4989 = vsel %vm3052, %v4941, -1e+30
      %v4990 = vsel %vm3053, %v4946, -1e+30
      %v4991 = vsel %vm3054, %v4949, -1e+30
      %v4992 = vsel %vm3055, %v4954, -1e+30
      %v4993 = vsel %vm3056, %v4957, -1e+30
      %v4994 = vsel %vm3057, %v4962, -1e+30
      %v4995 = vsel %vm3058, %v4965, -1e+30
      %v4996 = vsel %vm3059, %v4970, -1e+30
      %v4997 = vsel %vm3060, %v4973, -1e+30
      %v4998 = vsel %vm3061, %v4978, -1e+30
      %v4999 = vsel %vm3062, %v4981, -1e+30
      %v5000 = vld [vmem:[#allocation3] sm:$0xff]
      %v5001 = vld [vmem:[#allocation3 + $0x8] sm:$0xff]
      %v5002 = vld [vmem:[#allocation3 + $0x10] sm:$0xff]
      %v5003 = vld [vmem:[#allocation3 + $0x18] sm:$0xff]
      %v5004 = vld [vmem:[#allocation3 + $0x20] sm:$0xff]
      %v5005 = vld [vmem:[#allocation3 + $0x28] sm:$0xff]
      %v5006 = vld [vmem:[#allocation3 + $0x30] sm:$0xff]
      %v5007 = vld [vmem:[#allocation3 + $0x38] sm:$0xff]
      %v5008 = vld [vmem:[#allocation3 + $0x40] sm:$0xff]
      %v5009 = vld [vmem:[#allocation3 + $0x48] sm:$0xff]
      %v5010 = vld [vmem:[#allocation3 + $0x50] sm:$0xff]
      %v5011 = vld [vmem:[#allocation3 + $0x58] sm:$0xff]
      %v5012 = vld [vmem:[#allocation3 + $0x60] sm:$0xff]
      %v5013 = vld [vmem:[#allocation3 + $0x68] sm:$0xff]
      %v5014 = vld [vmem:[#allocation3 + $0x70] sm:$0xff]
      %v5015 = vld [vmem:[#allocation3 + $0x78] sm:$0xff]
      %5016 = vmax.xlane.f32.xlu0 %v4984
      %v5017 = vpop.xlane.xlu0 %5016
      %5018 = vmax.xlane.f32.xlu0 %v4985
      %v5019 = vpop.xlane.xlu0 %5018
      %5020 = vmax.xlane.f32.xlu0 %v4986
      %v5021 = vpop.xlane.xlu0 %5020
      %5022 = vmax.xlane.f32.xlu0 %v4987
      %v5023 = vpop.xlane.xlu0 %5022
      %5024 = vmax.xlane.f32.xlu0 %v4988
      %v5025 = vpop.xlane.xlu0 %5024
      %5026 = vmax.xlane.f32.xlu0 %v4989
      %v5027 = vpop.xlane.xlu0 %5026
      %5028 = vmax.xlane.f32.xlu0 %v4990
      %v5029 = vpop.xlane.xlu0 %5028
      %5030 = vmax.xlane.f32.xlu0 %v4991
      %v5031 = vpop.xlane.xlu0 %5030
      %5032 = vmax.xlane.f32.xlu0 %v4992
      %v5033 = vpop.xlane.xlu0 %5032
      %5034 = vmax.xlane.f32.xlu0 %v4993
      %v5035 = vpop.xlane.xlu0 %5034
      %5036 = vmax.xlane.f32.xlu0 %v4994
      %v5037 = vpop.xlane.xlu0 %5036
      %5038 = vmax.xlane.f32.xlu0 %v4995
      %v5039 = vpop.xlane.xlu0 %5038
      %5040 = vmax.xlane.f32.xlu0 %v4996
      %v5041 = vpop.xlane.xlu0 %5040
      %5042 = vmax.xlane.f32.xlu0 %v4997
      %v5043 = vpop.xlane.xlu0 %5042
      %5044 = vmax.xlane.f32.xlu0 %v4998
      %v5045 = vpop.xlane.xlu0 %5044
      %5046 = vmax.xlane.f32.xlu0 %v4999
      %v5047 = vpop.xlane.xlu0 %5046
      %v5048 = vmax.f32 %v5000, %v5017
      %v5049 = vmax.f32 %v5001, %v5019
      %v5050 = vmax.f32 %v5002, %v5021
      %v5051 = vmax.f32 %v5003, %v5023
      %v5052 = vmax.f32 %v5004, %v5025
      %v5053 = vmax.f32 %v5005, %v5027
      %v5054 = vmax.f32 %v5006, %v5029
      %v5055 = vmax.f32 %v5007, %v5031
      %v5056 = vmax.f32 %v5008, %v5033
      %v5057 = vmax.f32 %v5009, %v5035
      %v5058 = vmax.f32 %v5010, %v5037
      %v5059 = vmax.f32 %v5011, %v5039
      %v5060 = vmax.f32 %v5012, %v5041
      %v5061 = vmax.f32 %v5013, %v5043
      %v5062 = vmax.f32 %v5014, %v5045
      %v5063 = vmax.f32 %v5015, %v5047
      %v5064 = vsub.f32 %v5000, %v5048
      %v5065 = vsub.f32 %v5001, %v5049
      %v5066 = vsub.f32 %v5002, %v5050
      %v5067 = vsub.f32 %v5003, %v5051
      %v5068 = vsub.f32 %v5004, %v5052
      %v5069 = vsub.f32 %v5005, %v5053
      %v5070 = vsub.f32 %v5006, %v5054
      %v5071 = vsub.f32 %v5007, %v5055
      %v5072 = vsub.f32 %v5008, %v5056
      %v5073 = vsub.f32 %v5009, %v5057
      %v5074 = vsub.f32 %v5010, %v5058
      %v5075 = vsub.f32 %v5011, %v5059
      %v5076 = vsub.f32 %v5012, %v5060
      %v5077 = vsub.f32 %v5013, %v5061
      %v5078 = vsub.f32 %v5014, %v5062
      %v5079 = vsub.f32 %v5015, %v5063
      %v5080 = vmul.f32 %v5064, 1.442695
      %v5081 = vpow.pop %v5080
      %v5082 = vmul.f32 %v5065, 1.442695
      %v5083 = vpow.pop %v5082
      %v5084 = vmul.f32 %v5066, 1.442695
      %v5085 = vpow.pop %v5084
      %v5086 = vmul.f32 %v5067, 1.442695
      %v5087 = vpow.pop %v5086
      %v5088 = vmul.f32 %v5068, 1.442695
      %v5089 = vpow.pop %v5088
      %v5090 = vmul.f32 %v5069, 1.442695
      %v5091 = vpow.pop %v5090
      %v5092 = vmul.f32 %v5070, 1.442695
      %v5093 = vpow.pop %v5092
      %v5094 = vmul.f32 %v5071, 1.442695
      %v5095 = vpow.pop %v5094
      %v5096 = vmul.f32 %v5072, 1.442695
      %v5097 = vpow.pop %v5096
      %v5098 = vmul.f32 %v5073, 1.442695
      %v5099 = vpow.pop %v5098
      %v5100 = vmul.f32 %v5074, 1.442695
      %v5101 = vpow.pop %v5100
      %v5102 = vmul.f32 %v5075, 1.442695
      %v5103 = vpow.pop %v5102
      %v5104 = vmul.f32 %v5076, 1.442695
      %v5105 = vpow.pop %v5104
      %v5106 = vmul.f32 %v5077, 1.442695
      %v5107 = vpow.pop %v5106
      %v5108 = vmul.f32 %v5078, 1.442695
      %v5109 = vpow.pop %v5108
      %v5110 = vmul.f32 %v5079, 1.442695
      %v5111 = vpow.pop %v5110
      %5113 = vset.pattern.permute.xlu0 2
      %5114 = vperm.xlu0 %5113, %v5048
      %v5115 = vpop.permute.xlu0 %5114
      %5118 = vset.pattern.permute.xlu0 2
      %5119 = vperm.xlu0 %5118, %v5049
      %v5120 = vpop.permute.xlu0 %5119
      %5123 = vset.pattern.permute.xlu0 2
      %5124 = vperm.xlu0 %5123, %v5050
      %v5125 = vpop.permute.xlu0 %5124
      %5128 = vset.pattern.permute.xlu0 2
      %5129 = vperm.xlu0 %5128, %v5051
      %v5130 = vpop.permute.xlu0 %5129
      %5133 = vset.pattern.permute.xlu0 2
      %5134 = vperm.xlu0 %5133, %v5052
      %v5135 = vpop.permute.xlu0 %5134
      %5138 = vset.pattern.permute.xlu0 2
      %5139 = vperm.xlu0 %5138, %v5053
      %v5140 = vpop.permute.xlu0 %5139
      %5143 = vset.pattern.permute.xlu0 2
      %5144 = vperm.xlu0 %5143, %v5054
      %v5145 = vpop.permute.xlu0 %5144
      %5148 = vset.pattern.permute.xlu0 2
      %5149 = vperm.xlu0 %5148, %v5055
      %v5150 = vpop.permute.xlu0 %5149
      %5153 = vset.pattern.permute.xlu0 2
      %5154 = vperm.xlu0 %5153, %v5056
      %v5155 = vpop.permute.xlu0 %5154
      %5158 = vset.pattern.permute.xlu0 2
      %5159 = vperm.xlu0 %5158, %v5057
      %v5160 = vpop.permute.xlu0 %5159
      %5163 = vset.pattern.permute.xlu0 2
      %5164 = vperm.xlu0 %5163, %v5058
      %v5165 = vpop.permute.xlu0 %5164
      %5168 = vset.pattern.permute.xlu0 2
      %5169 = vperm.xlu0 %5168, %v5059
      %v5170 = vpop.permute.xlu0 %5169
      %5173 = vset.pattern.permute.xlu0 2
      %5174 = vperm.xlu0 %5173, %v5060
      %v5175 = vpop.permute.xlu0 %5174
      %5178 = vset.pattern.permute.xlu0 2
      %5179 = vperm.xlu0 %5178, %v5061
      %v5180 = vpop.permute.xlu0 %5179
      %5183 = vset.pattern.permute.xlu0 2
      %5184 = vperm.xlu0 %5183, %v5062
      %v5185 = vpop.permute.xlu0 %5184
      %5188 = vset.pattern.permute.xlu0 2
      %5189 = vperm.xlu0 %5188, %v5063
      %v5190 = vpop.permute.xlu0 %5189
      %v5192 = vsub.f32 %v4984, %v5115
      %v5193 = vsub.f32 %v4985, %v5120
      %v5194 = vsub.f32 %v4986, %v5125
      %v5195 = vsub.f32 %v4987, %v5130
      %v5196 = vsub.f32 %v4988, %v5135
      %v5197 = vsub.f32 %v4989, %v5140
      %v5198 = vsub.f32 %v4990, %v5145
      %v5199 = vsub.f32 %v4991, %v5150
      %v5200 = vsub.f32 %v4992, %v5155
      %v5201 = vsub.f32 %v4993, %v5160
      %v5202 = vsub.f32 %v4994, %v5165
      %v5203 = vsub.f32 %v4995, %v5170
      %v5204 = vsub.f32 %v4996, %v5175
      %v5205 = vsub.f32 %v4997, %v5180
      %v5206 = vsub.f32 %v4998, %v5185
      %v5207 = vsub.f32 %v4999, %v5190
      %v5208 = vmul.f32 %v5192, 1.442695
      %v5209 = vpow.pop %v5208
      %v5210 = vmul.f32 %v5193, 1.442695
      %v5211 = vpow.pop %v5210
      %v5212 = vmul.f32 %v5194, 1.442695
      %v5213 = vpow.pop %v5212
      %v5214 = vmul.f32 %v5195, 1.442695
      %v5215 = vpow.pop %v5214
      %v5216 = vmul.f32 %v5196, 1.442695
      %v5217 = vpow.pop %v5216
      %v5218 = vmul.f32 %v5197, 1.442695
      %v5219 = vpow.pop %v5218
      %v5220 = vmul.f32 %v5198, 1.442695
      %v5221 = vpow.pop %v5220
      %v5222 = vmul.f32 %v5199, 1.442695
      %v5223 = vpow.pop %v5222
      %v5224 = vmul.f32 %v5200, 1.442695
      %v5225 = vpow.pop %v5224
      %v5226 = vmul.f32 %v5201, 1.442695
      %v5227 = vpow.pop %v5226
      %v5228 = vmul.f32 %v5202, 1.442695
      %v5229 = vpow.pop %v5228
      %v5230 = vmul.f32 %v5203, 1.442695
      %v5231 = vpow.pop %v5230
      %v5232 = vmul.f32 %v5204, 1.442695
      %v5233 = vpow.pop %v5232
      %v5234 = vmul.f32 %v5205, 1.442695
      %v5235 = vpow.pop %v5234
      %v5236 = vmul.f32 %v5206, 1.442695
      %v5237 = vpow.pop %v5236
      %v5238 = vmul.f32 %v5207, 1.442695
      %v5239 = vpow.pop %v5238
      %v5240 = vld [vmem:[#allocation4] sm:$0xff]
      %v5241 = vld [vmem:[#allocation4 + $0x8] sm:$0xff]
      %v5242 = vld [vmem:[#allocation4 + $0x10] sm:$0xff]
      %v5243 = vld [vmem:[#allocation4 + $0x18] sm:$0xff]
      %v5244 = vld [vmem:[#allocation4 + $0x20] sm:$0xff]
      %v5245 = vld [vmem:[#allocation4 + $0x28] sm:$0xff]
      %v5246 = vld [vmem:[#allocation4 + $0x30] sm:$0xff]
      %v5247 = vld [vmem:[#allocation4 + $0x38] sm:$0xff]
      %v5248 = vld [vmem:[#allocation4 + $0x40] sm:$0xff]
      %v5249 = vld [vmem:[#allocation4 + $0x48] sm:$0xff]
      %v5250 = vld [vmem:[#allocation4 + $0x50] sm:$0xff]
      %v5251 = vld [vmem:[#allocation4 + $0x58] sm:$0xff]
      %v5252 = vld [vmem:[#allocation4 + $0x60] sm:$0xff]
      %v5253 = vld [vmem:[#allocation4 + $0x68] sm:$0xff]
      %v5254 = vld [vmem:[#allocation4 + $0x70] sm:$0xff]
      %v5255 = vld [vmem:[#allocation4 + $0x78] sm:$0xff]
      %v5256 = vmul.f32 %v5081, %v5240
      %v5257 = vmul.f32 %v5083, %v5241
      %v5258 = vmul.f32 %v5085, %v5242
      %v5259 = vmul.f32 %v5087, %v5243
      %v5260 = vmul.f32 %v5089, %v5244
      %v5261 = vmul.f32 %v5091, %v5245
      %v5262 = vmul.f32 %v5093, %v5246
      %v5263 = vmul.f32 %v5095, %v5247
      %v5264 = vmul.f32 %v5097, %v5248
      %v5265 = vmul.f32 %v5099, %v5249
      %v5266 = vmul.f32 %v5101, %v5250
      %v5267 = vmul.f32 %v5103, %v5251
      %v5268 = vmul.f32 %v5105, %v5252
      %v5269 = vmul.f32 %v5107, %v5253
      %v5270 = vmul.f32 %v5109, %v5254
      %v5271 = vmul.f32 %v5111, %v5255
      %5272 = vadd.xlane.f32.xlu0 %v5209
      %v5273 = vpop.xlane.xlu0 %5272
      %5274 = vadd.xlane.f32.xlu0 %v5211
      %v5275 = vpop.xlane.xlu0 %5274
      %5276 = vadd.xlane.f32.xlu0 %v5213
      %v5277 = vpop.xlane.xlu0 %5276
      %5278 = vadd.xlane.f32.xlu0 %v5215
      %v5279 = vpop.xlane.xlu0 %5278
      %5280 = vadd.xlane.f32.xlu0 %v5217
      %v5281 = vpop.xlane.xlu0 %5280
      %5282 = vadd.xlane.f32.xlu0 %v5219
      %v5283 = vpop.xlane.xlu0 %5282
      %5284 = vadd.xlane.f32.xlu0 %v5221
      %v5285 = vpop.xlane.xlu0 %5284
      %5286 = vadd.xlane.f32.xlu0 %v5223
      %v5287 = vpop.xlane.xlu0 %5286
      %5288 = vadd.xlane.f32.xlu0 %v5225
      %v5289 = vpop.xlane.xlu0 %5288
      %5290 = vadd.xlane.f32.xlu0 %v5227
      %v5291 = vpop.xlane.xlu0 %5290
      %5292 = vadd.xlane.f32.xlu0 %v5229
      %v5293 = vpop.xlane.xlu0 %5292
      %5294 = vadd.xlane.f32.xlu0 %v5231
      %v5295 = vpop.xlane.xlu0 %5294
      %5296 = vadd.xlane.f32.xlu0 %v5233
      %v5297 = vpop.xlane.xlu0 %5296
      %5298 = vadd.xlane.f32.xlu0 %v5235
      %v5299 = vpop.xlane.xlu0 %5298
      %5300 = vadd.xlane.f32.xlu0 %v5237
      %v5301 = vpop.xlane.xlu0 %5300
      %5302 = vadd.xlane.f32.xlu0 %v5239
      %v5303 = vpop.xlane.xlu0 %5302
      %v5304 = vadd.f32 %v5256, %v5273
      %v5305 = vadd.f32 %v5257, %v5275
      %v5306 = vadd.f32 %v5258, %v5277
      %v5307 = vadd.f32 %v5259, %v5279
      %v5308 = vadd.f32 %v5260, %v5281
      %v5309 = vadd.f32 %v5261, %v5283
      %v5310 = vadd.f32 %v5262, %v5285
      %v5311 = vadd.f32 %v5263, %v5287
      %v5312 = vadd.f32 %v5264, %v5289
      %v5313 = vadd.f32 %v5265, %v5291
      %v5314 = vadd.f32 %v5266, %v5293
      %v5315 = vadd.f32 %v5267, %v5295
      %v5316 = vadd.f32 %v5268, %v5297
      %v5317 = vadd.f32 %v5269, %v5299
      %v5318 = vadd.f32 %v5270, %v5301
      %v5319 = vadd.f32 %v5271, %v5303
      %vm5320 = vcmask 23568
      %5321 = vst.msk [vmem:[#allocation4] sm:$0xff] %vm5320, %v5304
      %5322 = vst.msk [vmem:[#allocation4 + $0x8] sm:$0xff] %vm5320, %v5305
      %5323 = vst.msk [vmem:[#allocation4 + $0x10] sm:$0xff] %vm5320, %v5306
      %5324 = vst.msk [vmem:[#allocation4 + $0x18] sm:$0xff] %vm5320, %v5307
      %5325 = vst.msk [vmem:[#allocation4 + $0x20] sm:$0xff] %vm5320, %v5308
      %5326 = vst.msk [vmem:[#allocation4 + $0x28] sm:$0xff] %vm5320, %v5309
      %5327 = vst.msk [vmem:[#allocation4 + $0x30] sm:$0xff] %vm5320, %v5310
      %5328 = vst.msk [vmem:[#allocation4 + $0x38] sm:$0xff] %vm5320, %v5311
      %5329 = vst.msk [vmem:[#allocation4 + $0x40] sm:$0xff] %vm5320, %v5312
      %5330 = vst.msk [vmem:[#allocation4 + $0x48] sm:$0xff] %vm5320, %v5313
      %5331 = vst.msk [vmem:[#allocation4 + $0x50] sm:$0xff] %vm5320, %v5314
      %5332 = vst.msk [vmem:[#allocation4 + $0x58] sm:$0xff] %vm5320, %v5315
      %5333 = vst.msk [vmem:[#allocation4 + $0x60] sm:$0xff] %vm5320, %v5316
      %5334 = vst.msk [vmem:[#allocation4 + $0x68] sm:$0xff] %vm5320, %v5317
      %5335 = vst.msk [vmem:[#allocation4 + $0x70] sm:$0xff] %vm5320, %v5318
      %5336 = vst.msk [vmem:[#allocation4 + $0x78] sm:$0xff] %vm5320, %v5319
      %v5337 = vld [vmem:[#allocation5] sm:$0xff]
      %v5338 = vld [vmem:[#allocation5 + $0x8] sm:$0xff]
      %v5339 = vld [vmem:[#allocation5 + $0x10] sm:$0xff]
      %v5340 = vld [vmem:[#allocation5 + $0x18] sm:$0xff]
      %v5341 = vld [vmem:[#allocation5 + $0x20] sm:$0xff]
      %v5342 = vld [vmem:[#allocation5 + $0x28] sm:$0xff]
      %v5343 = vld [vmem:[#allocation5 + $0x30] sm:$0xff]
      %v5344 = vld [vmem:[#allocation5 + $0x38] sm:$0xff]
      %v5345 = vld [vmem:[#allocation5 + $0x40] sm:$0xff]
      %v5346 = vld [vmem:[#allocation5 + $0x48] sm:$0xff]
      %v5347 = vld [vmem:[#allocation5 + $0x50] sm:$0xff]
      %v5348 = vld [vmem:[#allocation5 + $0x58] sm:$0xff]
      %v5349 = vld [vmem:[#allocation5 + $0x60] sm:$0xff]
      %v5350 = vld [vmem:[#allocation5 + $0x68] sm:$0xff]
      %v5351 = vld [vmem:[#allocation5 + $0x70] sm:$0xff]
      %v5352 = vld [vmem:[#allocation5 + $0x78] sm:$0xff]
      %5354 = vset.pattern.permute.xlu0 2
      %5355 = vperm.xlu0 %5354, %v5081
      %v5356 = vpop.permute.xlu0 %5355
      %5359 = vset.pattern.permute.xlu0 2
      %5360 = vperm.xlu0 %5359, %v5083
      %v5361 = vpop.permute.xlu0 %5360
      %5364 = vset.pattern.permute.xlu0 2
      %5365 = vperm.xlu0 %5364, %v5085
      %v5366 = vpop.permute.xlu0 %5365
      %5369 = vset.pattern.permute.xlu0 2
      %5370 = vperm.xlu0 %5369, %v5087
      %v5371 = vpop.permute.xlu0 %5370
      %5374 = vset.pattern.permute.xlu0 2
      %5375 = vperm.xlu0 %5374, %v5089
      %v5376 = vpop.permute.xlu0 %5375
      %5379 = vset.pattern.permute.xlu0 2
      %5380 = vperm.xlu0 %5379, %v5091
      %v5381 = vpop.permute.xlu0 %5380
      %5384 = vset.pattern.permute.xlu0 2
      %5385 = vperm.xlu0 %5384, %v5093
      %v5386 = vpop.permute.xlu0 %5385
      %5389 = vset.pattern.permute.xlu0 2
      %5390 = vperm.xlu0 %5389, %v5095
      %v5391 = vpop.permute.xlu0 %5390
      %5394 = vset.pattern.permute.xlu0 2
      %5395 = vperm.xlu0 %5394, %v5097
      %v5396 = vpop.permute.xlu0 %5395
      %5399 = vset.pattern.permute.xlu0 2
      %5400 = vperm.xlu0 %5399, %v5099
      %v5401 = vpop.permute.xlu0 %5400
      %5404 = vset.pattern.permute.xlu0 2
      %5405 = vperm.xlu0 %5404, %v5101
      %v5406 = vpop.permute.xlu0 %5405
      %5409 = vset.pattern.permute.xlu0 2
      %5410 = vperm.xlu0 %5409, %v5103
      %v5411 = vpop.permute.xlu0 %5410
      %5414 = vset.pattern.permute.xlu0 2
      %5415 = vperm.xlu0 %5414, %v5105
      %v5416 = vpop.permute.xlu0 %5415
      %5419 = vset.pattern.permute.xlu0 2
      %5420 = vperm.xlu0 %5419, %v5107
      %v5421 = vpop.permute.xlu0 %5420
      %5424 = vset.pattern.permute.xlu0 2
      %5425 = vperm.xlu0 %5424, %v5109
      %v5426 = vpop.permute.xlu0 %5425
      %5429 = vset.pattern.permute.xlu0 2
      %5430 = vperm.xlu0 %5429, %v5111
      %v5431 = vpop.permute.xlu0 %5430
      %v5433 = vmul.f32 %v5356, %v5337
      %v5434 = vmul.f32 %v5361, %v5338
      %v5435 = vmul.f32 %v5366, %v5339
      %v5436 = vmul.f32 %v5371, %v5340
      %v5437 = vmul.f32 %v5376, %v5341
      %v5438 = vmul.f32 %v5381, %v5342
      %v5439 = vmul.f32 %v5386, %v5343
      %v5440 = vmul.f32 %v5391, %v5344
      %v5441 = vmul.f32 %v5396, %v5345
      %v5442 = vmul.f32 %v5401, %v5346
      %v5443 = vmul.f32 %v5406, %v5347
      %v5444 = vmul.f32 %v5411, %v5348
      %v5445 = vmul.f32 %v5416, %v5349
      %v5446 = vmul.f32 %v5421, %v5350
      %v5447 = vmul.f32 %v5426, %v5351
      %v5448 = vmul.f32 %v5431, %v5352
      %v5449 = vpack.c.bf16 %v5211, %v5209
      %v5450 = vpack.c.bf16 %v5215, %v5213
      %v5451 = vpack.c.bf16 %v5219, %v5217
      %v5452 = vpack.c.bf16 %v5223, %v5221
      %v5453 = vpack.c.bf16 %v5227, %v5225
      %v5454 = vpack.c.bf16 %v5231, %v5229
      %v5455 = vpack.c.bf16 %v5235, %v5233
      %v5456 = vpack.c.bf16 %v5239, %v5237
      %5457 = vrot.lane.b32.xlu0 %v2970, 80
      %v5458 = vpop.permute.xlu0 %5457
      %5459 = vrot.lane.b32.xlu0 %v2971, 80
      %v5460 = vpop.permute.xlu0 %5459
      %5461 = vrot.lane.b32.xlu0 %v2972, 80
      %v5462 = vpop.permute.xlu0 %5461
      %5463 = vrot.lane.b32.xlu0 %v2973, 80
      %v5464 = vpop.permute.xlu0 %5463
      %5465 = vrot.lane.b32.xlu0 %v2974, 80
      %v5466 = vpop.permute.xlu0 %5465
      %5467 = vrot.lane.b32.xlu0 %v2975, 80
      %v5468 = vpop.permute.xlu0 %5467
      %5469 = vrot.lane.b32.xlu0 %v2976, 80
      %v5470 = vpop.permute.xlu0 %5469
      %5471 = vrot.lane.b32.xlu0 %v2977, 80
      %v5472 = vpop.permute.xlu0 %5471
      %5481 = vmatprep.subr.bf16.mxu0 0
      %5482 = vmatpush1.bf16.msra.mxu0 %v5472
      %5483 = vmatprep.subr.bf16.mxu0 0
      %5484 = vmatpush1.bf16.msra.mxu0 %v5470
      %5485 = vmatprep.subr.bf16.mxu0 0
      %5486 = vmatpush1.bf16.msra.mxu0 %v5468
      %5487 = vmatprep.subr.bf16.mxu0 0
      %5488 = vmatpush1.bf16.msra.mxu0 %v5466
      %5489 = vmatprep.subr.bf16.mxu0 0
      %5490 = vmatpush1.bf16.msra.mxu0 %v5464
      %5491 = vmatprep.subr.bf16.mxu0 0
      %5492 = vmatpush1.bf16.msra.mxu0 %v5462
      %5493 = vmatprep.subr.bf16.mxu0 0
      %5494 = vmatpush1.bf16.msra.mxu0 %v5460
      %5495 = vmatprep.subr.bf16.mxu0 0
      %5496 = vmatpush1.bf16.msra.mxu0 %v5458
      %5497 = vmatprep.subr.bf16.mxu0 0
      %5498 = vmatpush2.bf16.msra.mxu0 0
      %5499 = vmatprep.subr.bf16.mxu0 0
      %5500 = vmatpush2.bf16.msra.mxu0 0
      %5501 = vmatprep.subr.bf16.mxu0 0
      %5502 = vmatpush2.bf16.msra.mxu0 0
      %5503 = vmatprep.subr.bf16.mxu0 0
      %5504 = vmatpush2.bf16.msra.mxu0 0
      %5505 = vmatprep.subr.bf16.mxu0 0
      %5506 = vmatpush2.bf16.msra.mxu0 0
      %5507 = vmatprep.subr.bf16.mxu0 0
      %5508 = vmatpush2.bf16.msra.mxu0 0
      %5509 = vmatprep.subr.bf16.mxu0 0
      %5510 = vmatpush2.bf16.msra.mxu0 0
      %5511 = vmatprep.subr.bf16.mxu0 0
      %5512 = vmatpush2.bf16.msra.mxu0 0
      %5513 = vmatprep.mubr.bf16.mxu0 0
      %5514 = vmatmul.mubr.bf16.gmra.mxu0 %v5449
      %v5515 = vpop.f32.mrf.mxu0
      %v5516 = vadd.f32 0.0, %v5515
      %v5517 = vpop.f32.mrf.mxu0
      %v5518 = vpop.f32.mrf.mxu0
      %v5519 = vadd.f32 0.0, %v5518
      %v5520 = vpop.f32.mrf.mxu0
      %5521 = vmatprep.mubr.bf16.mxu0 0
      %5522 = vmatmul.mubr.bf16.gmra.mxu0 %v5450
      %v5523 = vpop.f32.mrf.mxu0
      %v5524 = vadd.f32 0.0, %v5523
      %v5525 = vpop.f32.mrf.mxu0
      %v5526 = vpop.f32.mrf.mxu0
      %v5527 = vadd.f32 0.0, %v5526
      %v5528 = vpop.f32.mrf.mxu0
      %5529 = vmatprep.mubr.bf16.mxu0 0
      %5530 = vmatmul.mubr.bf16.gmra.mxu0 %v5451
      %v5531 = vpop.f32.mrf.mxu0
      %v5532 = vadd.f32 0.0, %v5531
      %v5533 = vpop.f32.mrf.mxu0
      %v5534 = vpop.f32.mrf.mxu0
      %v5535 = vadd.f32 0.0, %v5534
      %v5536 = vpop.f32.mrf.mxu0
      %5537 = vmatprep.mubr.bf16.mxu0 0
      %5538 = vmatmul.mubr.bf16.gmra.mxu0 %v5452
      %v5539 = vpop.f32.mrf.mxu0
      %v5540 = vadd.f32 0.0, %v5539
      %v5541 = vpop.f32.mrf.mxu0
      %v5542 = vpop.f32.mrf.mxu0
      %v5543 = vadd.f32 0.0, %v5542
      %v5544 = vpop.f32.mrf.mxu0
      %5545 = vmatprep.mubr.bf16.mxu0 0
      %5546 = vmatmul.mubr.bf16.gmra.mxu0 %v5453
      %v5547 = vpop.f32.mrf.mxu0
      %v5548 = vadd.f32 0.0, %v5547
      %v5549 = vpop.f32.mrf.mxu0
      %v5550 = vpop.f32.mrf.mxu0
      %v5551 = vadd.f32 0.0, %v5550
      %v5552 = vpop.f32.mrf.mxu0
      %5553 = vmatprep.mubr.bf16.mxu0 0
      %5554 = vmatmul.mubr.bf16.gmra.mxu0 %v5454
      %v5555 = vpop.f32.mrf.mxu0
      %v5556 = vadd.f32 0.0, %v5555
      %v5557 = vpop.f32.mrf.mxu0
      %v5558 = vpop.f32.mrf.mxu0
      %v5559 = vadd.f32 0.0, %v5558
      %v5560 = vpop.f32.mrf.mxu0
      %5561 = vmatprep.mubr.bf16.mxu0 0
      %5562 = vmatmul.mubr.bf16.gmra.mxu0 %v5455
      %v5563 = vpop.f32.mrf.mxu0
      %v5564 = vadd.f32 0.0, %v5563
      %v5565 = vpop.f32.mrf.mxu0
      %v5566 = vpop.f32.mrf.mxu0
      %v5567 = vadd.f32 0.0, %v5566
      %v5568 = vpop.f32.mrf.mxu0
      %5569 = vmatprep.mubr.bf16.mxu0 0
      %5570 = vmatmul.mubr.bf16.gmra.mxu0 %v5456
      %v5571 = vpop.f32.mrf.mxu0
      %v5572 = vadd.f32 0.0, %v5571
      %v5573 = vpop.f32.mrf.mxu0
      %v5574 = vpop.f32.mrf.mxu0
      %v5575 = vadd.f32 0.0, %v5574
      %v5576 = vpop.f32.mrf.mxu0
      %5577 = vdwg.mxu0
      %5594 = vrot.lane.b32.xlu0 %v5516, 16
      %v5595 = vpop.permute.xlu0 %5594
      %5596 = vrot.lane.b32.xlu0 %v5519, 16
      %v5597 = vpop.permute.xlu0 %5596
      %5598 = vrot.lane.b32.xlu0 %v5524, 16
      %v5599 = vpop.permute.xlu0 %5598
      %5600 = vrot.lane.b32.xlu0 %v5527, 16
      %v5601 = vpop.permute.xlu0 %5600
      %5602 = vrot.lane.b32.xlu0 %v5532, 16
      %v5603 = vpop.permute.xlu0 %5602
      %5604 = vrot.lane.b32.xlu0 %v5535, 16
      %v5605 = vpop.permute.xlu0 %5604
      %5606 = vrot.lane.b32.xlu0 %v5540, 16
      %v5607 = vpop.permute.xlu0 %5606
      %5608 = vrot.lane.b32.xlu0 %v5543, 16
      %v5609 = vpop.permute.xlu0 %5608
      %5610 = vrot.lane.b32.xlu0 %v5548, 16
      %v5611 = vpop.permute.xlu0 %5610
      %5612 = vrot.lane.b32.xlu0 %v5551, 16
      %v5613 = vpop.permute.xlu0 %5612
      %5614 = vrot.lane.b32.xlu0 %v5556, 16
      %v5615 = vpop.permute.xlu0 %5614
      %5616 = vrot.lane.b32.xlu0 %v5559, 16
      %v5617 = vpop.permute.xlu0 %5616
      %5618 = vrot.lane.b32.xlu0 %v5564, 16
      %v5619 = vpop.permute.xlu0 %5618
      %5620 = vrot.lane.b32.xlu0 %v5567, 16
      %v5621 = vpop.permute.xlu0 %5620
      %5622 = vrot.lane.b32.xlu0 %v5572, 16
      %v5623 = vpop.permute.xlu0 %5622
      %5624 = vrot.lane.b32.xlu0 %v5575, 16
      %v5625 = vpop.permute.xlu0 %5624
      %v5642 = vadd.f32 %v5433, %v5595
      %v5643 = vadd.f32 %v5434, %v5597
      %v5644 = vadd.f32 %v5435, %v5599
      %v5645 = vadd.f32 %v5436, %v5601
      %v5646 = vadd.f32 %v5437, %v5603
      %v5647 = vadd.f32 %v5438, %v5605
      %v5648 = vadd.f32 %v5439, %v5607
      %v5649 = vadd.f32 %v5440, %v5609
      %v5650 = vadd.f32 %v5441, %v5611
      %v5651 = vadd.f32 %v5442, %v5613
      %v5652 = vadd.f32 %v5443, %v5615
      %v5653 = vadd.f32 %v5444, %v5617
      %v5654 = vadd.f32 %v5445, %v5619
      %v5655 = vadd.f32 %v5446, %v5621
      %v5656 = vadd.f32 %v5447, %v5623
      %v5657 = vadd.f32 %v5448, %v5625
      %vm5658 = vcmask 195712
      %5659 = vst.msk [vmem:[#allocation5] sm:$0xff] %vm5658, %v5642
      %5660 = vst.msk [vmem:[#allocation5 + $0x8] sm:$0xff] %vm5658, %v5643
      %5661 = vst.msk [vmem:[#allocation5 + $0x10] sm:$0xff] %vm5658, %v5644
      %5662 = vst.msk [vmem:[#allocation5 + $0x18] sm:$0xff] %vm5658, %v5645
      %5663 = vst.msk [vmem:[#allocation5 + $0x20] sm:$0xff] %vm5658, %v5646
      %5664 = vst.msk [vmem:[#allocation5 + $0x28] sm:$0xff] %vm5658, %v5647
      %5665 = vst.msk [vmem:[#allocation5 + $0x30] sm:$0xff] %vm5658, %v5648
      %5666 = vst.msk [vmem:[#allocation5 + $0x38] sm:$0xff] %vm5658, %v5649
      %5667 = vst.msk [vmem:[#allocation5 + $0x40] sm:$0xff] %vm5658, %v5650
      %5668 = vst.msk [vmem:[#allocation5 + $0x48] sm:$0xff] %vm5658, %v5651
      %5669 = vst.msk [vmem:[#allocation5 + $0x50] sm:$0xff] %vm5658, %v5652
      %5670 = vst.msk [vmem:[#allocation5 + $0x58] sm:$0xff] %vm5658, %v5653
      %5671 = vst.msk [vmem:[#allocation5 + $0x60] sm:$0xff] %vm5658, %v5654
      %5672 = vst.msk [vmem:[#allocation5 + $0x68] sm:$0xff] %vm5658, %v5655
      %5673 = vst.msk [vmem:[#allocation5 + $0x70] sm:$0xff] %vm5658, %v5656
      %5674 = vst.msk [vmem:[#allocation5 + $0x78] sm:$0xff] %vm5658, %v5657
      %5675 = vst.msk [vmem:[#allocation3] sm:$0xff] %vm5320, %v5048
      %5676 = vst.msk [vmem:[#allocation3 + $0x8] sm:$0xff] %vm5320, %v5049
      %5677 = vst.msk [vmem:[#allocation3 + $0x10] sm:$0xff] %vm5320, %v5050
      %5678 = vst.msk [vmem:[#allocation3 + $0x18] sm:$0xff] %vm5320, %v5051
      %5679 = vst.msk [vmem:[#allocation3 + $0x20] sm:$0xff] %vm5320, %v5052
      %5680 = vst.msk [vmem:[#allocation3 + $0x28] sm:$0xff] %vm5320, %v5053
      %5681 = vst.msk [vmem:[#allocation3 + $0x30] sm:$0xff] %vm5320, %v5054
      %5682 = vst.msk [vmem:[#allocation3 + $0x38] sm:$0xff] %vm5320, %v5055
      %5683 = vst.msk [vmem:[#allocation3 + $0x40] sm:$0xff] %vm5320, %v5056
      %5684 = vst.msk [vmem:[#allocation3 + $0x48] sm:$0xff] %vm5320, %v5057
      %5685 = vst.msk [vmem:[#allocation3 + $0x50] sm:$0xff] %vm5320, %v5058
      %5686 = vst.msk [vmem:[#allocation3 + $0x58] sm:$0xff] %vm5320, %v5059
      %5687 = vst.msk [vmem:[#allocation3 + $0x60] sm:$0xff] %vm5320, %v5060
      %5688 = vst.msk [vmem:[#allocation3 + $0x68] sm:$0xff] %vm5320, %v5061
      %5689 = vst.msk [vmem:[#allocation3 + $0x70] sm:$0xff] %vm5320, %v5062
      %5690 = vst.msk [vmem:[#allocation3 + $0x78] sm:$0xff] %vm5320, %v5063
      %5691 = vrot.lane.b32.xlu0 %v3111, 104
      %v5692 = vpop.permute.xlu0 %5691
      %5693 = vrot.lane.b32.xlu0 %v3112, 104
      %v5694 = vpop.permute.xlu0 %5693
      %5695 = vrot.lane.b32.xlu0 %v3113, 104
      %v5696 = vpop.permute.xlu0 %5695
      %5697 = vrot.lane.b32.xlu0 %v3114, 104
      %v5698 = vpop.permute.xlu0 %5697
      %5699 = vrot.lane.b32.xlu0 %v3115, 104
      %v5700 = vpop.permute.xlu0 %5699
      %5701 = vrot.lane.b32.xlu0 %v3116, 104
      %v5702 = vpop.permute.xlu0 %5701
      %5703 = vrot.lane.b32.xlu0 %v3117, 104
      %v5704 = vpop.permute.xlu0 %5703
      %5705 = vrot.lane.b32.xlu0 %v3118, 104
      %v5706 = vpop.permute.xlu0 %5705
      %5707 = vrot.lane.b32.xlu0 %v2962, 104
      %v5708 = vpop.permute.xlu0 %5707
      %5709 = vrot.lane.b32.xlu0 %v2963, 104
      %v5710 = vpop.permute.xlu0 %5709
      %5711 = vrot.lane.b32.xlu0 %v2964, 104
      %v5712 = vpop.permute.xlu0 %5711
      %5713 = vrot.lane.b32.xlu0 %v2965, 104
      %v5714 = vpop.permute.xlu0 %5713
      %5715 = vrot.lane.b32.xlu0 %v2966, 104
      %v5716 = vpop.permute.xlu0 %5715
      %5717 = vrot.lane.b32.xlu0 %v2967, 104
      %v5718 = vpop.permute.xlu0 %5717
      %5719 = vrot.lane.b32.xlu0 %v2968, 104
      %v5720 = vpop.permute.xlu0 %5719
      %5721 = vrot.lane.b32.xlu0 %v2969, 104
      %v5722 = vpop.permute.xlu0 %5721
      %v5724 = vsel %vm3119, %v5692, 0
      %v5727 = vsel %vm3119, %v5694, 0
      %v5730 = vsel %vm3119, %v5696, 0
      %v5733 = vsel %vm3119, %v5698, 0
      %v5736 = vsel %vm3119, %v5700, 0
      %v5739 = vsel %vm3119, %v5702, 0
      %v5742 = vsel %vm3119, %v5704, 0
      %v5745 = vsel %vm3119, %v5706, 0
      %v5748 = vsel %vm3119, %v5708, 0
      %v5751 = vsel %vm3119, %v5710, 0
      %v5754 = vsel %vm3119, %v5712, 0
      %v5757 = vsel %vm3119, %v5714, 0
      %v5760 = vsel %vm3119, %v5716, 0
      %v5763 = vsel %vm3119, %v5718, 0
      %v5766 = vsel %vm3119, %v5720, 0
      %v5769 = vsel %vm3119, %v5722, 0
      %5771 = vmatprep.subr.bf16.mxu0 0
      %5772 = vmatpush1.bf16.xpose.msra.mxu0 %v5769
      %5773 = vmatprep.subr.bf16.mxu0 0
      %5774 = vmatpush1.bf16.xpose.msra.mxu0 %v5766
      %5775 = vmatprep.subr.bf16.mxu0 0
      %5776 = vmatpush1.bf16.xpose.msra.mxu0 %v5763
      %5777 = vmatprep.subr.bf16.mxu0 0
      %5778 = vmatpush1.bf16.xpose.msra.mxu0 %v5760
      %5779 = vmatprep.subr.bf16.mxu0 0
      %5780 = vmatpush1.bf16.xpose.msra.mxu0 %v5757
      %5781 = vmatprep.subr.bf16.mxu0 0
      %5782 = vmatpush1.bf16.xpose.msra.mxu0 %v5754
      %5783 = vmatprep.subr.bf16.mxu0 0
      %5784 = vmatpush1.bf16.xpose.msra.mxu0 %v5751
      %5785 = vmatprep.subr.bf16.mxu0 0
      %5786 = vmatpush1.bf16.xpose.msra.mxu0 %v5748
      %5787 = vmatprep.subr.bf16.mxu0 0
      %5788 = vmatpush2.bf16.xpose.msra.mxu0 0
      %5789 = vmatprep.subr.bf16.mxu0 0
      %5790 = vmatpush2.bf16.xpose.msra.mxu0 0
      %5791 = vmatprep.subr.bf16.mxu0 0
      %5792 = vmatpush2.bf16.xpose.msra.mxu0 0
      %5793 = vmatprep.subr.bf16.mxu0 0
      %5794 = vmatpush2.bf16.xpose.msra.mxu0 0
      %5795 = vmatprep.subr.bf16.mxu0 0
      %5796 = vmatpush2.bf16.xpose.msra.mxu0 0
      %5797 = vmatprep.subr.bf16.mxu0 0
      %5798 = vmatpush2.bf16.xpose.msra.mxu0 0
      %5799 = vmatprep.subr.bf16.mxu0 0
      %5800 = vmatpush2.bf16.xpose.msra.mxu0 0
      %5801 = vmatprep.subr.bf16.mxu0 0
      %5802 = vmatpush2.bf16.xpose.msra.mxu0 0
      %5803 = vmatprep.mubr.bf16.mxu0 0
      %5804 = vmatmul.mubr.bf16.gmra.mxu0 %v5724
      %v5805 = vpop.f32.mrf.mxu0
      %v5806 = vadd.f32 0.0, %v5805
      %v5807 = vpop.f32.mrf.mxu0
      %v5808 = vpop.f32.mrf.mxu0
      %v5809 = vadd.f32 0.0, %v5808
      %v5810 = vpop.f32.mrf.mxu0
      %5811 = vmatprep.mubr.bf16.mxu0 0
      %5812 = vmatmul.mubr.bf16.gmra.mxu0 %v5727
      %v5813 = vpop.f32.mrf.mxu0
      %v5814 = vadd.f32 0.0, %v5813
      %v5815 = vpop.f32.mrf.mxu0
      %v5816 = vpop.f32.mrf.mxu0
      %v5817 = vadd.f32 0.0, %v5816
      %v5818 = vpop.f32.mrf.mxu0
      %5819 = vmatprep.mubr.bf16.mxu0 0
      %5820 = vmatmul.mubr.bf16.gmra.mxu0 %v5730
      %v5821 = vpop.f32.mrf.mxu0
      %v5822 = vadd.f32 0.0, %v5821
      %v5823 = vpop.f32.mrf.mxu0
      %v5824 = vpop.f32.mrf.mxu0
      %v5825 = vadd.f32 0.0, %v5824
      %v5826 = vpop.f32.mrf.mxu0
      %5827 = vmatprep.mubr.bf16.mxu0 0
      %5828 = vmatmul.mubr.bf16.gmra.mxu0 %v5733
      %v5829 = vpop.f32.mrf.mxu0
      %v5830 = vadd.f32 0.0, %v5829
      %v5831 = vpop.f32.mrf.mxu0
      %v5832 = vpop.f32.mrf.mxu0
      %v5833 = vadd.f32 0.0, %v5832
      %v5834 = vpop.f32.mrf.mxu0
      %5835 = vmatprep.mubr.bf16.mxu0 0
      %5836 = vmatmul.mubr.bf16.gmra.mxu0 %v5736
      %v5837 = vpop.f32.mrf.mxu0
      %v5838 = vadd.f32 0.0, %v5837
      %v5839 = vpop.f32.mrf.mxu0
      %v5840 = vpop.f32.mrf.mxu0
      %v5841 = vadd.f32 0.0, %v5840
      %v5842 = vpop.f32.mrf.mxu0
      %5843 = vmatprep.mubr.bf16.mxu0 0
      %5844 = vmatmul.mubr.bf16.gmra.mxu0 %v5739
      %v5845 = vpop.f32.mrf.mxu0
      %v5846 = vadd.f32 0.0, %v5845
      %v5847 = vpop.f32.mrf.mxu0
      %v5848 = vpop.f32.mrf.mxu0
      %v5849 = vadd.f32 0.0, %v5848
      %v5850 = vpop.f32.mrf.mxu0
      %5851 = vmatprep.mubr.bf16.mxu0 0
      %5852 = vmatmul.mubr.bf16.gmra.mxu0 %v5742
      %v5853 = vpop.f32.mrf.mxu0
      %v5854 = vadd.f32 0.0, %v5853
      %v5855 = vpop.f32.mrf.mxu0
      %v5856 = vpop.f32.mrf.mxu0
      %v5857 = vadd.f32 0.0, %v5856
      %v5858 = vpop.f32.mrf.mxu0
      %5859 = vmatprep.mubr.bf16.mxu0 0
      %5860 = vmatmul.mubr.bf16.gmra.mxu0 %v5745
      %v5861 = vpop.f32.mrf.mxu0
      %v5862 = vadd.f32 0.0, %v5861
      %v5863 = vpop.f32.mrf.mxu0
      %v5864 = vpop.f32.mrf.mxu0
      %v5865 = vadd.f32 0.0, %v5864
      %v5866 = vpop.f32.mrf.mxu0
      %5867 = vdwg.mxu0
      %v5868 = vsel %vm3047, %v5806, -1e+30
      %v5869 = vsel %vm3048, %v5809, -1e+30
      %v5870 = vsel %vm3049, %v5814, -1e+30
      %v5871 = vsel %vm3050, %v5817, -1e+30
      %v5872 = vsel %vm3051, %v5822, -1e+30
      %v5873 = vsel %vm3052, %v5825, -1e+30
      %v5874 = vsel %vm3053, %v5830, -1e+30
      %v5875 = vsel %vm3054, %v5833, -1e+30
      %v5876 = vsel %vm3055, %v5838, -1e+30
      %v5877 = vsel %vm3056, %v5841, -1e+30
      %v5878 = vsel %vm3057, %v5846, -1e+30
      %v5879 = vsel %vm3058, %v5849, -1e+30
      %v5880 = vsel %vm3059, %v5854, -1e+30
      %v5881 = vsel %vm3060, %v5857, -1e+30
      %v5882 = vsel %vm3061, %v5862, -1e+30
      %v5883 = vsel %vm3062, %v5865, -1e+30
      %v5884 = vld [vmem:[#allocation3] sm:$0xff]
      %v5885 = vld [vmem:[#allocation3 + $0x8] sm:$0xff]
      %v5886 = vld [vmem:[#allocation3 + $0x10] sm:$0xff]
      %v5887 = vld [vmem:[#allocation3 + $0x18] sm:$0xff]
      %v5888 = vld [vmem:[#allocation3 + $0x20] sm:$0xff]
      %v5889 = vld [vmem:[#allocation3 + $0x28] sm:$0xff]
      %v5890 = vld [vmem:[#allocation3 + $0x30] sm:$0xff]
      %v5891 = vld [vmem:[#allocation3 + $0x38] sm:$0xff]
      %v5892 = vld [vmem:[#allocation3 + $0x40] sm:$0xff]
      %v5893 = vld [vmem:[#allocation3 + $0x48] sm:$0xff]
      %v5894 = vld [vmem:[#allocation3 + $0x50] sm:$0xff]
      %v5895 = vld [vmem:[#allocation3 + $0x58] sm:$0xff]
      %v5896 = vld [vmem:[#allocation3 + $0x60] sm:$0xff]
      %v5897 = vld [vmem:[#allocation3 + $0x68] sm:$0xff]
      %v5898 = vld [vmem:[#allocation3 + $0x70] sm:$0xff]
      %v5899 = vld [vmem:[#allocation3 + $0x78] sm:$0xff]
      %5900 = vmax.xlane.f32.xlu0 %v5868
      %v5901 = vpop.xlane.xlu0 %5900
      %5902 = vmax.xlane.f32.xlu0 %v5869
      %v5903 = vpop.xlane.xlu0 %5902
      %5904 = vmax.xlane.f32.xlu0 %v5870
      %v5905 = vpop.xlane.xlu0 %5904
      %5906 = vmax.xlane.f32.xlu0 %v5871
      %v5907 = vpop.xlane.xlu0 %5906
      %5908 = vmax.xlane.f32.xlu0 %v5872
      %v5909 = vpop.xlane.xlu0 %5908
      %5910 = vmax.xlane.f32.xlu0 %v5873
      %v5911 = vpop.xlane.xlu0 %5910
      %5912 = vmax.xlane.f32.xlu0 %v5874
      %v5913 = vpop.xlane.xlu0 %5912
      %5914 = vmax.xlane.f32.xlu0 %v5875
      %v5915 = vpop.xlane.xlu0 %5914
      %5916 = vmax.xlane.f32.xlu0 %v5876
      %v5917 = vpop.xlane.xlu0 %5916
      %5918 = vmax.xlane.f32.xlu0 %v5877
      %v5919 = vpop.xlane.xlu0 %5918
      %5920 = vmax.xlane.f32.xlu0 %v5878
      %v5921 = vpop.xlane.xlu0 %5920
      %5922 = vmax.xlane.f32.xlu0 %v5879
      %v5923 = vpop.xlane.xlu0 %5922
      %5924 = vmax.xlane.f32.xlu0 %v5880
      %v5925 = vpop.xlane.xlu0 %5924
      %5926 = vmax.xlane.f32.xlu0 %v5881
      %v5927 = vpop.xlane.xlu0 %5926
      %5928 = vmax.xlane.f32.xlu0 %v5882
      %v5929 = vpop.xlane.xlu0 %5928
      %5930 = vmax.xlane.f32.xlu0 %v5883
      %v5931 = vpop.xlane.xlu0 %5930
      %v5932 = vmax.f32 %v5884, %v5901
      %v5933 = vmax.f32 %v5885, %v5903
      %v5934 = vmax.f32 %v5886, %v5905
      %v5935 = vmax.f32 %v5887, %v5907
      %v5936 = vmax.f32 %v5888, %v5909
      %v5937 = vmax.f32 %v5889, %v5911
      %v5938 = vmax.f32 %v5890, %v5913
      %v5939 = vmax.f32 %v5891, %v5915
      %v5940 = vmax.f32 %v5892, %v5917
      %v5941 = vmax.f32 %v5893, %v5919
      %v5942 = vmax.f32 %v5894, %v5921
      %v5943 = vmax.f32 %v5895, %v5923
      %v5944 = vmax.f32 %v5896, %v5925
      %v5945 = vmax.f32 %v5897, %v5927
      %v5946 = vmax.f32 %v5898, %v5929
      %v5947 = vmax.f32 %v5899, %v5931
      %v5948 = vsub.f32 %v5884, %v5932
      %v5949 = vsub.f32 %v5885, %v5933
      %v5950 = vsub.f32 %v5886, %v5934
      %v5951 = vsub.f32 %v5887, %v5935
      %v5952 = vsub.f32 %v5888, %v5936
      %v5953 = vsub.f32 %v5889, %v5937
      %v5954 = vsub.f32 %v5890, %v5938
      %v5955 = vsub.f32 %v5891, %v5939
      %v5956 = vsub.f32 %v5892, %v5940
      %v5957 = vsub.f32 %v5893, %v5941
      %v5958 = vsub.f32 %v5894, %v5942
      %v5959 = vsub.f32 %v5895, %v5943
      %v5960 = vsub.f32 %v5896, %v5944
      %v5961 = vsub.f32 %v5897, %v5945
      %v5962 = vsub.f32 %v5898, %v5946
      %v5963 = vsub.f32 %v5899, %v5947
      %v5964 = vmul.f32 %v5948, 1.442695
      %v5965 = vpow.pop %v5964
      %v5966 = vmul.f32 %v5949, 1.442695
      %v5967 = vpow.pop %v5966
      %v5968 = vmul.f32 %v5950, 1.442695
      %v5969 = vpow.pop %v5968
      %v5970 = vmul.f32 %v5951, 1.442695
      %v5971 = vpow.pop %v5970
      %v5972 = vmul.f32 %v5952, 1.442695
      %v5973 = vpow.pop %v5972
      %v5974 = vmul.f32 %v5953, 1.442695
      %v5975 = vpow.pop %v5974
      %v5976 = vmul.f32 %v5954, 1.442695
      %v5977 = vpow.pop %v5976
      %v5978 = vmul.f32 %v5955, 1.442695
      %v5979 = vpow.pop %v5978
      %v5980 = vmul.f32 %v5956, 1.442695
      %v5981 = vpow.pop %v5980
      %v5982 = vmul.f32 %v5957, 1.442695
      %v5983 = vpow.pop %v5982
      %v5984 = vmul.f32 %v5958, 1.442695
      %v5985 = vpow.pop %v5984
      %v5986 = vmul.f32 %v5959, 1.442695
      %v5987 = vpow.pop %v5986
      %v5988 = vmul.f32 %v5960, 1.442695
      %v5989 = vpow.pop %v5988
      %v5990 = vmul.f32 %v5961, 1.442695
      %v5991 = vpow.pop %v5990
      %v5992 = vmul.f32 %v5962, 1.442695
      %v5993 = vpow.pop %v5992
      %v5994 = vmul.f32 %v5963, 1.442695
      %v5995 = vpow.pop %v5994
      %5997 = vset.pattern.permute.xlu0 3
      %5998 = vperm.xlu0 %5997, %v5932
      %v5999 = vpop.permute.xlu0 %5998
      %6002 = vset.pattern.permute.xlu0 3
      %6003 = vperm.xlu0 %6002, %v5933
      %v6004 = vpop.permute.xlu0 %6003
      %6007 = vset.pattern.permute.xlu0 3
      %6008 = vperm.xlu0 %6007, %v5934
      %v6009 = vpop.permute.xlu0 %6008
      %6012 = vset.pattern.permute.xlu0 3
      %6013 = vperm.xlu0 %6012, %v5935
      %v6014 = vpop.permute.xlu0 %6013
      %6017 = vset.pattern.permute.xlu0 3
      %6018 = vperm.xlu0 %6017, %v5936
      %v6019 = vpop.permute.xlu0 %6018
      %6022 = vset.pattern.permute.xlu0 3
      %6023 = vperm.xlu0 %6022, %v5937
      %v6024 = vpop.permute.xlu0 %6023
      %6027 = vset.pattern.permute.xlu0 3
      %6028 = vperm.xlu0 %6027, %v5938
      %v6029 = vpop.permute.xlu0 %6028
      %6032 = vset.pattern.permute.xlu0 3
      %6033 = vperm.xlu0 %6032, %v5939
      %v6034 = vpop.permute.xlu0 %6033
      %6037 = vset.pattern.permute.xlu0 3
      %6038 = vperm.xlu0 %6037, %v5940
      %v6039 = vpop.permute.xlu0 %6038
      %6042 = vset.pattern.permute.xlu0 3
      %6043 = vperm.xlu0 %6042, %v5941
      %v6044 = vpop.permute.xlu0 %6043
      %6047 = vset.pattern.permute.xlu0 3
      %6048 = vperm.xlu0 %6047, %v5942
      %v6049 = vpop.permute.xlu0 %6048
      %6052 = vset.pattern.permute.xlu0 3
      %6053 = vperm.xlu0 %6052, %v5943
      %v6054 = vpop.permute.xlu0 %6053
      %6057 = vset.pattern.permute.xlu0 3
      %6058 = vperm.xlu0 %6057, %v5944
      %v6059 = vpop.permute.xlu0 %6058
      %6062 = vset.pattern.permute.xlu0 3
      %6063 = vperm.xlu0 %6062, %v5945
      %v6064 = vpop.permute.xlu0 %6063
      %6067 = vset.pattern.permute.xlu0 3
      %6068 = vperm.xlu0 %6067, %v5946
      %v6069 = vpop.permute.xlu0 %6068
      %6072 = vset.pattern.permute.xlu0 3
      %6073 = vperm.xlu0 %6072, %v5947
      %v6074 = vpop.permute.xlu0 %6073
      %v6076 = vsub.f32 %v5868, %v5999
      %v6077 = vsub.f32 %v5869, %v6004
      %v6078 = vsub.f32 %v5870, %v6009
      %v6079 = vsub.f32 %v5871, %v6014
      %v6080 = vsub.f32 %v5872, %v6019
      %v6081 = vsub.f32 %v5873, %v6024
      %v6082 = vsub.f32 %v5874, %v6029
      %v6083 = vsub.f32 %v5875, %v6034
      %v6084 = vsub.f32 %v5876, %v6039
      %v6085 = vsub.f32 %v5877, %v6044
      %v6086 = vsub.f32 %v5878, %v6049
      %v6087 = vsub.f32 %v5879, %v6054
      %v6088 = vsub.f32 %v5880, %v6059
      %v6089 = vsub.f32 %v5881, %v6064
      %v6090 = vsub.f32 %v5882, %v6069
      %v6091 = vsub.f32 %v5883, %v6074
      %v6092 = vmul.f32 %v6076, 1.442695
      %v6093 = vpow.pop %v6092
      %v6094 = vmul.f32 %v6077, 1.442695
      %v6095 = vpow.pop %v6094
      %v6096 = vmul.f32 %v6078, 1.442695
      %v6097 = vpow.pop %v6096
      %v6098 = vmul.f32 %v6079, 1.442695
      %v6099 = vpow.pop %v6098
      %v6100 = vmul.f32 %v6080, 1.442695
      %v6101 = vpow.pop %v6100
      %v6102 = vmul.f32 %v6081, 1.442695
      %v6103 = vpow.pop %v6102
      %v6104 = vmul.f32 %v6082, 1.442695
      %v6105 = vpow.pop %v6104
      %v6106 = vmul.f32 %v6083, 1.442695
      %v6107 = vpow.pop %v6106
      %v6108 = vmul.f32 %v6084, 1.442695
      %v6109 = vpow.pop %v6108
      %v6110 = vmul.f32 %v6085, 1.442695
      %v6111 = vpow.pop %v6110
      %v6112 = vmul.f32 %v6086, 1.442695
      %v6113 = vpow.pop %v6112
      %v6114 = vmul.f32 %v6087, 1.442695
      %v6115 = vpow.pop %v6114
      %v6116 = vmul.f32 %v6088, 1.442695
      %v6117 = vpow.pop %v6116
      %v6118 = vmul.f32 %v6089, 1.442695
      %v6119 = vpow.pop %v6118
      %v6120 = vmul.f32 %v6090, 1.442695
      %v6121 = vpow.pop %v6120
      %v6122 = vmul.f32 %v6091, 1.442695
      %v6123 = vpow.pop %v6122
      %v6124 = vld [vmem:[#allocation4] sm:$0xff]
      %v6125 = vld [vmem:[#allocation4 + $0x8] sm:$0xff]
      %v6126 = vld [vmem:[#allocation4 + $0x10] sm:$0xff]
      %v6127 = vld [vmem:[#allocation4 + $0x18] sm:$0xff]
      %v6128 = vld [vmem:[#allocation4 + $0x20] sm:$0xff]
      %v6129 = vld [vmem:[#allocation4 + $0x28] sm:$0xff]
      %v6130 = vld [vmem:[#allocation4 + $0x30] sm:$0xff]
      %v6131 = vld [vmem:[#allocation4 + $0x38] sm:$0xff]
      %v6132 = vld [vmem:[#allocation4 + $0x40] sm:$0xff]
      %v6133 = vld [vmem:[#allocation4 + $0x48] sm:$0xff]
      %v6134 = vld [vmem:[#allocation4 + $0x50] sm:$0xff]
      %v6135 = vld [vmem:[#allocation4 + $0x58] sm:$0xff]
      %v6136 = vld [vmem:[#allocation4 + $0x60] sm:$0xff]
      %v6137 = vld [vmem:[#allocation4 + $0x68] sm:$0xff]
      %v6138 = vld [vmem:[#allocation4 + $0x70] sm:$0xff]
      %v6139 = vld [vmem:[#allocation4 + $0x78] sm:$0xff]
      %v6140 = vmul.f32 %v5965, %v6124
      %v6141 = vmul.f32 %v5967, %v6125
      %v6142 = vmul.f32 %v5969, %v6126
      %v6143 = vmul.f32 %v5971, %v6127
      %v6144 = vmul.f32 %v5973, %v6128
      %v6145 = vmul.f32 %v5975, %v6129
      %v6146 = vmul.f32 %v5977, %v6130
      %v6147 = vmul.f32 %v5979, %v6131
      %v6148 = vmul.f32 %v5981, %v6132
      %v6149 = vmul.f32 %v5983, %v6133
      %v6150 = vmul.f32 %v5985, %v6134
      %v6151 = vmul.f32 %v5987, %v6135
      %v6152 = vmul.f32 %v5989, %v6136
      %v6153 = vmul.f32 %v5991, %v6137
      %v6154 = vmul.f32 %v5993, %v6138
      %v6155 = vmul.f32 %v5995, %v6139
      %6156 = vadd.xlane.f32.xlu0 %v6093
      %v6157 = vpop.xlane.xlu0 %6156
      %6158 = vadd.xlane.f32.xlu0 %v6095
      %v6159 = vpop.xlane.xlu0 %6158
      %6160 = vadd.xlane.f32.xlu0 %v6097
      %v6161 = vpop.xlane.xlu0 %6160
      %6162 = vadd.xlane.f32.xlu0 %v6099
      %v6163 = vpop.xlane.xlu0 %6162
      %6164 = vadd.xlane.f32.xlu0 %v6101
      %v6165 = vpop.xlane.xlu0 %6164
      %6166 = vadd.xlane.f32.xlu0 %v6103
      %v6167 = vpop.xlane.xlu0 %6166
      %6168 = vadd.xlane.f32.xlu0 %v6105
      %v6169 = vpop.xlane.xlu0 %6168
      %6170 = vadd.xlane.f32.xlu0 %v6107
      %v6171 = vpop.xlane.xlu0 %6170
      %6172 = vadd.xlane.f32.xlu0 %v6109
      %v6173 = vpop.xlane.xlu0 %6172
      %6174 = vadd.xlane.f32.xlu0 %v6111
      %v6175 = vpop.xlane.xlu0 %6174
      %6176 = vadd.xlane.f32.xlu0 %v6113
      %v6177 = vpop.xlane.xlu0 %6176
      %6178 = vadd.xlane.f32.xlu0 %v6115
      %v6179 = vpop.xlane.xlu0 %6178
      %6180 = vadd.xlane.f32.xlu0 %v6117
      %v6181 = vpop.xlane.xlu0 %6180
      %6182 = vadd.xlane.f32.xlu0 %v6119
      %v6183 = vpop.xlane.xlu0 %6182
      %6184 = vadd.xlane.f32.xlu0 %v6121
      %v6185 = vpop.xlane.xlu0 %6184
      %6186 = vadd.xlane.f32.xlu0 %v6123
      %v6187 = vpop.xlane.xlu0 %6186
      %v6188 = vadd.f32 %v6140, %v6157
      %v6189 = vadd.f32 %v6141, %v6159
      %v6190 = vadd.f32 %v6142, %v6161
      %v6191 = vadd.f32 %v6143, %v6163
      %v6192 = vadd.f32 %v6144, %v6165
      %v6193 = vadd.f32 %v6145, %v6167
      %v6194 = vadd.f32 %v6146, %v6169
      %v6195 = vadd.f32 %v6147, %v6171
      %v6196 = vadd.f32 %v6148, %v6173
      %v6197 = vadd.f32 %v6149, %v6175
      %v6198 = vadd.f32 %v6150, %v6177
      %v6199 = vadd.f32 %v6151, %v6179
      %v6200 = vadd.f32 %v6152, %v6181
      %v6201 = vadd.f32 %v6153, %v6183
      %v6202 = vadd.f32 %v6154, %v6185
      %v6203 = vadd.f32 %v6155, %v6187
      %vm6204 = vcmask 31768
      %6205 = vst.msk [vmem:[#allocation4] sm:$0xff] %vm6204, %v6188
      %6206 = vst.msk [vmem:[#allocation4 + $0x8] sm:$0xff] %vm6204, %v6189
      %6207 = vst.msk [vmem:[#allocation4 + $0x10] sm:$0xff] %vm6204, %v6190
      %6208 = vst.msk [vmem:[#allocation4 + $0x18] sm:$0xff] %vm6204, %v6191
      %6209 = vst.msk [vmem:[#allocation4 + $0x20] sm:$0xff] %vm6204, %v6192
      %6210 = vst.msk [vmem:[#allocation4 + $0x28] sm:$0xff] %vm6204, %v6193
      %6211 = vst.msk [vmem:[#allocation4 + $0x30] sm:$0xff] %vm6204, %v6194
      %6212 = vst.msk [vmem:[#allocation4 + $0x38] sm:$0xff] %vm6204, %v6195
      %6213 = vst.msk [vmem:[#allocation4 + $0x40] sm:$0xff] %vm6204, %v6196
      %6214 = vst.msk [vmem:[#allocation4 + $0x48] sm:$0xff] %vm6204, %v6197
      %6215 = vst.msk [vmem:[#allocation4 + $0x50] sm:$0xff] %vm6204, %v6198
      %6216 = vst.msk [vmem:[#allocation4 + $0x58] sm:$0xff] %vm6204, %v6199
      %6217 = vst.msk [vmem:[#allocation4 + $0x60] sm:$0xff] %vm6204, %v6200
      %6218 = vst.msk [vmem:[#allocation4 + $0x68] sm:$0xff] %vm6204, %v6201
      %6219 = vst.msk [vmem:[#allocation4 + $0x70] sm:$0xff] %vm6204, %v6202
      %6220 = vst.msk [vmem:[#allocation4 + $0x78] sm:$0xff] %vm6204, %v6203
      %v6221 = vld [vmem:[#allocation5] sm:$0xff]
      %v6222 = vld [vmem:[#allocation5 + $0x8] sm:$0xff]
      %v6223 = vld [vmem:[#allocation5 + $0x10] sm:$0xff]
      %v6224 = vld [vmem:[#allocation5 + $0x18] sm:$0xff]
      %v6225 = vld [vmem:[#allocation5 + $0x20] sm:$0xff]
      %v6226 = vld [vmem:[#allocation5 + $0x28] sm:$0xff]
      %v6227 = vld [vmem:[#allocation5 + $0x30] sm:$0xff]
      %v6228 = vld [vmem:[#allocation5 + $0x38] sm:$0xff]
      %v6229 = vld [vmem:[#allocation5 + $0x40] sm:$0xff]
      %v6230 = vld [vmem:[#allocation5 + $0x48] sm:$0xff]
      %v6231 = vld [vmem:[#allocation5 + $0x50] sm:$0xff]
      %v6232 = vld [vmem:[#allocation5 + $0x58] sm:$0xff]
      %v6233 = vld [vmem:[#allocation5 + $0x60] sm:$0xff]
      %v6234 = vld [vmem:[#allocation5 + $0x68] sm:$0xff]
      %v6235 = vld [vmem:[#allocation5 + $0x70] sm:$0xff]
      %v6236 = vld [vmem:[#allocation5 + $0x78] sm:$0xff]
      %6238 = vset.pattern.permute.xlu0 3
      %6239 = vperm.xlu0 %6238, %v5965
      %v6240 = vpop.permute.xlu0 %6239
      %6243 = vset.pattern.permute.xlu0 3
      %6244 = vperm.xlu0 %6243, %v5967
      %v6245 = vpop.permute.xlu0 %6244
      %6248 = vset.pattern.permute.xlu0 3
      %6249 = vperm.xlu0 %6248, %v5969
      %v6250 = vpop.permute.xlu0 %6249
      %6253 = vset.pattern.permute.xlu0 3
      %6254 = vperm.xlu0 %6253, %v5971
      %v6255 = vpop.permute.xlu0 %6254
      %6258 = vset.pattern.permute.xlu0 3
      %6259 = vperm.xlu0 %6258, %v5973
      %v6260 = vpop.permute.xlu0 %6259
      %6263 = vset.pattern.permute.xlu0 3
      %6264 = vperm.xlu0 %6263, %v5975
      %v6265 = vpop.permute.xlu0 %6264
      %6268 = vset.pattern.permute.xlu0 3
      %6269 = vperm.xlu0 %6268, %v5977
      %v6270 = vpop.permute.xlu0 %6269
      %6273 = vset.pattern.permute.xlu0 3
      %6274 = vperm.xlu0 %6273, %v5979
      %v6275 = vpop.permute.xlu0 %6274
      %6278 = vset.pattern.permute.xlu0 3
      %6279 = vperm.xlu0 %6278, %v5981
      %v6280 = vpop.permute.xlu0 %6279
      %6283 = vset.pattern.permute.xlu0 3
      %6284 = vperm.xlu0 %6283, %v5983
      %v6285 = vpop.permute.xlu0 %6284
      %6288 = vset.pattern.permute.xlu0 3
      %6289 = vperm.xlu0 %6288, %v5985
      %v6290 = vpop.permute.xlu0 %6289
      %6293 = vset.pattern.permute.xlu0 3
      %6294 = vperm.xlu0 %6293, %v5987
      %v6295 = vpop.permute.xlu0 %6294
      %6298 = vset.pattern.permute.xlu0 3
      %6299 = vperm.xlu0 %6298, %v5989
      %v6300 = vpop.permute.xlu0 %6299
      %6303 = vset.pattern.permute.xlu0 3
      %6304 = vperm.xlu0 %6303, %v5991
      %v6305 = vpop.permute.xlu0 %6304
      %6308 = vset.pattern.permute.xlu0 3
      %6309 = vperm.xlu0 %6308, %v5993
      %v6310 = vpop.permute.xlu0 %6309
      %6313 = vset.pattern.permute.xlu0 3
      %6314 = vperm.xlu0 %6313, %v5995
      %v6315 = vpop.permute.xlu0 %6314
      %v6317 = vmul.f32 %v6240, %v6221
      %v6318 = vmul.f32 %v6245, %v6222
      %v6319 = vmul.f32 %v6250, %v6223
      %v6320 = vmul.f32 %v6255, %v6224
      %v6321 = vmul.f32 %v6260, %v6225
      %v6322 = vmul.f32 %v6265, %v6226
      %v6323 = vmul.f32 %v6270, %v6227
      %v6324 = vmul.f32 %v6275, %v6228
      %v6325 = vmul.f32 %v6280, %v6229
      %v6326 = vmul.f32 %v6285, %v6230
      %v6327 = vmul.f32 %v6290, %v6231
      %v6328 = vmul.f32 %v6295, %v6232
      %v6329 = vmul.f32 %v6300, %v6233
      %v6330 = vmul.f32 %v6305, %v6234
      %v6331 = vmul.f32 %v6310, %v6235
      %v6332 = vmul.f32 %v6315, %v6236
      %v6333 = vpack.c.bf16 %v6095, %v6093
      %v6334 = vpack.c.bf16 %v6099, %v6097
      %v6335 = vpack.c.bf16 %v6103, %v6101
      %v6336 = vpack.c.bf16 %v6107, %v6105
      %v6337 = vpack.c.bf16 %v6111, %v6109
      %v6338 = vpack.c.bf16 %v6115, %v6113
      %v6339 = vpack.c.bf16 %v6119, %v6117
      %v6340 = vpack.c.bf16 %v6123, %v6121
      %6341 = vrot.lane.b32.xlu0 %v2970, 72
      %v6342 = vpop.permute.xlu0 %6341
      %6343 = vrot.lane.b32.xlu0 %v2971, 72
      %v6344 = vpop.permute.xlu0 %6343
      %6345 = vrot.lane.b32.xlu0 %v2972, 72
      %v6346 = vpop.permute.xlu0 %6345
      %6347 = vrot.lane.b32.xlu0 %v2973, 72
      %v6348 = vpop.permute.xlu0 %6347
      %6349 = vrot.lane.b32.xlu0 %v2974, 72
      %v6350 = vpop.permute.xlu0 %6349
      %6351 = vrot.lane.b32.xlu0 %v2975, 72
      %v6352 = vpop.permute.xlu0 %6351
      %6353 = vrot.lane.b32.xlu0 %v2976, 72
      %v6354 = vpop.permute.xlu0 %6353
      %6355 = vrot.lane.b32.xlu0 %v2977, 72
      %v6356 = vpop.permute.xlu0 %6355
      %6365 = vmatprep.subr.bf16.mxu0 0
      %6366 = vmatpush1.bf16.msra.mxu0 %v6356
      %6367 = vmatprep.subr.bf16.mxu0 0
      %6368 = vmatpush1.bf16.msra.mxu0 %v6354
      %6369 = vmatprep.subr.bf16.mxu0 0
      %6370 = vmatpush1.bf16.msra.mxu0 %v6352
      %6371 = vmatprep.subr.bf16.mxu0 0
      %6372 = vmatpush1.bf16.msra.mxu0 %v6350
      %6373 = vmatprep.subr.bf16.mxu0 0
      %6374 = vmatpush1.bf16.msra.mxu0 %v6348
      %6375 = vmatprep.subr.bf16.mxu0 0
      %6376 = vmatpush1.bf16.msra.mxu0 %v6346
      %6377 = vmatprep.subr.bf16.mxu0 0
      %6378 = vmatpush1.bf16.msra.mxu0 %v6344
      %6379 = vmatprep.subr.bf16.mxu0 0
      %6380 = vmatpush1.bf16.msra.mxu0 %v6342
      %6381 = vmatprep.subr.bf16.mxu0 0
      %6382 = vmatpush2.bf16.msra.mxu0 0
      %6383 = vmatprep.subr.bf16.mxu0 0
      %6384 = vmatpush2.bf16.msra.mxu0 0
      %6385 = vmatprep.subr.bf16.mxu0 0
      %6386 = vmatpush2.bf16.msra.mxu0 0
      %6387 = vmatprep.subr.bf16.mxu0 0
      %6388 = vmatpush2.bf16.msra.mxu0 0
      %6389 = vmatprep.subr.bf16.mxu0 0
      %6390 = vmatpush2.bf16.msra.mxu0 0
      %6391 = vmatprep.subr.bf16.mxu0 0
      %6392 = vmatpush2.bf16.msra.mxu0 0
      %6393 = vmatprep.subr.bf16.mxu0 0
      %6394 = vmatpush2.bf16.msra.mxu0 0
      %6395 = vmatprep.subr.bf16.mxu0 0
      %6396 = vmatpush2.bf16.msra.mxu0 0
      %6397 = vmatprep.mubr.bf16.mxu0 0
      %6398 = vmatmul.mubr.bf16.gmra.mxu0 %v6333
      %v6399 = vpop.f32.mrf.mxu0
      %v6400 = vadd.f32 0.0, %v6399
      %v6401 = vpop.f32.mrf.mxu0
      %v6402 = vpop.f32.mrf.mxu0
      %v6403 = vadd.f32 0.0, %v6402
      %v6404 = vpop.f32.mrf.mxu0
      %6405 = vmatprep.mubr.bf16.mxu0 0
      %6406 = vmatmul.mubr.bf16.gmra.mxu0 %v6334
      %v6407 = vpop.f32.mrf.mxu0
      %v6408 = vadd.f32 0.0, %v6407
      %v6409 = vpop.f32.mrf.mxu0
      %v6410 = vpop.f32.mrf.mxu0
      %v6411 = vadd.f32 0.0, %v6410
      %v6412 = vpop.f32.mrf.mxu0
      %6413 = vmatprep.mubr.bf16.mxu0 0
      %6414 = vmatmul.mubr.bf16.gmra.mxu0 %v6335
      %v6415 = vpop.f32.mrf.mxu0
      %v6416 = vadd.f32 0.0, %v6415
      %v6417 = vpop.f32.mrf.mxu0
      %v6418 = vpop.f32.mrf.mxu0
      %v6419 = vadd.f32 0.0, %v6418
      %v6420 = vpop.f32.mrf.mxu0
      %6421 = vmatprep.mubr.bf16.mxu0 0
      %6422 = vmatmul.mubr.bf16.gmra.mxu0 %v6336
      %v6423 = vpop.f32.mrf.mxu0
      %v6424 = vadd.f32 0.0, %v6423
      %v6425 = vpop.f32.mrf.mxu0
      %v6426 = vpop.f32.mrf.mxu0
      %v6427 = vadd.f32 0.0, %v6426
      %v6428 = vpop.f32.mrf.mxu0
      %6429 = vmatprep.mubr.bf16.mxu0 0
      %6430 = vmatmul.mubr.bf16.gmra.mxu0 %v6337
      %v6431 = vpop.f32.mrf.mxu0
      %v6432 = vadd.f32 0.0, %v6431
      %v6433 = vpop.f32.mrf.mxu0
      %v6434 = vpop.f32.mrf.mxu0
      %v6435 = vadd.f32 0.0, %v6434
      %v6436 = vpop.f32.mrf.mxu0
      %6437 = vmatprep.mubr.bf16.mxu0 0
      %6438 = vmatmul.mubr.bf16.gmra.mxu0 %v6338
      %v6439 = vpop.f32.mrf.mxu0
      %v6440 = vadd.f32 0.0, %v6439
      %v6441 = vpop.f32.mrf.mxu0
      %v6442 = vpop.f32.mrf.mxu0
      %v6443 = vadd.f32 0.0, %v6442
      %v6444 = vpop.f32.mrf.mxu0
      %6445 = vmatprep.mubr.bf16.mxu0 0
      %6446 = vmatmul.mubr.bf16.gmra.mxu0 %v6339
      %v6447 = vpop.f32.mrf.mxu0
      %v6448 = vadd.f32 0.0, %v6447
      %v6449 = vpop.f32.mrf.mxu0
      %v6450 = vpop.f32.mrf.mxu0
      %v6451 = vadd.f32 0.0, %v6450
      %v6452 = vpop.f32.mrf.mxu0
      %6453 = vmatprep.mubr.bf16.mxu0 0
      %6454 = vmatmul.mubr.bf16.gmra.mxu0 %v6340
      %v6455 = vpop.f32.mrf.mxu0
      %v6456 = vadd.f32 0.0, %v6455
      %v6457 = vpop.f32.mrf.mxu0
      %v6458 = vpop.f32.mrf.mxu0
      %v6459 = vadd.f32 0.0, %v6458
      %v6460 = vpop.f32.mrf.mxu0
      %6461 = vdwg.mxu0
      %6478 = vrot.lane.b32.xlu0 %v6400, 24
      %v6479 = vpop.permute.xlu0 %6478
      %6480 = vrot.lane.b32.xlu0 %v6403, 24
      %v6481 = vpop.permute.xlu0 %6480
      %6482 = vrot.lane.b32.xlu0 %v6408, 24
      %v6483 = vpop.permute.xlu0 %6482
      %6484 = vrot.lane.b32.xlu0 %v6411, 24
      %v6485 = vpop.permute.xlu0 %6484
      %6486 = vrot.lane.b32.xlu0 %v6416, 24
      %v6487 = vpop.permute.xlu0 %6486
      %6488 = vrot.lane.b32.xlu0 %v6419, 24
      %v6489 = vpop.permute.xlu0 %6488
      %6490 = vrot.lane.b32.xlu0 %v6424, 24
      %v6491 = vpop.permute.xlu0 %6490
      %6492 = vrot.lane.b32.xlu0 %v6427, 24
      %v6493 = vpop.permute.xlu0 %6492
      %6494 = vrot.lane.b32.xlu0 %v6432, 24
      %v6495 = vpop.permute.xlu0 %6494
      %6496 = vrot.lane.b32.xlu0 %v6435, 24
      %v6497 = vpop.permute.xlu0 %6496
      %6498 = vrot.lane.b32.xlu0 %v6440, 24
      %v6499 = vpop.permute.xlu0 %6498
      %6500 = vrot.lane.b32.xlu0 %v6443, 24
      %v6501 = vpop.permute.xlu0 %6500
      %6502 = vrot.lane.b32.xlu0 %v6448, 24
      %v6503 = vpop.permute.xlu0 %6502
      %6504 = vrot.lane.b32.xlu0 %v6451, 24
      %v6505 = vpop.permute.xlu0 %6504
      %6506 = vrot.lane.b32.xlu0 %v6456, 24
      %v6507 = vpop.permute.xlu0 %6506
      %6508 = vrot.lane.b32.xlu0 %v6459, 24
      %v6509 = vpop.permute.xlu0 %6508
      %v6526 = vadd.f32 %v6317, %v6479
      %v6527 = vadd.f32 %v6318, %v6481
      %v6528 = vadd.f32 %v6319, %v6483
      %v6529 = vadd.f32 %v6320, %v6485
      %v6530 = vadd.f32 %v6321, %v6487
      %v6531 = vadd.f32 %v6322, %v6489
      %v6532 = vadd.f32 %v6323, %v6491
      %v6533 = vadd.f32 %v6324, %v6493
      %v6534 = vadd.f32 %v6325, %v6495
      %v6535 = vadd.f32 %v6326, %v6497
      %v6536 = vadd.f32 %v6327, %v6499
      %v6537 = vadd.f32 %v6328, %v6501
      %v6538 = vadd.f32 %v6329, %v6503
      %v6539 = vadd.f32 %v6330, %v6505
      %v6540 = vadd.f32 %v6331, %v6507
      %v6541 = vadd.f32 %v6332, %v6509
      %vm6542 = vcmask 261312
      %6543 = vst.msk [vmem:[#allocation5] sm:$0xff] %vm6542, %v6526
      %6544 = vst.msk [vmem:[#allocation5 + $0x8] sm:$0xff] %vm6542, %v6527
      %6545 = vst.msk [vmem:[#allocation5 + $0x10] sm:$0xff] %vm6542, %v6528
      %6546 = vst.msk [vmem:[#allocation5 + $0x18] sm:$0xff] %vm6542, %v6529
      %6547 = vst.msk [vmem:[#allocation5 + $0x20] sm:$0xff] %vm6542, %v6530
      %6548 = vst.msk [vmem:[#allocation5 + $0x28] sm:$0xff] %vm6542, %v6531
      %6549 = vst.msk [vmem:[#allocation5 + $0x30] sm:$0xff] %vm6542, %v6532
      %6550 = vst.msk [vmem:[#allocation5 + $0x38] sm:$0xff] %vm6542, %v6533
      %6551 = vst.msk [vmem:[#allocation5 + $0x40] sm:$0xff] %vm6542, %v6534
      %6552 = vst.msk [vmem:[#allocation5 + $0x48] sm:$0xff] %vm6542, %v6535
      %6553 = vst.msk [vmem:[#allocation5 + $0x50] sm:$0xff] %vm6542, %v6536
      %6554 = vst.msk [vmem:[#allocation5 + $0x58] sm:$0xff] %vm6542, %v6537
      %6555 = vst.msk [vmem:[#allocation5 + $0x60] sm:$0xff] %vm6542, %v6538
      %6556 = vst.msk [vmem:[#allocation5 + $0x68] sm:$0xff] %vm6542, %v6539
      %6557 = vst.msk [vmem:[#allocation5 + $0x70] sm:$0xff] %vm6542, %v6540
      %6558 = vst.msk [vmem:[#allocation5 + $0x78] sm:$0xff] %vm6542, %v6541
      %6559 = vst.msk [vmem:[#allocation3] sm:$0xff] %vm6204, %v5932
      %6560 = vst.msk [vmem:[#allocation3 + $0x8] sm:$0xff] %vm6204, %v5933
      %6561 = vst.msk [vmem:[#allocation3 + $0x10] sm:$0xff] %vm6204, %v5934
      %6562 = vst.msk [vmem:[#allocation3 + $0x18] sm:$0xff] %vm6204, %v5935
      %6563 = vst.msk [vmem:[#allocation3 + $0x20] sm:$0xff] %vm6204, %v5936
      %6564 = vst.msk [vmem:[#allocation3 + $0x28] sm:$0xff] %vm6204, %v5937
      %6565 = vst.msk [vmem:[#allocation3 + $0x30] sm:$0xff] %vm6204, %v5938
      %6566 = vst.msk [vmem:[#allocation3 + $0x38] sm:$0xff] %vm6204, %v5939
      %6567 = vst.msk [vmem:[#allocation3 + $0x40] sm:$0xff] %vm6204, %v5940
      %6568 = vst.msk [vmem:[#allocation3 + $0x48] sm:$0xff] %vm6204, %v5941
      %6569 = vst.msk [vmem:[#allocation3 + $0x50] sm:$0xff] %vm6204, %v5942
      %6570 = vst.msk [vmem:[#allocation3 + $0x58] sm:$0xff] %vm6204, %v5943
      %6571 = vst.msk [vmem:[#allocation3 + $0x60] sm:$0xff] %vm6204, %v5944
      %6572 = vst.msk [vmem:[#allocation3 + $0x68] sm:$0xff] %vm6204, %v5945
      %6573 = vst.msk [vmem:[#allocation3 + $0x70] sm:$0xff] %vm6204, %v5946
      %6574 = vst.msk [vmem:[#allocation3 + $0x78] sm:$0xff] %vm6204, %v5947
      %p6575 = scmp.eq.s32.totalorder %s33, 1
      // Predicated region
      $region93: #{tpu_custom_call.1} parent=87 // pred_check
        %p6576 = pneg %p6575
      $region94: #{tpu_custom_call.1} parent=87 // pred_check_branch
        %6578 = sbr.rel (%p6576) target = $region96
      $region95: #{tpu_custom_call.1} parent=87 // pred_region
        %v6579 = vld [vmem:[#allocation5] sm:$0xff]
        %v6580 = vld [vmem:[#allocation5 + $0x8] sm:$0xff]
        %v6581 = vld [vmem:[#allocation5 + $0x10] sm:$0xff]
        %v6582 = vld [vmem:[#allocation5 + $0x18] sm:$0xff]
        %v6583 = vld [vmem:[#allocation5 + $0x20] sm:$0xff]
        %v6584 = vld [vmem:[#allocation5 + $0x28] sm:$0xff]
        %v6585 = vld [vmem:[#allocation5 + $0x30] sm:$0xff]
        %v6586 = vld [vmem:[#allocation5 + $0x38] sm:$0xff]
        %v6587 = vld [vmem:[#allocation5 + $0x40] sm:$0xff]
        %v6588 = vld [vmem:[#allocation5 + $0x48] sm:$0xff]
        %v6589 = vld [vmem:[#allocation5 + $0x50] sm:$0xff]
        %v6590 = vld [vmem:[#allocation5 + $0x58] sm:$0xff]
        %v6591 = vld [vmem:[#allocation5 + $0x60] sm:$0xff]
        %v6592 = vld [vmem:[#allocation5 + $0x68] sm:$0xff]
        %v6593 = vld [vmem:[#allocation5 + $0x70] sm:$0xff]
        %v6594 = vld [vmem:[#allocation5 + $0x78] sm:$0xff]
        %v6595 = vld [vmem:[#allocation4] sm:$0xff]
        %v6596 = vld [vmem:[#allocation4 + $0x8] sm:$0xff]
        %v6597 = vld [vmem:[#allocation4 + $0x10] sm:$0xff]
        %v6598 = vld [vmem:[#allocation4 + $0x18] sm:$0xff]
        %v6599 = vld [vmem:[#allocation4 + $0x20] sm:$0xff]
        %v6600 = vld [vmem:[#allocation4 + $0x28] sm:$0xff]
        %v6601 = vld [vmem:[#allocation4 + $0x30] sm:$0xff]
        %v6602 = vld [vmem:[#allocation4 + $0x38] sm:$0xff]
        %v6603 = vld [vmem:[#allocation4 + $0x40] sm:$0xff]
        %v6604 = vld [vmem:[#allocation4 + $0x48] sm:$0xff]
        %v6605 = vld [vmem:[#allocation4 + $0x50] sm:$0xff]
        %v6606 = vld [vmem:[#allocation4 + $0x58] sm:$0xff]
        %v6607 = vld [vmem:[#allocation4 + $0x60] sm:$0xff]
        %v6608 = vld [vmem:[#allocation4 + $0x68] sm:$0xff]
        %v6609 = vld [vmem:[#allocation4 + $0x70] sm:$0xff]
        %v6610 = vld [vmem:[#allocation4 + $0x78] sm:$0xff]
        %v6611 = vrcp.pop %v6595
        %v6612 = vrcp.pop %v6596
        %v6613 = vrcp.pop %v6597
        %v6614 = vrcp.pop %v6598
        %v6615 = vrcp.pop %v6599
        %v6616 = vrcp.pop %v6600
        %v6617 = vrcp.pop %v6601
        %v6618 = vrcp.pop %v6602
        %v6619 = vrcp.pop %v6603
        %v6620 = vrcp.pop %v6604
        %v6621 = vrcp.pop %v6605
        %v6622 = vrcp.pop %v6606
        %v6623 = vrcp.pop %v6607
        %v6624 = vrcp.pop %v6608
        %v6625 = vrcp.pop %v6609
        %v6626 = vrcp.pop %v6610
        %6628 = vset.pattern.permute.xlu0 0
        %6629 = vperm.xlu0 %6628, %v6611
        %v6630 = vpop.permute.xlu0 %6629
        %6633 = vset.pattern.permute.xlu0 0
        %6634 = vperm.xlu0 %6633, %v6612
        %v6635 = vpop.permute.xlu0 %6634
        %6638 = vset.pattern.permute.xlu0 0
        %6639 = vperm.xlu0 %6638, %v6613
        %v6640 = vpop.permute.xlu0 %6639
        %6643 = vset.pattern.permute.xlu0 0
        %6644 = vperm.xlu0 %6643, %v6614
        %v6645 = vpop.permute.xlu0 %6644
        %6648 = vset.pattern.permute.xlu0 0
        %6649 = vperm.xlu0 %6648, %v6615
        %v6650 = vpop.permute.xlu0 %6649
        %6653 = vset.pattern.permute.xlu0 0
        %6654 = vperm.xlu0 %6653, %v6616
        %v6655 = vpop.permute.xlu0 %6654
        %6658 = vset.pattern.permute.xlu0 0
        %6659 = vperm.xlu0 %6658, %v6617
        %v6660 = vpop.permute.xlu0 %6659
        %6663 = vset.pattern.permute.xlu0 0
        %6664 = vperm.xlu0 %6663, %v6618
        %v6665 = vpop.permute.xlu0 %6664
        %6668 = vset.pattern.permute.xlu0 0
        %6669 = vperm.xlu0 %6668, %v6619
        %v6670 = vpop.permute.xlu0 %6669
        %6673 = vset.pattern.permute.xlu0 0
        %6674 = vperm.xlu0 %6673, %v6620
        %v6675 = vpop.permute.xlu0 %6674
        %6678 = vset.pattern.permute.xlu0 0
        %6679 = vperm.xlu0 %6678, %v6621
        %v6680 = vpop.permute.xlu0 %6679
        %6683 = vset.pattern.permute.xlu0 0
        %6684 = vperm.xlu0 %6683, %v6622
        %v6685 = vpop.permute.xlu0 %6684
        %6688 = vset.pattern.permute.xlu0 0
        %6689 = vperm.xlu0 %6688, %v6623
        %v6690 = vpop.permute.xlu0 %6689
        %6693 = vset.pattern.permute.xlu0 0
        %6694 = vperm.xlu0 %6693, %v6624
        %v6695 = vpop.permute.xlu0 %6694
        %6698 = vset.pattern.permute.xlu0 0
        %6699 = vperm.xlu0 %6698, %v6625
        %v6700 = vpop.permute.xlu0 %6699
        %6703 = vset.pattern.permute.xlu0 0
        %6704 = vperm.xlu0 %6703, %v6626
        %v6705 = vpop.permute.xlu0 %6704
        %v6707 = vmul.f32 %v6579, %v6630
        %v6708 = vmul.f32 %v6580, %v6635
        %v6709 = vmul.f32 %v6581, %v6640
        %v6710 = vmul.f32 %v6582, %v6645
        %v6711 = vmul.f32 %v6583, %v6650
        %v6712 = vmul.f32 %v6584, %v6655
        %v6713 = vmul.f32 %v6585, %v6660
        %v6714 = vmul.f32 %v6586, %v6665
        %v6715 = vmul.f32 %v6587, %v6670
        %v6716 = vmul.f32 %v6588, %v6675
        %v6717 = vmul.f32 %v6589, %v6680
        %v6718 = vmul.f32 %v6590, %v6685
        %v6719 = vmul.f32 %v6591, %v6690
        %v6720 = vmul.f32 %v6592, %v6695
        %v6721 = vmul.f32 %v6593, %v6700
        %v6722 = vmul.f32 %v6594, %v6705
        %6723 = vst.msk [vmem:[#allocation5] sm:$0xff] %vm3119, %v6707
        %6724 = vst.msk [vmem:[#allocation5 + $0x8] sm:$0xff] %vm3119, %v6708
        %6725 = vst.msk [vmem:[#allocation5 + $0x10] sm:$0xff] %vm3119, %v6709
        %6726 = vst.msk [vmem:[#allocation5 + $0x18] sm:$0xff] %vm3119, %v6710
        %6727 = vst.msk [vmem:[#allocation5 + $0x20] sm:$0xff] %vm3119, %v6711
        %6728 = vst.msk [vmem:[#allocation5 + $0x28] sm:$0xff] %vm3119, %v6712
        %6729 = vst.msk [vmem:[#allocation5 + $0x30] sm:$0xff] %vm3119, %v6713
        %6730 = vst.msk [vmem:[#allocation5 + $0x38] sm:$0xff] %vm3119, %v6714
        %6731 = vst.msk [vmem:[#allocation5 + $0x40] sm:$0xff] %vm3119, %v6715
        %6732 = vst.msk [vmem:[#allocation5 + $0x48] sm:$0xff] %vm3119, %v6716
        %6733 = vst.msk [vmem:[#allocation5 + $0x50] sm:$0xff] %vm3119, %v6717
        %6734 = vst.msk [vmem:[#allocation5 + $0x58] sm:$0xff] %vm3119, %v6718
        %6735 = vst.msk [vmem:[#allocation5 + $0x60] sm:$0xff] %vm3119, %v6719
        %6736 = vst.msk [vmem:[#allocation5 + $0x68] sm:$0xff] %vm3119, %v6720
        %6737 = vst.msk [vmem:[#allocation5 + $0x70] sm:$0xff] %vm3119, %v6721
        %6738 = vst.msk [vmem:[#allocation5 + $0x78] sm:$0xff] %vm3119, %v6722
        %v6739 = vld [vmem:[#allocation5] sm:$0xff]
        %v6740 = vld [vmem:[#allocation5 + $0x8] sm:$0xff]
        %v6741 = vld [vmem:[#allocation5 + $0x10] sm:$0xff]
        %v6742 = vld [vmem:[#allocation5 + $0x18] sm:$0xff]
        %v6743 = vld [vmem:[#allocation5 + $0x20] sm:$0xff]
        %v6744 = vld [vmem:[#allocation5 + $0x28] sm:$0xff]
        %v6745 = vld [vmem:[#allocation5 + $0x30] sm:$0xff]
        %v6746 = vld [vmem:[#allocation5 + $0x38] sm:$0xff]
        %v6747 = vld [vmem:[#allocation5 + $0x40] sm:$0xff]
        %v6748 = vld [vmem:[#allocation5 + $0x48] sm:$0xff]
        %v6749 = vld [vmem:[#allocation5 + $0x50] sm:$0xff]
        %v6750 = vld [vmem:[#allocation5 + $0x58] sm:$0xff]
        %v6751 = vld [vmem:[#allocation5 + $0x60] sm:$0xff]
        %v6752 = vld [vmem:[#allocation5 + $0x68] sm:$0xff]
        %v6753 = vld [vmem:[#allocation5 + $0x70] sm:$0xff]
        %v6754 = vld [vmem:[#allocation5 + $0x78] sm:$0xff]
        %v6755 = vld [vmem:[#allocation4] sm:$0xff]
        %v6756 = vld [vmem:[#allocation4 + $0x8] sm:$0xff]
        %v6757 = vld [vmem:[#allocation4 + $0x10] sm:$0xff]
        %v6758 = vld [vmem:[#allocation4 + $0x18] sm:$0xff]
        %v6759 = vld [vmem:[#allocation4 + $0x20] sm:$0xff]
        %v6760 = vld [vmem:[#allocation4 + $0x28] sm:$0xff]
        %v6761 = vld [vmem:[#allocation4 + $0x30] sm:$0xff]
        %v6762 = vld [vmem:[#allocation4 + $0x38] sm:$0xff]
        %v6763 = vld [vmem:[#allocation4 + $0x40] sm:$0xff]
        %v6764 = vld [vmem:[#allocation4 + $0x48] sm:$0xff]
        %v6765 = vld [vmem:[#allocation4 + $0x50] sm:$0xff]
        %v6766 = vld [vmem:[#allocation4 + $0x58] sm:$0xff]
        %v6767 = vld [vmem:[#allocation4 + $0x60] sm:$0xff]
        %v6768 = vld [vmem:[#allocation4 + $0x68] sm:$0xff]
        %v6769 = vld [vmem:[#allocation4 + $0x70] sm:$0xff]
        %v6770 = vld [vmem:[#allocation4 + $0x78] sm:$0xff]
        %v6771 = vrcp.pop %v6755
        %v6772 = vrcp.pop %v6756
        %v6773 = vrcp.pop %v6757
        %v6774 = vrcp.pop %v6758
        %v6775 = vrcp.pop %v6759
        %v6776 = vrcp.pop %v6760
        %v6777 = vrcp.pop %v6761
        %v6778 = vrcp.pop %v6762
        %v6779 = vrcp.pop %v6763
        %v6780 = vrcp.pop %v6764
        %v6781 = vrcp.pop %v6765
        %v6782 = vrcp.pop %v6766
        %v6783 = vrcp.pop %v6767
        %v6784 = vrcp.pop %v6768
        %v6785 = vrcp.pop %v6769
        %v6786 = vrcp.pop %v6770
        %6788 = vset.pattern.permute.xlu0 1
        %6789 = vperm.xlu0 %6788, %v6771
        %v6790 = vpop.permute.xlu0 %6789
        %6793 = vset.pattern.permute.xlu0 1
        %6794 = vperm.xlu0 %6793, %v6772
        %v6795 = vpop.permute.xlu0 %6794
        %6798 = vset.pattern.permute.xlu0 1
        %6799 = vperm.xlu0 %6798, %v6773
        %v6800 = vpop.permute.xlu0 %6799
        %6803 = vset.pattern.permute.xlu0 1
        %6804 = vperm.xlu0 %6803, %v6774
        %v6805 = vpop.permute.xlu0 %6804
        %6808 = vset.pattern.permute.xlu0 1
        %6809 = vperm.xlu0 %6808, %v6775
        %v6810 = vpop.permute.xlu0 %6809
        %6813 = vset.pattern.permute.xlu0 1
        %6814 = vperm.xlu0 %6813, %v6776
        %v6815 = vpop.permute.xlu0 %6814
        %6818 = vset.pattern.permute.xlu0 1
        %6819 = vperm.xlu0 %6818, %v6777
        %v6820 = vpop.permute.xlu0 %6819
        %6823 = vset.pattern.permute.xlu0 1
        %6824 = vperm.xlu0 %6823, %v6778
        %v6825 = vpop.permute.xlu0 %6824
        %6828 = vset.pattern.permute.xlu0 1
        %6829 = vperm.xlu0 %6828, %v6779
        %v6830 = vpop.permute.xlu0 %6829
        %6833 = vset.pattern.permute.xlu0 1
        %6834 = vperm.xlu0 %6833, %v6780
        %v6835 = vpop.permute.xlu0 %6834
        %6838 = vset.pattern.permute.xlu0 1
        %6839 = vperm.xlu0 %6838, %v6781
        %v6840 = vpop.permute.xlu0 %6839
        %6843 = vset.pattern.permute.xlu0 1
        %6844 = vperm.xlu0 %6843, %v6782
        %v6845 = vpop.permute.xlu0 %6844
        %6848 = vset.pattern.permute.xlu0 1
        %6849 = vperm.xlu0 %6848, %v6783
        %v6850 = vpop.permute.xlu0 %6849
        %6853 = vset.pattern.permute.xlu0 1
        %6854 = vperm.xlu0 %6853, %v6784
        %v6855 = vpop.permute.xlu0 %6854
        %6858 = vset.pattern.permute.xlu0 1
        %6859 = vperm.xlu0 %6858, %v6785
        %v6860 = vpop.permute.xlu0 %6859
        %6863 = vset.pattern.permute.xlu0 1
        %6864 = vperm.xlu0 %6863, %v6786
        %v6865 = vpop.permute.xlu0 %6864
        %v6867 = vmul.f32 %v6739, %v6790
        %v6868 = vmul.f32 %v6740, %v6795
        %v6869 = vmul.f32 %v6741, %v6800
        %v6870 = vmul.f32 %v6742, %v6805
        %v6871 = vmul.f32 %v6743, %v6810
        %v6872 = vmul.f32 %v6744, %v6815
        %v6873 = vmul.f32 %v6745, %v6820
        %v6874 = vmul.f32 %v6746, %v6825
        %v6875 = vmul.f32 %v6747, %v6830
        %v6876 = vmul.f32 %v6748, %v6835
        %v6877 = vmul.f32 %v6749, %v6840
        %v6878 = vmul.f32 %v6750, %v6845
        %v6879 = vmul.f32 %v6751, %v6850
        %v6880 = vmul.f32 %v6752, %v6855
        %v6881 = vmul.f32 %v6753, %v6860
        %v6882 = vmul.f32 %v6754, %v6865
        %6883 = vst.msk [vmem:[#allocation5] sm:$0xff] %vm4774, %v6867
        %6884 = vst.msk [vmem:[#allocation5 + $0x8] sm:$0xff] %vm4774, %v6868
        %6885 = vst.msk [vmem:[#allocation5 + $0x10] sm:$0xff] %vm4774, %v6869
        %6886 = vst.msk [vmem:[#allocation5 + $0x18] sm:$0xff] %vm4774, %v6870
        %6887 = vst.msk [vmem:[#allocation5 + $0x20] sm:$0xff] %vm4774, %v6871
        %6888 = vst.msk [vmem:[#allocation5 + $0x28] sm:$0xff] %vm4774, %v6872
        %6889 = vst.msk [vmem:[#allocation5 + $0x30] sm:$0xff] %vm4774, %v6873
        %6890 = vst.msk [vmem:[#allocation5 + $0x38] sm:$0xff] %vm4774, %v6874
        %6891 = vst.msk [vmem:[#allocation5 + $0x40] sm:$0xff] %vm4774, %v6875
        %6892 = vst.msk [vmem:[#allocation5 + $0x48] sm:$0xff] %vm4774, %v6876
        %6893 = vst.msk [vmem:[#allocation5 + $0x50] sm:$0xff] %vm4774, %v6877
        %6894 = vst.msk [vmem:[#allocation5 + $0x58] sm:$0xff] %vm4774, %v6878
        %6895 = vst.msk [vmem:[#allocation5 + $0x60] sm:$0xff] %vm4774, %v6879
        %6896 = vst.msk [vmem:[#allocation5 + $0x68] sm:$0xff] %vm4774, %v6880
        %6897 = vst.msk [vmem:[#allocation5 + $0x70] sm:$0xff] %vm4774, %v6881
        %6898 = vst.msk [vmem:[#allocation5 + $0x78] sm:$0xff] %vm4774, %v6882
        %v6899 = vld [vmem:[#allocation5] sm:$0xff]
        %v6900 = vld [vmem:[#allocation5 + $0x8] sm:$0xff]
        %v6901 = vld [vmem:[#allocation5 + $0x10] sm:$0xff]
        %v6902 = vld [vmem:[#allocation5 + $0x18] sm:$0xff]
        %v6903 = vld [vmem:[#allocation5 + $0x20] sm:$0xff]
        %v6904 = vld [vmem:[#allocation5 + $0x28] sm:$0xff]
        %v6905 = vld [vmem:[#allocation5 + $0x30] sm:$0xff]
        %v6906 = vld [vmem:[#allocation5 + $0x38] sm:$0xff]
        %v6907 = vld [vmem:[#allocation5 + $0x40] sm:$0xff]
        %v6908 = vld [vmem:[#allocation5 + $0x48] sm:$0xff]
        %v6909 = vld [vmem:[#allocation5 + $0x50] sm:$0xff]
        %v6910 = vld [vmem:[#allocation5 + $0x58] sm:$0xff]
        %v6911 = vld [vmem:[#allocation5 + $0x60] sm:$0xff]
        %v6912 = vld [vmem:[#allocation5 + $0x68] sm:$0xff]
        %v6913 = vld [vmem:[#allocation5 + $0x70] sm:$0xff]
        %v6914 = vld [vmem:[#allocation5 + $0x78] sm:$0xff]
        %v6915 = vld [vmem:[#allocation4] sm:$0xff]
        %v6916 = vld [vmem:[#allocation4 + $0x8] sm:$0xff]
        %v6917 = vld [vmem:[#allocation4 + $0x10] sm:$0xff]
        %v6918 = vld [vmem:[#allocation4 + $0x18] sm:$0xff]
        %v6919 = vld [vmem:[#allocation4 + $0x20] sm:$0xff]
        %v6920 = vld [vmem:[#allocation4 + $0x28] sm:$0xff]
        %v6921 = vld [vmem:[#allocation4 + $0x30] sm:$0xff]
        %v6922 = vld [vmem:[#allocation4 + $0x38] sm:$0xff]
        %v6923 = vld [vmem:[#allocation4 + $0x40] sm:$0xff]
        %v6924 = vld [vmem:[#allocation4 + $0x48] sm:$0xff]
        %v6925 = vld [vmem:[#allocation4 + $0x50] sm:$0xff]
        %v6926 = vld [vmem:[#allocation4 + $0x58] sm:$0xff]
        %v6927 = vld [vmem:[#allocation4 + $0x60] sm:$0xff]
        %v6928 = vld [vmem:[#allocation4 + $0x68] sm:$0xff]
        %v6929 = vld [vmem:[#allocation4 + $0x70] sm:$0xff]
        %v6930 = vld [vmem:[#allocation4 + $0x78] sm:$0xff]
        %v6931 = vrcp.pop %v6915
        %v6932 = vrcp.pop %v6916
        %v6933 = vrcp.pop %v6917
        %v6934 = vrcp.pop %v6918
        %v6935 = vrcp.pop %v6919
        %v6936 = vrcp.pop %v6920
        %v6937 = vrcp.pop %v6921
        %v6938 = vrcp.pop %v6922
        %v6939 = vrcp.pop %v6923
        %v6940 = vrcp.pop %v6924
        %v6941 = vrcp.pop %v6925
        %v6942 = vrcp.pop %v6926
        %v6943 = vrcp.pop %v6927
        %v6944 = vrcp.pop %v6928
        %v6945 = vrcp.pop %v6929
        %v6946 = vrcp.pop %v6930
        %6948 = vset.pattern.permute.xlu0 2
        %6949 = vperm.xlu0 %6948, %v6931
        %v6950 = vpop.permute.xlu0 %6949
        %6953 = vset.pattern.permute.xlu0 2
        %6954 = vperm.xlu0 %6953, %v6932
        %v6955 = vpop.permute.xlu0 %6954
        %6958 = vset.pattern.permute.xlu0 2
        %6959 = vperm.xlu0 %6958, %v6933
        %v6960 = vpop.permute.xlu0 %6959
        %6963 = vset.pattern.permute.xlu0 2
        %6964 = vperm.xlu0 %6963, %v6934
        %v6965 = vpop.permute.xlu0 %6964
        %6968 = vset.pattern.permute.xlu0 2
        %6969 = vperm.xlu0 %6968, %v6935
        %v6970 = vpop.permute.xlu0 %6969
        %6973 = vset.pattern.permute.xlu0 2
        %6974 = vperm.xlu0 %6973, %v6936
        %v6975 = vpop.permute.xlu0 %6974
        %6978 = vset.pattern.permute.xlu0 2
        %6979 = vperm.xlu0 %6978, %v6937
        %v6980 = vpop.permute.xlu0 %6979
        %6983 = vset.pattern.permute.xlu0 2
        %6984 = vperm.xlu0 %6983, %v6938
        %v6985 = vpop.permute.xlu0 %6984
        %6988 = vset.pattern.permute.xlu0 2
        %6989 = vperm.xlu0 %6988, %v6939
        %v6990 = vpop.permute.xlu0 %6989
        %6993 = vset.pattern.permute.xlu0 2
        %6994 = vperm.xlu0 %6993, %v6940
        %v6995 = vpop.permute.xlu0 %6994
        %6998 = vset.pattern.permute.xlu0 2
        %6999 = vperm.xlu0 %6998, %v6941
        %v7000 = vpop.permute.xlu0 %6999
        %7003 = vset.pattern.permute.xlu0 2
        %7004 = vperm.xlu0 %7003, %v6942
        %v7005 = vpop.permute.xlu0 %7004
        %7008 = vset.pattern.permute.xlu0 2
        %7009 = vperm.xlu0 %7008, %v6943
        %v7010 = vpop.permute.xlu0 %7009
        %7013 = vset.pattern.permute.xlu0 2
        %7014 = vperm.xlu0 %7013, %v6944
        %v7015 = vpop.permute.xlu0 %7014
        %7018 = vset.pattern.permute.xlu0 2
        %7019 = vperm.xlu0 %7018, %v6945
        %v7020 = vpop.permute.xlu0 %7019
        %7023 = vset.pattern.permute.xlu0 2
        %7024 = vperm.xlu0 %7023, %v6946
        %v7025 = vpop.permute.xlu0 %7024
        %v7027 = vmul.f32 %v6899, %v6950
        %v7028 = vmul.f32 %v6900, %v6955
        %v7029 = vmul.f32 %v6901, %v6960
        %v7030 = vmul.f32 %v6902, %v6965
        %v7031 = vmul.f32 %v6903, %v6970
        %v7032 = vmul.f32 %v6904, %v6975
        %v7033 = vmul.f32 %v6905, %v6980
        %v7034 = vmul.f32 %v6906, %v6985
        %v7035 = vmul.f32 %v6907, %v6990
        %v7036 = vmul.f32 %v6908, %v6995
        %v7037 = vmul.f32 %v6909, %v7000
        %v7038 = vmul.f32 %v6910, %v7005
        %v7039 = vmul.f32 %v6911, %v7010
        %v7040 = vmul.f32 %v6912, %v7015
        %v7041 = vmul.f32 %v6913, %v7020
        %v7042 = vmul.f32 %v6914, %v7025
        %7043 = vst.msk [vmem:[#allocation5] sm:$0xff] %vm5658, %v7027
        %7044 = vst.msk [vmem:[#allocation5 + $0x8] sm:$0xff] %vm5658, %v7028
        %7045 = vst.msk [vmem:[#allocation5 + $0x10] sm:$0xff] %vm5658, %v7029
        %7046 = vst.msk [vmem:[#allocation5 + $0x18] sm:$0xff] %vm5658, %v7030
        %7047 = vst.msk [vmem:[#allocation5 + $0x20] sm:$0xff] %vm5658, %v7031
        %7048 = vst.msk [vmem:[#allocation5 + $0x28] sm:$0xff] %vm5658, %v7032
        %7049 = vst.msk [vmem:[#allocation5 + $0x30] sm:$0xff] %vm5658, %v7033
        %7050 = vst.msk [vmem:[#allocation5 + $0x38] sm:$0xff] %vm5658, %v7034
        %7051 = vst.msk [vmem:[#allocation5 + $0x40] sm:$0xff] %vm5658, %v7035
        %7052 = vst.msk [vmem:[#allocation5 + $0x48] sm:$0xff] %vm5658, %v7036
        %7053 = vst.msk [vmem:[#allocation5 + $0x50] sm:$0xff] %vm5658, %v7037
        %7054 = vst.msk [vmem:[#allocation5 + $0x58] sm:$0xff] %vm5658, %v7038
        %7055 = vst.msk [vmem:[#allocation5 + $0x60] sm:$0xff] %vm5658, %v7039
        %7056 = vst.msk [vmem:[#allocation5 + $0x68] sm:$0xff] %vm5658, %v7040
        %7057 = vst.msk [vmem:[#allocation5 + $0x70] sm:$0xff] %vm5658, %v7041
        %7058 = vst.msk [vmem:[#allocation5 + $0x78] sm:$0xff] %vm5658, %v7042
        %v7059 = vld [vmem:[#allocation5] sm:$0xff]
        %v7060 = vld [vmem:[#allocation5 + $0x8] sm:$0xff]
        %v7061 = vld [vmem:[#allocation5 + $0x10] sm:$0xff]
        %v7062 = vld [vmem:[#allocation5 + $0x18] sm:$0xff]
        %v7063 = vld [vmem:[#allocation5 + $0x20] sm:$0xff]
        %v7064 = vld [vmem:[#allocation5 + $0x28] sm:$0xff]
        %v7065 = vld [vmem:[#allocation5 + $0x30] sm:$0xff]
        %v7066 = vld [vmem:[#allocation5 + $0x38] sm:$0xff]
        %v7067 = vld [vmem:[#allocation5 + $0x40] sm:$0xff]
        %v7068 = vld [vmem:[#allocation5 + $0x48] sm:$0xff]
        %v7069 = vld [vmem:[#allocation5 + $0x50] sm:$0xff]
        %v7070 = vld [vmem:[#allocation5 + $0x58] sm:$0xff]
        %v7071 = vld [vmem:[#allocation5 + $0x60] sm:$0xff]
        %v7072 = vld [vmem:[#allocation5 + $0x68] sm:$0xff]
        %v7073 = vld [vmem:[#allocation5 + $0x70] sm:$0xff]
        %v7074 = vld [vmem:[#allocation5 + $0x78] sm:$0xff]
        %v7075 = vld [vmem:[#allocation4] sm:$0xff]
        %v7076 = vld [vmem:[#allocation4 + $0x8] sm:$0xff]
        %v7077 = vld [vmem:[#allocation4 + $0x10] sm:$0xff]
        %v7078 = vld [vmem:[#allocation4 + $0x18] sm:$0xff]
        %v7079 = vld [vmem:[#allocation4 + $0x20] sm:$0xff]
        %v7080 = vld [vmem:[#allocation4 + $0x28] sm:$0xff]
        %v7081 = vld [vmem:[#allocation4 + $0x30] sm:$0xff]
        %v7082 = vld [vmem:[#allocation4 + $0x38] sm:$0xff]
        %v7083 = vld [vmem:[#allocation4 + $0x40] sm:$0xff]
        %v7084 = vld [vmem:[#allocation4 + $0x48] sm:$0xff]
        %v7085 = vld [vmem:[#allocation4 + $0x50] sm:$0xff]
        %v7086 = vld [vmem:[#allocation4 + $0x58] sm:$0xff]
        %v7087 = vld [vmem:[#allocation4 + $0x60] sm:$0xff]
        %v7088 = vld [vmem:[#allocation4 + $0x68] sm:$0xff]
        %v7089 = vld [vmem:[#allocation4 + $0x70] sm:$0xff]
        %v7090 = vld [vmem:[#allocation4 + $0x78] sm:$0xff]
        %v7091 = vrcp.pop %v7075
        %v7092 = vrcp.pop %v7076
        %v7093 = vrcp.pop %v7077
        %v7094 = vrcp.pop %v7078
        %v7095 = vrcp.pop %v7079
        %v7096 = vrcp.pop %v7080
        %v7097 = vrcp.pop %v7081
        %v7098 = vrcp.pop %v7082
        %v7099 = vrcp.pop %v7083
        %v7100 = vrcp.pop %v7084
        %v7101 = vrcp.pop %v7085
        %v7102 = vrcp.pop %v7086
        %v7103 = vrcp.pop %v7087
        %v7104 = vrcp.pop %v7088
        %v7105 = vrcp.pop %v7089
        %v7106 = vrcp.pop %v7090
        %7108 = vset.pattern.permute.xlu0 3
        %7109 = vperm.xlu0 %7108, %v7091
        %v7110 = vpop.permute.xlu0 %7109
        %7113 = vset.pattern.permute.xlu0 3
        %7114 = vperm.xlu0 %7113, %v7092
        %v7115 = vpop.permute.xlu0 %7114
        %7118 = vset.pattern.permute.xlu0 3
        %7119 = vperm.xlu0 %7118, %v7093
        %v7120 = vpop.permute.xlu0 %7119
        %7123 = vset.pattern.permute.xlu0 3
        %7124 = vperm.xlu0 %7123, %v7094
        %v7125 = vpop.permute.xlu0 %7124
        %7128 = vset.pattern.permute.xlu0 3
        %7129 = vperm.xlu0 %7128, %v7095
        %v7130 = vpop.permute.xlu0 %7129
        %7133 = vset.pattern.permute.xlu0 3
        %7134 = vperm.xlu0 %7133, %v7096
        %v7135 = vpop.permute.xlu0 %7134
        %7138 = vset.pattern.permute.xlu0 3
        %7139 = vperm.xlu0 %7138, %v7097
        %v7140 = vpop.permute.xlu0 %7139
        %7143 = vset.pattern.permute.xlu0 3
        %7144 = vperm.xlu0 %7143, %v7098
        %v7145 = vpop.permute.xlu0 %7144
        %7148 = vset.pattern.permute.xlu0 3
        %7149 = vperm.xlu0 %7148, %v7099
        %v7150 = vpop.permute.xlu0 %7149
        %7153 = vset.pattern.permute.xlu0 3
        %7154 = vperm.xlu0 %7153, %v7100
        %v7155 = vpop.permute.xlu0 %7154
        %7158 = vset.pattern.permute.xlu0 3
        %7159 = vperm.xlu0 %7158, %v7101
        %v7160 = vpop.permute.xlu0 %7159
        %7163 = vset.pattern.permute.xlu0 3
        %7164 = vperm.xlu0 %7163, %v7102
        %v7165 = vpop.permute.xlu0 %7164
        %7168 = vset.pattern.permute.xlu0 3
        %7169 = vperm.xlu0 %7168, %v7103
        %v7170 = vpop.permute.xlu0 %7169
        %7173 = vset.pattern.permute.xlu0 3
        %7174 = vperm.xlu0 %7173, %v7104
        %v7175 = vpop.permute.xlu0 %7174
        %7178 = vset.pattern.permute.xlu0 3
        %7179 = vperm.xlu0 %7178, %v7105
        %v7180 = vpop.permute.xlu0 %7179
        %7183 = vset.pattern.permute.xlu0 3
        %7184 = vperm.xlu0 %7183, %v7106
        %v7185 = vpop.permute.xlu0 %7184
        %v7187 = vmul.f32 %v7059, %v7110
        %v7188 = vmul.f32 %v7060, %v7115
        %v7189 = vmul.f32 %v7061, %v7120
        %v7190 = vmul.f32 %v7062, %v7125
        %v7191 = vmul.f32 %v7063, %v7130
        %v7192 = vmul.f32 %v7064, %v7135
        %v7193 = vmul.f32 %v7065, %v7140
        %v7194 = vmul.f32 %v7066, %v7145
        %v7195 = vmul.f32 %v7067, %v7150
        %v7196 = vmul.f32 %v7068, %v7155
        %v7197 = vmul.f32 %v7069, %v7160
        %v7198 = vmul.f32 %v7070, %v7165
        %v7199 = vmul.f32 %v7071, %v7170
        %v7200 = vmul.f32 %v7072, %v7175
        %v7201 = vmul.f32 %v7073, %v7180
        %v7202 = vmul.f32 %v7074, %v7185
        %7203 = vst.msk [vmem:[#allocation5] sm:$0xff] %vm6542, %v7187
        %7204 = vst.msk [vmem:[#allocation5 + $0x8] sm:$0xff] %vm6542, %v7188
        %7205 = vst.msk [vmem:[#allocation5 + $0x10] sm:$0xff] %vm6542, %v7189
        %7206 = vst.msk [vmem:[#allocation5 + $0x18] sm:$0xff] %vm6542, %v7190
        %7207 = vst.msk [vmem:[#allocation5 + $0x20] sm:$0xff] %vm6542, %v7191
        %7208 = vst.msk [vmem:[#allocation5 + $0x28] sm:$0xff] %vm6542, %v7192
        %7209 = vst.msk [vmem:[#allocation5 + $0x30] sm:$0xff] %vm6542, %v7193
        %7210 = vst.msk [vmem:[#allocation5 + $0x38] sm:$0xff] %vm6542, %v7194
        %7211 = vst.msk [vmem:[#allocation5 + $0x40] sm:$0xff] %vm6542, %v7195
        %7212 = vst.msk [vmem:[#allocation5 + $0x48] sm:$0xff] %vm6542, %v7196
        %7213 = vst.msk [vmem:[#allocation5 + $0x50] sm:$0xff] %vm6542, %v7197
        %7214 = vst.msk [vmem:[#allocation5 + $0x58] sm:$0xff] %vm6542, %v7198
        %7215 = vst.msk [vmem:[#allocation5 + $0x60] sm:$0xff] %vm6542, %v7199
        %7216 = vst.msk [vmem:[#allocation5 + $0x68] sm:$0xff] %vm6542, %v7200
        %7217 = vst.msk [vmem:[#allocation5 + $0x70] sm:$0xff] %vm6542, %v7201
        %7218 = vst.msk [vmem:[#allocation5 + $0x78] sm:$0xff] %vm6542, %v7202
        %v7219 = vld [vmem:[#allocation5] sm:$0xff]
        %v7220 = vld [vmem:[#allocation5 + $0x8] sm:$0xff]
        %v7221 = vld [vmem:[#allocation5 + $0x10] sm:$0xff]
        %v7222 = vld [vmem:[#allocation5 + $0x18] sm:$0xff]
        %v7223 = vld [vmem:[#allocation5 + $0x20] sm:$0xff]
        %v7224 = vld [vmem:[#allocation5 + $0x28] sm:$0xff]
        %v7225 = vld [vmem:[#allocation5 + $0x30] sm:$0xff]
        %v7226 = vld [vmem:[#allocation5 + $0x38] sm:$0xff]
        %v7227 = vld [vmem:[#allocation5 + $0x40] sm:$0xff]
        %v7228 = vld [vmem:[#allocation5 + $0x48] sm:$0xff]
        %v7229 = vld [vmem:[#allocation5 + $0x50] sm:$0xff]
        %v7230 = vld [vmem:[#allocation5 + $0x58] sm:$0xff]
        %v7231 = vld [vmem:[#allocation5 + $0x60] sm:$0xff]
        %v7232 = vld [vmem:[#allocation5 + $0x68] sm:$0xff]
        %v7233 = vld [vmem:[#allocation5 + $0x70] sm:$0xff]
        %v7234 = vld [vmem:[#allocation5 + $0x78] sm:$0xff]
        %v7235 = vpack.c.bf16 %v7220, %v7219
        %v7236 = vpack.c.bf16 %v7222, %v7221
        %v7237 = vpack.c.bf16 %v7224, %v7223
        %v7238 = vpack.c.bf16 %v7226, %v7225
        %v7239 = vpack.c.bf16 %v7228, %v7227
        %v7240 = vpack.c.bf16 %v7230, %v7229
        %v7241 = vpack.c.bf16 %v7232, %v7231
        %v7242 = vpack.c.bf16 %v7234, %v7233
        %v7243 = vld [vmem:[%s16] sm:$0xf]
        %v7244 = vld [vmem:[%s16 + $0x4] sm:$0xf]
        %v7245 = vld [vmem:[%s16 + $0x8] sm:$0xf]
        %v7246 = vld [vmem:[%s16 + $0xc] sm:$0xf]
        %v7251 = vunpack.c.l.b16 %v7243
        %v7252 = vunpack.c.l.b16 %v7244
        %v7253 = vunpack.c.l.b16 %v7245
        %v7254 = vunpack.c.l.b16 %v7246
        %v7255 = vpack.c.b16 %v7252, %v7251
        %v7256 = vpack.c.b16 %v7254, %v7253
        %v7260 = vsel %vm1967, %v7235, 0
        %v7263 = vsel %vm1967, %v7236, 0
        %v7266 = vsel %vm1967, %v7237, 0
        %v7269 = vsel %vm1967, %v7238, 0
        %v7272 = vsel %vm1967, %v7239, 0
        %v7275 = vsel %vm1967, %v7240, 0
        %v7278 = vsel %vm1967, %v7241, 0
        %v7281 = vsel %vm1967, %v7242, 0
        %7283 = vmatprep.subr.bf16.mxu0 0
        %7284 = vmatpush1.bf16.msra.mxu0 0
        %7285 = vmatprep.subr.bf16.mxu0 0
        %7286 = vmatpush1.bf16.msra.mxu0 0
        %7287 = vmatprep.subr.bf16.mxu0 0
        %7288 = vmatpush1.bf16.msra.mxu0 0
        %7289 = vmatprep.subr.bf16.mxu0 0
        %7290 = vmatpush1.bf16.msra.mxu0 0
        %7291 = vmatprep.subr.bf16.mxu0 0
        %7292 = vmatpush1.bf16.msra.mxu0 0
        %7293 = vmatprep.subr.bf16.mxu0 0
        %7294 = vmatpush1.bf16.msra.mxu0 0
        %7295 = vmatprep.subr.bf16.mxu0 0
        %7296 = vmatpush1.bf16.msra.mxu0 %v7256
        %7297 = vmatprep.subr.bf16.mxu0 0
        %7298 = vmatpush1.bf16.msra.mxu0 %v7255
        %7299 = vmatprep.subr.bf16.mxu0 0
        %7300 = vmatpush2.bf16.msra.mxu0 0
        %7301 = vmatprep.subr.bf16.mxu0 0
        %7302 = vmatpush2.bf16.msra.mxu0 0
        %7303 = vmatprep.subr.bf16.mxu0 0
        %7304 = vmatpush2.bf16.msra.mxu0 0
        %7305 = vmatprep.subr.bf16.mxu0 0
        %7306 = vmatpush2.bf16.msra.mxu0 0
        %7307 = vmatprep.subr.bf16.mxu0 0
        %7308 = vmatpush2.bf16.msra.mxu0 0
        %7309 = vmatprep.subr.bf16.mxu0 0
        %7310 = vmatpush2.bf16.msra.mxu0 0
        %7311 = vmatprep.subr.bf16.mxu0 0
        %7312 = vmatpush2.bf16.msra.mxu0 0
        %7313 = vmatprep.subr.bf16.mxu0 0
        %7314 = vmatpush2.bf16.msra.mxu0 0
        %7315 = vmatprep.mubr.bf16.mxu0 0
        %7316 = vmatmul.mubr.bf16.gmra.mxu0 %v7260
        %v7317 = vpop.f32.mrf.mxu0
        %v7318 = vadd.f32 0.0, %v7317
        %v7319 = vpop.f32.mrf.mxu0
        %v7320 = vpop.f32.mrf.mxu0
        %v7321 = vadd.f32 0.0, %v7320
        %v7322 = vpop.f32.mrf.mxu0
        %7323 = vmatprep.mubr.bf16.mxu0 0
        %7324 = vmatmul.mubr.bf16.gmra.mxu0 %v7263
        %v7325 = vpop.f32.mrf.mxu0
        %v7326 = vadd.f32 0.0, %v7325
        %v7327 = vpop.f32.mrf.mxu0
        %v7328 = vpop.f32.mrf.mxu0
        %v7329 = vadd.f32 0.0, %v7328
        %v7330 = vpop.f32.mrf.mxu0
        %7331 = vmatprep.mubr.bf16.mxu0 0
        %7332 = vmatmul.mubr.bf16.gmra.mxu0 %v7266
        %v7333 = vpop.f32.mrf.mxu0
        %v7334 = vadd.f32 0.0, %v7333
        %v7335 = vpop.f32.mrf.mxu0
        %v7336 = vpop.f32.mrf.mxu0
        %v7337 = vadd.f32 0.0, %v7336
        %v7338 = vpop.f32.mrf.mxu0
        %7339 = vmatprep.mubr.bf16.mxu0 0
        %7340 = vmatmul.mubr.bf16.gmra.mxu0 %v7269
        %v7341 = vpop.f32.mrf.mxu0
        %v7342 = vadd.f32 0.0, %v7341
        %v7343 = vpop.f32.mrf.mxu0
        %v7344 = vpop.f32.mrf.mxu0
        %v7345 = vadd.f32 0.0, %v7344
        %v7346 = vpop.f32.mrf.mxu0
        %7347 = vmatprep.mubr.bf16.mxu0 0
        %7348 = vmatmul.mubr.bf16.gmra.mxu0 %v7272
        %v7349 = vpop.f32.mrf.mxu0
        %v7350 = vadd.f32 0.0, %v7349
        %v7351 = vpop.f32.mrf.mxu0
        %v7352 = vpop.f32.mrf.mxu0
        %v7353 = vadd.f32 0.0, %v7352
        %v7354 = vpop.f32.mrf.mxu0
        %7355 = vmatprep.mubr.bf16.mxu0 0
        %7356 = vmatmul.mubr.bf16.gmra.mxu0 %v7275
        %v7357 = vpop.f32.mrf.mxu0
        %v7358 = vadd.f32 0.0, %v7357
        %v7359 = vpop.f32.mrf.mxu0
        %v7360 = vpop.f32.mrf.mxu0
        %v7361 = vadd.f32 0.0, %v7360
        %v7362 = vpop.f32.mrf.mxu0
        %7363 = vmatprep.mubr.bf16.mxu0 0
        %7364 = vmatmul.mubr.bf16.gmra.mxu0 %v7278
        %v7365 = vpop.f32.mrf.mxu0
        %v7366 = vadd.f32 0.0, %v7365
        %v7367 = vpop.f32.mrf.mxu0
        %v7368 = vpop.f32.mrf.mxu0
        %v7369 = vadd.f32 0.0, %v7368
        %v7370 = vpop.f32.mrf.mxu0
        %7371 = vmatprep.mubr.bf16.mxu0 0
        %7372 = vmatmul.mubr.bf16.gmra.mxu0 %v7281
        %v7373 = vpop.f32.mrf.mxu0
        %v7374 = vadd.f32 0.0, %v7373
        %v7375 = vpop.f32.mrf.mxu0
        %v7376 = vpop.f32.mrf.mxu0
        %v7377 = vadd.f32 0.0, %v7376
        %v7378 = vpop.f32.mrf.mxu0
        %7379 = vdwg.mxu0
        %v7380 = vpack.c.bf16 %v7321, %v7318
        %v7381 = vpack.c.bf16 %v7329, %v7326
        %v7382 = vpack.c.bf16 %v7337, %v7334
        %v7383 = vpack.c.bf16 %v7345, %v7342
        %v7384 = vpack.c.bf16 %v7353, %v7350
        %v7385 = vpack.c.bf16 %v7361, %v7358
        %v7386 = vpack.c.bf16 %v7369, %v7366
        %v7387 = vpack.c.bf16 %v7377, %v7374
        %v7396 = vunpack.c.l.b16 %v7380
        %v7397 = vunpack.c.h.b16 %v7380
        %v7398 = vunpack.c.l.b16 %v7381
        %v7399 = vunpack.c.h.b16 %v7381
        %v7400 = vunpack.c.l.b16 %v7382
        %v7401 = vunpack.c.h.b16 %v7382
        %v7402 = vunpack.c.l.b16 %v7383
        %v7403 = vunpack.c.h.b16 %v7383
        %v7404 = vunpack.c.l.b16 %v7384
        %v7405 = vunpack.c.h.b16 %v7384
        %v7406 = vunpack.c.l.b16 %v7385
        %v7407 = vunpack.c.h.b16 %v7385
        %v7408 = vunpack.c.l.b16 %v7386
        %v7409 = vunpack.c.h.b16 %v7386
        %v7410 = vunpack.c.l.b16 %v7387
        %v7411 = vunpack.c.h.b16 %v7387
        %v7412 = vpack.c.b16 %v7396, %v7396
        %v7413 = vpack.c.b16 %v7397, %v7397
        %v7414 = vpack.c.b16 %v7398, %v7398
        %v7415 = vpack.c.b16 %v7399, %v7399
        %v7416 = vpack.c.b16 %v7400, %v7400
        %v7417 = vpack.c.b16 %v7401, %v7401
        %v7418 = vpack.c.b16 %v7402, %v7402
        %v7419 = vpack.c.b16 %v7403, %v7403
        %v7420 = vpack.c.b16 %v7404, %v7404
        %v7421 = vpack.c.b16 %v7405, %v7405
        %v7422 = vpack.c.b16 %v7406, %v7406
        %v7423 = vpack.c.b16 %v7407, %v7407
        %v7424 = vpack.c.b16 %v7408, %v7408
        %v7425 = vpack.c.b16 %v7409, %v7409
        %v7426 = vpack.c.b16 %v7410, %v7410
        %v7427 = vpack.c.b16 %v7411, %v7411
        %vm7444 = vcmask 257024
        %7445 = vst.msk [vmem:[%s752] sm:$0xf] %vm7444, %v7412
        %7446 = vst.msk [vmem:[%s752 + $0x4] sm:$0xf] %vm7444, %v7413
        %7447 = vst.msk [vmem:[%s752 + $0x8] sm:$0xf] %vm7444, %v7414
        %7448 = vst.msk [vmem:[%s752 + $0xc] sm:$0xf] %vm7444, %v7415
        %7449 = vst.msk [vmem:[%s752 + $0x10] sm:$0xf] %vm7444, %v7416
        %7450 = vst.msk [vmem:[%s752 + $0x14] sm:$0xf] %vm7444, %v7417
        %7451 = vst.msk [vmem:[%s752 + $0x18] sm:$0xf] %vm7444, %v7418
        %7452 = vst.msk [vmem:[%s752 + $0x1c] sm:$0xf] %vm7444, %v7419
        %7453 = vst.msk [vmem:[%s752 + $0x20] sm:$0xf] %vm7444, %v7420
        %7454 = vst.msk [vmem:[%s752 + $0x24] sm:$0xf] %vm7444, %v7421
        %7455 = vst.msk [vmem:[%s752 + $0x28] sm:$0xf] %vm7444, %v7422
        %7456 = vst.msk [vmem:[%s752 + $0x2c] sm:$0xf] %vm7444, %v7423
        %7457 = vst.msk [vmem:[%s752 + $0x30] sm:$0xf] %vm7444, %v7424
        %7458 = vst.msk [vmem:[%s752 + $0x34] sm:$0xf] %vm7444, %v7425
        %7459 = vst.msk [vmem:[%s752 + $0x38] sm:$0xf] %vm7444, %v7426
        %7460 = vst.msk [vmem:[%s752 + $0x3c] sm:$0xf] %vm7444, %v7427
      $region96: #{tpu_custom_call.1} parent=87 // pred_fallthru
        _
      %s7461 = smul.u32 16, %s32
      %p7462 = scmp.lt.s32.totalorder %s7461, 31
      %s7463 = scalar_select %p7462, %s7461, 31
      %s7464 = smul.addr %s7463, 4
      %s7465 = scalar_lea.vmem %s17, %s7464
      // Predicated region
      $region97: #{tpu_custom_call.1} parent=87 // pred_check
        %p7466 = pneg %p465
      $region98: #{tpu_custom_call.1} parent=87 // pred_check_branch
        %7468 = sbr.rel (%p7466) target = $region100
      $region99: #{tpu_custom_call.1} parent=87 // pred_region
        %s7469 = smul.u32 16, %s32
      $region100: #{tpu_custom_call.1} parent=87 // pred_fallthru
        _
    $region88: #{tpu_custom_call.1} parent=5 // pred_fallthru
      _
    %p7470 = scmp.le.s32.totalorder 2, %s23
    // Predicated region
    $region101: #{tpu_custom_call.1} parent=5 // pred_check
      %p7471 = pneg %p7470
    $region102: #{tpu_custom_call.1} parent=5 // pred_check_branch
      %7473 = sbr.rel (%p7471) target = $region104
    $region103: #{tpu_custom_call.1} parent=5 // pred_region
      %s7474 = ssub.s32 %s23, 2
      // Predicated region
      $region105: #{tpu_custom_call.1} parent=103 // pred_check
        %p7475 = pneg %p471
      $region106: #{tpu_custom_call.1} parent=103 // pred_check_branch
        %7477 = sbr.rel (%p7475) target = $region108
      $region107: #{tpu_custom_call.1} parent=103 // pred_region
        %s7478 = smul.u32 16, %s34
        %p7479 = scmp.lt.s32.totalorder %s7478, 31
        %s7480 = scalar_select %p7479, %s7478, 31
        %s7481 = smul.addr %s7480, 4
        %s7482 = scalar_lea.vmem %s17, %s7481
      $region108: #{tpu_custom_call.1} parent=103 // pred_fallthru
        _
    $region104: #{tpu_custom_call.1} parent=5 // pred_fallthru
      _
  $region6: #{tpu_custom_call.1} parent=0 // loop_footer
    %s27 = sadd.s32 1, %s23
  $region7: #{tpu_custom_call.1} parent=0 // loop_footer_branch
    %22 = sbr.rel target = $region3
  $region8: #{tpu_custom_call.1} parent=0 // loop_exit
    _

</llo_original>
